<compile_context>
chip_gen: v7x
topology: tpu7x:2x2x1
jax: 0.10.0
libtpu: 0.0.40
codegen_flags: <defaults>
</compile_context>

<pallas_src>
import functools

import jax
import jax.numpy as jnp
import numpy as np
from jax.experimental import pallas as pl
from jax.experimental.pallas import tpu as pltpu

EPS = 1e-5
LANE = 128
VMEM_LIMIT = 32 * 1024 * 1024  # explicit scoped-VMEM limit (safe on v5e/v6e/v7x)


def _round_up(x, m):
    return (x + m - 1) // m * m


def _pad_rows(x, rows):
    r = x.shape[0]
    return x if r == rows else jnp.pad(x, ((0, rows - r), (0, 0)))


# ---------------------------------------------------------------------------
# Tiled, pipelined matmul (used for the 1x1 convolutions)
# ---------------------------------------------------------------------------
def _matmul_kernel(a_ref, b_ref, o_ref, acc_ref):
    @pl.when(pl.program_id(2) == 0)
    def _init():
        acc_ref[...] = jnp.zeros_like(acc_ref)

    acc_ref[...] += jnp.dot(a_ref[...], b_ref[...],
                            preferred_element_type=jnp.float32)

    @pl.when(pl.program_id(2) == pl.num_programs(2) - 1)
    def _done():
        o_ref[...] = acc_ref[...].astype(o_ref.dtype)


def pallas_matmul(a, b):
    """(M, K) x (K, N) -> (M, N) f32.  K, N must be multiples of 128 (the
    callers keep channels lane-padded); operands are cast to bf16, f32 acc."""
    M, K = a.shape
    K2, N = b.shape
    assert K == K2 and K % LANE == 0 and N % LANE == 0
    tk = 256 if K % 256 == 0 else 128
    tn = 256 if N % 256 == 0 else 128
    tm = min(256, _round_up(M, 8))
    Mp = _round_up(M, tm)

    a_p = _pad_rows(a, Mp).astype(jnp.bfloat16)
    b_p = b.astype(jnp.bfloat16)

    out = pl.pallas_call(
        _matmul_kernel,
        out_shape=jax.ShapeDtypeStruct((Mp, N), jnp.float32),
        grid=(Mp // tm, N // tn, K // tk),
        in_specs=[pl.BlockSpec((tm, tk), lambda i, j, k: (i, k)),
                  pl.BlockSpec((tk, tn), lambda i, j, k: (k, j))],
        out_specs=pl.BlockSpec((tm, tn), lambda i, j, k: (i, j)),
        scratch_shapes=[pltpu.VMEM((tm, tn), jnp.float32)],
        compiler_params=pltpu.CompilerParams(
            dimension_semantics=("parallel", "parallel", "arbitrary"),
            vmem_limit_bytes=VMEM_LIMIT),
    )(a_p, b_p)
    return out[:M] if Mp != M else out


# ---------------------------------------------------------------------------
# 3x3 conv: in-kernel 9-tap accumulation (no materialized im2col)
# ---------------------------------------------------------------------------
def _conv3x3_kernel(x_ref, w_ref, o_ref, *, stride, ho, wo, cin_p):
    tn = o_ref.shape[-1]
    acc = jnp.zeros((ho * wo, tn), jnp.float32)
    for t in range(9):                        # static unroll over the 9 taps
        ky, kx = t // 3, t % 3
        if stride == 1:
            patch = x_ref[pl.ds(ky, ho), pl.ds(kx, wo), :]
        else:
            patch = x_ref[pl.ds(ky, ho, stride), pl.ds(kx, wo, stride), :]
        acc = acc + jnp.dot(patch.reshape(ho * wo, cin_p),
                            w_ref[pl.ds(t * cin_p, cin_p), :],
                            preferred_element_type=jnp.float32)
    o_ref[...] = acc.reshape(ho, wo, tn)


def pallas_conv3x3(x_nhwc_p, w_mat, stride):
    """x_nhwc_p: (N, H, W, Cin_p) bf16 (channels lane-padded).
    w_mat: (9*Cin_p, Cout_p) bf16 laid out as (ky, kx, cin) x cout.
    Returns the (N*Ho*Wo, Cout_p) f32 slab of the padding-1 3x3 conv."""
    n, h, w, cin_p = x_nhwc_p.shape
    cout_p = w_mat.shape[1]
    ho = (h + 2 - 3) // stride + 1
    wo = (w + 2 - 3) // stride + 1
    hp, wp = h + 2, w + 2
    xp = jnp.pad(x_nhwc_p, ((0, 0), (1, 1), (1, 1), (0, 0)))
    tn = 256 if cout_p % 256 == 0 else 128
    kern = functools.partial(_conv3x3_kernel, stride=stride,
                             ho=ho, wo=wo, cin_p=cin_p)
    out = pl.pallas_call(
        kern,
        out_shape=jax.ShapeDtypeStruct((n, ho, wo, cout_p), jnp.float32),
        grid=(n, cout_p // tn),
        in_specs=[pl.BlockSpec((None, hp, wp, cin_p), lambda b, j: (b, 0, 0, 0)),
                  pl.BlockSpec((9 * cin_p, tn), lambda b, j: (0, j))],
        out_specs=pl.BlockSpec((None, ho, wo, tn), lambda b, j: (b, 0, 0, j)),
        compiler_params=pltpu.CompilerParams(
            dimension_semantics=("parallel", "parallel"),
            vmem_limit_bytes=VMEM_LIMIT),
    )(xp, w_mat)
    return out.reshape(n * ho * wo, cout_p)


# ---------------------------------------------------------------------------
# BatchNorm: tiled sum/sumsq reduction + fused scale/shift(+residual)(+ReLU)
# ---------------------------------------------------------------------------
def _bn_stats_kernel(x_ref, s_ref, ss_ref):
    @pl.when(pl.program_id(0) == 0)
    def _init():
        s_ref[...] = jnp.zeros_like(s_ref)
        ss_ref[...] = jnp.zeros_like(ss_ref)

    x = x_ref[...]
    s_ref[...] += jnp.sum(x, axis=0, keepdims=True)
    ss_ref[...] += jnp.sum(x * x, axis=0, keepdims=True)


def pallas_bn_stats(x2d):
    """Per-channel (sum, sumsq) of an (M, Cp) f32 slab, tiled over M."""
    M, Cp = x2d.shape
    tm = min(1024, _round_up(M, 8))
    Mp = _round_up(M, tm)
    x_p = _pad_rows(x2d, Mp)          # zero rows do not perturb sum / sumsq
    return pl.pallas_call(
        _bn_stats_kernel,
        out_shape=(jax.ShapeDtypeStruct((1, Cp), jnp.float32),
                   jax.ShapeDtypeStruct((1, Cp), jnp.float32)),
        grid=(Mp // tm,),
        in_specs=[pl.BlockSpec((tm, Cp), lambda i: (i, 0))],
        out_specs=(pl.BlockSpec((1, Cp), lambda i: (0, 0)),
                   pl.BlockSpec((1, Cp), lambda i: (0, 0))),
        compiler_params=pltpu.CompilerParams(
            dimension_semantics=("arbitrary",),
            vmem_limit_bytes=VMEM_LIMIT),
    )(x_p)


def _scale_shift_kernel(x_ref, sc_ref, sh_ref, o_ref, *, relu):
    y = x_ref[...] * sc_ref[...] + sh_ref[...]
    if relu:
        y = jnp.maximum(y, 0.0)
    o_ref[...] = y.astype(o_ref.dtype)


def _scale_shift_res_kernel(x_ref, sc_ref, sh_ref, r_ref, o_ref, *, relu):
    y = x_ref[...] * sc_ref[...] + sh_ref[...] + r_ref[...]
    if relu:
        y = jnp.maximum(y, 0.0)
    o_ref[...] = y.astype(o_ref.dtype)


def pallas_bn_apply(x2d, scale, shift, *, relu, residual=None,
                    out_dtype=jnp.float32):
    """Fused y = x*scale + shift (+ residual) (ReLU), tiled over rows."""
    M, Cp = x2d.shape
    tm = min(1024, _round_up(M, 8))
    Mp = _round_up(M, tm)
    args = [_pad_rows(x2d, Mp), scale.reshape(1, Cp), shift.reshape(1, Cp)]
    in_specs = [pl.BlockSpec((tm, Cp), lambda i: (i, 0)),
                pl.BlockSpec((1, Cp), lambda i: (0, 0)),
                pl.BlockSpec((1, Cp), lambda i: (0, 0))]
    if residual is None:
        kern = functools.partial(_scale_shift_kernel, relu=relu)
    else:
        kern = functools.partial(_scale_shift_res_kernel, relu=relu)
        args.append(_pad_rows(residual.astype(jnp.float32), Mp))
        in_specs.append(pl.BlockSpec((tm, Cp), lambda i: (i, 0)))
    out = pl.pallas_call(
        kern,
        out_shape=jax.ShapeDtypeStruct((Mp, Cp), out_dtype),
        grid=(Mp // tm,),
        in_specs=in_specs,
        out_specs=pl.BlockSpec((tm, Cp), lambda i: (i, 0)),
        compiler_params=pltpu.CompilerParams(
            dimension_semantics=("parallel",),
            vmem_limit_bytes=VMEM_LIMIT),
    )(*args)
    return out[:M] if Mp != M else out


# ---------------------------------------------------------------------------
# Parameter / stats glue (tiny per-channel math, plain JAX)
# ---------------------------------------------------------------------------
def _prep_w1x1(w_oihw, cin_p, cout_p):
    cout, cin = w_oihw.shape[0], w_oihw.shape[1]
    wm = w_oihw.reshape(cout, cin).T                       # (cin, cout)
    wm = jnp.pad(wm, ((0, cin_p - cin), (0, cout_p - cout)))
    return wm.astype(jnp.bfloat16)


def _prep_w3x3(w_oihw, cin_p, cout_p):
    cout, cin = w_oihw.shape[0], w_oihw.shape[1]
    wm = jnp.transpose(w_oihw, (2, 3, 1, 0))               # (3,3,cin,cout)
    wm = jnp.pad(wm, ((0, 0), (0, 0), (0, cin_p - cin), (0, cout_p - cout)))
    return wm.reshape(9 * cin_p, cout_p).astype(jnp.bfloat16)


def _pad_vec(v, cp):
    v = v.astype(jnp.float32)
    c = v.shape[0]
    return v if c == cp else jnp.pad(v, (0, cp - c))


def _bn_scale_shift(stats, count, gamma_p, beta_p):
    s, ss = stats
    mean = s[0] / count
    var = ss[0] / count - mean * mean                      # biased (training)
    inv = jax.lax.rsqrt(var + EPS)
    scale = gamma_p * inv
    shift = beta_p - mean * scale
    return scale, shift


# ---------------------------------------------------------------------------
# BottleNeck forward (Pallas path)
# ---------------------------------------------------------------------------
def bottleneck_forward(x_nchw, params, stride=1):
    x = jnp.transpose(x_nchw, (0, 2, 3, 1)).astype(jnp.float32)   # NHWC once
    n, h, w, cin = x.shape
    planes = params["w1"].shape[0]
    outplanes = params["w3"].shape[0]
    cin_p = _round_up(cin, LANE)
    c1_p = _round_up(planes, LANE)
    c3_p = _round_up(outplanes, LANE)

    m0 = n * h * w
    x_slab = jnp.pad(x, ((0, 0), (0, 0), (0, 0), (0, cin_p - cin)))
    x_slab = x_slab.reshape(m0, cin_p)
    x_bf = x_slab.astype(jnp.bfloat16)

    # stage 1: 1x1 conv -> BN -> ReLU
    y1 = pallas_matmul(x_bf, _prep_w1x1(params["w1"], cin_p, c1_p))
    sc1, sh1 = _bn_scale_shift(pallas_bn_stats(y1), m0,
                               _pad_vec(params["g1"], c1_p),
                               _pad_vec(params["b1"], c1_p))
    a1 = pallas_bn_apply(y1, sc1, sh1, relu=True, out_dtype=jnp.bfloat16)

    # stage 2: 3x3 conv (stride, pad 1) -> BN -> ReLU
    ho = (h + 2 - 3) // stride + 1
    wo = (w + 2 - 3) // stride + 1
    m2 = n * ho * wo
    y2 = pallas_conv3x3(a1.reshape(n, h, w, c1_p),
                        _prep_w3x3(params["w2"], c1_p, c1_p), stride)
    sc2, sh2 = _bn_scale_shift(pallas_bn_stats(y2), m2,
                               _pad_vec(params["g2"], c1_p),
                               _pad_vec(params["b2"], c1_p))
    a2 = pallas_bn_apply(y2, sc2, sh2, relu=True, out_dtype=jnp.bfloat16)

    # stage 3: 1x1 conv -> BN (ReLU deferred to the fused residual epilogue)
    y3 = pallas_matmul(a2, _prep_w1x1(params["w3"], c1_p, c3_p))
    sc3, sh3 = _bn_scale_shift(pallas_bn_stats(y3), m2,
                               _pad_vec(params["g3"], c3_p),
                               _pad_vec(params["b3"], c3_p))

    # residual path
    if "wd" in params:
        xr = x_bf.reshape(n, h, w, cin_p)
        if stride != 1:
            # TODO(synk): fold the stride-2 subsampling into the matmul
            # index_map instead of a wrapper slice (no-op for stride == 1).
            xr = xr[:, ::stride, ::stride, :]
        xr = xr.reshape(m2, cin_p)
        yd = pallas_matmul(xr, _prep_w1x1(params["wd"], cin_p, c3_p))
        scd, shd = _bn_scale_shift(pallas_bn_stats(yd), m2,
                                   _pad_vec(params["gd"], c3_p),
                                   _pad_vec(params["bd"], c3_p))
        res = pallas_bn_apply(yd, scd, shd, relu=False, out_dtype=jnp.float32)
    else:
        res = x_slab   # identity skip (stride==1 and cin==outplanes)

    # fused BN-apply + residual add + ReLU epilogue
    out = pallas_bn_apply(y3, sc3, sh3, relu=True, residual=res,
                          out_dtype=jnp.float32)

    out = out.reshape(n, ho, wo, c3_p)[..., :outplanes]
    return jnp.transpose(out, (0, 3, 1, 2))                        # NCHW


# ---------------------------------------------------------------------------
# Pure-JAX f32 reference (torch training-mode semantics)
# ---------------------------------------------------------------------------
def reference_forward(x_nchw, params, stride=1):
    def bn(y, g, b):
        mean = jnp.mean(y, axis=(0, 2, 3), keepdims=True)
        var = jnp.mean(jnp.square(y - mean), axis=(0, 2, 3), keepdims=True)
        return ((y - mean) / jnp.sqrt(var + EPS) * g.reshape(1, -1, 1, 1)
                + b.reshape(1, -1, 1, 1))

    def conv(y, w, s, p):
        return jax.lax.conv_general_dilated(
            y, w, (s, s), [(p, p), (p, p)],
            dimension_numbers=("NCHW", "OIHW", "NCHW"))

    out = jax.nn.relu(bn(conv(x_nchw, params["w1"], 1, 0),
                         params["g1"], params["b1"]))
    out = jax.nn.relu(bn(conv(out, params["w2"], stride, 1),
                         params["g2"], params["b2"]))
    out = bn(conv(out, params["w3"], 1, 0), params["g3"], params["b3"])
    if "wd" in params:
        res = bn(conv(x_nchw, params["wd"], stride, 0),
                 params["gd"], params["bd"])
    else:
        res = x_nchw
    return jax.nn.relu(out + res)


# ---------------------------------------------------------------------------
if __name__ == "__main__":
    inplanes, planes, stride = 4, 4, 1
    expansion = 4
    outplanes = planes * expansion

    key = jax.random.PRNGKey(0)
    keys = jax.random.split(key, 13)

    params = {
        "w1": 0.1 * jax.random.normal(keys[0], (planes, inplanes, 1, 1), jnp.float32),
        "g1": 1.0 + 0.1 * jax.random.normal(keys[1], (planes,), jnp.float32),
        "b1": 0.1 * jax.random.normal(keys[2], (planes,), jnp.float32),
        "w2": 0.1 * jax.random.normal(keys[3], (planes, planes, 3, 3), jnp.float32),
        "g2": 1.0 + 0.1 * jax.random.normal(keys[4], (planes,), jnp.float32),
        "b2": 0.1 * jax.random.normal(keys[5], (planes,), jnp.float32),
        "w3": 0.1 * jax.random.normal(keys[6], (outplanes, planes, 1, 1), jnp.float32),
        "g3": 1.0 + 0.1 * jax.random.normal(keys[7], (outplanes,), jnp.float32),
        "b3": 0.1 * jax.random.normal(keys[8], (outplanes,), jnp.float32),
    }
    if stride != 1 or outplanes != inplanes:   # downsample branch exists
        params["wd"] = 0.1 * jax.random.normal(keys[9], (outplanes, inplanes, 1, 1), jnp.float32)
        params["gd"] = 1.0 + 0.1 * jax.random.normal(keys[10], (outplanes,), jnp.float32)
        params["bd"] = 0.1 * jax.random.normal(keys[11], (outplanes,), jnp.float32)

    x = jax.random.normal(keys[12], (2, inplanes, 16, 16), jnp.float32)

    fwd = jax.jit(functools.partial(bottleneck_forward, stride=stride))
    y = jax.block_until_ready(fwd(x, params))

    ref = jax.jit(functools.partial(reference_forward, stride=stride))
    y_ref = jax.block_until_ready(ref(x, params))

    # Tolerance reflects the (intentional) bf16 matmul operands with f32
    # accumulation vs. the pure-f32 reference; any structural bug would show
    # up as O(0.1 - 1) errors.
    np.testing.assert_allclose(np.asarray(y), np.asarray(y_ref),
                               rtol=3e-2, atol=3e-2)

    print("KERNEL_OK")
</pallas_src>

<mosaic_0001>
module attributes {stable_mosaic.version = 11 : i64} {
  func.func @_matmul_kernel(%arg0: i32, %arg1: i32, %arg2: i32, %arg3: memref<256x128xbf16, #tpu.memory_space<vmem>>, %arg4: memref<128x128xbf16, #tpu.memory_space<vmem>>, %arg5: memref<256x128xf32, #tpu.memory_space<vmem>>, %arg6: memref<256x128xf32, #tpu.memory_space<vmem>>) attributes {dimension_semantics = [#tpu.dimension_semantics<parallel>, #tpu.dimension_semantics<parallel>, #tpu.dimension_semantics<arbitrary>], iteration_bounds = array<i64: 2, 1, 1>, scalar_prefetch = 0 : i64, scratch_operands = 1 : i64, tpu.core_type = #tpu.core_type<tc>, window_params = [{transform_indices = @transform_0, window_bounds = array<i64: 256, 128>}, {transform_indices = @transform_1, window_bounds = array<i64: 128, 128>}, {transform_indices = @transform_2, window_bounds = array<i64: 256, 128>}]} {
    %c0_i32 = arith.constant 0 : i32
    %0 = arith.cmpi eq, %arg2, %c0_i32 : i32
    %1 = arith.extui %0 : i1 to i32
    %c0_i32_0 = arith.constant 0 : i32
    %2 = arith.cmpi ne, %1, %c0_i32_0 : i32
    scf.if %2 {
      %cst_10 = arith.constant 0.000000e+00 : f32
      %12 = vector.broadcast %cst_10 : f32 to vector<256x128xf32>
      %c0_11 = arith.constant 0 : index
      %c0_12 = arith.constant 0 : index
      %13 = vector.load %arg6[%c0_11, %c0_12] : memref<256x128xf32, #tpu.memory_space<vmem>>, vector<256x128xf32>
      tpu.vector_store %arg6[%c0_11, %c0_12], %12 {strides = array<i32>} : memref<256x128xf32, #tpu.memory_space<vmem>>, vector<256x128xf32>,
    } else {
    }
    %c0 = arith.constant 0 : index
    %c0_1 = arith.constant 0 : index
    %3 = vector.load %arg6[%c0, %c0_1] : memref<256x128xf32, #tpu.memory_space<vmem>>, vector<256x128xf32>
    %c0_2 = arith.constant 0 : index
    %c0_3 = arith.constant 0 : index
    %4 = vector.load %arg3[%c0_2, %c0_3] : memref<256x128xbf16, #tpu.memory_space<vmem>>, vector<256x128xbf16>
    %c0_4 = arith.constant 0 : index
    %c0_5 = arith.constant 0 : index
    %5 = vector.load %arg4[%c0_4, %c0_5] : memref<128x128xbf16, #tpu.memory_space<vmem>>, vector<128x128xbf16>
    %cst = arith.constant dense<0.000000e+00> : vector<256x128xf32>
    %6 = tpu.matmul %4, %5, %cst {dimension_numbers = #tpu.dot_dimension_numbers<[1], [0], [0], [1], [0, 0, 1, 1], [], []>} : vector<256x128xbf16>, vector<128x128xbf16>, vector<256x128xf32> -> vector<256x128xf32>
    %7 = arith.addf %3, %6 : vector<256x128xf32>
    %c0_6 = arith.constant 0 : index
    %c0_7 = arith.constant 0 : index
    %8 = vector.load %arg6[%c0_6, %c0_7] : memref<256x128xf32, #tpu.memory_space<vmem>>, vector<256x128xf32>
    tpu.vector_store %arg6[%c0_6, %c0_7], %7 {strides = array<i32>} : memref<256x128xf32, #tpu.memory_space<vmem>>, vector<256x128xf32>,
    %c0_i32_8 = arith.constant 0 : i32
    %9 = arith.cmpi eq, %arg2, %c0_i32_8 : i32
    %10 = arith.extui %9 : i1 to i32
    %c0_i32_9 = arith.constant 0 : i32
    %11 = arith.cmpi ne, %10, %c0_i32_9 : i32
    scf.if %11 {
      %c0_10 = arith.constant 0 : index
      %c0_11 = arith.constant 0 : index
      %12 = vector.load %arg6[%c0_10, %c0_11] : memref<256x128xf32, #tpu.memory_space<vmem>>, vector<256x128xf32>
      %c0_12 = arith.constant 0 : index
      %c0_13 = arith.constant 0 : index
      %13 = vector.load %arg5[%c0_12, %c0_13] : memref<256x128xf32, #tpu.memory_space<vmem>>, vector<256x128xf32>
      tpu.vector_store %arg5[%c0_12, %c0_13], %12 {strides = array<i32>} : memref<256x128xf32, #tpu.memory_space<vmem>>, vector<256x128xf32>,
    } else {
    }
    return
  }
  func.func @transform_0(%arg0: i32, %arg1: i32, %arg2: i32) -> (i32, i32) {
    %c0_i32 = arith.constant 0 : i32
    return %arg0, %arg2 : i32, i32
  }
  func.func @transform_1(%arg0: i32, %arg1: i32, %arg2: i32) -> (i32, i32) {
    %c0_i32 = arith.constant 0 : i32
    return %arg2, %arg1 : i32, i32
  }
  func.func @transform_2(%arg0: i32, %arg1: i32, %arg2: i32) -> (i32, i32) {
    %c0_i32 = arith.constant 0 : i32
    return %arg0, %arg1 : i32, i32
  }
}

module attributes {stable_mosaic.version = 11 : i64} {
  func.func @_bn_stats_kernel(%arg0: i32, %arg1: memref<512x128xf32, #tpu.memory_space<vmem>>, %arg2: memref<1x128xf32, #tpu.memory_space<vmem>>, %arg3: memref<1x128xf32, #tpu.memory_space<vmem>>) attributes {dimension_semantics = [#tpu.dimension_semantics<arbitrary>], iteration_bounds = array<i64: 1>, scalar_prefetch = 0 : i64, scratch_operands = 0 : i64, tpu.core_type = #tpu.core_type<tc>, window_params = [{transform_indices = @transform_0, window_bounds = array<i64: 512, 128>}, {pipeline_mode = #tpu.pipeline_mode<synchronous>, transform_indices = @transform_1, window_bounds = array<i64: 1, 128>}, {pipeline_mode = #tpu.pipeline_mode<synchronous>, transform_indices = @transform_2, window_bounds = array<i64: 1, 128>}]} {
    %c0_i32 = arith.constant 0 : i32
    %0 = arith.cmpi eq, %arg0, %c0_i32 : i32
    %1 = arith.extui %0 : i1 to i32
    %c0_i32_0 = arith.constant 0 : i32
    %2 = arith.cmpi ne, %1, %c0_i32_0 : i32
    scf.if %2 {
      %cst_11 = arith.constant 0.000000e+00 : f32
      %15 = vector.broadcast %cst_11 : f32 to vector<1x128xf32>
      %c0_12 = arith.constant 0 : index
      %c0_13 = arith.constant 0 : index
      %16 = vector.load %arg2[%c0_12, %c0_13] : memref<1x128xf32, #tpu.memory_space<vmem>>, vector<1x128xf32>
      tpu.vector_store %arg2[%c0_12, %c0_13], %15 {strides = array<i32>} : memref<1x128xf32, #tpu.memory_space<vmem>>, vector<1x128xf32>,
      %cst_14 = arith.constant 0.000000e+00 : f32
      %17 = vector.broadcast %cst_14 : f32 to vector<1x128xf32>
      %c0_15 = arith.constant 0 : index
      %c0_16 = arith.constant 0 : index
      %18 = vector.load %arg3[%c0_15, %c0_16] : memref<1x128xf32, #tpu.memory_space<vmem>>, vector<1x128xf32>
      tpu.vector_store %arg3[%c0_15, %c0_16], %17 {strides = array<i32>} : memref<1x128xf32, #tpu.memory_space<vmem>>, vector<1x128xf32>,
    } else {
    }
    %c0 = arith.constant 0 : index
    %c0_1 = arith.constant 0 : index
    %3 = vector.load %arg1[%c0, %c0_1] : memref<512x128xf32, #tpu.memory_space<vmem>>, vector<512x128xf32>
    %c0_2 = arith.constant 0 : index
    %c0_3 = arith.constant 0 : index
    %4 = vector.load %arg2[%c0_2, %c0_3] : memref<1x128xf32, #tpu.memory_space<vmem>>, vector<1x128xf32>
    %cst = arith.constant dense<0.000000e+00> : vector<128xf32>
    %5 = vector.multi_reduction <add>, %3, %cst [0] : vector<512x128xf32> to vector<128xf32>
    %6 = vector.shape_cast %5 : vector<128xf32> to vector<1x128xf32>
    %7 = arith.addf %4, %6 : vector<1x128xf32>
    %c0_4 = arith.constant 0 : index
    %c0_5 = arith.constant 0 : index
    %8 = vector.load %arg2[%c0_4, %c0_5] : memref<1x128xf32, #tpu.memory_space<vmem>>, vector<1x128xf32>
    tpu.vector_store %arg2[%c0_4, %c0_5], %7 {strides = array<i32>} : memref<1x128xf32, #tpu.memory_space<vmem>>, vector<1x128xf32>,
    %c0_6 = arith.constant 0 : index
    %c0_7 = arith.constant 0 : index
    %9 = vector.load %arg3[%c0_6, %c0_7] : memref<1x128xf32, #tpu.memory_space<vmem>>, vector<1x128xf32>
    %10 = arith.mulf %3, %3 : vector<512x128xf32>
    %cst_8 = arith.constant dense<0.000000e+00> : vector<128xf32>
    %11 = vector.multi_reduction <add>, %10, %cst_8 [0] : vector<512x128xf32> to vector<128xf32>
    %12 = vector.shape_cast %11 : vector<128xf32> to vector<1x128xf32>
    %13 = arith.addf %9, %12 : vector<1x128xf32>
    %c0_9 = arith.constant 0 : index
    %c0_10 = arith.constant 0 : index
    %14 = vector.load %arg3[%c0_9, %c0_10] : memref<1x128xf32, #tpu.memory_space<vmem>>, vector<1x128xf32>
    tpu.vector_store %arg3[%c0_9, %c0_10], %13 {strides = array<i32>} : memref<1x128xf32, #tpu.memory_space<vmem>>, vector<1x128xf32>,
    return
  }
  func.func @transform_0(%arg0: i32) -> (i32, i32) {
    %c0_i32 = arith.constant 0 : i32
    %c0_i32_0 = arith.constant 0 : i32
    return %arg0, %c0_i32 : i32, i32
  }
  func.func @transform_1(%arg0: i32) -> (i32, i32) {
    %c0_i32 = arith.constant 0 : i32
    %c0_i32_0 = arith.constant 0 : i32
    %c0_i32_1 = arith.constant 0 : i32
    return %c0_i32, %c0_i32_0 : i32, i32
  }
  func.func @transform_2(%arg0: i32) -> (i32, i32) {
    %c0_i32 = arith.constant 0 : i32
    %c0_i32_0 = arith.constant 0 : i32
    %c0_i32_1 = arith.constant 0 : i32
    return %c0_i32, %c0_i32_0 : i32, i32
  }
}

module attributes {stable_mosaic.version = 11 : i64} {
  func.func @_scale_shift_kernel(%arg0: i32, %arg1: memref<512x128xf32, #tpu.memory_space<vmem>>, %arg2: memref<1x128xf32, #tpu.memory_space<vmem>>, %arg3: memref<1x128xf32, #tpu.memory_space<vmem>>, %arg4: memref<512x128xbf16, #tpu.memory_space<vmem>>) attributes {dimension_semantics = [#tpu.dimension_semantics<parallel>], iteration_bounds = array<i64: 1>, scalar_prefetch = 0 : i64, scratch_operands = 0 : i64, tpu.core_type = #tpu.core_type<tc>, window_params = [{transform_indices = @transform_0, window_bounds = array<i64: 512, 128>}, {pipeline_mode = #tpu.pipeline_mode<synchronous>, transform_indices = @transform_1, window_bounds = array<i64: 1, 128>}, {pipeline_mode = #tpu.pipeline_mode<synchronous>, transform_indices = @transform_2, window_bounds = array<i64: 1, 128>}, {transform_indices = @transform_3, window_bounds = array<i64: 512, 128>}]} {
    %c0 = arith.constant 0 : index
    %c0_0 = arith.constant 0 : index
    %0 = vector.load %arg1[%c0, %c0_0] : memref<512x128xf32, #tpu.memory_space<vmem>>, vector<512x128xf32>
    %c0_1 = arith.constant 0 : index
    %c0_2 = arith.constant 0 : index
    %1 = vector.load %arg2[%c0_1, %c0_2] : memref<1x128xf32, #tpu.memory_space<vmem>>, vector<1x128xf32>
    %2 = vector.broadcast %1 : vector<1x128xf32> to vector<512x128xf32>
    %3 = arith.mulf %0, %2 : vector<512x128xf32>
    %c0_3 = arith.constant 0 : index
    %c0_4 = arith.constant 0 : index
    %4 = vector.load %arg3[%c0_3, %c0_4] : memref<1x128xf32, #tpu.memory_space<vmem>>, vector<1x128xf32>
    %5 = vector.broadcast %4 : vector<1x128xf32> to vector<512x128xf32>
    %6 = arith.addf %3, %5 : vector<512x128xf32>
    %cst = arith.constant 0.000000e+00 : f32
    %7 = vector.broadcast %cst : f32 to vector<512x128xf32>
    %8 = arith.maximumf %6, %7 : vector<512x128xf32>
    %9 = arith.truncf %8 : vector<512x128xf32> to vector<512x128xbf16>
    %c0_5 = arith.constant 0 : index
    %c0_6 = arith.constant 0 : index
    %10 = vector.load %arg4[%c0_5, %c0_6] : memref<512x128xbf16, #tpu.memory_space<vmem>>, vector<512x128xbf16>
    tpu.vector_store %arg4[%c0_5, %c0_6], %9 {strides = array<i32>} : memref<512x128xbf16, #tpu.memory_space<vmem>>, vector<512x128xbf16>,
    return
  }
  func.func @transform_0(%arg0: i32) -> (i32, i32) {
    %c0_i32 = arith.constant 0 : i32
    %c0_i32_0 = arith.constant 0 : i32
    return %arg0, %c0_i32 : i32, i32
  }
  func.func @transform_1(%arg0: i32) -> (i32, i32) {
    %c0_i32 = arith.constant 0 : i32
    %c0_i32_0 = arith.constant 0 : i32
    %c0_i32_1 = arith.constant 0 : i32
    return %c0_i32, %c0_i32_0 : i32, i32
  }
  func.func @transform_2(%arg0: i32) -> (i32, i32) {
    %c0_i32 = arith.constant 0 : i32
    %c0_i32_0 = arith.constant 0 : i32
    %c0_i32_1 = arith.constant 0 : i32
    return %c0_i32, %c0_i32_0 : i32, i32
  }
  func.func @transform_3(%arg0: i32) -> (i32, i32) {
    %c0_i32 = arith.constant 0 : i32
    %c0_i32_0 = arith.constant 0 : i32
    return %arg0, %c0_i32 : i32, i32
  }
}

module attributes {stable_mosaic.version = 11 : i64} {
  func.func @_conv3x3_kernel(%arg0: i32, %arg1: i32, %arg2: memref<1x18x18x128xbf16, #tpu.memory_space<vmem>>, %arg3: memref<1152x128xbf16, #tpu.memory_space<vmem>>, %arg4: memref<1x16x16x128xf32, #tpu.memory_space<vmem>>) attributes {dimension_semantics = [#tpu.dimension_semantics<parallel>, #tpu.dimension_semantics<parallel>], iteration_bounds = array<i64: 2, 1>, scalar_prefetch = 0 : i64, scratch_operands = 0 : i64, tpu.core_type = #tpu.core_type<tc>, window_params = [{transform_indices = @transform_0, window_bounds = array<i64: 1, 18, 18, 128>}, {transform_indices = @transform_1, window_bounds = array<i64: 1152, 128>}, {transform_indices = @transform_2, window_bounds = array<i64: 1, 16, 16, 128>}]} {
    %cst = arith.constant 0.000000e+00 : f32
    %0 = vector.broadcast %cst : f32 to vector<256x128xf32>
    %c0 = arith.constant 0 : index
    %c0_0 = arith.constant 0 : index
    %c0_1 = arith.constant 0 : index
    %c0_2 = arith.constant 0 : index
    %1 = vector.load %arg2[%c0, %c0_0, %c0_1, %c0_2] : memref<1x18x18x128xbf16, #tpu.memory_space<vmem>>, vector<1x16x16x128xbf16>
    %2 = vector.shape_cast %1 : vector<1x16x16x128xbf16> to vector<16x16x128xbf16>
    %3 = vector.shape_cast %2 : vector<16x16x128xbf16> to vector<256x128xbf16>
    %c0_3 = arith.constant 0 : index
    %c0_4 = arith.constant 0 : index
    %4 = vector.load %arg3[%c0_3, %c0_4] : memref<1152x128xbf16, #tpu.memory_space<vmem>>, vector<128x128xbf16>
    %cst_5 = arith.constant dense<0.000000e+00> : vector<256x128xf32>
    %5 = tpu.matmul %3, %4, %cst_5 {dimension_numbers = #tpu.dot_dimension_numbers<[1], [0], [0], [1], [0, 0, 1, 1], [], []>} : vector<256x128xbf16>, vector<128x128xbf16>, vector<256x128xf32> -> vector<256x128xf32>
    %6 = arith.addf %0, %5 : vector<256x128xf32>
    %c0_6 = arith.constant 0 : index
    %c0_7 = arith.constant 0 : index
    %c1 = arith.constant 1 : index
    %c0_8 = arith.constant 0 : index
    %7 = vector.load %arg2[%c0_6, %c0_7, %c1, %c0_8] : memref<1x18x18x128xbf16, #tpu.memory_space<vmem>>, vector<1x16x16x128xbf16>
    %8 = vector.shape_cast %7 : vector<1x16x16x128xbf16> to vector<16x16x128xbf16>
    %9 = vector.shape_cast %8 : vector<16x16x128xbf16> to vector<256x128xbf16>
    %c128 = arith.constant 128 : index
    %c0_9 = arith.constant 0 : index
    %10 = vector.load %arg3[%c128, %c0_9] : memref<1152x128xbf16, #tpu.memory_space<vmem>>, vector<128x128xbf16>
    %cst_10 = arith.constant dense<0.000000e+00> : vector<256x128xf32>
    %11 = tpu.matmul %9, %10, %cst_10 {dimension_numbers = #tpu.dot_dimension_numbers<[1], [0], [0], [1], [0, 0, 1, 1], [], []>} : vector<256x128xbf16>, vector<128x128xbf16>, vector<256x128xf32> -> vector<256x128xf32>
    %12 = arith.addf %6, %11 : vector<256x128xf32>
    %c0_11 = arith.constant 0 : index
    %c0_12 = arith.constant 0 : index
    %c2 = arith.constant 2 : index
    %c0_13 = arith.constant 0 : index
    %13 = vector.load %arg2[%c0_11, %c0_12, %c2, %c0_13] : memref<1x18x18x128xbf16, #tpu.memory_space<vmem>>, vector<1x16x16x128xbf16>
    %14 = vector.shape_cast %13 : vector<1x16x16x128xbf16> to vector<16x16x128xbf16>
    %15 = vector.shape_cast %14 : vector<16x16x128xbf16> to vector<256x128xbf16>
    %c256 = arith.constant 256 : index
    %c0_14 = arith.constant 0 : index
    %16 = vector.load %arg3[%c256, %c0_14] : memref<1152x128xbf16, #tpu.memory_space<vmem>>, vector<128x128xbf16>
    %cst_15 = arith.constant dense<0.000000e+00> : vector<256x128xf32>
    %17 = tpu.matmul %15, %16, %cst_15 {dimension_numbers = #tpu.dot_dimension_numbers<[1], [0], [0], [1], [0, 0, 1, 1], [], []>} : vector<256x128xbf16>, vector<128x128xbf16>, vector<256x128xf32> -> vector<256x128xf32>
    %18 = arith.addf %12, %17 : vector<256x128xf32>
    %c0_16 = arith.constant 0 : index
    %c1_17 = arith.constant 1 : index
    %c0_18 = arith.constant 0 : index
    %c0_19 = arith.constant 0 : index
    %19 = vector.load %arg2[%c0_16, %c1_17, %c0_18, %c0_19] : memref<1x18x18x128xbf16, #tpu.memory_space<vmem>>, vector<1x16x16x128xbf16>
    %20 = vector.shape_cast %19 : vector<1x16x16x128xbf16> to vector<16x16x128xbf16>
    %21 = vector.shape_cast %20 : vector<16x16x128xbf16> to vector<256x128xbf16>
    %c384 = arith.constant 384 : index
    %c0_20 = arith.constant 0 : index
    %22 = vector.load %arg3[%c384, %c0_20] : memref<1152x128xbf16, #tpu.memory_space<vmem>>, vector<128x128xbf16>
    %cst_21 = arith.constant dense<0.000000e+00> : vector<256x128xf32>
    %23 = tpu.matmul %21, %22, %cst_21 {dimension_numbers = #tpu.dot_dimension_numbers<[1], [0], [0], [1], [0, 0, 1, 1], [], []>} : vector<256x128xbf16>, vector<128x128xbf16>, vector<256x128xf32> -> vector<256x128xf32>
    %24 = arith.addf %18, %23 : vector<256x128xf32>
    %c0_22 = arith.constant 0 : index
    %c1_23 = arith.constant 1 : index
    %c1_24 = arith.constant 1 : index
    %c0_25 = arith.constant 0 : index
    %25 = vector.load %arg2[%c0_22, %c1_23, %c1_24, %c0_25] : memref<1x18x18x128xbf16, #tpu.memory_space<vmem>>, vector<1x16x16x128xbf16>
    %26 = vector.shape_cast %25 : vector<1x16x16x128xbf16> to vector<16x16x128xbf16>
    %27 = vector.shape_cast %26 : vector<16x16x128xbf16> to vector<256x128xbf16>
    %c512 = arith.constant 512 : index
    %c0_26 = arith.constant 0 : index
    %28 = vector.load %arg3[%c512, %c0_26] : memref<1152x128xbf16, #tpu.memory_space<vmem>>, vector<128x128xbf16>
    %cst_27 = arith.constant dense<0.000000e+00> : vector<256x128xf32>
    %29 = tpu.matmul %27, %28, %cst_27 {dimension_numbers = #tpu.dot_dimension_numbers<[1], [0], [0], [1], [0, 0, 1, 1], [], []>} : vector<256x128xbf16>, vector<128x128xbf16>, vector<256x128xf32> -> vector<256x128xf32>
    %30 = arith.addf %24, %29 : vector<256x128xf32>
    %c0_28 = arith.constant 0 : index
    %c1_29 = arith.constant 1 : index
    %c2_30 = arith.constant 2 : index
    %c0_31 = arith.constant 0 : index
    %31 = vector.load %arg2[%c0_28, %c1_29, %c2_30, %c0_31] : memref<1x18x18x128xbf16, #tpu.memory_space<vmem>>, vector<1x16x16x128xbf16>
    %32 = vector.shape_cast %31 : vector<1x16x16x128xbf16> to vector<16x16x128xbf16>
    %33 = vector.shape_cast %32 : vector<16x16x128xbf16> to vector<256x128xbf16>
    %c640 = arith.constant 640 : index
    %c0_32 = arith.constant 0 : index
    %34 = vector.load %arg3[%c640, %c0_32] : memref<1152x128xbf16, #tpu.memory_space<vmem>>, vector<128x128xbf16>
    %cst_33 = arith.constant dense<0.000000e+00> : vector<256x128xf32>
    %35 = tpu.matmul %33, %34, %cst_33 {dimension_numbers = #tpu.dot_dimension_numbers<[1], [0], [0], [1], [0, 0, 1, 1], [], []>} : vector<256x128xbf16>, vector<128x128xbf16>, vector<256x128xf32> -> vector<256x128xf32>
    %36 = arith.addf %30, %35 : vector<256x128xf32>
    %c0_34 = arith.constant 0 : index
    %c2_35 = arith.constant 2 : index
    %c0_36 = arith.constant 0 : index
    %c0_37 = arith.constant 0 : index
    %37 = vector.load %arg2[%c0_34, %c2_35, %c0_36, %c0_37] : memref<1x18x18x128xbf16, #tpu.memory_space<vmem>>, vector<1x16x16x128xbf16>
    %38 = vector.shape_cast %37 : vector<1x16x16x128xbf16> to vector<16x16x128xbf16>
    %39 = vector.shape_cast %38 : vector<16x16x128xbf16> to vector<256x128xbf16>
    %c768 = arith.constant 768 : index
    %c0_38 = arith.constant 0 : index
    %40 = vector.load %arg3[%c768, %c0_38] : memref<1152x128xbf16, #tpu.memory_space<vmem>>, vector<128x128xbf16>
    %cst_39 = arith.constant dense<0.000000e+00> : vector<256x128xf32>
    %41 = tpu.matmul %39, %40, %cst_39 {dimension_numbers = #tpu.dot_dimension_numbers<[1], [0], [0], [1], [0, 0, 1, 1], [], []>} : vector<256x128xbf16>, vector<128x128xbf16>, vector<256x128xf32> -> vector<256x128xf32>
    %42 = arith.addf %36, %41 : vector<256x128xf32>
    %c0_40 = arith.constant 0 : index
    %c2_41 = arith.constant 2 : index
    %c1_42 = arith.constant 1 : index
    %c0_43 = arith.constant 0 : index
    %43 = vector.load %arg2[%c0_40, %c2_41, %c1_42, %c0_43] : memref<1x18x18x128xbf16, #tpu.memory_space<vmem>>, vector<1x16x16x128xbf16>
    %44 = vector.shape_cast %43 : vector<1x16x16x128xbf16> to vector<16x16x128xbf16>
    %45 = vector.shape_cast %44 : vector<16x16x128xbf16> to vector<256x128xbf16>
    %c896 = arith.constant 896 : index
    %c0_44 = arith.constant 0 : index
    %46 = vector.load %arg3[%c896, %c0_44] : memref<1152x128xbf16, #tpu.memory_space<vmem>>, vector<128x128xbf16>
    %cst_45 = arith.constant dense<0.000000e+00> : vector<256x128xf32>
    %47 = tpu.matmul %45, %46, %cst_45 {dimension_numbers = #tpu.dot_dimension_numbers<[1], [0], [0], [1], [0, 0, 1, 1], [], []>} : vector<256x128xbf16>, vector<128x128xbf16>, vector<256x128xf32> -> vector<256x128xf32>
    %48 = arith.addf %42, %47 : vector<256x128xf32>
    %c0_46 = arith.constant 0 : index
    %c2_47 = arith.constant 2 : index
    %c2_48 = arith.constant 2 : index
    %c0_49 = arith.constant 0 : index
    %49 = vector.load %arg2[%c0_46, %c2_47, %c2_48, %c0_49] : memref<1x18x18x128xbf16, #tpu.memory_space<vmem>>, vector<1x16x16x128xbf16>
    %50 = vector.shape_cast %49 : vector<1x16x16x128xbf16> to vector<16x16x128xbf16>
    %51 = vector.shape_cast %50 : vector<16x16x128xbf16> to vector<256x128xbf16>
    %c1024 = arith.constant 1024 : index
    %c0_50 = arith.constant 0 : index
    %52 = vector.load %arg3[%c1024, %c0_50] : memref<1152x128xbf16, #tpu.memory_space<vmem>>, vector<128x128xbf16>
    %cst_51 = arith.constant dense<0.000000e+00> : vector<256x128xf32>
    %53 = tpu.matmul %51, %52, %cst_51 {dimension_numbers = #tpu.dot_dimension_numbers<[1], [0], [0], [1], [0, 0, 1, 1], [], []>} : vector<256x128xbf16>, vector<128x128xbf16>, vector<256x128xf32> -> vector<256x128xf32>
    %54 = arith.addf %48, %53 : vector<256x128xf32>
    %55 = vector.shape_cast %54 : vector<256x128xf32> to vector<16x16x128xf32>
    %c0_52 = arith.constant 0 : index
    %c0_53 = arith.constant 0 : index
    %c0_54 = arith.constant 0 : index
    %c0_55 = arith.constant 0 : index
    %56 = vector.load %arg4[%c0_52, %c0_53, %c0_54, %c0_55] : memref<1x16x16x128xf32, #tpu.memory_space<vmem>>, vector<1x16x16x128xf32>
    %57 = vector.shape_cast %56 : vector<1x16x16x128xf32> to vector<16x16x128xf32>
    %58 = vector.shape_cast %55 : vector<16x16x128xf32> to vector<1x16x16x128xf32>
    tpu.vector_store %arg4[%c0_52, %c0_53, %c0_54, %c0_55], %58 {strides = array<i32>} : memref<1x16x16x128xf32, #tpu.memory_space<vmem>>, vector<1x16x16x128xf32>,
    return
  }
  func.func @transform_0(%arg0: i32, %arg1: i32) -> (i32, i32, i32, i32) {
    %c0_i32 = arith.constant 0 : i32
    %c0_i32_0 = arith.constant 0 : i32
    %c0_i32_1 = arith.constant 0 : i32
    %c0_i32_2 = arith.constant 0 : i32
    return %arg0, %c0_i32, %c0_i32_0, %c0_i32_1 : i32, i32, i32, i32
  }
  func.func @transform_1(%arg0: i32, %arg1: i32) -> (i32, i32) {
    %c0_i32 = arith.constant 0 : i32
    %c0_i32_0 = arith.constant 0 : i32
    return %c0_i32, %arg1 : i32, i32
  }
  func.func @transform_2(%arg0: i32, %arg1: i32) -> (i32, i32, i32, i32) {
    %c0_i32 = arith.constant 0 : i32
    %c0_i32_0 = arith.constant 0 : i32
    %c0_i32_1 = arith.constant 0 : i32
    return %arg0, %c0_i32, %c0_i32_0, %arg1 : i32, i32, i32, i32
  }
}

module attributes {stable_mosaic.version = 11 : i64} {
  func.func @_scale_shift_kernel(%arg0: i32, %arg1: memref<512x128xf32, #tpu.memory_space<vmem>>, %arg2: memref<1x128xf32, #tpu.memory_space<vmem>>, %arg3: memref<1x128xf32, #tpu.memory_space<vmem>>, %arg4: memref<512x128xf32, #tpu.memory_space<vmem>>) attributes {dimension_semantics = [#tpu.dimension_semantics<parallel>], iteration_bounds = array<i64: 1>, scalar_prefetch = 0 : i64, scratch_operands = 0 : i64, tpu.core_type = #tpu.core_type<tc>, window_params = [{transform_indices = @transform_0, window_bounds = array<i64: 512, 128>}, {pipeline_mode = #tpu.pipeline_mode<synchronous>, transform_indices = @transform_1, window_bounds = array<i64: 1, 128>}, {pipeline_mode = #tpu.pipeline_mode<synchronous>, transform_indices = @transform_2, window_bounds = array<i64: 1, 128>}, {transform_indices = @transform_3, window_bounds = array<i64: 512, 128>}]} {
    %c0 = arith.constant 0 : index
    %c0_0 = arith.constant 0 : index
    %0 = vector.load %arg1[%c0, %c0_0] : memref<512x128xf32, #tpu.memory_space<vmem>>, vector<512x128xf32>
    %c0_1 = arith.constant 0 : index
    %c0_2 = arith.constant 0 : index
    %1 = vector.load %arg2[%c0_1, %c0_2] : memref<1x128xf32, #tpu.memory_space<vmem>>, vector<1x128xf32>
    %2 = vector.broadcast %1 : vector<1x128xf32> to vector<512x128xf32>
    %3 = arith.mulf %0, %2 : vector<512x128xf32>
    %c0_3 = arith.constant 0 : index
    %c0_4 = arith.constant 0 : index
    %4 = vector.load %arg3[%c0_3, %c0_4] : memref<1x128xf32, #tpu.memory_space<vmem>>, vector<1x128xf32>
    %5 = vector.broadcast %4 : vector<1x128xf32> to vector<512x128xf32>
    %6 = arith.addf %3, %5 : vector<512x128xf32>
    %c0_5 = arith.constant 0 : index
    %c0_6 = arith.constant 0 : index
    %7 = vector.load %arg4[%c0_5, %c0_6] : memref<512x128xf32, #tpu.memory_space<vmem>>, vector<512x128xf32>
    tpu.vector_store %arg4[%c0_5, %c0_6], %6 {strides = array<i32>} : memref<512x128xf32, #tpu.memory_space<vmem>>, vector<512x128xf32>,
    return
  }
  func.func @transform_0(%arg0: i32) -> (i32, i32) {
    %c0_i32 = arith.constant 0 : i32
    %c0_i32_0 = arith.constant 0 : i32
    return %arg0, %c0_i32 : i32, i32
  }
  func.func @transform_1(%arg0: i32) -> (i32, i32) {
    %c0_i32 = arith.constant 0 : i32
    %c0_i32_0 = arith.constant 0 : i32
    %c0_i32_1 = arith.constant 0 : i32
    return %c0_i32, %c0_i32_0 : i32, i32
  }
  func.func @transform_2(%arg0: i32) -> (i32, i32) {
    %c0_i32 = arith.constant 0 : i32
    %c0_i32_0 = arith.constant 0 : i32
    %c0_i32_1 = arith.constant 0 : i32
    return %c0_i32, %c0_i32_0 : i32, i32
  }
  func.func @transform_3(%arg0: i32) -> (i32, i32) {
    %c0_i32 = arith.constant 0 : i32
    %c0_i32_0 = arith.constant 0 : i32
    return %arg0, %c0_i32 : i32, i32
  }
}

module attributes {stable_mosaic.version = 11 : i64} {
  func.func @_scale_shift_res_kernel(%arg0: i32, %arg1: memref<512x128xf32, #tpu.memory_space<vmem>>, %arg2: memref<1x128xf32, #tpu.memory_space<vmem>>, %arg3: memref<1x128xf32, #tpu.memory_space<vmem>>, %arg4: memref<512x128xf32, #tpu.memory_space<vmem>>, %arg5: memref<512x128xf32, #tpu.memory_space<vmem>>) attributes {dimension_semantics = [#tpu.dimension_semantics<parallel>], iteration_bounds = array<i64: 1>, scalar_prefetch = 0 : i64, scratch_operands = 0 : i64, tpu.core_type = #tpu.core_type<tc>, window_params = [{transform_indices = @transform_0, window_bounds = array<i64: 512, 128>}, {pipeline_mode = #tpu.pipeline_mode<synchronous>, transform_indices = @transform_1, window_bounds = array<i64: 1, 128>}, {pipeline_mode = #tpu.pipeline_mode<synchronous>, transform_indices = @transform_2, window_bounds = array<i64: 1, 128>}, {transform_indices = @transform_3, window_bounds = array<i64: 512, 128>}, {transform_indices = @transform_4, window_bounds = array<i64: 512, 128>}]} {
    %c0 = arith.constant 0 : index
    %c0_0 = arith.constant 0 : index
    %0 = vector.load %arg1[%c0, %c0_0] : memref<512x128xf32, #tpu.memory_space<vmem>>, vector<512x128xf32>
    %c0_1 = arith.constant 0 : index
    %c0_2 = arith.constant 0 : index
    %1 = vector.load %arg2[%c0_1, %c0_2] : memref<1x128xf32, #tpu.memory_space<vmem>>, vector<1x128xf32>
    %2 = vector.broadcast %1 : vector<1x128xf32> to vector<512x128xf32>
    %3 = arith.mulf %0, %2 : vector<512x128xf32>
    %c0_3 = arith.constant 0 : index
    %c0_4 = arith.constant 0 : index
    %4 = vector.load %arg3[%c0_3, %c0_4] : memref<1x128xf32, #tpu.memory_space<vmem>>, vector<1x128xf32>
    %5 = vector.broadcast %4 : vector<1x128xf32> to vector<512x128xf32>
    %6 = arith.addf %3, %5 : vector<512x128xf32>
    %c0_5 = arith.constant 0 : index
    %c0_6 = arith.constant 0 : index
    %7 = vector.load %arg4[%c0_5, %c0_6] : memref<512x128xf32, #tpu.memory_space<vmem>>, vector<512x128xf32>
    %8 = arith.addf %6, %7 : vector<512x128xf32>
    %cst = arith.constant 0.000000e+00 : f32
    %9 = vector.broadcast %cst : f32 to vector<512x128xf32>
    %10 = arith.maximumf %8, %9 : vector<512x128xf32>
    %c0_7 = arith.constant 0 : index
    %c0_8 = arith.constant 0 : index
    %11 = vector.load %arg5[%c0_7, %c0_8] : memref<512x128xf32, #tpu.memory_space<vmem>>, vector<512x128xf32>
    tpu.vector_store %arg5[%c0_7, %c0_8], %10 {strides = array<i32>} : memref<512x128xf32, #tpu.memory_space<vmem>>, vector<512x128xf32>,
    return
  }
  func.func @transform_0(%arg0: i32) -> (i32, i32) {
    %c0_i32 = arith.constant 0 : i32
    %c0_i32_0 = arith.constant 0 : i32
    return %arg0, %c0_i32 : i32, i32
  }
  func.func @transform_1(%arg0: i32) -> (i32, i32) {
    %c0_i32 = arith.constant 0 : i32
    %c0_i32_0 = arith.constant 0 : i32
    %c0_i32_1 = arith.constant 0 : i32
    return %c0_i32, %c0_i32_0 : i32, i32
  }
  func.func @transform_2(%arg0: i32) -> (i32, i32) {
    %c0_i32 = arith.constant 0 : i32
    %c0_i32_0 = arith.constant 0 : i32
    %c0_i32_1 = arith.constant 0 : i32
    return %c0_i32, %c0_i32_0 : i32, i32
  }
  func.func @transform_3(%arg0: i32) -> (i32, i32) {
    %c0_i32 = arith.constant 0 : i32
    %c0_i32_0 = arith.constant 0 : i32
    return %arg0, %c0_i32 : i32, i32
  }
  func.func @transform_4(%arg0: i32) -> (i32, i32) {
    %c0_i32 = arith.constant 0 : i32
    %c0_i32_0 = arith.constant 0 : i32
    return %arg0, %c0_i32 : i32, i32
  }
}

</mosaic_0001>

<llo_original>
// kernel: bottleneck_forward.13
$region0: #{bottleneck_forward.13}
  #allocation0 [shape = 'u32[]', space=smem, size = 0x4, offset = 0x4, fixed_abs, tag = 'smem constant byte address 0x4 - core index']
  #allocation1 [shape = 'u32[144,128]{1,0:T(1,128)}', space=vmem, size = 0x12000, scoped, tag = 'internal scratch']
  %s0 = inlined_call_operand.vmem [shape: f32[512,128], index: 0, kind: input, shape index: {}]
  %s1 = inlined_call_operand.vmem [shape: f32[1,128], index: 1, kind: output, shape index: {0}]
  %s2 = inlined_call_operand.vmem [shape: f32[1,128], index: 2, kind: output, shape index: {1}]
  %3 = xla_tuple %s1, %s2
  %s4 = sld [smem:[#allocation0]]
  $region26: #{bottleneck_forward.13} parent=0
    _
  %s6 = ssub.s32 1, %s4
  %s7 = scalar_select 0, %s6, %s4
  // Predicated region
  $region2: #{bottleneck_forward.13} parent=0 // pred_check
    _
  $region3: #{bottleneck_forward.13} parent=0 // pred_check_branch
    %9 = sbr.rel (0) target = $region5
  $region4: #{bottleneck_forward.13} parent=0 // pred_region
    _
  $region5: #{bottleneck_forward.13} parent=0 // pred_fallthru
    _
  %p10 = scmp.eq.s32.totalorder 0, 0
  // Predicated region
  $region6: #{bottleneck_forward.13} parent=0 // pred_check
    %p11 = pneg %p10
  $region7: #{bottleneck_forward.13} parent=0 // pred_check_branch
    %13 = sbr.rel (%p11) target = $region9
  $region8: #{bottleneck_forward.13} parent=0 // pred_region
    %14 = vst [vmem:[%s1] sm:$0x1] 0.0
    %15 = vst [vmem:[%s2] sm:$0x1] 0.0
  $region9: #{bottleneck_forward.13} parent=0 // pred_fallthru
    _
  %v16 = vld [vmem:[%s0] sm:$0xff]
  %v17 = vld [vmem:[%s0 + $0x8] sm:$0xff]
  %v18 = vld [vmem:[%s0 + $0x10] sm:$0xff]
  %v19 = vld [vmem:[%s0 + $0x18] sm:$0xff]
  %v20 = vld [vmem:[%s0 + $0x20] sm:$0xff]
  %v21 = vld [vmem:[%s0 + $0x28] sm:$0xff]
  %v22 = vld [vmem:[%s0 + $0x30] sm:$0xff]
  %v23 = vld [vmem:[%s0 + $0x38] sm:$0xff]
  %v24 = vld [vmem:[%s0 + $0x40] sm:$0xff]
  %v25 = vld [vmem:[%s0 + $0x48] sm:$0xff]
  %v26 = vld [vmem:[%s0 + $0x50] sm:$0xff]
  %v27 = vld [vmem:[%s0 + $0x58] sm:$0xff]
  %v28 = vld [vmem:[%s0 + $0x60] sm:$0xff]
  %v29 = vld [vmem:[%s0 + $0x68] sm:$0xff]
  %v30 = vld [vmem:[%s0 + $0x70] sm:$0xff]
  %v31 = vld [vmem:[%s0 + $0x78] sm:$0xff]
  %v32 = vld [vmem:[%s0 + $0x80] sm:$0xff]
  %v33 = vld [vmem:[%s0 + $0x88] sm:$0xff]
  %v34 = vld [vmem:[%s0 + $0x90] sm:$0xff]
  %v35 = vld [vmem:[%s0 + $0x98] sm:$0xff]
  %v36 = vld [vmem:[%s0 + $0xa0] sm:$0xff]
  %v37 = vld [vmem:[%s0 + $0xa8] sm:$0xff]
  %v38 = vld [vmem:[%s0 + $0xb0] sm:$0xff]
  %v39 = vld [vmem:[%s0 + $0xb8] sm:$0xff]
  %v40 = vld [vmem:[%s0 + $0xc0] sm:$0xff]
  %v41 = vld [vmem:[%s0 + $0xc8] sm:$0xff]
  %v42 = vld [vmem:[%s0 + $0xd0] sm:$0xff]
  %v43 = vld [vmem:[%s0 + $0xd8] sm:$0xff]
  %v44 = vld [vmem:[%s0 + $0xe0] sm:$0xff]
  %v45 = vld [vmem:[%s0 + $0xe8] sm:$0xff]
  %v46 = vld [vmem:[%s0 + $0xf0] sm:$0xff]
  %v47 = vld [vmem:[%s0 + $0xf8] sm:$0xff]
  %v48 = vld [vmem:[%s0 + $0x100] sm:$0xff]
  %v49 = vld [vmem:[%s0 + $0x108] sm:$0xff]
  %v50 = vld [vmem:[%s0 + $0x110] sm:$0xff]
  %v51 = vld [vmem:[%s0 + $0x118] sm:$0xff]
  %v52 = vld [vmem:[%s0 + $0x120] sm:$0xff]
  %v53 = vld [vmem:[%s0 + $0x128] sm:$0xff]
  %v54 = vld [vmem:[%s0 + $0x130] sm:$0xff]
  %v55 = vld [vmem:[%s0 + $0x138] sm:$0xff]
  %v56 = vld [vmem:[%s0 + $0x140] sm:$0xff]
  %v57 = vld [vmem:[%s0 + $0x148] sm:$0xff]
  %v58 = vld [vmem:[%s0 + $0x150] sm:$0xff]
  %v59 = vld [vmem:[%s0 + $0x158] sm:$0xff]
  %v60 = vld [vmem:[%s0 + $0x160] sm:$0xff]
  %v61 = vld [vmem:[%s0 + $0x168] sm:$0xff]
  %v62 = vld [vmem:[%s0 + $0x170] sm:$0xff]
  %v63 = vld [vmem:[%s0 + $0x178] sm:$0xff]
  %v64 = vld [vmem:[%s0 + $0x180] sm:$0xff]
  %v65 = vld [vmem:[%s0 + $0x188] sm:$0xff]
  %v66 = vld [vmem:[%s0 + $0x190] sm:$0xff]
  %v67 = vld [vmem:[%s0 + $0x198] sm:$0xff]
  %v68 = vld [vmem:[%s0 + $0x1a0] sm:$0xff]
  %v69 = vld [vmem:[%s0 + $0x1a8] sm:$0xff]
  %v70 = vld [vmem:[%s0 + $0x1b0] sm:$0xff]
  %v71 = vld [vmem:[%s0 + $0x1b8] sm:$0xff]
  %v72 = vld [vmem:[%s0 + $0x1c0] sm:$0xff]
  %v73 = vld [vmem:[%s0 + $0x1c8] sm:$0xff]
  %v74 = vld [vmem:[%s0 + $0x1d0] sm:$0xff]
  %v75 = vld [vmem:[%s0 + $0x1d8] sm:$0xff]
  %v76 = vld [vmem:[%s0 + $0x1e0] sm:$0xff]
  %v77 = vld [vmem:[%s0 + $0x1e8] sm:$0xff]
  %v78 = vld [vmem:[%s0 + $0x1f0] sm:$0xff]
  %v79 = vld [vmem:[%s0 + $0x1f8] sm:$0xff]
  %v80 = vld [vmem:[%s1] sm:$0x1]
  %v81 = vadd.f32 %v16, %v17
  %v82 = vadd.f32 %v81, %v18
  %v83 = vadd.f32 %v82, %v19
  %v84 = vadd.f32 %v83, %v20
  %v85 = vadd.f32 %v84, %v21
  %v86 = vadd.f32 %v85, %v22
  %v87 = vadd.f32 %v86, %v23
  %v88 = vadd.f32 %v87, %v24
  %v89 = vadd.f32 %v88, %v25
  %v90 = vadd.f32 %v89, %v26
  %v91 = vadd.f32 %v90, %v27
  %v92 = vadd.f32 %v91, %v28
  %v93 = vadd.f32 %v92, %v29
  %v94 = vadd.f32 %v93, %v30
  %v95 = vadd.f32 %v94, %v31
  %v96 = vadd.f32 %v95, %v32
  %v97 = vadd.f32 %v96, %v33
  %v98 = vadd.f32 %v97, %v34
  %v99 = vadd.f32 %v98, %v35
  %v100 = vadd.f32 %v99, %v36
  %v101 = vadd.f32 %v100, %v37
  %v102 = vadd.f32 %v101, %v38
  %v103 = vadd.f32 %v102, %v39
  %v104 = vadd.f32 %v103, %v40
  %v105 = vadd.f32 %v104, %v41
  %v106 = vadd.f32 %v105, %v42
  %v107 = vadd.f32 %v106, %v43
  %v108 = vadd.f32 %v107, %v44
  %v109 = vadd.f32 %v108, %v45
  %v110 = vadd.f32 %v109, %v46
  %v111 = vadd.f32 %v110, %v47
  %v112 = vadd.f32 %v111, %v48
  %v113 = vadd.f32 %v112, %v49
  %v114 = vadd.f32 %v113, %v50
  %v115 = vadd.f32 %v114, %v51
  %v116 = vadd.f32 %v115, %v52
  %v117 = vadd.f32 %v116, %v53
  %v118 = vadd.f32 %v117, %v54
  %v119 = vadd.f32 %v118, %v55
  %v120 = vadd.f32 %v119, %v56
  %v121 = vadd.f32 %v120, %v57
  %v122 = vadd.f32 %v121, %v58
  %v123 = vadd.f32 %v122, %v59
  %v124 = vadd.f32 %v123, %v60
  %v125 = vadd.f32 %v124, %v61
  %v126 = vadd.f32 %v125, %v62
  %v127 = vadd.f32 %v126, %v63
  %v128 = vadd.f32 %v127, %v64
  %v129 = vadd.f32 %v128, %v65
  %v130 = vadd.f32 %v129, %v66
  %v131 = vadd.f32 %v130, %v67
  %v132 = vadd.f32 %v131, %v68
  %v133 = vadd.f32 %v132, %v69
  %v134 = vadd.f32 %v133, %v70
  %v135 = vadd.f32 %v134, %v71
  %v136 = vadd.f32 %v135, %v72
  %v137 = vadd.f32 %v136, %v73
  %v138 = vadd.f32 %v137, %v74
  %v139 = vadd.f32 %v138, %v75
  %v140 = vadd.f32 %v139, %v76
  %v141 = vadd.f32 %v140, %v77
  %v142 = vadd.f32 %v141, %v78
  %v143 = vadd.f32 %v142, %v79
  %v144 = vrot.slane %v143, 4
  %v145 = vadd.f32 %v143, %v144
  %v146 = vrot.slane %v145, 2
  %v147 = vadd.f32 %v145, %v146
  %v148 = vrot.slane %v147, 1
  %v149 = vadd.f32 %v147, %v148
  %v150 = vadd.f32 %v80, %v149
  %151 = vst [vmem:[%s1] sm:$0x1] %v150
  %v152 = vld [vmem:[%s2] sm:$0x1]
  %v153 = vmul.f32 %v16, %v16
  %v154 = vmul.f32 %v17, %v17
  %v155 = vmul.f32 %v18, %v18
  %v156 = vmul.f32 %v19, %v19
  %v157 = vmul.f32 %v20, %v20
  %v158 = vmul.f32 %v21, %v21
  %v159 = vmul.f32 %v22, %v22
  %v160 = vmul.f32 %v23, %v23
  %v161 = vmul.f32 %v24, %v24
  %v162 = vmul.f32 %v25, %v25
  %v163 = vmul.f32 %v26, %v26
  %v164 = vmul.f32 %v27, %v27
  %v165 = vmul.f32 %v28, %v28
  %v166 = vmul.f32 %v29, %v29
  %v167 = vmul.f32 %v30, %v30
  %v168 = vmul.f32 %v31, %v31
  %v169 = vmul.f32 %v32, %v32
  %v170 = vmul.f32 %v33, %v33
  %v171 = vmul.f32 %v34, %v34
  %v172 = vmul.f32 %v35, %v35
  %v173 = vmul.f32 %v36, %v36
  %v174 = vmul.f32 %v37, %v37
  %v175 = vmul.f32 %v38, %v38
  %v176 = vmul.f32 %v39, %v39
  %v177 = vmul.f32 %v40, %v40
  %v178 = vmul.f32 %v41, %v41
  %v179 = vmul.f32 %v42, %v42
  %v180 = vmul.f32 %v43, %v43
  %v181 = vmul.f32 %v44, %v44
  %v182 = vmul.f32 %v45, %v45
  %v183 = vmul.f32 %v46, %v46
  %v184 = vmul.f32 %v47, %v47
  %v185 = vmul.f32 %v48, %v48
  %v186 = vmul.f32 %v49, %v49
  %v187 = vmul.f32 %v50, %v50
  %v188 = vmul.f32 %v51, %v51
  %v189 = vmul.f32 %v52, %v52
  %v190 = vmul.f32 %v53, %v53
  %v191 = vmul.f32 %v54, %v54
  %v192 = vmul.f32 %v55, %v55
  %v193 = vmul.f32 %v56, %v56
  %v194 = vmul.f32 %v57, %v57
  %v195 = vmul.f32 %v58, %v58
  %v196 = vmul.f32 %v59, %v59
  %v197 = vmul.f32 %v60, %v60
  %v198 = vmul.f32 %v61, %v61
  %v199 = vmul.f32 %v62, %v62
  %v200 = vmul.f32 %v63, %v63
  %v201 = vmul.f32 %v64, %v64
  %v202 = vmul.f32 %v65, %v65
  %v203 = vmul.f32 %v66, %v66
  %v204 = vmul.f32 %v67, %v67
  %v205 = vmul.f32 %v68, %v68
  %v206 = vmul.f32 %v69, %v69
  %v207 = vmul.f32 %v70, %v70
  %v208 = vmul.f32 %v71, %v71
  %v209 = vmul.f32 %v72, %v72
  %v210 = vmul.f32 %v73, %v73
  %v211 = vmul.f32 %v74, %v74
  %v212 = vmul.f32 %v75, %v75
  %v213 = vmul.f32 %v76, %v76
  %v214 = vmul.f32 %v77, %v77
  %v215 = vmul.f32 %v78, %v78
  %v216 = vmul.f32 %v79, %v79
  %v217 = vadd.f32 %v153, %v154
  %v218 = vadd.f32 %v217, %v155
  %v219 = vadd.f32 %v218, %v156
  %v220 = vadd.f32 %v219, %v157
  %v221 = vadd.f32 %v220, %v158
  %v222 = vadd.f32 %v221, %v159
  %v223 = vadd.f32 %v222, %v160
  %v224 = vadd.f32 %v223, %v161
  %v225 = vadd.f32 %v224, %v162
  %v226 = vadd.f32 %v225, %v163
  %v227 = vadd.f32 %v226, %v164
  %v228 = vadd.f32 %v227, %v165
  %v229 = vadd.f32 %v228, %v166
  %v230 = vadd.f32 %v229, %v167
  %v231 = vadd.f32 %v230, %v168
  %v232 = vadd.f32 %v231, %v169
  %v233 = vadd.f32 %v232, %v170
  %v234 = vadd.f32 %v233, %v171
  %v235 = vadd.f32 %v234, %v172
  %v236 = vadd.f32 %v235, %v173
  %v237 = vadd.f32 %v236, %v174
  %v238 = vadd.f32 %v237, %v175
  %v239 = vadd.f32 %v238, %v176
  %v240 = vadd.f32 %v239, %v177
  %v241 = vadd.f32 %v240, %v178
  %v242 = vadd.f32 %v241, %v179
  %v243 = vadd.f32 %v242, %v180
  %v244 = vadd.f32 %v243, %v181
  %v245 = vadd.f32 %v244, %v182
  %v246 = vadd.f32 %v245, %v183
  %v247 = vadd.f32 %v246, %v184
  %v248 = vadd.f32 %v247, %v185
  %v249 = vadd.f32 %v248, %v186
  %v250 = vadd.f32 %v249, %v187
  %v251 = vadd.f32 %v250, %v188
  %v252 = vadd.f32 %v251, %v189
  %v253 = vadd.f32 %v252, %v190
  %v254 = vadd.f32 %v253, %v191
  %v255 = vadd.f32 %v254, %v192
  %v256 = vadd.f32 %v255, %v193
  %v257 = vadd.f32 %v256, %v194
  %v258 = vadd.f32 %v257, %v195
  %v259 = vadd.f32 %v258, %v196
  %v260 = vadd.f32 %v259, %v197
  %v261 = vadd.f32 %v260, %v198
  %v262 = vadd.f32 %v261, %v199
  %v263 = vadd.f32 %v262, %v200
  %v264 = vadd.f32 %v263, %v201
  %v265 = vadd.f32 %v264, %v202
  %v266 = vadd.f32 %v265, %v203
  %v267 = vadd.f32 %v266, %v204
  %v268 = vadd.f32 %v267, %v205
  %v269 = vadd.f32 %v268, %v206
  %v270 = vadd.f32 %v269, %v207
  %v271 = vadd.f32 %v270, %v208
  %v272 = vadd.f32 %v271, %v209
  %v273 = vadd.f32 %v272, %v210
  %v274 = vadd.f32 %v273, %v211
  %v275 = vadd.f32 %v274, %v212
  %v276 = vadd.f32 %v275, %v213
  %v277 = vadd.f32 %v276, %v214
  %v278 = vadd.f32 %v277, %v215
  %v279 = vadd.f32 %v278, %v216
  %v280 = vrot.slane %v279, 4
  %v281 = vadd.f32 %v279, %v280
  %v282 = vrot.slane %v281, 2
  %v283 = vadd.f32 %v281, %v282
  %v284 = vrot.slane %v283, 1
  %v285 = vadd.f32 %v283, %v284
  %v286 = vadd.f32 %v152, %v285
  %287 = vst [vmem:[%s2] sm:$0x1] %v286
  // Predicated region
  $region10: #{bottleneck_forward.13} parent=0 // pred_check
    _
  $region11: #{bottleneck_forward.13} parent=0 // pred_check_branch
    %289 = sbr.rel (0) target = $region13
  $region12: #{bottleneck_forward.13} parent=0 // pred_region
    _
  $region13: #{bottleneck_forward.13} parent=0 // pred_fallthru
    _
  // Predicated region
  $region14: #{bottleneck_forward.13} parent=0 // pred_check
    _
  $region15: #{bottleneck_forward.13} parent=0 // pred_check_branch
    %291 = sbr.rel (0) target = $region17
  $region16: #{bottleneck_forward.13} parent=0 // pred_region
    _
  $region17: #{bottleneck_forward.13} parent=0 // pred_fallthru
    _
  // Predicated region
  $region18: #{bottleneck_forward.13} parent=0 // pred_check
    _
  $region19: #{bottleneck_forward.13} parent=0 // pred_check_branch
    %293 = sbr.rel (0) target = $region21
  $region20: #{bottleneck_forward.13} parent=0 // pred_region
    _
  $region21: #{bottleneck_forward.13} parent=0 // pred_fallthru
    _
  // Predicated region
  $region22: #{bottleneck_forward.13} parent=0 // pred_check
    _
  $region23: #{bottleneck_forward.13} parent=0 // pred_check_branch
    %295 = sbr.rel (0) target = $region25
  $region24: #{bottleneck_forward.13} parent=0 // pred_region
    _
  $region25: #{bottleneck_forward.13} parent=0 // pred_fallthru
    _

// kernel: bottleneck_forward.14
$region0: #{bottleneck_forward.14}
  #allocation0 [shape = 'u32[]', space=smem, size = 0x4, offset = 0x4, fixed_abs, tag = 'smem constant byte address 0x4 - core index']
  #allocation1 [shape = 'u32[144,128]{1,0:T(1,128)}', space=vmem, size = 0x12000, scoped, tag = 'internal scratch']
  %s0 = inlined_call_operand.vmem [shape: f32[512,128], index: 0, kind: input, shape index: {}]
  %s1 = inlined_call_operand.vmem [shape: f32[1,128], index: 1, kind: input, shape index: {}]
  %s2 = inlined_call_operand.vmem [shape: f32[1,128], index: 2, kind: input, shape index: {}]
  %s3 = inlined_call_operand.vmem [shape: bf16[512,128], index: 3, kind: output, shape index: {}]
  %s4 = sld [smem:[#allocation0]]
  $region22: #{bottleneck_forward.14} parent=0
    _
  %s6 = ssub.s32 1, %s4
  %s7 = scalar_select 0, %s6, %s4
  // Predicated region
  $region2: #{bottleneck_forward.14} parent=0 // pred_check
    _
  $region3: #{bottleneck_forward.14} parent=0 // pred_check_branch
    %9 = sbr.rel (0) target = $region5
  $region4: #{bottleneck_forward.14} parent=0 // pred_region
    _
  $region5: #{bottleneck_forward.14} parent=0 // pred_fallthru
    _
  // Predicated region
  $region6: #{bottleneck_forward.14} parent=0 // pred_check
    _
  $region7: #{bottleneck_forward.14} parent=0 // pred_check_branch
    %11 = sbr.rel (0) target = $region9
  $region8: #{bottleneck_forward.14} parent=0 // pred_region
    _
  $region9: #{bottleneck_forward.14} parent=0 // pred_fallthru
    _
  // Predicated region
  $region10: #{bottleneck_forward.14} parent=0 // pred_check
    _
  $region11: #{bottleneck_forward.14} parent=0 // pred_check_branch
    %13 = sbr.rel (0) target = $region13
  $region12: #{bottleneck_forward.14} parent=0 // pred_region
    _
  $region13: #{bottleneck_forward.14} parent=0 // pred_fallthru
    _
  %v14 = vld [vmem:[%s0] sm:$0xff]
  %v15 = vld [vmem:[%s0 + $0x8] sm:$0xff]
  %v16 = vld [vmem:[%s0 + $0x10] sm:$0xff]
  %v17 = vld [vmem:[%s0 + $0x18] sm:$0xff]
  %v18 = vld [vmem:[%s0 + $0x20] sm:$0xff]
  %v19 = vld [vmem:[%s0 + $0x28] sm:$0xff]
  %v20 = vld [vmem:[%s0 + $0x30] sm:$0xff]
  %v21 = vld [vmem:[%s0 + $0x38] sm:$0xff]
  %v22 = vld [vmem:[%s0 + $0x40] sm:$0xff]
  %v23 = vld [vmem:[%s0 + $0x48] sm:$0xff]
  %v24 = vld [vmem:[%s0 + $0x50] sm:$0xff]
  %v25 = vld [vmem:[%s0 + $0x58] sm:$0xff]
  %v26 = vld [vmem:[%s0 + $0x60] sm:$0xff]
  %v27 = vld [vmem:[%s0 + $0x68] sm:$0xff]
  %v28 = vld [vmem:[%s0 + $0x70] sm:$0xff]
  %v29 = vld [vmem:[%s0 + $0x78] sm:$0xff]
  %v30 = vld [vmem:[%s0 + $0x80] sm:$0xff]
  %v31 = vld [vmem:[%s0 + $0x88] sm:$0xff]
  %v32 = vld [vmem:[%s0 + $0x90] sm:$0xff]
  %v33 = vld [vmem:[%s0 + $0x98] sm:$0xff]
  %v34 = vld [vmem:[%s0 + $0xa0] sm:$0xff]
  %v35 = vld [vmem:[%s0 + $0xa8] sm:$0xff]
  %v36 = vld [vmem:[%s0 + $0xb0] sm:$0xff]
  %v37 = vld [vmem:[%s0 + $0xb8] sm:$0xff]
  %v38 = vld [vmem:[%s0 + $0xc0] sm:$0xff]
  %v39 = vld [vmem:[%s0 + $0xc8] sm:$0xff]
  %v40 = vld [vmem:[%s0 + $0xd0] sm:$0xff]
  %v41 = vld [vmem:[%s0 + $0xd8] sm:$0xff]
  %v42 = vld [vmem:[%s0 + $0xe0] sm:$0xff]
  %v43 = vld [vmem:[%s0 + $0xe8] sm:$0xff]
  %v44 = vld [vmem:[%s0 + $0xf0] sm:$0xff]
  %v45 = vld [vmem:[%s0 + $0xf8] sm:$0xff]
  %v46 = vld [vmem:[%s0 + $0x100] sm:$0xff]
  %v47 = vld [vmem:[%s0 + $0x108] sm:$0xff]
  %v48 = vld [vmem:[%s0 + $0x110] sm:$0xff]
  %v49 = vld [vmem:[%s0 + $0x118] sm:$0xff]
  %v50 = vld [vmem:[%s0 + $0x120] sm:$0xff]
  %v51 = vld [vmem:[%s0 + $0x128] sm:$0xff]
  %v52 = vld [vmem:[%s0 + $0x130] sm:$0xff]
  %v53 = vld [vmem:[%s0 + $0x138] sm:$0xff]
  %v54 = vld [vmem:[%s0 + $0x140] sm:$0xff]
  %v55 = vld [vmem:[%s0 + $0x148] sm:$0xff]
  %v56 = vld [vmem:[%s0 + $0x150] sm:$0xff]
  %v57 = vld [vmem:[%s0 + $0x158] sm:$0xff]
  %v58 = vld [vmem:[%s0 + $0x160] sm:$0xff]
  %v59 = vld [vmem:[%s0 + $0x168] sm:$0xff]
  %v60 = vld [vmem:[%s0 + $0x170] sm:$0xff]
  %v61 = vld [vmem:[%s0 + $0x178] sm:$0xff]
  %v62 = vld [vmem:[%s0 + $0x180] sm:$0xff]
  %v63 = vld [vmem:[%s0 + $0x188] sm:$0xff]
  %v64 = vld [vmem:[%s0 + $0x190] sm:$0xff]
  %v65 = vld [vmem:[%s0 + $0x198] sm:$0xff]
  %v66 = vld [vmem:[%s0 + $0x1a0] sm:$0xff]
  %v67 = vld [vmem:[%s0 + $0x1a8] sm:$0xff]
  %v68 = vld [vmem:[%s0 + $0x1b0] sm:$0xff]
  %v69 = vld [vmem:[%s0 + $0x1b8] sm:$0xff]
  %v70 = vld [vmem:[%s0 + $0x1c0] sm:$0xff]
  %v71 = vld [vmem:[%s0 + $0x1c8] sm:$0xff]
  %v72 = vld [vmem:[%s0 + $0x1d0] sm:$0xff]
  %v73 = vld [vmem:[%s0 + $0x1d8] sm:$0xff]
  %v74 = vld [vmem:[%s0 + $0x1e0] sm:$0xff]
  %v75 = vld [vmem:[%s0 + $0x1e8] sm:$0xff]
  %v76 = vld [vmem:[%s0 + $0x1f0] sm:$0xff]
  %v77 = vld [vmem:[%s0 + $0x1f8] sm:$0xff]
  %v78 = vld [vmem:[%s1] sm:$0x1]
  %v80 = vlaneseq
  %v81 = vshrl.u32 %v80, 7
  %v82 = vsub.s32 0, %v81
  %v83 = vrot.slane %v78, %v82
  %v85 = vmul.f32 %v14, %v83
  %v86 = vmul.f32 %v15, %v83
  %v87 = vmul.f32 %v16, %v83
  %v88 = vmul.f32 %v17, %v83
  %v89 = vmul.f32 %v18, %v83
  %v90 = vmul.f32 %v19, %v83
  %v91 = vmul.f32 %v20, %v83
  %v92 = vmul.f32 %v21, %v83
  %v93 = vmul.f32 %v22, %v83
  %v94 = vmul.f32 %v23, %v83
  %v95 = vmul.f32 %v24, %v83
  %v96 = vmul.f32 %v25, %v83
  %v97 = vmul.f32 %v26, %v83
  %v98 = vmul.f32 %v27, %v83
  %v99 = vmul.f32 %v28, %v83
  %v100 = vmul.f32 %v29, %v83
  %v101 = vmul.f32 %v30, %v83
  %v102 = vmul.f32 %v31, %v83
  %v103 = vmul.f32 %v32, %v83
  %v104 = vmul.f32 %v33, %v83
  %v105 = vmul.f32 %v34, %v83
  %v106 = vmul.f32 %v35, %v83
  %v107 = vmul.f32 %v36, %v83
  %v108 = vmul.f32 %v37, %v83
  %v109 = vmul.f32 %v38, %v83
  %v110 = vmul.f32 %v39, %v83
  %v111 = vmul.f32 %v40, %v83
  %v112 = vmul.f32 %v41, %v83
  %v113 = vmul.f32 %v42, %v83
  %v114 = vmul.f32 %v43, %v83
  %v115 = vmul.f32 %v44, %v83
  %v116 = vmul.f32 %v45, %v83
  %v117 = vmul.f32 %v46, %v83
  %v118 = vmul.f32 %v47, %v83
  %v119 = vmul.f32 %v48, %v83
  %v120 = vmul.f32 %v49, %v83
  %v121 = vmul.f32 %v50, %v83
  %v122 = vmul.f32 %v51, %v83
  %v123 = vmul.f32 %v52, %v83
  %v124 = vmul.f32 %v53, %v83
  %v125 = vmul.f32 %v54, %v83
  %v126 = vmul.f32 %v55, %v83
  %v127 = vmul.f32 %v56, %v83
  %v128 = vmul.f32 %v57, %v83
  %v129 = vmul.f32 %v58, %v83
  %v130 = vmul.f32 %v59, %v83
  %v131 = vmul.f32 %v60, %v83
  %v132 = vmul.f32 %v61, %v83
  %v133 = vmul.f32 %v62, %v83
  %v134 = vmul.f32 %v63, %v83
  %v135 = vmul.f32 %v64, %v83
  %v136 = vmul.f32 %v65, %v83
  %v137 = vmul.f32 %v66, %v83
  %v138 = vmul.f32 %v67, %v83
  %v139 = vmul.f32 %v68, %v83
  %v140 = vmul.f32 %v69, %v83
  %v141 = vmul.f32 %v70, %v83
  %v142 = vmul.f32 %v71, %v83
  %v143 = vmul.f32 %v72, %v83
  %v144 = vmul.f32 %v73, %v83
  %v145 = vmul.f32 %v74, %v83
  %v146 = vmul.f32 %v75, %v83
  %v147 = vmul.f32 %v76, %v83
  %v148 = vmul.f32 %v77, %v83
  %v149 = vld [vmem:[%s2] sm:$0x1]
  %v151 = vlaneseq
  %v152 = vshrl.u32 %v151, 7
  %v153 = vsub.s32 0, %v152
  %v154 = vrot.slane %v149, %v153
  %v156 = vadd.f32 %v85, %v154
  %v157 = vadd.f32 %v86, %v154
  %v158 = vadd.f32 %v87, %v154
  %v159 = vadd.f32 %v88, %v154
  %v160 = vadd.f32 %v89, %v154
  %v161 = vadd.f32 %v90, %v154
  %v162 = vadd.f32 %v91, %v154
  %v163 = vadd.f32 %v92, %v154
  %v164 = vadd.f32 %v93, %v154
  %v165 = vadd.f32 %v94, %v154
  %v166 = vadd.f32 %v95, %v154
  %v167 = vadd.f32 %v96, %v154
  %v168 = vadd.f32 %v97, %v154
  %v169 = vadd.f32 %v98, %v154
  %v170 = vadd.f32 %v99, %v154
  %v171 = vadd.f32 %v100, %v154
  %v172 = vadd.f32 %v101, %v154
  %v173 = vadd.f32 %v102, %v154
  %v174 = vadd.f32 %v103, %v154
  %v175 = vadd.f32 %v104, %v154
  %v176 = vadd.f32 %v105, %v154
  %v177 = vadd.f32 %v106, %v154
  %v178 = vadd.f32 %v107, %v154
  %v179 = vadd.f32 %v108, %v154
  %v180 = vadd.f32 %v109, %v154
  %v181 = vadd.f32 %v110, %v154
  %v182 = vadd.f32 %v111, %v154
  %v183 = vadd.f32 %v112, %v154
  %v184 = vadd.f32 %v113, %v154
  %v185 = vadd.f32 %v114, %v154
  %v186 = vadd.f32 %v115, %v154
  %v187 = vadd.f32 %v116, %v154
  %v188 = vadd.f32 %v117, %v154
  %v189 = vadd.f32 %v118, %v154
  %v190 = vadd.f32 %v119, %v154
  %v191 = vadd.f32 %v120, %v154
  %v192 = vadd.f32 %v121, %v154
  %v193 = vadd.f32 %v122, %v154
  %v194 = vadd.f32 %v123, %v154
  %v195 = vadd.f32 %v124, %v154
  %v196 = vadd.f32 %v125, %v154
  %v197 = vadd.f32 %v126, %v154
  %v198 = vadd.f32 %v127, %v154
  %v199 = vadd.f32 %v128, %v154
  %v200 = vadd.f32 %v129, %v154
  %v201 = vadd.f32 %v130, %v154
  %v202 = vadd.f32 %v131, %v154
  %v203 = vadd.f32 %v132, %v154
  %v204 = vadd.f32 %v133, %v154
  %v205 = vadd.f32 %v134, %v154
  %v206 = vadd.f32 %v135, %v154
  %v207 = vadd.f32 %v136, %v154
  %v208 = vadd.f32 %v137, %v154
  %v209 = vadd.f32 %v138, %v154
  %v210 = vadd.f32 %v139, %v154
  %v211 = vadd.f32 %v140, %v154
  %v212 = vadd.f32 %v141, %v154
  %v213 = vadd.f32 %v142, %v154
  %v214 = vadd.f32 %v143, %v154
  %v215 = vadd.f32 %v144, %v154
  %v216 = vadd.f32 %v145, %v154
  %v217 = vadd.f32 %v146, %v154
  %v218 = vadd.f32 %v147, %v154
  %v219 = vadd.f32 %v148, %v154
  %v220 = vmax.f32 %v156, 0.0
  %v221 = vmax.f32 %v157, 0.0
  %v222 = vmax.f32 %v158, 0.0
  %v223 = vmax.f32 %v159, 0.0
  %v224 = vmax.f32 %v160, 0.0
  %v225 = vmax.f32 %v161, 0.0
  %v226 = vmax.f32 %v162, 0.0
  %v227 = vmax.f32 %v163, 0.0
  %v228 = vmax.f32 %v164, 0.0
  %v229 = vmax.f32 %v165, 0.0
  %v230 = vmax.f32 %v166, 0.0
  %v231 = vmax.f32 %v167, 0.0
  %v232 = vmax.f32 %v168, 0.0
  %v233 = vmax.f32 %v169, 0.0
  %v234 = vmax.f32 %v170, 0.0
  %v235 = vmax.f32 %v171, 0.0
  %v236 = vmax.f32 %v172, 0.0
  %v237 = vmax.f32 %v173, 0.0
  %v238 = vmax.f32 %v174, 0.0
  %v239 = vmax.f32 %v175, 0.0
  %v240 = vmax.f32 %v176, 0.0
  %v241 = vmax.f32 %v177, 0.0
  %v242 = vmax.f32 %v178, 0.0
  %v243 = vmax.f32 %v179, 0.0
  %v244 = vmax.f32 %v180, 0.0
  %v245 = vmax.f32 %v181, 0.0
  %v246 = vmax.f32 %v182, 0.0
  %v247 = vmax.f32 %v183, 0.0
  %v248 = vmax.f32 %v184, 0.0
  %v249 = vmax.f32 %v185, 0.0
  %v250 = vmax.f32 %v186, 0.0
  %v251 = vmax.f32 %v187, 0.0
  %v252 = vmax.f32 %v188, 0.0
  %v253 = vmax.f32 %v189, 0.0
  %v254 = vmax.f32 %v190, 0.0
  %v255 = vmax.f32 %v191, 0.0
  %v256 = vmax.f32 %v192, 0.0
  %v257 = vmax.f32 %v193, 0.0
  %v258 = vmax.f32 %v194, 0.0
  %v259 = vmax.f32 %v195, 0.0
  %v260 = vmax.f32 %v196, 0.0
  %v261 = vmax.f32 %v197, 0.0
  %v262 = vmax.f32 %v198, 0.0
  %v263 = vmax.f32 %v199, 0.0
  %v264 = vmax.f32 %v200, 0.0
  %v265 = vmax.f32 %v201, 0.0
  %v266 = vmax.f32 %v202, 0.0
  %v267 = vmax.f32 %v203, 0.0
  %v268 = vmax.f32 %v204, 0.0
  %v269 = vmax.f32 %v205, 0.0
  %v270 = vmax.f32 %v206, 0.0
  %v271 = vmax.f32 %v207, 0.0
  %v272 = vmax.f32 %v208, 0.0
  %v273 = vmax.f32 %v209, 0.0
  %v274 = vmax.f32 %v210, 0.0
  %v275 = vmax.f32 %v211, 0.0
  %v276 = vmax.f32 %v212, 0.0
  %v277 = vmax.f32 %v213, 0.0
  %v278 = vmax.f32 %v214, 0.0
  %v279 = vmax.f32 %v215, 0.0
  %v280 = vmax.f32 %v216, 0.0
  %v281 = vmax.f32 %v217, 0.0
  %v282 = vmax.f32 %v218, 0.0
  %v283 = vmax.f32 %v219, 0.0
  %v284 = vpack.c.bf16 %v221, %v220
  %v285 = vpack.c.bf16 %v223, %v222
  %v286 = vpack.c.bf16 %v225, %v224
  %v287 = vpack.c.bf16 %v227, %v226
  %v288 = vpack.c.bf16 %v229, %v228
  %v289 = vpack.c.bf16 %v231, %v230
  %v290 = vpack.c.bf16 %v233, %v232
  %v291 = vpack.c.bf16 %v235, %v234
  %v292 = vpack.c.bf16 %v237, %v236
  %v293 = vpack.c.bf16 %v239, %v238
  %v294 = vpack.c.bf16 %v241, %v240
  %v295 = vpack.c.bf16 %v243, %v242
  %v296 = vpack.c.bf16 %v245, %v244
  %v297 = vpack.c.bf16 %v247, %v246
  %v298 = vpack.c.bf16 %v249, %v248
  %v299 = vpack.c.bf16 %v251, %v250
  %v300 = vpack.c.bf16 %v253, %v252
  %v301 = vpack.c.bf16 %v255, %v254
  %v302 = vpack.c.bf16 %v257, %v256
  %v303 = vpack.c.bf16 %v259, %v258
  %v304 = vpack.c.bf16 %v261, %v260
  %v305 = vpack.c.bf16 %v263, %v262
  %v306 = vpack.c.bf16 %v265, %v264
  %v307 = vpack.c.bf16 %v267, %v266
  %v308 = vpack.c.bf16 %v269, %v268
  %v309 = vpack.c.bf16 %v271, %v270
  %v310 = vpack.c.bf16 %v273, %v272
  %v311 = vpack.c.bf16 %v275, %v274
  %v312 = vpack.c.bf16 %v277, %v276
  %v313 = vpack.c.bf16 %v279, %v278
  %v314 = vpack.c.bf16 %v281, %v280
  %v315 = vpack.c.bf16 %v283, %v282
  %v348 = vunpack.c.l.b16 %v284
  %v349 = vunpack.c.h.b16 %v284
  %v350 = vunpack.c.l.b16 %v285
  %v351 = vunpack.c.h.b16 %v285
  %v352 = vunpack.c.l.b16 %v286
  %v353 = vunpack.c.h.b16 %v286
  %v354 = vunpack.c.l.b16 %v287
  %v355 = vunpack.c.h.b16 %v287
  %v356 = vunpack.c.l.b16 %v288
  %v357 = vunpack.c.h.b16 %v288
  %v358 = vunpack.c.l.b16 %v289
  %v359 = vunpack.c.h.b16 %v289
  %v360 = vunpack.c.l.b16 %v290
  %v361 = vunpack.c.h.b16 %v290
  %v362 = vunpack.c.l.b16 %v291
  %v363 = vunpack.c.h.b16 %v291
  %v364 = vunpack.c.l.b16 %v292
  %v365 = vunpack.c.h.b16 %v292
  %v366 = vunpack.c.l.b16 %v293
  %v367 = vunpack.c.h.b16 %v293
  %v368 = vunpack.c.l.b16 %v294
  %v369 = vunpack.c.h.b16 %v294
  %v370 = vunpack.c.l.b16 %v295
  %v371 = vunpack.c.h.b16 %v295
  %v372 = vunpack.c.l.b16 %v296
  %v373 = vunpack.c.h.b16 %v296
  %v374 = vunpack.c.l.b16 %v297
  %v375 = vunpack.c.h.b16 %v297
  %v376 = vunpack.c.l.b16 %v298
  %v377 = vunpack.c.h.b16 %v298
  %v378 = vunpack.c.l.b16 %v299
  %v379 = vunpack.c.h.b16 %v299
  %v380 = vunpack.c.l.b16 %v300
  %v381 = vunpack.c.h.b16 %v300
  %v382 = vunpack.c.l.b16 %v301
  %v383 = vunpack.c.h.b16 %v301
  %v384 = vunpack.c.l.b16 %v302
  %v385 = vunpack.c.h.b16 %v302
  %v386 = vunpack.c.l.b16 %v303
  %v387 = vunpack.c.h.b16 %v303
  %v388 = vunpack.c.l.b16 %v304
  %v389 = vunpack.c.h.b16 %v304
  %v390 = vunpack.c.l.b16 %v305
  %v391 = vunpack.c.h.b16 %v305
  %v392 = vunpack.c.l.b16 %v306
  %v393 = vunpack.c.h.b16 %v306
  %v394 = vunpack.c.l.b16 %v307
  %v395 = vunpack.c.h.b16 %v307
  %v396 = vunpack.c.l.b16 %v308
  %v397 = vunpack.c.h.b16 %v308
  %v398 = vunpack.c.l.b16 %v309
  %v399 = vunpack.c.h.b16 %v309
  %v400 = vunpack.c.l.b16 %v310
  %v401 = vunpack.c.h.b16 %v310
  %v402 = vunpack.c.l.b16 %v311
  %v403 = vunpack.c.h.b16 %v311
  %v404 = vunpack.c.l.b16 %v312
  %v405 = vunpack.c.h.b16 %v312
  %v406 = vunpack.c.l.b16 %v313
  %v407 = vunpack.c.h.b16 %v313
  %v408 = vunpack.c.l.b16 %v314
  %v409 = vunpack.c.h.b16 %v314
  %v410 = vunpack.c.l.b16 %v315
  %v411 = vunpack.c.h.b16 %v315
  %v412 = vpack.c.b16 %v348, %v348
  %v413 = vpack.c.b16 %v349, %v349
  %v414 = vpack.c.b16 %v350, %v350
  %v415 = vpack.c.b16 %v351, %v351
  %v416 = vpack.c.b16 %v352, %v352
  %v417 = vpack.c.b16 %v353, %v353
  %v418 = vpack.c.b16 %v354, %v354
  %v419 = vpack.c.b16 %v355, %v355
  %v420 = vpack.c.b16 %v356, %v356
  %v421 = vpack.c.b16 %v357, %v357
  %v422 = vpack.c.b16 %v358, %v358
  %v423 = vpack.c.b16 %v359, %v359
  %v424 = vpack.c.b16 %v360, %v360
  %v425 = vpack.c.b16 %v361, %v361
  %v426 = vpack.c.b16 %v362, %v362
  %v427 = vpack.c.b16 %v363, %v363
  %v428 = vpack.c.b16 %v364, %v364
  %v429 = vpack.c.b16 %v365, %v365
  %v430 = vpack.c.b16 %v366, %v366
  %v431 = vpack.c.b16 %v367, %v367
  %v432 = vpack.c.b16 %v368, %v368
  %v433 = vpack.c.b16 %v369, %v369
  %v434 = vpack.c.b16 %v370, %v370
  %v435 = vpack.c.b16 %v371, %v371
  %v436 = vpack.c.b16 %v372, %v372
  %v437 = vpack.c.b16 %v373, %v373
  %v438 = vpack.c.b16 %v374, %v374
  %v439 = vpack.c.b16 %v375, %v375
  %v440 = vpack.c.b16 %v376, %v376
  %v441 = vpack.c.b16 %v377, %v377
  %v442 = vpack.c.b16 %v378, %v378
  %v443 = vpack.c.b16 %v379, %v379
  %v444 = vpack.c.b16 %v380, %v380
  %v445 = vpack.c.b16 %v381, %v381
  %v446 = vpack.c.b16 %v382, %v382
  %v447 = vpack.c.b16 %v383, %v383
  %v448 = vpack.c.b16 %v384, %v384
  %v449 = vpack.c.b16 %v385, %v385
  %v450 = vpack.c.b16 %v386, %v386
  %v451 = vpack.c.b16 %v387, %v387
  %v452 = vpack.c.b16 %v388, %v388
  %v453 = vpack.c.b16 %v389, %v389
  %v454 = vpack.c.b16 %v390, %v390
  %v455 = vpack.c.b16 %v391, %v391
  %v456 = vpack.c.b16 %v392, %v392
  %v457 = vpack.c.b16 %v393, %v393
  %v458 = vpack.c.b16 %v394, %v394
  %v459 = vpack.c.b16 %v395, %v395
  %v460 = vpack.c.b16 %v396, %v396
  %v461 = vpack.c.b16 %v397, %v397
  %v462 = vpack.c.b16 %v398, %v398
  %v463 = vpack.c.b16 %v399, %v399
  %v464 = vpack.c.b16 %v400, %v400
  %v465 = vpack.c.b16 %v401, %v401
  %v466 = vpack.c.b16 %v402, %v402
  %v467 = vpack.c.b16 %v403, %v403
  %v468 = vpack.c.b16 %v404, %v404
  %v469 = vpack.c.b16 %v405, %v405
  %v470 = vpack.c.b16 %v406, %v406
  %v471 = vpack.c.b16 %v407, %v407
  %v472 = vpack.c.b16 %v408, %v408
  %v473 = vpack.c.b16 %v409, %v409
  %v474 = vpack.c.b16 %v410, %v410
  %v475 = vpack.c.b16 %v411, %v411
  %540 = vst [vmem:[%s3] sm:$0xf] %v412
  %541 = vst [vmem:[%s3 + $0x4] sm:$0xf] %v413
  %542 = vst [vmem:[%s3 + $0x8] sm:$0xf] %v414
  %543 = vst [vmem:[%s3 + $0xc] sm:$0xf] %v415
  %544 = vst [vmem:[%s3 + $0x10] sm:$0xf] %v416
  %545 = vst [vmem:[%s3 + $0x14] sm:$0xf] %v417
  %546 = vst [vmem:[%s3 + $0x18] sm:$0xf] %v418
  %547 = vst [vmem:[%s3 + $0x1c] sm:$0xf] %v419
  %548 = vst [vmem:[%s3 + $0x20] sm:$0xf] %v420
  %549 = vst [vmem:[%s3 + $0x24] sm:$0xf] %v421
  %550 = vst [vmem:[%s3 + $0x28] sm:$0xf] %v422
  %551 = vst [vmem:[%s3 + $0x2c] sm:$0xf] %v423
  %552 = vst [vmem:[%s3 + $0x30] sm:$0xf] %v424
  %553 = vst [vmem:[%s3 + $0x34] sm:$0xf] %v425
  %554 = vst [vmem:[%s3 + $0x38] sm:$0xf] %v426
  %555 = vst [vmem:[%s3 + $0x3c] sm:$0xf] %v427
  %556 = vst [vmem:[%s3 + $0x40] sm:$0xf] %v428
  %557 = vst [vmem:[%s3 + $0x44] sm:$0xf] %v429
  %558 = vst [vmem:[%s3 + $0x48] sm:$0xf] %v430
  %559 = vst [vmem:[%s3 + $0x4c] sm:$0xf] %v431
  %560 = vst [vmem:[%s3 + $0x50] sm:$0xf] %v432
  %561 = vst [vmem:[%s3 + $0x54] sm:$0xf] %v433
  %562 = vst [vmem:[%s3 + $0x58] sm:$0xf] %v434
  %563 = vst [vmem:[%s3 + $0x5c] sm:$0xf] %v435
  %564 = vst [vmem:[%s3 + $0x60] sm:$0xf] %v436
  %565 = vst [vmem:[%s3 + $0x64] sm:$0xf] %v437
  %566 = vst [vmem:[%s3 + $0x68] sm:$0xf] %v438
  %567 = vst [vmem:[%s3 + $0x6c] sm:$0xf] %v439
  %568 = vst [vmem:[%s3 + $0x70] sm:$0xf] %v440
  %569 = vst [vmem:[%s3 + $0x74] sm:$0xf] %v441
  %570 = vst [vmem:[%s3 + $0x78] sm:$0xf] %v442
  %571 = vst [vmem:[%s3 + $0x7c] sm:$0xf] %v443
  %572 = vst [vmem:[%s3 + $0x80] sm:$0xf] %v444
  %573 = vst [vmem:[%s3 + $0x84] sm:$0xf] %v445
  %574 = vst [vmem:[%s3 + $0x88] sm:$0xf] %v446
  %575 = vst [vmem:[%s3 + $0x8c] sm:$0xf] %v447
  %576 = vst [vmem:[%s3 + $0x90] sm:$0xf] %v448
  %577 = vst [vmem:[%s3 + $0x94] sm:$0xf] %v449
  %578 = vst [vmem:[%s3 + $0x98] sm:$0xf] %v450
  %579 = vst [vmem:[%s3 + $0x9c] sm:$0xf] %v451
  %580 = vst [vmem:[%s3 + $0xa0] sm:$0xf] %v452
  %581 = vst [vmem:[%s3 + $0xa4] sm:$0xf] %v453
  %582 = vst [vmem:[%s3 + $0xa8] sm:$0xf] %v454
  %583 = vst [vmem:[%s3 + $0xac] sm:$0xf] %v455
  %584 = vst [vmem:[%s3 + $0xb0] sm:$0xf] %v456
  %585 = vst [vmem:[%s3 + $0xb4] sm:$0xf] %v457
  %586 = vst [vmem:[%s3 + $0xb8] sm:$0xf] %v458
  %587 = vst [vmem:[%s3 + $0xbc] sm:$0xf] %v459
  %588 = vst [vmem:[%s3 + $0xc0] sm:$0xf] %v460
  %589 = vst [vmem:[%s3 + $0xc4] sm:$0xf] %v461
  %590 = vst [vmem:[%s3 + $0xc8] sm:$0xf] %v462
  %591 = vst [vmem:[%s3 + $0xcc] sm:$0xf] %v463
  %592 = vst [vmem:[%s3 + $0xd0] sm:$0xf] %v464
  %593 = vst [vmem:[%s3 + $0xd4] sm:$0xf] %v465
  %594 = vst [vmem:[%s3 + $0xd8] sm:$0xf] %v466
  %595 = vst [vmem:[%s3 + $0xdc] sm:$0xf] %v467
  %596 = vst [vmem:[%s3 + $0xe0] sm:$0xf] %v468
  %597 = vst [vmem:[%s3 + $0xe4] sm:$0xf] %v469
  %598 = vst [vmem:[%s3 + $0xe8] sm:$0xf] %v470
  %599 = vst [vmem:[%s3 + $0xec] sm:$0xf] %v471
  %600 = vst [vmem:[%s3 + $0xf0] sm:$0xf] %v472
  %601 = vst [vmem:[%s3 + $0xf4] sm:$0xf] %v473
  %602 = vst [vmem:[%s3 + $0xf8] sm:$0xf] %v474
  %603 = vst [vmem:[%s3 + $0xfc] sm:$0xf] %v475
  // Predicated region
  $region14: #{bottleneck_forward.14} parent=0 // pred_check
    _
  $region15: #{bottleneck_forward.14} parent=0 // pred_check_branch
    %605 = sbr.rel (0) target = $region17
  $region16: #{bottleneck_forward.14} parent=0 // pred_region
    _
  $region17: #{bottleneck_forward.14} parent=0 // pred_fallthru
    _
  // Predicated region
  $region18: #{bottleneck_forward.14} parent=0 // pred_check
    _
  $region19: #{bottleneck_forward.14} parent=0 // pred_check_branch
    %607 = sbr.rel (0) target = $region21
  $region20: #{bottleneck_forward.14} parent=0 // pred_region
    _
  $region21: #{bottleneck_forward.14} parent=0 // pred_fallthru
    _

// kernel: bottleneck_forward.12
$region0: #{bottleneck_forward.12}
  #allocation0 [shape = 'u32[]', space=smem, size = 0x4, offset = 0x4, fixed_abs, tag = 'smem constant byte address 0x4 - core index']
  #allocation1 [shape = 'u32[144,128]{1,0:T(1,128)}', space=vmem, size = 0x12000, scoped, tag = 'internal scratch']
  #allocation2 [shape = 'f32[256,128]{1,0:T(8,128)}', space=vmem, size = 0x20000, scoped, tag = 'scratch operand']
  %s0 = inlined_call_operand.vmem [shape: bf16[512,128], index: 0, kind: input, shape index: {}]
  %s1 = inlined_call_operand.vmem [shape: bf16[128,128], index: 1, kind: input, shape index: {}]
  %s2 = inlined_call_operand.vmem [shape: f32[512,128], index: 2, kind: output, shape index: {}]
  %s3 = sld [smem:[#allocation0]]
  $region49: #{bottleneck_forward.12} parent=0
    _
  %s5 = ssub.s32 1, %s3
  %s6 = scalar_select 0, %s5, %s3
  loop: start=0, step=1, limit=4
  $region2: #{bottleneck_forward.12} parent=0 // loop_pre_header
    _
  $region3: #{bottleneck_forward.12} parent=0 // loop_header
    %s8 = sphi 0, %s12
    %p9 = scmp.ge.s32.totalorder %s8, 4
    %s15 = sphi 0, %s34
    %s16 = sphi 0, %s30
    %s17 = sphi 0, %s26
    %s18 = sphi 0, %s15
    %s19 = sphi 0, %s16
    %s20 = sphi 0, %s17
    %s21 = sphi 0, %s18
    %s22 = sphi 0, %s19
    %s23 = sphi 0, %s20
    %s39 = sphi 0, %s41
    %s42 = sphi 0, %s39
    %s43 = sphi 0, %s42
    %s59 = sphi 0, %s43
    %s67 = sphi 0, %s69
    %s70 = sphi 0, %s67
    %s71 = sphi 0, %s70
    %s87 = sphi 0, %s71
    %s95 = sphi 0, %s97
    %s98 = sphi 0, %s95
    %s99 = sphi 0, %s98
    %s115 = sphi 0, %s99
  $region4: #{bottleneck_forward.12} parent=0 // loop_header_branch
    %11 = sbr.rel (%p9) target = $region8
  $region5: #{bottleneck_forward.12} parent=0 // loop_body
    %s13 = ssub.s32 %s8, 1
    %s14 = ssub.s32 %s8, 2
    %s24 = sadd.s32 1, %s17
    %p25 = scmp.ge.s32.totalorder %s24, 1
    %s26 = scalar_select %p25, 0, %s24
    %s27 = sadd.s32 1, %s16
    %s28 = scalar_select %p25, %s27, %s16
    %p29 = scmp.ge.s32.totalorder %s28, 1
    %s30 = scalar_select %p29, 0, %s28
    %s31 = sadd.s32 1, %s15
    %s32 = scalar_select %p29, %s31, %s15
    %p33 = scmp.ge.s32.totalorder %s32, 2
    %s34 = scalar_select %p33, 0, %s32
    %s35 = ssub.s32 %s15, %s34
    %s36 = ssub.s32 %s17, %s26
    %s37 = sor.u32 %s35, %s36
    %p38 = scmp.eq.s32.totalorder %s37, 0
    %s40 = sadd.s32 %s39, 1
    %s41 = scalar_select %p38, %s39, %s40
    %p44 = pneg %p38
    %p45 = scmp.eq.s32.totalorder %s8, 1
    %p46 = por %p44, %p45
    %p47 = scmp.ne.s32.totalorder %s39, %s42
    %p48 = scmp.eq.s32.totalorder %s8, 0
    %p49 = por %p47, %p48
    %p50 = scmp.ne.s32.totalorder %s39, %s42
    %p51 = scmp.eq.s32.totalorder %s13, 1
    %p52 = por %p50, %p51
    %p53 = scmp.ne.s32.totalorder %s42, %s43
    %p54 = scmp.eq.s32.totalorder %s13, 0
    %p55 = por %p53, %p54
    %p56 = scmp.ne.s32.totalorder %s42, %s43
    %p57 = scmp.eq.s32.totalorder %s14, 1
    %p58 = por %p56, %p57
    %p60 = scmp.ne.s32.totalorder %s43, %s59
    %p61 = scmp.eq.s32.totalorder %s14, 0
    %p62 = por %p60, %p61
    %s63 = ssub.s32 %s17, %s26
    %s64 = ssub.s32 %s16, %s30
    %s65 = sor.u32 %s63, %s64
    %p66 = scmp.eq.s32.totalorder %s65, 0
    %s68 = sadd.s32 %s67, 1
    %s69 = scalar_select %p66, %s67, %s68
    %p72 = pneg %p66
    %p73 = scmp.eq.s32.totalorder %s8, 1
    %p74 = por %p72, %p73
    %p75 = scmp.ne.s32.totalorder %s67, %s70
    %p76 = scmp.eq.s32.totalorder %s8, 0
    %p77 = por %p75, %p76
    %p78 = scmp.ne.s32.totalorder %s67, %s70
    %p79 = scmp.eq.s32.totalorder %s13, 1
    %p80 = por %p78, %p79
    %p81 = scmp.ne.s32.totalorder %s70, %s71
    %p82 = scmp.eq.s32.totalorder %s13, 0
    %p83 = por %p81, %p82
    %p84 = scmp.ne.s32.totalorder %s70, %s71
    %p85 = scmp.eq.s32.totalorder %s14, 1
    %p86 = por %p84, %p85
    %p88 = scmp.ne.s32.totalorder %s71, %s87
    %p89 = scmp.eq.s32.totalorder %s14, 0
    %p90 = por %p88, %p89
    %s91 = ssub.s32 %s15, %s34
    %s92 = ssub.s32 %s16, %s30
    %s93 = sor.u32 %s91, %s92
    %p94 = scmp.eq.s32.totalorder %s93, 0
    %s96 = sadd.s32 %s95, 1
    %s97 = scalar_select %p94, %s95, %s96
    %p100 = pneg %p94
    %p101 = scmp.eq.s32.totalorder %s8, 1
    %p102 = por %p100, %p101
    %p103 = scmp.ne.s32.totalorder %s95, %s98
    %p104 = scmp.eq.s32.totalorder %s8, 0
    %p105 = por %p103, %p104
    %p106 = scmp.ne.s32.totalorder %s95, %s98
    %p107 = scmp.eq.s32.totalorder %s13, 1
    %p108 = por %p106, %p107
    %p109 = scmp.ne.s32.totalorder %s98, %s99
    %p110 = scmp.eq.s32.totalorder %s13, 0
    %p111 = por %p109, %p110
    %p112 = scmp.ne.s32.totalorder %s98, %s99
    %p113 = scmp.eq.s32.totalorder %s14, 1
    %p114 = por %p112, %p113
    %p116 = scmp.ne.s32.totalorder %s99, %s115
    %p117 = scmp.eq.s32.totalorder %s14, 0
    %p118 = por %p116, %p117
    %p119 = scmp.le.s32.totalorder 1, %s8
    %p120 = scmp.lt.s32.totalorder %s8, 3
    %p121 = pnand %p119, %p120
    %p122 = pneg %p121
    // Predicated region
    $region9: #{bottleneck_forward.12} parent=5 // pred_check
      _
    $region10: #{bottleneck_forward.12} parent=5 // pred_check_branch
      %124 = sbr.rel (%p121) target = $region12
    $region11: #{bottleneck_forward.12} parent=5 // pred_region
      %s125 = ssub.s32 %s8, 1
      // Predicated region
      $region13: #{bottleneck_forward.12} parent=11 // pred_check
        %p126 = pneg %p83
      $region14: #{bottleneck_forward.12} parent=11 // pred_check_branch
        %128 = sbr.rel (%p126) target = $region16
      $region15: #{bottleneck_forward.12} parent=11 // pred_region
        %s129 = smul.u32 16, %s20
        %p130 = scmp.lt.s32.totalorder %s129, 15
        %s131 = scalar_select %p130, %s129, 15
        %p132 = scmp.lt.s32.totalorder %s19, 0
        %s133 = scalar_select %p132, %s19, 0
        %s134 = sadd.s32 %s133, %s131
        %s135 = smul.addr %s134, 4
        %s136 = scalar_lea.vmem %s1, %s135
        %s137 = smul.u32 16, %s20
      $region16: #{bottleneck_forward.12} parent=11 // pred_fallthru
        _
    $region12: #{bottleneck_forward.12} parent=5 // pred_fallthru
      _
    %p138 = scmp.lt.s32.totalorder %s8, 2
    // Predicated region
    $region17: #{bottleneck_forward.12} parent=5 // pred_check
      %p139 = pneg %p138
    $region18: #{bottleneck_forward.12} parent=5 // pred_check_branch
      %141 = sbr.rel (%p139) target = $region20
    $region19: #{bottleneck_forward.12} parent=5 // pred_region
      // Predicated region
      $region21: #{bottleneck_forward.12} parent=19 // pred_check
        %p142 = pneg %p49
      $region22: #{bottleneck_forward.12} parent=19 // pred_check_branch
        %144 = sbr.rel (%p142) target = $region24
      $region23: #{bottleneck_forward.12} parent=19 // pred_region
        %s145 = smul.u32 32, %s15
        %p146 = scmp.lt.s32.totalorder %s145, 63
        %s147 = scalar_select %p146, %s145, 63
        %p148 = scmp.lt.s32.totalorder %s17, 0
        %s149 = scalar_select %p148, %s17, 0
        %s150 = sadd.s32 %s149, %s147
        %s151 = smul.addr %s150, 4
        %s152 = scalar_lea.vmem %s0, %s151
        %s153 = smul.u32 32, %s15
      $region24: #{bottleneck_forward.12} parent=19 // pred_fallthru
        _
    $region20: #{bottleneck_forward.12} parent=5 // pred_fallthru
      _
    %p154 = scmp.le.s32.totalorder 1, %s8
    %p155 = scmp.lt.s32.totalorder %s8, 3
    %p156 = pnand %p154, %p155
    %p157 = pneg %p156
    // Predicated region
    $region25: #{bottleneck_forward.12} parent=5 // pred_check
      _
    $region26: #{bottleneck_forward.12} parent=5 // pred_check_branch
      %159 = sbr.rel (%p156) target = $region28
    $region27: #{bottleneck_forward.12} parent=5 // pred_region
      %s160 = ssub.s32 %s8, 1
      %s161 = smul.u32 32, %s18
      %p162 = scmp.lt.s32.totalorder %s161, 63
      %s163 = scalar_select %p162, %s161, 63
      %p164 = scmp.lt.s32.totalorder %s20, 0
      %s165 = scalar_select %p164, %s20, 0
      %s166 = sadd.s32 %s165, %s163
      %s167 = smul.addr %s166, 4
      %s168 = scalar_lea.vmem %s0, %s167
      %p169 = pneg %p55
      %p170 = pneg %p52
      %s171 = smul.u32 16, %s20
      %p172 = scmp.lt.s32.totalorder %s171, 15
      %s173 = scalar_select %p172, %s171, 15
      %p174 = scmp.lt.s32.totalorder %s19, 0
      %s175 = scalar_select %p174, %s19, 0
      %s176 = sadd.s32 %s175, %s173
      %s177 = smul.addr %s176, 4
      %s178 = scalar_lea.vmem %s1, %s177
      %p179 = pneg %p83
      %p180 = pneg %p80
      %p181 = pneg %p111
      %p182 = pneg %p108
      %s183 = smul.u32 32, %s18
      %p184 = scmp.lt.s32.totalorder %s183, 63
      %s185 = scalar_select %p184, %s183, 63
      %p186 = scmp.lt.s32.totalorder %s19, 0
      %s187 = scalar_select %p186, %s19, 0
      %s188 = sadd.s32 %s187, %s185
      %s189 = smul.addr %s188, 8
      %s190 = scalar_lea.vmem %s2, %s189
      %s191 = smul.u32 32, %s18
      %p192 = scmp.lt.s32.totalorder %s191, 63
      %s193 = scalar_select %p192, %s191, 63
      %p194 = scmp.lt.s32.totalorder %s20, 0
      %s195 = scalar_select %p194, %s20, 0
      %s196 = sadd.s32 %s195, %s193
      %s197 = smul.addr %s196, 4
      %s198 = scalar_lea.vmem %s0, %s197
      %s199 = smul.u32 32, %s18
      %s200 = smul.u32 16, %s20
      %p201 = scmp.lt.s32.totalorder %s200, 15
      %s202 = scalar_select %p201, %s200, 15
      %p203 = scmp.lt.s32.totalorder %s19, 0
      %s204 = scalar_select %p203, %s19, 0
      %s205 = sadd.s32 %s204, %s202
      %s206 = smul.addr %s205, 4
      %s207 = scalar_lea.vmem %s1, %s206
      %s208 = smul.u32 16, %s20
      %s209 = smul.u32 32, %s18
      %p210 = scmp.lt.s32.totalorder %s209, 63
      %s211 = scalar_select %p210, %s209, 63
      %p212 = scmp.lt.s32.totalorder %s19, 0
      %s213 = scalar_select %p212, %s19, 0
      %s214 = sadd.s32 %s213, %s211
      %s215 = smul.addr %s214, 8
      %s216 = scalar_lea.vmem %s2, %s215
      %s217 = smul.u32 32, %s18
      %p219 = scmp.eq.s32.totalorder %s20, 0
      // Predicated region
      $region29: #{bottleneck_forward.12} parent=27 // pred_check
        %p220 = pneg %p219
      $region30: #{bottleneck_forward.12} parent=27 // pred_check_branch
        %222 = sbr.rel (%p220) target = $region32
      $region31: #{bottleneck_forward.12} parent=27 // pred_region
        %223 = vst [vmem:[#allocation2] sm:$0xff] 0.0
        %224 = vst [vmem:[#allocation2 + $0x8] sm:$0xff] 0.0
        %225 = vst [vmem:[#allocation2 + $0x10] sm:$0xff] 0.0
        %226 = vst [vmem:[#allocation2 + $0x18] sm:$0xff] 0.0
        %227 = vst [vmem:[#allocation2 + $0x20] sm:$0xff] 0.0
        %228 = vst [vmem:[#allocation2 + $0x28] sm:$0xff] 0.0
        %229 = vst [vmem:[#allocation2 + $0x30] sm:$0xff] 0.0
        %230 = vst [vmem:[#allocation2 + $0x38] sm:$0xff] 0.0
        %231 = vst [vmem:[#allocation2 + $0x40] sm:$0xff] 0.0
        %232 = vst [vmem:[#allocation2 + $0x48] sm:$0xff] 0.0
        %233 = vst [vmem:[#allocation2 + $0x50] sm:$0xff] 0.0
        %234 = vst [vmem:[#allocation2 + $0x58] sm:$0xff] 0.0
        %235 = vst [vmem:[#allocation2 + $0x60] sm:$0xff] 0.0
        %236 = vst [vmem:[#allocation2 + $0x68] sm:$0xff] 0.0
        %237 = vst [vmem:[#allocation2 + $0x70] sm:$0xff] 0.0
        %238 = vst [vmem:[#allocation2 + $0x78] sm:$0xff] 0.0
        %239 = vst [vmem:[#allocation2 + $0x80] sm:$0xff] 0.0
        %240 = vst [vmem:[#allocation2 + $0x88] sm:$0xff] 0.0
        %241 = vst [vmem:[#allocation2 + $0x90] sm:$0xff] 0.0
        %242 = vst [vmem:[#allocation2 + $0x98] sm:$0xff] 0.0
        %243 = vst [vmem:[#allocation2 + $0xa0] sm:$0xff] 0.0
        %244 = vst [vmem:[#allocation2 + $0xa8] sm:$0xff] 0.0
        %245 = vst [vmem:[#allocation2 + $0xb0] sm:$0xff] 0.0
        %246 = vst [vmem:[#allocation2 + $0xb8] sm:$0xff] 0.0
        %247 = vst [vmem:[#allocation2 + $0xc0] sm:$0xff] 0.0
        %248 = vst [vmem:[#allocation2 + $0xc8] sm:$0xff] 0.0
        %249 = vst [vmem:[#allocation2 + $0xd0] sm:$0xff] 0.0
        %250 = vst [vmem:[#allocation2 + $0xd8] sm:$0xff] 0.0
        %251 = vst [vmem:[#allocation2 + $0xe0] sm:$0xff] 0.0
        %252 = vst [vmem:[#allocation2 + $0xe8] sm:$0xff] 0.0
        %253 = vst [vmem:[#allocation2 + $0xf0] sm:$0xff] 0.0
        %254 = vst [vmem:[#allocation2 + $0xf8] sm:$0xff] 0.0
      $region32: #{bottleneck_forward.12} parent=27 // pred_fallthru
        _
      %v255 = vld [vmem:[#allocation2] sm:$0xff]
      %v256 = vld [vmem:[#allocation2 + $0x8] sm:$0xff]
      %v257 = vld [vmem:[#allocation2 + $0x10] sm:$0xff]
      %v258 = vld [vmem:[#allocation2 + $0x18] sm:$0xff]
      %v259 = vld [vmem:[#allocation2 + $0x20] sm:$0xff]
      %v260 = vld [vmem:[#allocation2 + $0x28] sm:$0xff]
      %v261 = vld [vmem:[#allocation2 + $0x30] sm:$0xff]
      %v262 = vld [vmem:[#allocation2 + $0x38] sm:$0xff]
      %v263 = vld [vmem:[#allocation2 + $0x40] sm:$0xff]
      %v264 = vld [vmem:[#allocation2 + $0x48] sm:$0xff]
      %v265 = vld [vmem:[#allocation2 + $0x50] sm:$0xff]
      %v266 = vld [vmem:[#allocation2 + $0x58] sm:$0xff]
      %v267 = vld [vmem:[#allocation2 + $0x60] sm:$0xff]
      %v268 = vld [vmem:[#allocation2 + $0x68] sm:$0xff]
      %v269 = vld [vmem:[#allocation2 + $0x70] sm:$0xff]
      %v270 = vld [vmem:[#allocation2 + $0x78] sm:$0xff]
      %v271 = vld [vmem:[#allocation2 + $0x80] sm:$0xff]
      %v272 = vld [vmem:[#allocation2 + $0x88] sm:$0xff]
      %v273 = vld [vmem:[#allocation2 + $0x90] sm:$0xff]
      %v274 = vld [vmem:[#allocation2 + $0x98] sm:$0xff]
      %v275 = vld [vmem:[#allocation2 + $0xa0] sm:$0xff]
      %v276 = vld [vmem:[#allocation2 + $0xa8] sm:$0xff]
      %v277 = vld [vmem:[#allocation2 + $0xb0] sm:$0xff]
      %v278 = vld [vmem:[#allocation2 + $0xb8] sm:$0xff]
      %v279 = vld [vmem:[#allocation2 + $0xc0] sm:$0xff]
      %v280 = vld [vmem:[#allocation2 + $0xc8] sm:$0xff]
      %v281 = vld [vmem:[#allocation2 + $0xd0] sm:$0xff]
      %v282 = vld [vmem:[#allocation2 + $0xd8] sm:$0xff]
      %v283 = vld [vmem:[#allocation2 + $0xe0] sm:$0xff]
      %v284 = vld [vmem:[#allocation2 + $0xe8] sm:$0xff]
      %v285 = vld [vmem:[#allocation2 + $0xf0] sm:$0xff]
      %v286 = vld [vmem:[#allocation2 + $0xf8] sm:$0xff]
      %v287 = vld [vmem:[%s198] sm:$0xf]
      %v288 = vld [vmem:[%s198 + $0x4] sm:$0xf]
      %v289 = vld [vmem:[%s198 + $0x8] sm:$0xf]
      %v290 = vld [vmem:[%s198 + $0xc] sm:$0xf]
      %v291 = vld [vmem:[%s198 + $0x10] sm:$0xf]
      %v292 = vld [vmem:[%s198 + $0x14] sm:$0xf]
      %v293 = vld [vmem:[%s198 + $0x18] sm:$0xf]
      %v294 = vld [vmem:[%s198 + $0x1c] sm:$0xf]
      %v295 = vld [vmem:[%s198 + $0x20] sm:$0xf]
      %v296 = vld [vmem:[%s198 + $0x24] sm:$0xf]
      %v297 = vld [vmem:[%s198 + $0x28] sm:$0xf]
      %v298 = vld [vmem:[%s198 + $0x2c] sm:$0xf]
      %v299 = vld [vmem:[%s198 + $0x30] sm:$0xf]
      %v300 = vld [vmem:[%s198 + $0x34] sm:$0xf]
      %v301 = vld [vmem:[%s198 + $0x38] sm:$0xf]
      %v302 = vld [vmem:[%s198 + $0x3c] sm:$0xf]
      %v303 = vld [vmem:[%s198 + $0x40] sm:$0xf]
      %v304 = vld [vmem:[%s198 + $0x44] sm:$0xf]
      %v305 = vld [vmem:[%s198 + $0x48] sm:$0xf]
      %v306 = vld [vmem:[%s198 + $0x4c] sm:$0xf]
      %v307 = vld [vmem:[%s198 + $0x50] sm:$0xf]
      %v308 = vld [vmem:[%s198 + $0x54] sm:$0xf]
      %v309 = vld [vmem:[%s198 + $0x58] sm:$0xf]
      %v310 = vld [vmem:[%s198 + $0x5c] sm:$0xf]
      %v311 = vld [vmem:[%s198 + $0x60] sm:$0xf]
      %v312 = vld [vmem:[%s198 + $0x64] sm:$0xf]
      %v313 = vld [vmem:[%s198 + $0x68] sm:$0xf]
      %v314 = vld [vmem:[%s198 + $0x6c] sm:$0xf]
      %v315 = vld [vmem:[%s198 + $0x70] sm:$0xf]
      %v316 = vld [vmem:[%s198 + $0x74] sm:$0xf]
      %v317 = vld [vmem:[%s198 + $0x78] sm:$0xf]
      %v318 = vld [vmem:[%s198 + $0x7c] sm:$0xf]
      %v319 = vld [vmem:[%s207] sm:$0xf]
      %v320 = vld [vmem:[%s207 + $0x4] sm:$0xf]
      %v321 = vld [vmem:[%s207 + $0x8] sm:$0xf]
      %v322 = vld [vmem:[%s207 + $0xc] sm:$0xf]
      %v323 = vld [vmem:[%s207 + $0x10] sm:$0xf]
      %v324 = vld [vmem:[%s207 + $0x14] sm:$0xf]
      %v325 = vld [vmem:[%s207 + $0x18] sm:$0xf]
      %v326 = vld [vmem:[%s207 + $0x1c] sm:$0xf]
      %v327 = vld [vmem:[%s207 + $0x20] sm:$0xf]
      %v328 = vld [vmem:[%s207 + $0x24] sm:$0xf]
      %v329 = vld [vmem:[%s207 + $0x28] sm:$0xf]
      %v330 = vld [vmem:[%s207 + $0x2c] sm:$0xf]
      %v331 = vld [vmem:[%s207 + $0x30] sm:$0xf]
      %v332 = vld [vmem:[%s207 + $0x34] sm:$0xf]
      %v333 = vld [vmem:[%s207 + $0x38] sm:$0xf]
      %v334 = vld [vmem:[%s207 + $0x3c] sm:$0xf]
      %v367 = vunpack.c.l.b16 %v287
      %v368 = vunpack.c.l.b16 %v288
      %v369 = vunpack.c.l.b16 %v289
      %v370 = vunpack.c.l.b16 %v290
      %v371 = vunpack.c.l.b16 %v291
      %v372 = vunpack.c.l.b16 %v292
      %v373 = vunpack.c.l.b16 %v293
      %v374 = vunpack.c.l.b16 %v294
      %v375 = vunpack.c.l.b16 %v295
      %v376 = vunpack.c.l.b16 %v296
      %v377 = vunpack.c.l.b16 %v297
      %v378 = vunpack.c.l.b16 %v298
      %v379 = vunpack.c.l.b16 %v299
      %v380 = vunpack.c.l.b16 %v300
      %v381 = vunpack.c.l.b16 %v301
      %v382 = vunpack.c.l.b16 %v302
      %v383 = vunpack.c.l.b16 %v303
      %v384 = vunpack.c.l.b16 %v304
      %v385 = vunpack.c.l.b16 %v305
      %v386 = vunpack.c.l.b16 %v306
      %v387 = vunpack.c.l.b16 %v307
      %v388 = vunpack.c.l.b16 %v308
      %v389 = vunpack.c.l.b16 %v309
      %v390 = vunpack.c.l.b16 %v310
      %v391 = vunpack.c.l.b16 %v311
      %v392 = vunpack.c.l.b16 %v312
      %v393 = vunpack.c.l.b16 %v313
      %v394 = vunpack.c.l.b16 %v314
      %v395 = vunpack.c.l.b16 %v315
      %v396 = vunpack.c.l.b16 %v316
      %v397 = vunpack.c.l.b16 %v317
      %v398 = vunpack.c.l.b16 %v318
      %v399 = vpack.c.b16 %v368, %v367
      %v400 = vpack.c.b16 %v370, %v369
      %v401 = vpack.c.b16 %v372, %v371
      %v402 = vpack.c.b16 %v374, %v373
      %v403 = vpack.c.b16 %v376, %v375
      %v404 = vpack.c.b16 %v378, %v377
      %v405 = vpack.c.b16 %v380, %v379
      %v406 = vpack.c.b16 %v382, %v381
      %v407 = vpack.c.b16 %v384, %v383
      %v408 = vpack.c.b16 %v386, %v385
      %v409 = vpack.c.b16 %v388, %v387
      %v410 = vpack.c.b16 %v390, %v389
      %v411 = vpack.c.b16 %v392, %v391
      %v412 = vpack.c.b16 %v394, %v393
      %v413 = vpack.c.b16 %v396, %v395
      %v414 = vpack.c.b16 %v398, %v397
      %v447 = vunpack.c.l.b16 %v319
      %v448 = vunpack.c.l.b16 %v320
      %v449 = vunpack.c.l.b16 %v321
      %v450 = vunpack.c.l.b16 %v322
      %v451 = vunpack.c.l.b16 %v323
      %v452 = vunpack.c.l.b16 %v324
      %v453 = vunpack.c.l.b16 %v325
      %v454 = vunpack.c.l.b16 %v326
      %v455 = vunpack.c.l.b16 %v327
      %v456 = vunpack.c.l.b16 %v328
      %v457 = vunpack.c.l.b16 %v329
      %v458 = vunpack.c.l.b16 %v330
      %v459 = vunpack.c.l.b16 %v331
      %v460 = vunpack.c.l.b16 %v332
      %v461 = vunpack.c.l.b16 %v333
      %v462 = vunpack.c.l.b16 %v334
      %v463 = vpack.c.b16 %v448, %v447
      %v464 = vpack.c.b16 %v450, %v449
      %v465 = vpack.c.b16 %v452, %v451
      %v466 = vpack.c.b16 %v454, %v453
      %v467 = vpack.c.b16 %v456, %v455
      %v468 = vpack.c.b16 %v458, %v457
      %v469 = vpack.c.b16 %v460, %v459
      %v470 = vpack.c.b16 %v462, %v461
      %479 = vmatprep.subr.bf16.mxu0 0
      %480 = vmatpush1.bf16.msra.mxu0 %v463
      %481 = vmatprep.subr.bf16.mxu0 0
      %482 = vmatpush1.bf16.msra.mxu0 %v464
      %483 = vmatprep.subr.bf16.mxu0 0
      %484 = vmatpush1.bf16.msra.mxu0 %v465
      %485 = vmatprep.subr.bf16.mxu0 0
      %486 = vmatpush1.bf16.msra.mxu0 %v466
      %487 = vmatprep.subr.bf16.mxu0 0
      %488 = vmatpush1.bf16.msra.mxu0 %v467
      %489 = vmatprep.subr.bf16.mxu0 0
      %490 = vmatpush1.bf16.msra.mxu0 %v468
      %491 = vmatprep.subr.bf16.mxu0 0
      %492 = vmatpush1.bf16.msra.mxu0 %v469
      %493 = vmatprep.subr.bf16.mxu0 0
      %494 = vmatpush1.bf16.msra.mxu0 %v470
      %495 = vmatprep.subr.bf16.mxu0 0
      %496 = vmatpush1.bf16.msra.mxu0 0
      %497 = vmatprep.subr.bf16.mxu0 0
      %498 = vmatpush1.bf16.msra.mxu0 0
      %499 = vmatprep.subr.bf16.mxu0 0
      %500 = vmatpush1.bf16.msra.mxu0 0
      %501 = vmatprep.subr.bf16.mxu0 0
      %502 = vmatpush1.bf16.msra.mxu0 0
      %503 = vmatprep.subr.bf16.mxu0 0
      %504 = vmatpush1.bf16.msra.mxu0 0
      %505 = vmatprep.subr.bf16.mxu0 0
      %506 = vmatpush1.bf16.msra.mxu0 0
      %507 = vmatprep.subr.bf16.mxu0 0
      %508 = vmatpush1.bf16.msra.mxu0 0
      %509 = vmatprep.subr.bf16.mxu0 0
      %510 = vmatpush1.bf16.msra.mxu0 0
      %511 = vmatprep.mubr.bf16.mxu0 0
      %512 = vmatmul.mubr.bf16.gmra.mrb[0].mxu0 %v399
      %v513 = vpop.f32.mrb[0].mxu0
      %v514 = vadd.f32 0.0, %v513
      %v515 = vpop.f32.mrb[0].mxu0
      %v516 = vpop.f32.mrb[0].mxu0
      %v517 = vadd.f32 0.0, %v516
      %v518 = vpop.f32.mrb[0].mxu0
      %519 = vmatprep.mubr.bf16.mxu0 0
      %520 = vmatmul.mubr.bf16.gmra.mrb[0].mxu0 %v400
      %v521 = vpop.f32.mrb[0].mxu0
      %v522 = vadd.f32 0.0, %v521
      %v523 = vpop.f32.mrb[0].mxu0
      %v524 = vpop.f32.mrb[0].mxu0
      %v525 = vadd.f32 0.0, %v524
      %v526 = vpop.f32.mrb[0].mxu0
      %527 = vmatprep.mubr.bf16.mxu0 0
      %528 = vmatmul.mubr.bf16.gmra.mrb[0].mxu0 %v401
      %v529 = vpop.f32.mrb[0].mxu0
      %v530 = vadd.f32 0.0, %v529
      %v531 = vpop.f32.mrb[0].mxu0
      %v532 = vpop.f32.mrb[0].mxu0
      %v533 = vadd.f32 0.0, %v532
      %v534 = vpop.f32.mrb[0].mxu0
      %535 = vmatprep.mubr.bf16.mxu0 0
      %536 = vmatmul.mubr.bf16.gmra.mrb[0].mxu0 %v402
      %v537 = vpop.f32.mrb[0].mxu0
      %v538 = vadd.f32 0.0, %v537
      %v539 = vpop.f32.mrb[0].mxu0
      %v540 = vpop.f32.mrb[0].mxu0
      %v541 = vadd.f32 0.0, %v540
      %v542 = vpop.f32.mrb[0].mxu0
      %543 = vmatprep.mubr.bf16.mxu0 0
      %544 = vmatmul.mubr.bf16.gmra.mrb[0].mxu0 %v403
      %v545 = vpop.f32.mrb[0].mxu0
      %v546 = vadd.f32 0.0, %v545
      %v547 = vpop.f32.mrb[0].mxu0
      %v548 = vpop.f32.mrb[0].mxu0
      %v549 = vadd.f32 0.0, %v548
      %v550 = vpop.f32.mrb[0].mxu0
      %551 = vmatprep.mubr.bf16.mxu0 0
      %552 = vmatmul.mubr.bf16.gmra.mrb[0].mxu0 %v404
      %v553 = vpop.f32.mrb[0].mxu0
      %v554 = vadd.f32 0.0, %v553
      %v555 = vpop.f32.mrb[0].mxu0
      %v556 = vpop.f32.mrb[0].mxu0
      %v557 = vadd.f32 0.0, %v556
      %v558 = vpop.f32.mrb[0].mxu0
      %559 = vmatprep.mubr.bf16.mxu0 0
      %560 = vmatmul.mubr.bf16.gmra.mrb[0].mxu0 %v405
      %v561 = vpop.f32.mrb[0].mxu0
      %v562 = vadd.f32 0.0, %v561
      %v563 = vpop.f32.mrb[0].mxu0
      %v564 = vpop.f32.mrb[0].mxu0
      %v565 = vadd.f32 0.0, %v564
      %v566 = vpop.f32.mrb[0].mxu0
      %567 = vmatprep.mubr.bf16.mxu0 0
      %568 = vmatmul.mubr.bf16.gmra.mrb[0].mxu0 %v406
      %v569 = vpop.f32.mrb[0].mxu0
      %v570 = vadd.f32 0.0, %v569
      %v571 = vpop.f32.mrb[0].mxu0
      %v572 = vpop.f32.mrb[0].mxu0
      %v573 = vadd.f32 0.0, %v572
      %v574 = vpop.f32.mrb[0].mxu0
      %575 = vmatprep.mubr.bf16.mxu0 0
      %576 = vmatmul.mubr.bf16.gmra.mrb[0].mxu0 %v407
      %v577 = vpop.f32.mrb[0].mxu0
      %v578 = vadd.f32 0.0, %v577
      %v579 = vpop.f32.mrb[0].mxu0
      %v580 = vpop.f32.mrb[0].mxu0
      %v581 = vadd.f32 0.0, %v580
      %v582 = vpop.f32.mrb[0].mxu0
      %583 = vmatprep.mubr.bf16.mxu0 0
      %584 = vmatmul.mubr.bf16.gmra.mrb[0].mxu0 %v408
      %v585 = vpop.f32.mrb[0].mxu0
      %v586 = vadd.f32 0.0, %v585
      %v587 = vpop.f32.mrb[0].mxu0
      %v588 = vpop.f32.mrb[0].mxu0
      %v589 = vadd.f32 0.0, %v588
      %v590 = vpop.f32.mrb[0].mxu0
      %591 = vmatprep.mubr.bf16.mxu0 0
      %592 = vmatmul.mubr.bf16.gmra.mrb[0].mxu0 %v409
      %v593 = vpop.f32.mrb[0].mxu0
      %v594 = vadd.f32 0.0, %v593
      %v595 = vpop.f32.mrb[0].mxu0
      %v596 = vpop.f32.mrb[0].mxu0
      %v597 = vadd.f32 0.0, %v596
      %v598 = vpop.f32.mrb[0].mxu0
      %599 = vmatprep.mubr.bf16.mxu0 0
      %600 = vmatmul.mubr.bf16.gmra.mrb[0].mxu0 %v410
      %v601 = vpop.f32.mrb[0].mxu0
      %v602 = vadd.f32 0.0, %v601
      %v603 = vpop.f32.mrb[0].mxu0
      %v604 = vpop.f32.mrb[0].mxu0
      %v605 = vadd.f32 0.0, %v604
      %v606 = vpop.f32.mrb[0].mxu0
      %607 = vmatprep.mubr.bf16.mxu0 0
      %608 = vmatmul.mubr.bf16.gmra.mrb[0].mxu0 %v411
      %v609 = vpop.f32.mrb[0].mxu0
      %v610 = vadd.f32 0.0, %v609
      %v611 = vpop.f32.mrb[0].mxu0
      %v612 = vpop.f32.mrb[0].mxu0
      %v613 = vadd.f32 0.0, %v612
      %v614 = vpop.f32.mrb[0].mxu0
      %615 = vmatprep.mubr.bf16.mxu0 0
      %616 = vmatmul.mubr.bf16.gmra.mrb[0].mxu0 %v412
      %v617 = vpop.f32.mrb[0].mxu0
      %v618 = vadd.f32 0.0, %v617
      %v619 = vpop.f32.mrb[0].mxu0
      %v620 = vpop.f32.mrb[0].mxu0
      %v621 = vadd.f32 0.0, %v620
      %v622 = vpop.f32.mrb[0].mxu0
      %623 = vmatprep.mubr.bf16.mxu0 0
      %624 = vmatmul.mubr.bf16.gmra.mrb[0].mxu0 %v413
      %v625 = vpop.f32.mrb[0].mxu0
      %v626 = vadd.f32 0.0, %v625
      %v627 = vpop.f32.mrb[0].mxu0
      %v628 = vpop.f32.mrb[0].mxu0
      %v629 = vadd.f32 0.0, %v628
      %v630 = vpop.f32.mrb[0].mxu0
      %631 = vmatprep.mubr.bf16.mxu0 0
      %632 = vmatmul.mubr.bf16.gmra.mrb[0].mxu0 %v414
      %v633 = vpop.f32.mrb[0].mxu0
      %v634 = vadd.f32 0.0, %v633
      %v635 = vpop.f32.mrb[0].mxu0
      %v636 = vpop.f32.mrb[0].mxu0
      %v637 = vadd.f32 0.0, %v636
      %v638 = vpop.f32.mrb[0].mxu0
      %639 = vdwg.mxu0
      %v640 = vadd.f32 %v255, %v514
      %v641 = vadd.f32 %v256, %v517
      %v642 = vadd.f32 %v257, %v522
      %v643 = vadd.f32 %v258, %v525
      %v644 = vadd.f32 %v259, %v530
      %v645 = vadd.f32 %v260, %v533
      %v646 = vadd.f32 %v261, %v538
      %v647 = vadd.f32 %v262, %v541
      %v648 = vadd.f32 %v263, %v546
      %v649 = vadd.f32 %v264, %v549
      %v650 = vadd.f32 %v265, %v554
      %v651 = vadd.f32 %v266, %v557
      %v652 = vadd.f32 %v267, %v562
      %v653 = vadd.f32 %v268, %v565
      %v654 = vadd.f32 %v269, %v570
      %v655 = vadd.f32 %v270, %v573
      %v656 = vadd.f32 %v271, %v578
      %v657 = vadd.f32 %v272, %v581
      %v658 = vadd.f32 %v273, %v586
      %v659 = vadd.f32 %v274, %v589
      %v660 = vadd.f32 %v275, %v594
      %v661 = vadd.f32 %v276, %v597
      %v662 = vadd.f32 %v277, %v602
      %v663 = vadd.f32 %v278, %v605
      %v664 = vadd.f32 %v279, %v610
      %v665 = vadd.f32 %v280, %v613
      %v666 = vadd.f32 %v281, %v618
      %v667 = vadd.f32 %v282, %v621
      %v668 = vadd.f32 %v283, %v626
      %v669 = vadd.f32 %v284, %v629
      %v670 = vadd.f32 %v285, %v634
      %v671 = vadd.f32 %v286, %v637
      %672 = vst [vmem:[#allocation2] sm:$0xff] %v640
      %673 = vst [vmem:[#allocation2 + $0x8] sm:$0xff] %v641
      %674 = vst [vmem:[#allocation2 + $0x10] sm:$0xff] %v642
      %675 = vst [vmem:[#allocation2 + $0x18] sm:$0xff] %v643
      %676 = vst [vmem:[#allocation2 + $0x20] sm:$0xff] %v644
      %677 = vst [vmem:[#allocation2 + $0x28] sm:$0xff] %v645
      %678 = vst [vmem:[#allocation2 + $0x30] sm:$0xff] %v646
      %679 = vst [vmem:[#allocation2 + $0x38] sm:$0xff] %v647
      %680 = vst [vmem:[#allocation2 + $0x40] sm:$0xff] %v648
      %681 = vst [vmem:[#allocation2 + $0x48] sm:$0xff] %v649
      %682 = vst [vmem:[#allocation2 + $0x50] sm:$0xff] %v650
      %683 = vst [vmem:[#allocation2 + $0x58] sm:$0xff] %v651
      %684 = vst [vmem:[#allocation2 + $0x60] sm:$0xff] %v652
      %685 = vst [vmem:[#allocation2 + $0x68] sm:$0xff] %v653
      %686 = vst [vmem:[#allocation2 + $0x70] sm:$0xff] %v654
      %687 = vst [vmem:[#allocation2 + $0x78] sm:$0xff] %v655
      %688 = vst [vmem:[#allocation2 + $0x80] sm:$0xff] %v656
      %689 = vst [vmem:[#allocation2 + $0x88] sm:$0xff] %v657
      %690 = vst [vmem:[#allocation2 + $0x90] sm:$0xff] %v658
      %691 = vst [vmem:[#allocation2 + $0x98] sm:$0xff] %v659
      %692 = vst [vmem:[#allocation2 + $0xa0] sm:$0xff] %v660
      %693 = vst [vmem:[#allocation2 + $0xa8] sm:$0xff] %v661
      %694 = vst [vmem:[#allocation2 + $0xb0] sm:$0xff] %v662
      %695 = vst [vmem:[#allocation2 + $0xb8] sm:$0xff] %v663
      %696 = vst [vmem:[#allocation2 + $0xc0] sm:$0xff] %v664
      %697 = vst [vmem:[#allocation2 + $0xc8] sm:$0xff] %v665
      %698 = vst [vmem:[#allocation2 + $0xd0] sm:$0xff] %v666
      %699 = vst [vmem:[#allocation2 + $0xd8] sm:$0xff] %v667
      %700 = vst [vmem:[#allocation2 + $0xe0] sm:$0xff] %v668
      %701 = vst [vmem:[#allocation2 + $0xe8] sm:$0xff] %v669
      %702 = vst [vmem:[#allocation2 + $0xf0] sm:$0xff] %v670
      %703 = vst [vmem:[#allocation2 + $0xf8] sm:$0xff] %v671
      // Predicated region
      $region33: #{bottleneck_forward.12} parent=27 // pred_check
        %p704 = pneg %p219
      $region34: #{bottleneck_forward.12} parent=27 // pred_check_branch
        %706 = sbr.rel (%p704) target = $region36
      $region35: #{bottleneck_forward.12} parent=27 // pred_region
        %v707 = vld [vmem:[#allocation2] sm:$0xff]
        %v708 = vld [vmem:[#allocation2 + $0x8] sm:$0xff]
        %v709 = vld [vmem:[#allocation2 + $0x10] sm:$0xff]
        %v710 = vld [vmem:[#allocation2 + $0x18] sm:$0xff]
        %v711 = vld [vmem:[#allocation2 + $0x20] sm:$0xff]
        %v712 = vld [vmem:[#allocation2 + $0x28] sm:$0xff]
        %v713 = vld [vmem:[#allocation2 + $0x30] sm:$0xff]
        %v714 = vld [vmem:[#allocation2 + $0x38] sm:$0xff]
        %v715 = vld [vmem:[#allocation2 + $0x40] sm:$0xff]
        %v716 = vld [vmem:[#allocation2 + $0x48] sm:$0xff]
        %v717 = vld [vmem:[#allocation2 + $0x50] sm:$0xff]
        %v718 = vld [vmem:[#allocation2 + $0x58] sm:$0xff]
        %v719 = vld [vmem:[#allocation2 + $0x60] sm:$0xff]
        %v720 = vld [vmem:[#allocation2 + $0x68] sm:$0xff]
        %v721 = vld [vmem:[#allocation2 + $0x70] sm:$0xff]
        %v722 = vld [vmem:[#allocation2 + $0x78] sm:$0xff]
        %v723 = vld [vmem:[#allocation2 + $0x80] sm:$0xff]
        %v724 = vld [vmem:[#allocation2 + $0x88] sm:$0xff]
        %v725 = vld [vmem:[#allocation2 + $0x90] sm:$0xff]
        %v726 = vld [vmem:[#allocation2 + $0x98] sm:$0xff]
        %v727 = vld [vmem:[#allocation2 + $0xa0] sm:$0xff]
        %v728 = vld [vmem:[#allocation2 + $0xa8] sm:$0xff]
        %v729 = vld [vmem:[#allocation2 + $0xb0] sm:$0xff]
        %v730 = vld [vmem:[#allocation2 + $0xb8] sm:$0xff]
        %v731 = vld [vmem:[#allocation2 + $0xc0] sm:$0xff]
        %v732 = vld [vmem:[#allocation2 + $0xc8] sm:$0xff]
        %v733 = vld [vmem:[#allocation2 + $0xd0] sm:$0xff]
        %v734 = vld [vmem:[#allocation2 + $0xd8] sm:$0xff]
        %v735 = vld [vmem:[#allocation2 + $0xe0] sm:$0xff]
        %v736 = vld [vmem:[#allocation2 + $0xe8] sm:$0xff]
        %v737 = vld [vmem:[#allocation2 + $0xf0] sm:$0xff]
        %v738 = vld [vmem:[#allocation2 + $0xf8] sm:$0xff]
        %739 = vst [vmem:[%s216] sm:$0xff] %v707
        %740 = vst [vmem:[%s216 + $0x8] sm:$0xff] %v708
        %741 = vst [vmem:[%s216 + $0x10] sm:$0xff] %v709
        %742 = vst [vmem:[%s216 + $0x18] sm:$0xff] %v710
        %743 = vst [vmem:[%s216 + $0x20] sm:$0xff] %v711
        %744 = vst [vmem:[%s216 + $0x28] sm:$0xff] %v712
        %745 = vst [vmem:[%s216 + $0x30] sm:$0xff] %v713
        %746 = vst [vmem:[%s216 + $0x38] sm:$0xff] %v714
        %747 = vst [vmem:[%s216 + $0x40] sm:$0xff] %v715
        %748 = vst [vmem:[%s216 + $0x48] sm:$0xff] %v716
        %749 = vst [vmem:[%s216 + $0x50] sm:$0xff] %v717
        %750 = vst [vmem:[%s216 + $0x58] sm:$0xff] %v718
        %751 = vst [vmem:[%s216 + $0x60] sm:$0xff] %v719
        %752 = vst [vmem:[%s216 + $0x68] sm:$0xff] %v720
        %753 = vst [vmem:[%s216 + $0x70] sm:$0xff] %v721
        %754 = vst [vmem:[%s216 + $0x78] sm:$0xff] %v722
        %755 = vst [vmem:[%s216 + $0x80] sm:$0xff] %v723
        %756 = vst [vmem:[%s216 + $0x88] sm:$0xff] %v724
        %757 = vst [vmem:[%s216 + $0x90] sm:$0xff] %v725
        %758 = vst [vmem:[%s216 + $0x98] sm:$0xff] %v726
        %759 = vst [vmem:[%s216 + $0xa0] sm:$0xff] %v727
        %760 = vst [vmem:[%s216 + $0xa8] sm:$0xff] %v728
        %761 = vst [vmem:[%s216 + $0xb0] sm:$0xff] %v729
        %762 = vst [vmem:[%s216 + $0xb8] sm:$0xff] %v730
        %763 = vst [vmem:[%s216 + $0xc0] sm:$0xff] %v731
        %764 = vst [vmem:[%s216 + $0xc8] sm:$0xff] %v732
        %765 = vst [vmem:[%s216 + $0xd0] sm:$0xff] %v733
        %766 = vst [vmem:[%s216 + $0xd8] sm:$0xff] %v734
        %767 = vst [vmem:[%s216 + $0xe0] sm:$0xff] %v735
        %768 = vst [vmem:[%s216 + $0xe8] sm:$0xff] %v736
        %769 = vst [vmem:[%s216 + $0xf0] sm:$0xff] %v737
        %770 = vst [vmem:[%s216 + $0xf8] sm:$0xff] %v738
      $region36: #{bottleneck_forward.12} parent=27 // pred_fallthru
        _
      %s771 = smul.u32 32, %s18
      %p772 = scmp.lt.s32.totalorder %s771, 63
      %s773 = scalar_select %p772, %s771, 63
      %p774 = scmp.lt.s32.totalorder %s19, 0
      %s775 = scalar_select %p774, %s19, 0
      %s776 = sadd.s32 %s775, %s773
      %s777 = smul.addr %s776, 8
      %s778 = scalar_lea.vmem %s2, %s777
      // Predicated region
      $region37: #{bottleneck_forward.12} parent=27 // pred_check
        %p779 = pneg %p108
      $region38: #{bottleneck_forward.12} parent=27 // pred_check_branch
        %781 = sbr.rel (%p779) target = $region40
      $region39: #{bottleneck_forward.12} parent=27 // pred_region
        %s782 = smul.u32 32, %s18
      $region40: #{bottleneck_forward.12} parent=27 // pred_fallthru
        _
    $region28: #{bottleneck_forward.12} parent=5 // pred_fallthru
      _
    %p783 = scmp.le.s32.totalorder 2, %s8
    // Predicated region
    $region41: #{bottleneck_forward.12} parent=5 // pred_check
      %p784 = pneg %p783
    $region42: #{bottleneck_forward.12} parent=5 // pred_check_branch
      %786 = sbr.rel (%p784) target = $region44
    $region43: #{bottleneck_forward.12} parent=5 // pred_region
      %s787 = ssub.s32 %s8, 2
      // Predicated region
      $region45: #{bottleneck_forward.12} parent=43 // pred_check
        %p788 = pneg %p114
      $region46: #{bottleneck_forward.12} parent=43 // pred_check_branch
        %790 = sbr.rel (%p788) target = $region48
      $region47: #{bottleneck_forward.12} parent=43 // pred_region
        %s791 = smul.u32 32, %s21
        %p792 = scmp.lt.s32.totalorder %s791, 63
        %s793 = scalar_select %p792, %s791, 63
        %p794 = scmp.lt.s32.totalorder %s22, 0
        %s795 = scalar_select %p794, %s22, 0
        %s796 = sadd.s32 %s795, %s793
        %s797 = smul.addr %s796, 8
        %s798 = scalar_lea.vmem %s2, %s797
      $region48: #{bottleneck_forward.12} parent=43 // pred_fallthru
        _
    $region44: #{bottleneck_forward.12} parent=5 // pred_fallthru
      _
  $region6: #{bottleneck_forward.12} parent=0 // loop_footer
    %s12 = sadd.s32 1, %s8
  $region7: #{bottleneck_forward.12} parent=0 // loop_footer_branch
    %7 = sbr.rel target = $region3
  $region8: #{bottleneck_forward.12} parent=0 // loop_exit
    _

// kernel: bottleneck_forward.22
$region0: #{bottleneck_forward.22}
  #allocation0 [shape = 'u32[]', space=smem, size = 0x4, offset = 0x4, fixed_abs, tag = 'smem constant byte address 0x4 - core index']
  #allocation1 [shape = 'u32[144,128]{1,0:T(1,128)}', space=vmem, size = 0x12000, scoped, tag = 'internal scratch']
  %s0 = inlined_call_operand.vmem [shape: f32[512,128], index: 0, kind: input, shape index: {}]
  %s1 = inlined_call_operand.vmem [shape: f32[1,128], index: 1, kind: input, shape index: {}]
  %s2 = inlined_call_operand.vmem [shape: f32[1,128], index: 2, kind: input, shape index: {}]
  %s3 = inlined_call_operand.vmem [shape: f32[512,128], index: 3, kind: output, shape index: {}]
  %s4 = sld [smem:[#allocation0]]
  $region22: #{bottleneck_forward.22} parent=0
    _
  %s6 = ssub.s32 1, %s4
  %s7 = scalar_select 0, %s6, %s4
  // Predicated region
  $region2: #{bottleneck_forward.22} parent=0 // pred_check
    _
  $region3: #{bottleneck_forward.22} parent=0 // pred_check_branch
    %9 = sbr.rel (0) target = $region5
  $region4: #{bottleneck_forward.22} parent=0 // pred_region
    _
  $region5: #{bottleneck_forward.22} parent=0 // pred_fallthru
    _
  // Predicated region
  $region6: #{bottleneck_forward.22} parent=0 // pred_check
    _
  $region7: #{bottleneck_forward.22} parent=0 // pred_check_branch
    %11 = sbr.rel (0) target = $region9
  $region8: #{bottleneck_forward.22} parent=0 // pred_region
    _
  $region9: #{bottleneck_forward.22} parent=0 // pred_fallthru
    _
  // Predicated region
  $region10: #{bottleneck_forward.22} parent=0 // pred_check
    _
  $region11: #{bottleneck_forward.22} parent=0 // pred_check_branch
    %13 = sbr.rel (0) target = $region13
  $region12: #{bottleneck_forward.22} parent=0 // pred_region
    _
  $region13: #{bottleneck_forward.22} parent=0 // pred_fallthru
    _
  %v14 = vld [vmem:[%s0] sm:$0xff]
  %v15 = vld [vmem:[%s0 + $0x8] sm:$0xff]
  %v16 = vld [vmem:[%s0 + $0x10] sm:$0xff]
  %v17 = vld [vmem:[%s0 + $0x18] sm:$0xff]
  %v18 = vld [vmem:[%s0 + $0x20] sm:$0xff]
  %v19 = vld [vmem:[%s0 + $0x28] sm:$0xff]
  %v20 = vld [vmem:[%s0 + $0x30] sm:$0xff]
  %v21 = vld [vmem:[%s0 + $0x38] sm:$0xff]
  %v22 = vld [vmem:[%s0 + $0x40] sm:$0xff]
  %v23 = vld [vmem:[%s0 + $0x48] sm:$0xff]
  %v24 = vld [vmem:[%s0 + $0x50] sm:$0xff]
  %v25 = vld [vmem:[%s0 + $0x58] sm:$0xff]
  %v26 = vld [vmem:[%s0 + $0x60] sm:$0xff]
  %v27 = vld [vmem:[%s0 + $0x68] sm:$0xff]
  %v28 = vld [vmem:[%s0 + $0x70] sm:$0xff]
  %v29 = vld [vmem:[%s0 + $0x78] sm:$0xff]
  %v30 = vld [vmem:[%s0 + $0x80] sm:$0xff]
  %v31 = vld [vmem:[%s0 + $0x88] sm:$0xff]
  %v32 = vld [vmem:[%s0 + $0x90] sm:$0xff]
  %v33 = vld [vmem:[%s0 + $0x98] sm:$0xff]
  %v34 = vld [vmem:[%s0 + $0xa0] sm:$0xff]
  %v35 = vld [vmem:[%s0 + $0xa8] sm:$0xff]
  %v36 = vld [vmem:[%s0 + $0xb0] sm:$0xff]
  %v37 = vld [vmem:[%s0 + $0xb8] sm:$0xff]
  %v38 = vld [vmem:[%s0 + $0xc0] sm:$0xff]
  %v39 = vld [vmem:[%s0 + $0xc8] sm:$0xff]
  %v40 = vld [vmem:[%s0 + $0xd0] sm:$0xff]
  %v41 = vld [vmem:[%s0 + $0xd8] sm:$0xff]
  %v42 = vld [vmem:[%s0 + $0xe0] sm:$0xff]
  %v43 = vld [vmem:[%s0 + $0xe8] sm:$0xff]
  %v44 = vld [vmem:[%s0 + $0xf0] sm:$0xff]
  %v45 = vld [vmem:[%s0 + $0xf8] sm:$0xff]
  %v46 = vld [vmem:[%s0 + $0x100] sm:$0xff]
  %v47 = vld [vmem:[%s0 + $0x108] sm:$0xff]
  %v48 = vld [vmem:[%s0 + $0x110] sm:$0xff]
  %v49 = vld [vmem:[%s0 + $0x118] sm:$0xff]
  %v50 = vld [vmem:[%s0 + $0x120] sm:$0xff]
  %v51 = vld [vmem:[%s0 + $0x128] sm:$0xff]
  %v52 = vld [vmem:[%s0 + $0x130] sm:$0xff]
  %v53 = vld [vmem:[%s0 + $0x138] sm:$0xff]
  %v54 = vld [vmem:[%s0 + $0x140] sm:$0xff]
  %v55 = vld [vmem:[%s0 + $0x148] sm:$0xff]
  %v56 = vld [vmem:[%s0 + $0x150] sm:$0xff]
  %v57 = vld [vmem:[%s0 + $0x158] sm:$0xff]
  %v58 = vld [vmem:[%s0 + $0x160] sm:$0xff]
  %v59 = vld [vmem:[%s0 + $0x168] sm:$0xff]
  %v60 = vld [vmem:[%s0 + $0x170] sm:$0xff]
  %v61 = vld [vmem:[%s0 + $0x178] sm:$0xff]
  %v62 = vld [vmem:[%s0 + $0x180] sm:$0xff]
  %v63 = vld [vmem:[%s0 + $0x188] sm:$0xff]
  %v64 = vld [vmem:[%s0 + $0x190] sm:$0xff]
  %v65 = vld [vmem:[%s0 + $0x198] sm:$0xff]
  %v66 = vld [vmem:[%s0 + $0x1a0] sm:$0xff]
  %v67 = vld [vmem:[%s0 + $0x1a8] sm:$0xff]
  %v68 = vld [vmem:[%s0 + $0x1b0] sm:$0xff]
  %v69 = vld [vmem:[%s0 + $0x1b8] sm:$0xff]
  %v70 = vld [vmem:[%s0 + $0x1c0] sm:$0xff]
  %v71 = vld [vmem:[%s0 + $0x1c8] sm:$0xff]
  %v72 = vld [vmem:[%s0 + $0x1d0] sm:$0xff]
  %v73 = vld [vmem:[%s0 + $0x1d8] sm:$0xff]
  %v74 = vld [vmem:[%s0 + $0x1e0] sm:$0xff]
  %v75 = vld [vmem:[%s0 + $0x1e8] sm:$0xff]
  %v76 = vld [vmem:[%s0 + $0x1f0] sm:$0xff]
  %v77 = vld [vmem:[%s0 + $0x1f8] sm:$0xff]
  %v78 = vld [vmem:[%s1] sm:$0x1]
  %v80 = vlaneseq
  %v81 = vshrl.u32 %v80, 7
  %v82 = vsub.s32 0, %v81
  %v83 = vrot.slane %v78, %v82
  %v85 = vmul.f32 %v14, %v83
  %v86 = vmul.f32 %v15, %v83
  %v87 = vmul.f32 %v16, %v83
  %v88 = vmul.f32 %v17, %v83
  %v89 = vmul.f32 %v18, %v83
  %v90 = vmul.f32 %v19, %v83
  %v91 = vmul.f32 %v20, %v83
  %v92 = vmul.f32 %v21, %v83
  %v93 = vmul.f32 %v22, %v83
  %v94 = vmul.f32 %v23, %v83
  %v95 = vmul.f32 %v24, %v83
  %v96 = vmul.f32 %v25, %v83
  %v97 = vmul.f32 %v26, %v83
  %v98 = vmul.f32 %v27, %v83
  %v99 = vmul.f32 %v28, %v83
  %v100 = vmul.f32 %v29, %v83
  %v101 = vmul.f32 %v30, %v83
  %v102 = vmul.f32 %v31, %v83
  %v103 = vmul.f32 %v32, %v83
  %v104 = vmul.f32 %v33, %v83
  %v105 = vmul.f32 %v34, %v83
  %v106 = vmul.f32 %v35, %v83
  %v107 = vmul.f32 %v36, %v83
  %v108 = vmul.f32 %v37, %v83
  %v109 = vmul.f32 %v38, %v83
  %v110 = vmul.f32 %v39, %v83
  %v111 = vmul.f32 %v40, %v83
  %v112 = vmul.f32 %v41, %v83
  %v113 = vmul.f32 %v42, %v83
  %v114 = vmul.f32 %v43, %v83
  %v115 = vmul.f32 %v44, %v83
  %v116 = vmul.f32 %v45, %v83
  %v117 = vmul.f32 %v46, %v83
  %v118 = vmul.f32 %v47, %v83
  %v119 = vmul.f32 %v48, %v83
  %v120 = vmul.f32 %v49, %v83
  %v121 = vmul.f32 %v50, %v83
  %v122 = vmul.f32 %v51, %v83
  %v123 = vmul.f32 %v52, %v83
  %v124 = vmul.f32 %v53, %v83
  %v125 = vmul.f32 %v54, %v83
  %v126 = vmul.f32 %v55, %v83
  %v127 = vmul.f32 %v56, %v83
  %v128 = vmul.f32 %v57, %v83
  %v129 = vmul.f32 %v58, %v83
  %v130 = vmul.f32 %v59, %v83
  %v131 = vmul.f32 %v60, %v83
  %v132 = vmul.f32 %v61, %v83
  %v133 = vmul.f32 %v62, %v83
  %v134 = vmul.f32 %v63, %v83
  %v135 = vmul.f32 %v64, %v83
  %v136 = vmul.f32 %v65, %v83
  %v137 = vmul.f32 %v66, %v83
  %v138 = vmul.f32 %v67, %v83
  %v139 = vmul.f32 %v68, %v83
  %v140 = vmul.f32 %v69, %v83
  %v141 = vmul.f32 %v70, %v83
  %v142 = vmul.f32 %v71, %v83
  %v143 = vmul.f32 %v72, %v83
  %v144 = vmul.f32 %v73, %v83
  %v145 = vmul.f32 %v74, %v83
  %v146 = vmul.f32 %v75, %v83
  %v147 = vmul.f32 %v76, %v83
  %v148 = vmul.f32 %v77, %v83
  %v149 = vld [vmem:[%s2] sm:$0x1]
  %v151 = vlaneseq
  %v152 = vshrl.u32 %v151, 7
  %v153 = vsub.s32 0, %v152
  %v154 = vrot.slane %v149, %v153
  %v156 = vadd.f32 %v85, %v154
  %v157 = vadd.f32 %v86, %v154
  %v158 = vadd.f32 %v87, %v154
  %v159 = vadd.f32 %v88, %v154
  %v160 = vadd.f32 %v89, %v154
  %v161 = vadd.f32 %v90, %v154
  %v162 = vadd.f32 %v91, %v154
  %v163 = vadd.f32 %v92, %v154
  %v164 = vadd.f32 %v93, %v154
  %v165 = vadd.f32 %v94, %v154
  %v166 = vadd.f32 %v95, %v154
  %v167 = vadd.f32 %v96, %v154
  %v168 = vadd.f32 %v97, %v154
  %v169 = vadd.f32 %v98, %v154
  %v170 = vadd.f32 %v99, %v154
  %v171 = vadd.f32 %v100, %v154
  %v172 = vadd.f32 %v101, %v154
  %v173 = vadd.f32 %v102, %v154
  %v174 = vadd.f32 %v103, %v154
  %v175 = vadd.f32 %v104, %v154
  %v176 = vadd.f32 %v105, %v154
  %v177 = vadd.f32 %v106, %v154
  %v178 = vadd.f32 %v107, %v154
  %v179 = vadd.f32 %v108, %v154
  %v180 = vadd.f32 %v109, %v154
  %v181 = vadd.f32 %v110, %v154
  %v182 = vadd.f32 %v111, %v154
  %v183 = vadd.f32 %v112, %v154
  %v184 = vadd.f32 %v113, %v154
  %v185 = vadd.f32 %v114, %v154
  %v186 = vadd.f32 %v115, %v154
  %v187 = vadd.f32 %v116, %v154
  %v188 = vadd.f32 %v117, %v154
  %v189 = vadd.f32 %v118, %v154
  %v190 = vadd.f32 %v119, %v154
  %v191 = vadd.f32 %v120, %v154
  %v192 = vadd.f32 %v121, %v154
  %v193 = vadd.f32 %v122, %v154
  %v194 = vadd.f32 %v123, %v154
  %v195 = vadd.f32 %v124, %v154
  %v196 = vadd.f32 %v125, %v154
  %v197 = vadd.f32 %v126, %v154
  %v198 = vadd.f32 %v127, %v154
  %v199 = vadd.f32 %v128, %v154
  %v200 = vadd.f32 %v129, %v154
  %v201 = vadd.f32 %v130, %v154
  %v202 = vadd.f32 %v131, %v154
  %v203 = vadd.f32 %v132, %v154
  %v204 = vadd.f32 %v133, %v154
  %v205 = vadd.f32 %v134, %v154
  %v206 = vadd.f32 %v135, %v154
  %v207 = vadd.f32 %v136, %v154
  %v208 = vadd.f32 %v137, %v154
  %v209 = vadd.f32 %v138, %v154
  %v210 = vadd.f32 %v139, %v154
  %v211 = vadd.f32 %v140, %v154
  %v212 = vadd.f32 %v141, %v154
  %v213 = vadd.f32 %v142, %v154
  %v214 = vadd.f32 %v143, %v154
  %v215 = vadd.f32 %v144, %v154
  %v216 = vadd.f32 %v145, %v154
  %v217 = vadd.f32 %v146, %v154
  %v218 = vadd.f32 %v147, %v154
  %v219 = vadd.f32 %v148, %v154
  %220 = vst [vmem:[%s3] sm:$0xff] %v156
  %221 = vst [vmem:[%s3 + $0x8] sm:$0xff] %v157
  %222 = vst [vmem:[%s3 + $0x10] sm:$0xff] %v158
  %223 = vst [vmem:[%s3 + $0x18] sm:$0xff] %v159
  %224 = vst [vmem:[%s3 + $0x20] sm:$0xff] %v160
  %225 = vst [vmem:[%s3 + $0x28] sm:$0xff] %v161
  %226 = vst [vmem:[%s3 + $0x30] sm:$0xff] %v162
  %227 = vst [vmem:[%s3 + $0x38] sm:$0xff] %v163
  %228 = vst [vmem:[%s3 + $0x40] sm:$0xff] %v164
  %229 = vst [vmem:[%s3 + $0x48] sm:$0xff] %v165
  %230 = vst [vmem:[%s3 + $0x50] sm:$0xff] %v166
  %231 = vst [vmem:[%s3 + $0x58] sm:$0xff] %v167
  %232 = vst [vmem:[%s3 + $0x60] sm:$0xff] %v168
  %233 = vst [vmem:[%s3 + $0x68] sm:$0xff] %v169
  %234 = vst [vmem:[%s3 + $0x70] sm:$0xff] %v170
  %235 = vst [vmem:[%s3 + $0x78] sm:$0xff] %v171
  %236 = vst [vmem:[%s3 + $0x80] sm:$0xff] %v172
  %237 = vst [vmem:[%s3 + $0x88] sm:$0xff] %v173
  %238 = vst [vmem:[%s3 + $0x90] sm:$0xff] %v174
  %239 = vst [vmem:[%s3 + $0x98] sm:$0xff] %v175
  %240 = vst [vmem:[%s3 + $0xa0] sm:$0xff] %v176
  %241 = vst [vmem:[%s3 + $0xa8] sm:$0xff] %v177
  %242 = vst [vmem:[%s3 + $0xb0] sm:$0xff] %v178
  %243 = vst [vmem:[%s3 + $0xb8] sm:$0xff] %v179
  %244 = vst [vmem:[%s3 + $0xc0] sm:$0xff] %v180
  %245 = vst [vmem:[%s3 + $0xc8] sm:$0xff] %v181
  %246 = vst [vmem:[%s3 + $0xd0] sm:$0xff] %v182
  %247 = vst [vmem:[%s3 + $0xd8] sm:$0xff] %v183
  %248 = vst [vmem:[%s3 + $0xe0] sm:$0xff] %v184
  %249 = vst [vmem:[%s3 + $0xe8] sm:$0xff] %v185
  %250 = vst [vmem:[%s3 + $0xf0] sm:$0xff] %v186
  %251 = vst [vmem:[%s3 + $0xf8] sm:$0xff] %v187
  %252 = vst [vmem:[%s3 + $0x100] sm:$0xff] %v188
  %253 = vst [vmem:[%s3 + $0x108] sm:$0xff] %v189
  %254 = vst [vmem:[%s3 + $0x110] sm:$0xff] %v190
  %255 = vst [vmem:[%s3 + $0x118] sm:$0xff] %v191
  %256 = vst [vmem:[%s3 + $0x120] sm:$0xff] %v192
  %257 = vst [vmem:[%s3 + $0x128] sm:$0xff] %v193
  %258 = vst [vmem:[%s3 + $0x130] sm:$0xff] %v194
  %259 = vst [vmem:[%s3 + $0x138] sm:$0xff] %v195
  %260 = vst [vmem:[%s3 + $0x140] sm:$0xff] %v196
  %261 = vst [vmem:[%s3 + $0x148] sm:$0xff] %v197
  %262 = vst [vmem:[%s3 + $0x150] sm:$0xff] %v198
  %263 = vst [vmem:[%s3 + $0x158] sm:$0xff] %v199
  %264 = vst [vmem:[%s3 + $0x160] sm:$0xff] %v200
  %265 = vst [vmem:[%s3 + $0x168] sm:$0xff] %v201
  %266 = vst [vmem:[%s3 + $0x170] sm:$0xff] %v202
  %267 = vst [vmem:[%s3 + $0x178] sm:$0xff] %v203
  %268 = vst [vmem:[%s3 + $0x180] sm:$0xff] %v204
  %269 = vst [vmem:[%s3 + $0x188] sm:$0xff] %v205
  %270 = vst [vmem:[%s3 + $0x190] sm:$0xff] %v206
  %271 = vst [vmem:[%s3 + $0x198] sm:$0xff] %v207
  %272 = vst [vmem:[%s3 + $0x1a0] sm:$0xff] %v208
  %273 = vst [vmem:[%s3 + $0x1a8] sm:$0xff] %v209
  %274 = vst [vmem:[%s3 + $0x1b0] sm:$0xff] %v210
  %275 = vst [vmem:[%s3 + $0x1b8] sm:$0xff] %v211
  %276 = vst [vmem:[%s3 + $0x1c0] sm:$0xff] %v212
  %277 = vst [vmem:[%s3 + $0x1c8] sm:$0xff] %v213
  %278 = vst [vmem:[%s3 + $0x1d0] sm:$0xff] %v214
  %279 = vst [vmem:[%s3 + $0x1d8] sm:$0xff] %v215
  %280 = vst [vmem:[%s3 + $0x1e0] sm:$0xff] %v216
  %281 = vst [vmem:[%s3 + $0x1e8] sm:$0xff] %v217
  %282 = vst [vmem:[%s3 + $0x1f0] sm:$0xff] %v218
  %283 = vst [vmem:[%s3 + $0x1f8] sm:$0xff] %v219
  // Predicated region
  $region14: #{bottleneck_forward.22} parent=0 // pred_check
    _
  $region15: #{bottleneck_forward.22} parent=0 // pred_check_branch
    %285 = sbr.rel (0) target = $region17
  $region16: #{bottleneck_forward.22} parent=0 // pred_region
    _
  $region17: #{bottleneck_forward.22} parent=0 // pred_fallthru
    _
  // Predicated region
  $region18: #{bottleneck_forward.22} parent=0 // pred_check
    _
  $region19: #{bottleneck_forward.22} parent=0 // pred_check_branch
    %287 = sbr.rel (0) target = $region21
  $region20: #{bottleneck_forward.22} parent=0 // pred_region
    _
  $region21: #{bottleneck_forward.22} parent=0 // pred_fallthru
    _

// kernel: bottleneck_forward.23
$region0: #{bottleneck_forward.23}
  #allocation0 [shape = 'u32[]', space=smem, size = 0x4, offset = 0x4, fixed_abs, tag = 'smem constant byte address 0x4 - core index']
  #allocation1 [shape = 'u32[144,128]{1,0:T(1,128)}', space=vmem, size = 0x12000, scoped, tag = 'internal scratch']
  %s0 = inlined_call_operand.vmem [shape: f32[512,128], index: 0, kind: input, shape index: {}]
  %s1 = inlined_call_operand.vmem [shape: f32[1,128], index: 1, kind: input, shape index: {}]
  %s2 = inlined_call_operand.vmem [shape: f32[1,128], index: 2, kind: input, shape index: {}]
  %s3 = inlined_call_operand.vmem [shape: f32[512,128], index: 3, kind: input, shape index: {}]
  %s4 = inlined_call_operand.vmem [shape: f32[512,128], index: 4, kind: output, shape index: {}]
  %s5 = sld [smem:[#allocation0]]
  $region26: #{bottleneck_forward.23} parent=0
    _
  %s7 = ssub.s32 1, %s5
  %s8 = scalar_select 0, %s7, %s5
  // Predicated region
  $region2: #{bottleneck_forward.23} parent=0 // pred_check
    _
  $region3: #{bottleneck_forward.23} parent=0 // pred_check_branch
    %10 = sbr.rel (0) target = $region5
  $region4: #{bottleneck_forward.23} parent=0 // pred_region
    _
  $region5: #{bottleneck_forward.23} parent=0 // pred_fallthru
    _
  // Predicated region
  $region6: #{bottleneck_forward.23} parent=0 // pred_check
    _
  $region7: #{bottleneck_forward.23} parent=0 // pred_check_branch
    %12 = sbr.rel (0) target = $region9
  $region8: #{bottleneck_forward.23} parent=0 // pred_region
    _
  $region9: #{bottleneck_forward.23} parent=0 // pred_fallthru
    _
  // Predicated region
  $region10: #{bottleneck_forward.23} parent=0 // pred_check
    _
  $region11: #{bottleneck_forward.23} parent=0 // pred_check_branch
    %14 = sbr.rel (0) target = $region13
  $region12: #{bottleneck_forward.23} parent=0 // pred_region
    _
  $region13: #{bottleneck_forward.23} parent=0 // pred_fallthru
    _
  // Predicated region
  $region14: #{bottleneck_forward.23} parent=0 // pred_check
    _
  $region15: #{bottleneck_forward.23} parent=0 // pred_check_branch
    %16 = sbr.rel (0) target = $region17
  $region16: #{bottleneck_forward.23} parent=0 // pred_region
    _
  $region17: #{bottleneck_forward.23} parent=0 // pred_fallthru
    _
  %v17 = vld [vmem:[%s0] sm:$0xff]
  %v18 = vld [vmem:[%s0 + $0x8] sm:$0xff]
  %v19 = vld [vmem:[%s0 + $0x10] sm:$0xff]
  %v20 = vld [vmem:[%s0 + $0x18] sm:$0xff]
  %v21 = vld [vmem:[%s0 + $0x20] sm:$0xff]
  %v22 = vld [vmem:[%s0 + $0x28] sm:$0xff]
  %v23 = vld [vmem:[%s0 + $0x30] sm:$0xff]
  %v24 = vld [vmem:[%s0 + $0x38] sm:$0xff]
  %v25 = vld [vmem:[%s0 + $0x40] sm:$0xff]
  %v26 = vld [vmem:[%s0 + $0x48] sm:$0xff]
  %v27 = vld [vmem:[%s0 + $0x50] sm:$0xff]
  %v28 = vld [vmem:[%s0 + $0x58] sm:$0xff]
  %v29 = vld [vmem:[%s0 + $0x60] sm:$0xff]
  %v30 = vld [vmem:[%s0 + $0x68] sm:$0xff]
  %v31 = vld [vmem:[%s0 + $0x70] sm:$0xff]
  %v32 = vld [vmem:[%s0 + $0x78] sm:$0xff]
  %v33 = vld [vmem:[%s0 + $0x80] sm:$0xff]
  %v34 = vld [vmem:[%s0 + $0x88] sm:$0xff]
  %v35 = vld [vmem:[%s0 + $0x90] sm:$0xff]
  %v36 = vld [vmem:[%s0 + $0x98] sm:$0xff]
  %v37 = vld [vmem:[%s0 + $0xa0] sm:$0xff]
  %v38 = vld [vmem:[%s0 + $0xa8] sm:$0xff]
  %v39 = vld [vmem:[%s0 + $0xb0] sm:$0xff]
  %v40 = vld [vmem:[%s0 + $0xb8] sm:$0xff]
  %v41 = vld [vmem:[%s0 + $0xc0] sm:$0xff]
  %v42 = vld [vmem:[%s0 + $0xc8] sm:$0xff]
  %v43 = vld [vmem:[%s0 + $0xd0] sm:$0xff]
  %v44 = vld [vmem:[%s0 + $0xd8] sm:$0xff]
  %v45 = vld [vmem:[%s0 + $0xe0] sm:$0xff]
  %v46 = vld [vmem:[%s0 + $0xe8] sm:$0xff]
  %v47 = vld [vmem:[%s0 + $0xf0] sm:$0xff]
  %v48 = vld [vmem:[%s0 + $0xf8] sm:$0xff]
  %v49 = vld [vmem:[%s0 + $0x100] sm:$0xff]
  %v50 = vld [vmem:[%s0 + $0x108] sm:$0xff]
  %v51 = vld [vmem:[%s0 + $0x110] sm:$0xff]
  %v52 = vld [vmem:[%s0 + $0x118] sm:$0xff]
  %v53 = vld [vmem:[%s0 + $0x120] sm:$0xff]
  %v54 = vld [vmem:[%s0 + $0x128] sm:$0xff]
  %v55 = vld [vmem:[%s0 + $0x130] sm:$0xff]
  %v56 = vld [vmem:[%s0 + $0x138] sm:$0xff]
  %v57 = vld [vmem:[%s0 + $0x140] sm:$0xff]
  %v58 = vld [vmem:[%s0 + $0x148] sm:$0xff]
  %v59 = vld [vmem:[%s0 + $0x150] sm:$0xff]
  %v60 = vld [vmem:[%s0 + $0x158] sm:$0xff]
  %v61 = vld [vmem:[%s0 + $0x160] sm:$0xff]
  %v62 = vld [vmem:[%s0 + $0x168] sm:$0xff]
  %v63 = vld [vmem:[%s0 + $0x170] sm:$0xff]
  %v64 = vld [vmem:[%s0 + $0x178] sm:$0xff]
  %v65 = vld [vmem:[%s0 + $0x180] sm:$0xff]
  %v66 = vld [vmem:[%s0 + $0x188] sm:$0xff]
  %v67 = vld [vmem:[%s0 + $0x190] sm:$0xff]
  %v68 = vld [vmem:[%s0 + $0x198] sm:$0xff]
  %v69 = vld [vmem:[%s0 + $0x1a0] sm:$0xff]
  %v70 = vld [vmem:[%s0 + $0x1a8] sm:$0xff]
  %v71 = vld [vmem:[%s0 + $0x1b0] sm:$0xff]
  %v72 = vld [vmem:[%s0 + $0x1b8] sm:$0xff]
  %v73 = vld [vmem:[%s0 + $0x1c0] sm:$0xff]
  %v74 = vld [vmem:[%s0 + $0x1c8] sm:$0xff]
  %v75 = vld [vmem:[%s0 + $0x1d0] sm:$0xff]
  %v76 = vld [vmem:[%s0 + $0x1d8] sm:$0xff]
  %v77 = vld [vmem:[%s0 + $0x1e0] sm:$0xff]
  %v78 = vld [vmem:[%s0 + $0x1e8] sm:$0xff]
  %v79 = vld [vmem:[%s0 + $0x1f0] sm:$0xff]
  %v80 = vld [vmem:[%s0 + $0x1f8] sm:$0xff]
  %v81 = vld [vmem:[%s1] sm:$0x1]
  %v83 = vlaneseq
  %v84 = vshrl.u32 %v83, 7
  %v85 = vsub.s32 0, %v84
  %v86 = vrot.slane %v81, %v85
  %v88 = vmul.f32 %v17, %v86
  %v89 = vmul.f32 %v18, %v86
  %v90 = vmul.f32 %v19, %v86
  %v91 = vmul.f32 %v20, %v86
  %v92 = vmul.f32 %v21, %v86
  %v93 = vmul.f32 %v22, %v86
  %v94 = vmul.f32 %v23, %v86
  %v95 = vmul.f32 %v24, %v86
  %v96 = vmul.f32 %v25, %v86
  %v97 = vmul.f32 %v26, %v86
  %v98 = vmul.f32 %v27, %v86
  %v99 = vmul.f32 %v28, %v86
  %v100 = vmul.f32 %v29, %v86
  %v101 = vmul.f32 %v30, %v86
  %v102 = vmul.f32 %v31, %v86
  %v103 = vmul.f32 %v32, %v86
  %v104 = vmul.f32 %v33, %v86
  %v105 = vmul.f32 %v34, %v86
  %v106 = vmul.f32 %v35, %v86
  %v107 = vmul.f32 %v36, %v86
  %v108 = vmul.f32 %v37, %v86
  %v109 = vmul.f32 %v38, %v86
  %v110 = vmul.f32 %v39, %v86
  %v111 = vmul.f32 %v40, %v86
  %v112 = vmul.f32 %v41, %v86
  %v113 = vmul.f32 %v42, %v86
  %v114 = vmul.f32 %v43, %v86
  %v115 = vmul.f32 %v44, %v86
  %v116 = vmul.f32 %v45, %v86
  %v117 = vmul.f32 %v46, %v86
  %v118 = vmul.f32 %v47, %v86
  %v119 = vmul.f32 %v48, %v86
  %v120 = vmul.f32 %v49, %v86
  %v121 = vmul.f32 %v50, %v86
  %v122 = vmul.f32 %v51, %v86
  %v123 = vmul.f32 %v52, %v86
  %v124 = vmul.f32 %v53, %v86
  %v125 = vmul.f32 %v54, %v86
  %v126 = vmul.f32 %v55, %v86
  %v127 = vmul.f32 %v56, %v86
  %v128 = vmul.f32 %v57, %v86
  %v129 = vmul.f32 %v58, %v86
  %v130 = vmul.f32 %v59, %v86
  %v131 = vmul.f32 %v60, %v86
  %v132 = vmul.f32 %v61, %v86
  %v133 = vmul.f32 %v62, %v86
  %v134 = vmul.f32 %v63, %v86
  %v135 = vmul.f32 %v64, %v86
  %v136 = vmul.f32 %v65, %v86
  %v137 = vmul.f32 %v66, %v86
  %v138 = vmul.f32 %v67, %v86
  %v139 = vmul.f32 %v68, %v86
  %v140 = vmul.f32 %v69, %v86
  %v141 = vmul.f32 %v70, %v86
  %v142 = vmul.f32 %v71, %v86
  %v143 = vmul.f32 %v72, %v86
  %v144 = vmul.f32 %v73, %v86
  %v145 = vmul.f32 %v74, %v86
  %v146 = vmul.f32 %v75, %v86
  %v147 = vmul.f32 %v76, %v86
  %v148 = vmul.f32 %v77, %v86
  %v149 = vmul.f32 %v78, %v86
  %v150 = vmul.f32 %v79, %v86
  %v151 = vmul.f32 %v80, %v86
  %v152 = vld [vmem:[%s2] sm:$0x1]
  %v154 = vlaneseq
  %v155 = vshrl.u32 %v154, 7
  %v156 = vsub.s32 0, %v155
  %v157 = vrot.slane %v152, %v156
  %v159 = vadd.f32 %v88, %v157
  %v160 = vadd.f32 %v89, %v157
  %v161 = vadd.f32 %v90, %v157
  %v162 = vadd.f32 %v91, %v157
  %v163 = vadd.f32 %v92, %v157
  %v164 = vadd.f32 %v93, %v157
  %v165 = vadd.f32 %v94, %v157
  %v166 = vadd.f32 %v95, %v157
  %v167 = vadd.f32 %v96, %v157
  %v168 = vadd.f32 %v97, %v157
  %v169 = vadd.f32 %v98, %v157
  %v170 = vadd.f32 %v99, %v157
  %v171 = vadd.f32 %v100, %v157
  %v172 = vadd.f32 %v101, %v157
  %v173 = vadd.f32 %v102, %v157
  %v174 = vadd.f32 %v103, %v157
  %v175 = vadd.f32 %v104, %v157
  %v176 = vadd.f32 %v105, %v157
  %v177 = vadd.f32 %v106, %v157
  %v178 = vadd.f32 %v107, %v157
  %v179 = vadd.f32 %v108, %v157
  %v180 = vadd.f32 %v109, %v157
  %v181 = vadd.f32 %v110, %v157
  %v182 = vadd.f32 %v111, %v157
  %v183 = vadd.f32 %v112, %v157
  %v184 = vadd.f32 %v113, %v157
  %v185 = vadd.f32 %v114, %v157
  %v186 = vadd.f32 %v115, %v157
  %v187 = vadd.f32 %v116, %v157
  %v188 = vadd.f32 %v117, %v157
  %v189 = vadd.f32 %v118, %v157
  %v190 = vadd.f32 %v119, %v157
  %v191 = vadd.f32 %v120, %v157
  %v192 = vadd.f32 %v121, %v157
  %v193 = vadd.f32 %v122, %v157
  %v194 = vadd.f32 %v123, %v157
  %v195 = vadd.f32 %v124, %v157
  %v196 = vadd.f32 %v125, %v157
  %v197 = vadd.f32 %v126, %v157
  %v198 = vadd.f32 %v127, %v157
  %v199 = vadd.f32 %v128, %v157
  %v200 = vadd.f32 %v129, %v157
  %v201 = vadd.f32 %v130, %v157
  %v202 = vadd.f32 %v131, %v157
  %v203 = vadd.f32 %v132, %v157
  %v204 = vadd.f32 %v133, %v157
  %v205 = vadd.f32 %v134, %v157
  %v206 = vadd.f32 %v135, %v157
  %v207 = vadd.f32 %v136, %v157
  %v208 = vadd.f32 %v137, %v157
  %v209 = vadd.f32 %v138, %v157
  %v210 = vadd.f32 %v139, %v157
  %v211 = vadd.f32 %v140, %v157
  %v212 = vadd.f32 %v141, %v157
  %v213 = vadd.f32 %v142, %v157
  %v214 = vadd.f32 %v143, %v157
  %v215 = vadd.f32 %v144, %v157
  %v216 = vadd.f32 %v145, %v157
  %v217 = vadd.f32 %v146, %v157
  %v218 = vadd.f32 %v147, %v157
  %v219 = vadd.f32 %v148, %v157
  %v220 = vadd.f32 %v149, %v157
  %v221 = vadd.f32 %v150, %v157
  %v222 = vadd.f32 %v151, %v157
  %v223 = vld [vmem:[%s3] sm:$0xff]
  %v224 = vld [vmem:[%s3 + $0x8] sm:$0xff]
  %v225 = vld [vmem:[%s3 + $0x10] sm:$0xff]
  %v226 = vld [vmem:[%s3 + $0x18] sm:$0xff]
  %v227 = vld [vmem:[%s3 + $0x20] sm:$0xff]
  %v228 = vld [vmem:[%s3 + $0x28] sm:$0xff]
  %v229 = vld [vmem:[%s3 + $0x30] sm:$0xff]
  %v230 = vld [vmem:[%s3 + $0x38] sm:$0xff]
  %v231 = vld [vmem:[%s3 + $0x40] sm:$0xff]
  %v232 = vld [vmem:[%s3 + $0x48] sm:$0xff]
  %v233 = vld [vmem:[%s3 + $0x50] sm:$0xff]
  %v234 = vld [vmem:[%s3 + $0x58] sm:$0xff]
  %v235 = vld [vmem:[%s3 + $0x60] sm:$0xff]
  %v236 = vld [vmem:[%s3 + $0x68] sm:$0xff]
  %v237 = vld [vmem:[%s3 + $0x70] sm:$0xff]
  %v238 = vld [vmem:[%s3 + $0x78] sm:$0xff]
  %v239 = vld [vmem:[%s3 + $0x80] sm:$0xff]
  %v240 = vld [vmem:[%s3 + $0x88] sm:$0xff]
  %v241 = vld [vmem:[%s3 + $0x90] sm:$0xff]
  %v242 = vld [vmem:[%s3 + $0x98] sm:$0xff]
  %v243 = vld [vmem:[%s3 + $0xa0] sm:$0xff]
  %v244 = vld [vmem:[%s3 + $0xa8] sm:$0xff]
  %v245 = vld [vmem:[%s3 + $0xb0] sm:$0xff]
  %v246 = vld [vmem:[%s3 + $0xb8] sm:$0xff]
  %v247 = vld [vmem:[%s3 + $0xc0] sm:$0xff]
  %v248 = vld [vmem:[%s3 + $0xc8] sm:$0xff]
  %v249 = vld [vmem:[%s3 + $0xd0] sm:$0xff]
  %v250 = vld [vmem:[%s3 + $0xd8] sm:$0xff]
  %v251 = vld [vmem:[%s3 + $0xe0] sm:$0xff]
  %v252 = vld [vmem:[%s3 + $0xe8] sm:$0xff]
  %v253 = vld [vmem:[%s3 + $0xf0] sm:$0xff]
  %v254 = vld [vmem:[%s3 + $0xf8] sm:$0xff]
  %v255 = vld [vmem:[%s3 + $0x100] sm:$0xff]
  %v256 = vld [vmem:[%s3 + $0x108] sm:$0xff]
  %v257 = vld [vmem:[%s3 + $0x110] sm:$0xff]
  %v258 = vld [vmem:[%s3 + $0x118] sm:$0xff]
  %v259 = vld [vmem:[%s3 + $0x120] sm:$0xff]
  %v260 = vld [vmem:[%s3 + $0x128] sm:$0xff]
  %v261 = vld [vmem:[%s3 + $0x130] sm:$0xff]
  %v262 = vld [vmem:[%s3 + $0x138] sm:$0xff]
  %v263 = vld [vmem:[%s3 + $0x140] sm:$0xff]
  %v264 = vld [vmem:[%s3 + $0x148] sm:$0xff]
  %v265 = vld [vmem:[%s3 + $0x150] sm:$0xff]
  %v266 = vld [vmem:[%s3 + $0x158] sm:$0xff]
  %v267 = vld [vmem:[%s3 + $0x160] sm:$0xff]
  %v268 = vld [vmem:[%s3 + $0x168] sm:$0xff]
  %v269 = vld [vmem:[%s3 + $0x170] sm:$0xff]
  %v270 = vld [vmem:[%s3 + $0x178] sm:$0xff]
  %v271 = vld [vmem:[%s3 + $0x180] sm:$0xff]
  %v272 = vld [vmem:[%s3 + $0x188] sm:$0xff]
  %v273 = vld [vmem:[%s3 + $0x190] sm:$0xff]
  %v274 = vld [vmem:[%s3 + $0x198] sm:$0xff]
  %v275 = vld [vmem:[%s3 + $0x1a0] sm:$0xff]
  %v276 = vld [vmem:[%s3 + $0x1a8] sm:$0xff]
  %v277 = vld [vmem:[%s3 + $0x1b0] sm:$0xff]
  %v278 = vld [vmem:[%s3 + $0x1b8] sm:$0xff]
  %v279 = vld [vmem:[%s3 + $0x1c0] sm:$0xff]
  %v280 = vld [vmem:[%s3 + $0x1c8] sm:$0xff]
  %v281 = vld [vmem:[%s3 + $0x1d0] sm:$0xff]
  %v282 = vld [vmem:[%s3 + $0x1d8] sm:$0xff]
  %v283 = vld [vmem:[%s3 + $0x1e0] sm:$0xff]
  %v284 = vld [vmem:[%s3 + $0x1e8] sm:$0xff]
  %v285 = vld [vmem:[%s3 + $0x1f0] sm:$0xff]
  %v286 = vld [vmem:[%s3 + $0x1f8] sm:$0xff]
  %v287 = vadd.f32 %v159, %v223
  %v288 = vadd.f32 %v160, %v224
  %v289 = vadd.f32 %v161, %v225
  %v290 = vadd.f32 %v162, %v226
  %v291 = vadd.f32 %v163, %v227
  %v292 = vadd.f32 %v164, %v228
  %v293 = vadd.f32 %v165, %v229
  %v294 = vadd.f32 %v166, %v230
  %v295 = vadd.f32 %v167, %v231
  %v296 = vadd.f32 %v168, %v232
  %v297 = vadd.f32 %v169, %v233
  %v298 = vadd.f32 %v170, %v234
  %v299 = vadd.f32 %v171, %v235
  %v300 = vadd.f32 %v172, %v236
  %v301 = vadd.f32 %v173, %v237
  %v302 = vadd.f32 %v174, %v238
  %v303 = vadd.f32 %v175, %v239
  %v304 = vadd.f32 %v176, %v240
  %v305 = vadd.f32 %v177, %v241
  %v306 = vadd.f32 %v178, %v242
  %v307 = vadd.f32 %v179, %v243
  %v308 = vadd.f32 %v180, %v244
  %v309 = vadd.f32 %v181, %v245
  %v310 = vadd.f32 %v182, %v246
  %v311 = vadd.f32 %v183, %v247
  %v312 = vadd.f32 %v184, %v248
  %v313 = vadd.f32 %v185, %v249
  %v314 = vadd.f32 %v186, %v250
  %v315 = vadd.f32 %v187, %v251
  %v316 = vadd.f32 %v188, %v252
  %v317 = vadd.f32 %v189, %v253
  %v318 = vadd.f32 %v190, %v254
  %v319 = vadd.f32 %v191, %v255
  %v320 = vadd.f32 %v192, %v256
  %v321 = vadd.f32 %v193, %v257
  %v322 = vadd.f32 %v194, %v258
  %v323 = vadd.f32 %v195, %v259
  %v324 = vadd.f32 %v196, %v260
  %v325 = vadd.f32 %v197, %v261
  %v326 = vadd.f32 %v198, %v262
  %v327 = vadd.f32 %v199, %v263
  %v328 = vadd.f32 %v200, %v264
  %v329 = vadd.f32 %v201, %v265
  %v330 = vadd.f32 %v202, %v266
  %v331 = vadd.f32 %v203, %v267
  %v332 = vadd.f32 %v204, %v268
  %v333 = vadd.f32 %v205, %v269
  %v334 = vadd.f32 %v206, %v270
  %v335 = vadd.f32 %v207, %v271
  %v336 = vadd.f32 %v208, %v272
  %v337 = vadd.f32 %v209, %v273
  %v338 = vadd.f32 %v210, %v274
  %v339 = vadd.f32 %v211, %v275
  %v340 = vadd.f32 %v212, %v276
  %v341 = vadd.f32 %v213, %v277
  %v342 = vadd.f32 %v214, %v278
  %v343 = vadd.f32 %v215, %v279
  %v344 = vadd.f32 %v216, %v280
  %v345 = vadd.f32 %v217, %v281
  %v346 = vadd.f32 %v218, %v282
  %v347 = vadd.f32 %v219, %v283
  %v348 = vadd.f32 %v220, %v284
  %v349 = vadd.f32 %v221, %v285
  %v350 = vadd.f32 %v222, %v286
  %v351 = vmax.f32 %v287, 0.0
  %v352 = vmax.f32 %v288, 0.0
  %v353 = vmax.f32 %v289, 0.0
  %v354 = vmax.f32 %v290, 0.0
  %v355 = vmax.f32 %v291, 0.0
  %v356 = vmax.f32 %v292, 0.0
  %v357 = vmax.f32 %v293, 0.0
  %v358 = vmax.f32 %v294, 0.0
  %v359 = vmax.f32 %v295, 0.0
  %v360 = vmax.f32 %v296, 0.0
  %v361 = vmax.f32 %v297, 0.0
  %v362 = vmax.f32 %v298, 0.0
  %v363 = vmax.f32 %v299, 0.0
  %v364 = vmax.f32 %v300, 0.0
  %v365 = vmax.f32 %v301, 0.0
  %v366 = vmax.f32 %v302, 0.0
  %v367 = vmax.f32 %v303, 0.0
  %v368 = vmax.f32 %v304, 0.0
  %v369 = vmax.f32 %v305, 0.0
  %v370 = vmax.f32 %v306, 0.0
  %v371 = vmax.f32 %v307, 0.0
  %v372 = vmax.f32 %v308, 0.0
  %v373 = vmax.f32 %v309, 0.0
  %v374 = vmax.f32 %v310, 0.0
  %v375 = vmax.f32 %v311, 0.0
  %v376 = vmax.f32 %v312, 0.0
  %v377 = vmax.f32 %v313, 0.0
  %v378 = vmax.f32 %v314, 0.0
  %v379 = vmax.f32 %v315, 0.0
  %v380 = vmax.f32 %v316, 0.0
  %v381 = vmax.f32 %v317, 0.0
  %v382 = vmax.f32 %v318, 0.0
  %v383 = vmax.f32 %v319, 0.0
  %v384 = vmax.f32 %v320, 0.0
  %v385 = vmax.f32 %v321, 0.0
  %v386 = vmax.f32 %v322, 0.0
  %v387 = vmax.f32 %v323, 0.0
  %v388 = vmax.f32 %v324, 0.0
  %v389 = vmax.f32 %v325, 0.0
  %v390 = vmax.f32 %v326, 0.0
  %v391 = vmax.f32 %v327, 0.0
  %v392 = vmax.f32 %v328, 0.0
  %v393 = vmax.f32 %v329, 0.0
  %v394 = vmax.f32 %v330, 0.0
  %v395 = vmax.f32 %v331, 0.0
  %v396 = vmax.f32 %v332, 0.0
  %v397 = vmax.f32 %v333, 0.0
  %v398 = vmax.f32 %v334, 0.0
  %v399 = vmax.f32 %v335, 0.0
  %v400 = vmax.f32 %v336, 0.0
  %v401 = vmax.f32 %v337, 0.0
  %v402 = vmax.f32 %v338, 0.0
  %v403 = vmax.f32 %v339, 0.0
  %v404 = vmax.f32 %v340, 0.0
  %v405 = vmax.f32 %v341, 0.0
  %v406 = vmax.f32 %v342, 0.0
  %v407 = vmax.f32 %v343, 0.0
  %v408 = vmax.f32 %v344, 0.0
  %v409 = vmax.f32 %v345, 0.0
  %v410 = vmax.f32 %v346, 0.0
  %v411 = vmax.f32 %v347, 0.0
  %v412 = vmax.f32 %v348, 0.0
  %v413 = vmax.f32 %v349, 0.0
  %v414 = vmax.f32 %v350, 0.0
  %415 = vst [vmem:[%s4] sm:$0xff] %v351
  %416 = vst [vmem:[%s4 + $0x8] sm:$0xff] %v352
  %417 = vst [vmem:[%s4 + $0x10] sm:$0xff] %v353
  %418 = vst [vmem:[%s4 + $0x18] sm:$0xff] %v354
  %419 = vst [vmem:[%s4 + $0x20] sm:$0xff] %v355
  %420 = vst [vmem:[%s4 + $0x28] sm:$0xff] %v356
  %421 = vst [vmem:[%s4 + $0x30] sm:$0xff] %v357
  %422 = vst [vmem:[%s4 + $0x38] sm:$0xff] %v358
  %423 = vst [vmem:[%s4 + $0x40] sm:$0xff] %v359
  %424 = vst [vmem:[%s4 + $0x48] sm:$0xff] %v360
  %425 = vst [vmem:[%s4 + $0x50] sm:$0xff] %v361
  %426 = vst [vmem:[%s4 + $0x58] sm:$0xff] %v362
  %427 = vst [vmem:[%s4 + $0x60] sm:$0xff] %v363
  %428 = vst [vmem:[%s4 + $0x68] sm:$0xff] %v364
  %429 = vst [vmem:[%s4 + $0x70] sm:$0xff] %v365
  %430 = vst [vmem:[%s4 + $0x78] sm:$0xff] %v366
  %431 = vst [vmem:[%s4 + $0x80] sm:$0xff] %v367
  %432 = vst [vmem:[%s4 + $0x88] sm:$0xff] %v368
  %433 = vst [vmem:[%s4 + $0x90] sm:$0xff] %v369
  %434 = vst [vmem:[%s4 + $0x98] sm:$0xff] %v370
  %435 = vst [vmem:[%s4 + $0xa0] sm:$0xff] %v371
  %436 = vst [vmem:[%s4 + $0xa8] sm:$0xff] %v372
  %437 = vst [vmem:[%s4 + $0xb0] sm:$0xff] %v373
  %438 = vst [vmem:[%s4 + $0xb8] sm:$0xff] %v374
  %439 = vst [vmem:[%s4 + $0xc0] sm:$0xff] %v375
  %440 = vst [vmem:[%s4 + $0xc8] sm:$0xff] %v376
  %441 = vst [vmem:[%s4 + $0xd0] sm:$0xff] %v377
  %442 = vst [vmem:[%s4 + $0xd8] sm:$0xff] %v378
  %443 = vst [vmem:[%s4 + $0xe0] sm:$0xff] %v379
  %444 = vst [vmem:[%s4 + $0xe8] sm:$0xff] %v380
  %445 = vst [vmem:[%s4 + $0xf0] sm:$0xff] %v381
  %446 = vst [vmem:[%s4 + $0xf8] sm:$0xff] %v382
  %447 = vst [vmem:[%s4 + $0x100] sm:$0xff] %v383
  %448 = vst [vmem:[%s4 + $0x108] sm:$0xff] %v384
  %449 = vst [vmem:[%s4 + $0x110] sm:$0xff] %v385
  %450 = vst [vmem:[%s4 + $0x118] sm:$0xff] %v386
  %451 = vst [vmem:[%s4 + $0x120] sm:$0xff] %v387
  %452 = vst [vmem:[%s4 + $0x128] sm:$0xff] %v388
  %453 = vst [vmem:[%s4 + $0x130] sm:$0xff] %v389
  %454 = vst [vmem:[%s4 + $0x138] sm:$0xff] %v390
  %455 = vst [vmem:[%s4 + $0x140] sm:$0xff] %v391
  %456 = vst [vmem:[%s4 + $0x148] sm:$0xff] %v392
  %457 = vst [vmem:[%s4 + $0x150] sm:$0xff] %v393
  %458 = vst [vmem:[%s4 + $0x158] sm:$0xff] %v394
  %459 = vst [vmem:[%s4 + $0x160] sm:$0xff] %v395
  %460 = vst [vmem:[%s4 + $0x168] sm:$0xff] %v396
  %461 = vst [vmem:[%s4 + $0x170] sm:$0xff] %v397
  %462 = vst [vmem:[%s4 + $0x178] sm:$0xff] %v398
  %463 = vst [vmem:[%s4 + $0x180] sm:$0xff] %v399
  %464 = vst [vmem:[%s4 + $0x188] sm:$0xff] %v400
  %465 = vst [vmem:[%s4 + $0x190] sm:$0xff] %v401
  %466 = vst [vmem:[%s4 + $0x198] sm:$0xff] %v402
  %467 = vst [vmem:[%s4 + $0x1a0] sm:$0xff] %v403
  %468 = vst [vmem:[%s4 + $0x1a8] sm:$0xff] %v404
  %469 = vst [vmem:[%s4 + $0x1b0] sm:$0xff] %v405
  %470 = vst [vmem:[%s4 + $0x1b8] sm:$0xff] %v406
  %471 = vst [vmem:[%s4 + $0x1c0] sm:$0xff] %v407
  %472 = vst [vmem:[%s4 + $0x1c8] sm:$0xff] %v408
  %473 = vst [vmem:[%s4 + $0x1d0] sm:$0xff] %v409
  %474 = vst [vmem:[%s4 + $0x1d8] sm:$0xff] %v410
  %475 = vst [vmem:[%s4 + $0x1e0] sm:$0xff] %v411
  %476 = vst [vmem:[%s4 + $0x1e8] sm:$0xff] %v412
  %477 = vst [vmem:[%s4 + $0x1f0] sm:$0xff] %v413
  %478 = vst [vmem:[%s4 + $0x1f8] sm:$0xff] %v414
  // Predicated region
  $region18: #{bottleneck_forward.23} parent=0 // pred_check
    _
  $region19: #{bottleneck_forward.23} parent=0 // pred_check_branch
    %480 = sbr.rel (0) target = $region21
  $region20: #{bottleneck_forward.23} parent=0 // pred_region
    _
  $region21: #{bottleneck_forward.23} parent=0 // pred_fallthru
    _
  // Predicated region
  $region22: #{bottleneck_forward.23} parent=0 // pred_check
    _
  $region23: #{bottleneck_forward.23} parent=0 // pred_check_branch
    %482 = sbr.rel (0) target = $region25
  $region24: #{bottleneck_forward.23} parent=0 // pred_region
    _
  $region25: #{bottleneck_forward.23} parent=0 // pred_fallthru
    _

// kernel: bottleneck_forward.15
$region0: #{bottleneck_forward.15}
  #allocation0 [shape = 'u32[]', space=smem, size = 0x4, offset = 0x4, fixed_abs, tag = 'smem constant byte address 0x4 - core index']
  #allocation1 [shape = 'u32[144,128]{1,0:T(1,128)}', space=vmem, size = 0x12000, scoped, tag = 'internal scratch']
  %s0 = inlined_call_operand.vmem [shape: bf16[2,18,18,128], index: 0, kind: input, shape index: {}]
  %s1 = inlined_call_operand.vmem [shape: bf16[1152,128], index: 1, kind: input, shape index: {}]
  %s2 = inlined_call_operand.vmem [shape: f32[2,16,16,128], index: 2, kind: output, shape index: {}]
  %s3 = sld [smem:[#allocation0]]
  $region41: #{bottleneck_forward.15} parent=0
    _
  %s5 = ssub.s32 1, %s3
  %s6 = scalar_select 0, %s5, %s3
  loop: start=0, step=1, limit=4
  $region2: #{bottleneck_forward.15} parent=0 // loop_pre_header
    _
  $region3: #{bottleneck_forward.15} parent=0 // loop_header
    %s8 = sphi 0, %s12
    %p9 = scmp.ge.s32.totalorder %s8, 4
    %s15 = sphi 0, %s27
    %s16 = sphi 0, %s23
    %s17 = sphi 0, %s15
    %s18 = sphi 0, %s16
    %s19 = sphi 0, %s17
    %s20 = sphi 0, %s18
    %s30 = sphi 0, %s32
    %s33 = sphi 0, %s30
    %s34 = sphi 0, %s33
    %s50 = sphi 0, %s34
    %s56 = sphi 0, %s58
    %s59 = sphi 0, %s56
    %s60 = sphi 0, %s59
    %s76 = sphi 0, %s60
    %s84 = sphi 0, %s86
    %s87 = sphi 0, %s84
    %s88 = sphi 0, %s87
    %s104 = sphi 0, %s88
  $region4: #{bottleneck_forward.15} parent=0 // loop_header_branch
    %11 = sbr.rel (%p9) target = $region8
  $region5: #{bottleneck_forward.15} parent=0 // loop_body
    %s13 = ssub.s32 %s8, 1
    %s14 = ssub.s32 %s8, 2
    %s21 = sadd.s32 1, %s16
    %p22 = scmp.ge.s32.totalorder %s21, 1
    %s23 = scalar_select %p22, 0, %s21
    %s24 = sadd.s32 1, %s15
    %s25 = scalar_select %p22, %s24, %s15
    %p26 = scmp.ge.s32.totalorder %s25, 2
    %s27 = scalar_select %p26, 0, %s25
    %s28 = ssub.s32 %s15, %s27
    %p29 = scmp.eq.s32.totalorder %s28, 0
    %s31 = sadd.s32 %s30, 1
    %s32 = scalar_select %p29, %s30, %s31
    %p35 = pneg %p29
    %p36 = scmp.eq.s32.totalorder %s8, 1
    %p37 = por %p35, %p36
    %p38 = scmp.ne.s32.totalorder %s30, %s33
    %p39 = scmp.eq.s32.totalorder %s8, 0
    %p40 = por %p38, %p39
    %p41 = scmp.ne.s32.totalorder %s30, %s33
    %p42 = scmp.eq.s32.totalorder %s13, 1
    %p43 = por %p41, %p42
    %p44 = scmp.ne.s32.totalorder %s33, %s34
    %p45 = scmp.eq.s32.totalorder %s13, 0
    %p46 = por %p44, %p45
    %p47 = scmp.ne.s32.totalorder %s33, %s34
    %p48 = scmp.eq.s32.totalorder %s14, 1
    %p49 = por %p47, %p48
    %p51 = scmp.ne.s32.totalorder %s34, %s50
    %p52 = scmp.eq.s32.totalorder %s14, 0
    %p53 = por %p51, %p52
    %s54 = ssub.s32 %s16, %s23
    %p55 = scmp.eq.s32.totalorder %s54, 0
    %s57 = sadd.s32 %s56, 1
    %s58 = scalar_select %p55, %s56, %s57
    %p61 = pneg %p55
    %p62 = scmp.eq.s32.totalorder %s8, 1
    %p63 = por %p61, %p62
    %p64 = scmp.ne.s32.totalorder %s56, %s59
    %p65 = scmp.eq.s32.totalorder %s8, 0
    %p66 = por %p64, %p65
    %p67 = scmp.ne.s32.totalorder %s56, %s59
    %p68 = scmp.eq.s32.totalorder %s13, 1
    %p69 = por %p67, %p68
    %p70 = scmp.ne.s32.totalorder %s59, %s60
    %p71 = scmp.eq.s32.totalorder %s13, 0
    %p72 = por %p70, %p71
    %p73 = scmp.ne.s32.totalorder %s59, %s60
    %p74 = scmp.eq.s32.totalorder %s14, 1
    %p75 = por %p73, %p74
    %p77 = scmp.ne.s32.totalorder %s60, %s76
    %p78 = scmp.eq.s32.totalorder %s14, 0
    %p79 = por %p77, %p78
    %s80 = ssub.s32 %s15, %s27
    %s81 = ssub.s32 %s16, %s23
    %s82 = sor.u32 %s80, %s81
    %p83 = scmp.eq.s32.totalorder %s82, 0
    %s85 = sadd.s32 %s84, 1
    %s86 = scalar_select %p83, %s84, %s85
    %p89 = pneg %p83
    %p90 = scmp.eq.s32.totalorder %s8, 1
    %p91 = por %p89, %p90
    %p92 = scmp.ne.s32.totalorder %s84, %s87
    %p93 = scmp.eq.s32.totalorder %s8, 0
    %p94 = por %p92, %p93
    %p95 = scmp.ne.s32.totalorder %s84, %s87
    %p96 = scmp.eq.s32.totalorder %s13, 1
    %p97 = por %p95, %p96
    %p98 = scmp.ne.s32.totalorder %s87, %s88
    %p99 = scmp.eq.s32.totalorder %s13, 0
    %p100 = por %p98, %p99
    %p101 = scmp.ne.s32.totalorder %s87, %s88
    %p102 = scmp.eq.s32.totalorder %s14, 1
    %p103 = por %p101, %p102
    %p105 = scmp.ne.s32.totalorder %s88, %s104
    %p106 = scmp.eq.s32.totalorder %s14, 0
    %p107 = por %p105, %p106
    %p108 = scmp.le.s32.totalorder 1, %s8
    %p109 = scmp.lt.s32.totalorder %s8, 3
    %p110 = pnand %p108, %p109
    %p111 = pneg %p110
    // Predicated region
    $region9: #{bottleneck_forward.15} parent=5 // pred_check
      _
    $region10: #{bottleneck_forward.15} parent=5 // pred_check_branch
      %113 = sbr.rel (%p110) target = $region12
    $region11: #{bottleneck_forward.15} parent=5 // pred_region
      %s114 = ssub.s32 %s8, 1
      // Predicated region
      $region13: #{bottleneck_forward.15} parent=11 // pred_check
        %p115 = pneg %p72
      $region14: #{bottleneck_forward.15} parent=11 // pred_check_branch
        %117 = sbr.rel (%p115) target = $region16
      $region15: #{bottleneck_forward.15} parent=11 // pred_region
        %p118 = scmp.lt.s32.totalorder %s18, 0
        %s119 = scalar_select %p118, %s18, 0
        %s120 = smul.addr %s119, 4
        %s121 = scalar_lea.vmem %s1, %s120
      $region16: #{bottleneck_forward.15} parent=11 // pred_fallthru
        _
    $region12: #{bottleneck_forward.15} parent=5 // pred_fallthru
      _
    %p122 = scmp.lt.s32.totalorder %s8, 2
    // Predicated region
    $region17: #{bottleneck_forward.15} parent=5 // pred_check
      %p123 = pneg %p122
    $region18: #{bottleneck_forward.15} parent=5 // pred_check_branch
      %125 = sbr.rel (%p123) target = $region20
    $region19: #{bottleneck_forward.15} parent=5 // pred_region
      // Predicated region
      $region21: #{bottleneck_forward.15} parent=19 // pred_check
        %p126 = pneg %p40
      $region22: #{bottleneck_forward.15} parent=19 // pred_check_branch
        %128 = sbr.rel (%p126) target = $region24
      $region23: #{bottleneck_forward.15} parent=19 // pred_region
        %p129 = scmp.lt.s32.totalorder %s15, 1
        %s130 = scalar_select %p129, %s15, 1
        %s131 = smul.addr %s130, 54
        %s132 = smul.addr %s131, 4
        %s133 = scalar_lea.vmem %s0, %s132
      $region24: #{bottleneck_forward.15} parent=19 // pred_fallthru
        _
    $region20: #{bottleneck_forward.15} parent=5 // pred_fallthru
      _
    %p134 = scmp.le.s32.totalorder 1, %s8
    %p135 = scmp.lt.s32.totalorder %s8, 3
    %p136 = pnand %p134, %p135
    %p137 = pneg %p136
    // Predicated region
    $region25: #{bottleneck_forward.15} parent=5 // pred_check
      _
    $region26: #{bottleneck_forward.15} parent=5 // pred_check_branch
      %139 = sbr.rel (%p136) target = $region28
    $region27: #{bottleneck_forward.15} parent=5 // pred_region
      %s140 = ssub.s32 %s8, 1
      %p141 = scmp.lt.s32.totalorder %s17, 1
      %s142 = scalar_select %p141, %s17, 1
      %s143 = smul.addr %s142, 54
      %s144 = smul.addr %s143, 4
      %s145 = scalar_lea.vmem %s0, %s144
      %p146 = pneg %p46
      %p147 = pneg %p43
      %p148 = scmp.lt.s32.totalorder %s18, 0
      %s149 = scalar_select %p148, %s18, 0
      %s150 = smul.addr %s149, 4
      %s151 = scalar_lea.vmem %s1, %s150
      %p152 = pneg %p72
      %p153 = pneg %p69
      %p154 = pneg %p100
      %p155 = pneg %p97
      %p156 = scmp.lt.s32.totalorder %s17, 1
      %s157 = scalar_select %p156, %s17, 1
      %p158 = scmp.lt.s32.totalorder %s18, 0
      %s159 = scalar_select %p158, %s18, 0
      %s160 = smul.addr %s157, 32
      %s161 = sadd.s32 %s159, %s160
      %s162 = smul.addr %s161, 8
      %s163 = scalar_lea.vmem %s2, %s162
      %p164 = scmp.lt.s32.totalorder %s17, 1
      %s165 = scalar_select %p164, %s17, 1
      %s166 = smul.addr %s165, 54
      %s167 = smul.addr %s166, 4
      %s168 = scalar_lea.vmem %s0, %s167
      %p169 = scmp.lt.s32.totalorder %s18, 0
      %s170 = scalar_select %p169, %s18, 0
      %s171 = smul.addr %s170, 4
      %s172 = scalar_lea.vmem %s1, %s171
      %p173 = scmp.lt.s32.totalorder %s17, 1
      %s174 = scalar_select %p173, %s17, 1
      %p175 = scmp.lt.s32.totalorder %s18, 0
      %s176 = scalar_select %p175, %s18, 0
      %s177 = smul.addr %s174, 32
      %s178 = sadd.s32 %s176, %s177
      %s179 = smul.addr %s178, 8
      %s180 = scalar_lea.vmem %s2, %s179
      %v182 = vld [vmem:[%s168] sm:$0xf]
      %v183 = vld [vmem:[%s168 + $0x4] sm:$0xf]
      %v184 = vld [vmem:[%s168 + $0xc] sm:$0xf]
      %v185 = vld [vmem:[%s168 + $0x10] sm:$0xf]
      %v186 = vld [vmem:[%s168 + $0x18] sm:$0xf]
      %v187 = vld [vmem:[%s168 + $0x1c] sm:$0xf]
      %v188 = vld [vmem:[%s168 + $0x24] sm:$0xf]
      %v189 = vld [vmem:[%s168 + $0x28] sm:$0xf]
      %v190 = vld [vmem:[%s168 + $0x30] sm:$0xf]
      %v191 = vld [vmem:[%s168 + $0x34] sm:$0xf]
      %v192 = vld [vmem:[%s168 + $0x3c] sm:$0xf]
      %v193 = vld [vmem:[%s168 + $0x40] sm:$0xf]
      %v194 = vld [vmem:[%s168 + $0x48] sm:$0xf]
      %v195 = vld [vmem:[%s168 + $0x4c] sm:$0xf]
      %v196 = vld [vmem:[%s168 + $0x54] sm:$0xf]
      %v197 = vld [vmem:[%s168 + $0x58] sm:$0xf]
      %v198 = vld [vmem:[%s168 + $0x60] sm:$0xf]
      %v199 = vld [vmem:[%s168 + $0x64] sm:$0xf]
      %v200 = vld [vmem:[%s168 + $0x6c] sm:$0xf]
      %v201 = vld [vmem:[%s168 + $0x70] sm:$0xf]
      %v202 = vld [vmem:[%s168 + $0x78] sm:$0xf]
      %v203 = vld [vmem:[%s168 + $0x7c] sm:$0xf]
      %v204 = vld [vmem:[%s168 + $0x84] sm:$0xf]
      %v205 = vld [vmem:[%s168 + $0x88] sm:$0xf]
      %v206 = vld [vmem:[%s168 + $0x90] sm:$0xf]
      %v207 = vld [vmem:[%s168 + $0x94] sm:$0xf]
      %v208 = vld [vmem:[%s168 + $0x9c] sm:$0xf]
      %v209 = vld [vmem:[%s168 + $0xa0] sm:$0xf]
      %v210 = vld [vmem:[%s168 + $0xa8] sm:$0xf]
      %v211 = vld [vmem:[%s168 + $0xac] sm:$0xf]
      %v212 = vld [vmem:[%s168 + $0xb4] sm:$0xf]
      %v213 = vld [vmem:[%s168 + $0xb8] sm:$0xf]
      %v214 = vld [vmem:[%s172] sm:$0xf]
      %v215 = vld [vmem:[%s172 + $0x4] sm:$0xf]
      %v216 = vld [vmem:[%s172 + $0x8] sm:$0xf]
      %v217 = vld [vmem:[%s172 + $0xc] sm:$0xf]
      %v218 = vld [vmem:[%s172 + $0x10] sm:$0xf]
      %v219 = vld [vmem:[%s172 + $0x14] sm:$0xf]
      %v220 = vld [vmem:[%s172 + $0x18] sm:$0xf]
      %v221 = vld [vmem:[%s172 + $0x1c] sm:$0xf]
      %v222 = vld [vmem:[%s172 + $0x20] sm:$0xf]
      %v223 = vld [vmem:[%s172 + $0x24] sm:$0xf]
      %v224 = vld [vmem:[%s172 + $0x28] sm:$0xf]
      %v225 = vld [vmem:[%s172 + $0x2c] sm:$0xf]
      %v226 = vld [vmem:[%s172 + $0x30] sm:$0xf]
      %v227 = vld [vmem:[%s172 + $0x34] sm:$0xf]
      %v228 = vld [vmem:[%s172 + $0x38] sm:$0xf]
      %v229 = vld [vmem:[%s172 + $0x3c] sm:$0xf]
      %v230 = vld [vmem:[%s168 + $0x8] sm:$0x1]
      %v231 = vld [vmem:[%s168 + $0x14] sm:$0x1]
      %v232 = vld [vmem:[%s168 + $0x20] sm:$0x1]
      %v233 = vld [vmem:[%s168 + $0x2c] sm:$0x1]
      %v234 = vld [vmem:[%s168 + $0x38] sm:$0x1]
      %v235 = vld [vmem:[%s168 + $0x44] sm:$0x1]
      %v236 = vld [vmem:[%s168 + $0x50] sm:$0x1]
      %v237 = vld [vmem:[%s168 + $0x5c] sm:$0x1]
      %v238 = vld [vmem:[%s168 + $0x68] sm:$0x1]
      %v239 = vld [vmem:[%s168 + $0x74] sm:$0x1]
      %v240 = vld [vmem:[%s168 + $0x80] sm:$0x1]
      %v241 = vld [vmem:[%s168 + $0x8c] sm:$0x1]
      %v242 = vld [vmem:[%s168 + $0x98] sm:$0x1]
      %v243 = vld [vmem:[%s168 + $0xa4] sm:$0x1]
      %v244 = vld [vmem:[%s168 + $0xb0] sm:$0x1]
      %v245 = vld [vmem:[%s168 + $0xbc] sm:$0x1]
      %vm246 = vsmask.f32 3328
      %vm247 = vsmask.f32 7440
      %vm248 = vmor %vm246, %vm247
      %v250 = vshrl.u32 %v182, 16
      %v252 = vrot.slane %v250, 4
      %v253 = vshll.u32 %v182, 16
      %v255 = vrot.slane %v253, 5
      %v256 = vor.u32 %v252, %v255
      %v257 = vrot.slane %v256, 4
      %v259 = vshll.u32 %v183, 16
      %v261 = vrot.slane %v259, 5
      %v262 = vsel %vm248, %v257, %v261
      %v263 = vshrl.u32 %v183, 16
      %v265 = vrot.slane %v263, 4
      %v266 = vor.u32 %v265, %v261
      %v267 = vrot.slane %v266, 4
      %v269 = vshll.u32 %v230, 16
      %v271 = vrot.slane %v269, 5
      %v272 = vsel %vm248, %v267, %v271
      %v274 = vshrl.u32 %v184, 16
      %v276 = vrot.slane %v274, 4
      %v277 = vshll.u32 %v184, 16
      %v279 = vrot.slane %v277, 5
      %v280 = vor.u32 %v276, %v279
      %v281 = vrot.slane %v280, 4
      %v283 = vshll.u32 %v185, 16
      %v285 = vrot.slane %v283, 5
      %v286 = vsel %vm248, %v281, %v285
      %v287 = vshrl.u32 %v185, 16
      %v289 = vrot.slane %v287, 4
      %v290 = vor.u32 %v289, %v285
      %v291 = vrot.slane %v290, 4
      %v293 = vshll.u32 %v231, 16
      %v295 = vrot.slane %v293, 5
      %v296 = vsel %vm248, %v291, %v295
      %v298 = vshrl.u32 %v186, 16
      %v300 = vrot.slane %v298, 4
      %v301 = vshll.u32 %v186, 16
      %v303 = vrot.slane %v301, 5
      %v304 = vor.u32 %v300, %v303
      %v305 = vrot.slane %v304, 4
      %v307 = vshll.u32 %v187, 16
      %v309 = vrot.slane %v307, 5
      %v310 = vsel %vm248, %v305, %v309
      %v311 = vshrl.u32 %v187, 16
      %v313 = vrot.slane %v311, 4
      %v314 = vor.u32 %v313, %v309
      %v315 = vrot.slane %v314, 4
      %v317 = vshll.u32 %v232, 16
      %v319 = vrot.slane %v317, 5
      %v320 = vsel %vm248, %v315, %v319
      %v322 = vshrl.u32 %v188, 16
      %v324 = vrot.slane %v322, 4
      %v325 = vshll.u32 %v188, 16
      %v327 = vrot.slane %v325, 5
      %v328 = vor.u32 %v324, %v327
      %v329 = vrot.slane %v328, 4
      %v331 = vshll.u32 %v189, 16
      %v333 = vrot.slane %v331, 5
      %v334 = vsel %vm248, %v329, %v333
      %v335 = vshrl.u32 %v189, 16
      %v337 = vrot.slane %v335, 4
      %v338 = vor.u32 %v337, %v333
      %v339 = vrot.slane %v338, 4
      %v341 = vshll.u32 %v233, 16
      %v343 = vrot.slane %v341, 5
      %v344 = vsel %vm248, %v339, %v343
      %v346 = vshrl.u32 %v190, 16
      %v348 = vrot.slane %v346, 4
      %v349 = vshll.u32 %v190, 16
      %v351 = vrot.slane %v349, 5
      %v352 = vor.u32 %v348, %v351
      %v353 = vrot.slane %v352, 4
      %v355 = vshll.u32 %v191, 16
      %v357 = vrot.slane %v355, 5
      %v358 = vsel %vm248, %v353, %v357
      %v359 = vshrl.u32 %v191, 16
      %v361 = vrot.slane %v359, 4
      %v362 = vor.u32 %v361, %v357
      %v363 = vrot.slane %v362, 4
      %v365 = vshll.u32 %v234, 16
      %v367 = vrot.slane %v365, 5
      %v368 = vsel %vm248, %v363, %v367
      %v370 = vshrl.u32 %v192, 16
      %v372 = vrot.slane %v370, 4
      %v373 = vshll.u32 %v192, 16
      %v375 = vrot.slane %v373, 5
      %v376 = vor.u32 %v372, %v375
      %v377 = vrot.slane %v376, 4
      %v379 = vshll.u32 %v193, 16
      %v381 = vrot.slane %v379, 5
      %v382 = vsel %vm248, %v377, %v381
      %v383 = vshrl.u32 %v193, 16
      %v385 = vrot.slane %v383, 4
      %v386 = vor.u32 %v385, %v381
      %v387 = vrot.slane %v386, 4
      %v389 = vshll.u32 %v235, 16
      %v391 = vrot.slane %v389, 5
      %v392 = vsel %vm248, %v387, %v391
      %v394 = vshrl.u32 %v194, 16
      %v396 = vrot.slane %v394, 4
      %v397 = vshll.u32 %v194, 16
      %v399 = vrot.slane %v397, 5
      %v400 = vor.u32 %v396, %v399
      %v401 = vrot.slane %v400, 4
      %v403 = vshll.u32 %v195, 16
      %v405 = vrot.slane %v403, 5
      %v406 = vsel %vm248, %v401, %v405
      %v407 = vshrl.u32 %v195, 16
      %v409 = vrot.slane %v407, 4
      %v410 = vor.u32 %v409, %v405
      %v411 = vrot.slane %v410, 4
      %v413 = vshll.u32 %v236, 16
      %v415 = vrot.slane %v413, 5
      %v416 = vsel %vm248, %v411, %v415
      %v418 = vshrl.u32 %v196, 16
      %v420 = vrot.slane %v418, 4
      %v421 = vshll.u32 %v196, 16
      %v423 = vrot.slane %v421, 5
      %v424 = vor.u32 %v420, %v423
      %v425 = vrot.slane %v424, 4
      %v427 = vshll.u32 %v197, 16
      %v429 = vrot.slane %v427, 5
      %v430 = vsel %vm248, %v425, %v429
      %v431 = vshrl.u32 %v197, 16
      %v433 = vrot.slane %v431, 4
      %v434 = vor.u32 %v433, %v429
      %v435 = vrot.slane %v434, 4
      %v437 = vshll.u32 %v237, 16
      %v439 = vrot.slane %v437, 5
      %v440 = vsel %vm248, %v435, %v439
      %v442 = vshrl.u32 %v198, 16
      %v444 = vrot.slane %v442, 4
      %v445 = vshll.u32 %v198, 16
      %v447 = vrot.slane %v445, 5
      %v448 = vor.u32 %v444, %v447
      %v449 = vrot.slane %v448, 4
      %v451 = vshll.u32 %v199, 16
      %v453 = vrot.slane %v451, 5
      %v454 = vsel %vm248, %v449, %v453
      %v455 = vshrl.u32 %v199, 16
      %v457 = vrot.slane %v455, 4
      %v458 = vor.u32 %v457, %v453
      %v459 = vrot.slane %v458, 4
      %v461 = vshll.u32 %v238, 16
      %v463 = vrot.slane %v461, 5
      %v464 = vsel %vm248, %v459, %v463
      %v466 = vshrl.u32 %v200, 16
      %v468 = vrot.slane %v466, 4
      %v469 = vshll.u32 %v200, 16
      %v471 = vrot.slane %v469, 5
      %v472 = vor.u32 %v468, %v471
      %v473 = vrot.slane %v472, 4
      %v475 = vshll.u32 %v201, 16
      %v477 = vrot.slane %v475, 5
      %v478 = vsel %vm248, %v473, %v477
      %v479 = vshrl.u32 %v201, 16
      %v481 = vrot.slane %v479, 4
      %v482 = vor.u32 %v481, %v477
      %v483 = vrot.slane %v482, 4
      %v485 = vshll.u32 %v239, 16
      %v487 = vrot.slane %v485, 5
      %v488 = vsel %vm248, %v483, %v487
      %v490 = vshrl.u32 %v202, 16
      %v492 = vrot.slane %v490, 4
      %v493 = vshll.u32 %v202, 16
      %v495 = vrot.slane %v493, 5
      %v496 = vor.u32 %v492, %v495
      %v497 = vrot.slane %v496, 4
      %v499 = vshll.u32 %v203, 16
      %v501 = vrot.slane %v499, 5
      %v502 = vsel %vm248, %v497, %v501
      %v503 = vshrl.u32 %v203, 16
      %v505 = vrot.slane %v503, 4
      %v506 = vor.u32 %v505, %v501
      %v507 = vrot.slane %v506, 4
      %v509 = vshll.u32 %v240, 16
      %v511 = vrot.slane %v509, 5
      %v512 = vsel %vm248, %v507, %v511
      %v514 = vshrl.u32 %v204, 16
      %v516 = vrot.slane %v514, 4
      %v517 = vshll.u32 %v204, 16
      %v519 = vrot.slane %v517, 5
      %v520 = vor.u32 %v516, %v519
      %v521 = vrot.slane %v520, 4
      %v523 = vshll.u32 %v205, 16
      %v525 = vrot.slane %v523, 5
      %v526 = vsel %vm248, %v521, %v525
      %v527 = vshrl.u32 %v205, 16
      %v529 = vrot.slane %v527, 4
      %v530 = vor.u32 %v529, %v525
      %v531 = vrot.slane %v530, 4
      %v533 = vshll.u32 %v241, 16
      %v535 = vrot.slane %v533, 5
      %v536 = vsel %vm248, %v531, %v535
      %v538 = vshrl.u32 %v206, 16
      %v540 = vrot.slane %v538, 4
      %v541 = vshll.u32 %v206, 16
      %v543 = vrot.slane %v541, 5
      %v544 = vor.u32 %v540, %v543
      %v545 = vrot.slane %v544, 4
      %v547 = vshll.u32 %v207, 16
      %v549 = vrot.slane %v547, 5
      %v550 = vsel %vm248, %v545, %v549
      %v551 = vshrl.u32 %v207, 16
      %v553 = vrot.slane %v551, 4
      %v554 = vor.u32 %v553, %v549
      %v555 = vrot.slane %v554, 4
      %v557 = vshll.u32 %v242, 16
      %v559 = vrot.slane %v557, 5
      %v560 = vsel %vm248, %v555, %v559
      %v562 = vshrl.u32 %v208, 16
      %v564 = vrot.slane %v562, 4
      %v565 = vshll.u32 %v208, 16
      %v567 = vrot.slane %v565, 5
      %v568 = vor.u32 %v564, %v567
      %v569 = vrot.slane %v568, 4
      %v571 = vshll.u32 %v209, 16
      %v573 = vrot.slane %v571, 5
      %v574 = vsel %vm248, %v569, %v573
      %v575 = vshrl.u32 %v209, 16
      %v577 = vrot.slane %v575, 4
      %v578 = vor.u32 %v577, %v573
      %v579 = vrot.slane %v578, 4
      %v581 = vshll.u32 %v243, 16
      %v583 = vrot.slane %v581, 5
      %v584 = vsel %vm248, %v579, %v583
      %v586 = vshrl.u32 %v210, 16
      %v588 = vrot.slane %v586, 4
      %v589 = vshll.u32 %v210, 16
      %v591 = vrot.slane %v589, 5
      %v592 = vor.u32 %v588, %v591
      %v593 = vrot.slane %v592, 4
      %v595 = vshll.u32 %v211, 16
      %v597 = vrot.slane %v595, 5
      %v598 = vsel %vm248, %v593, %v597
      %v599 = vshrl.u32 %v211, 16
      %v601 = vrot.slane %v599, 4
      %v602 = vor.u32 %v601, %v597
      %v603 = vrot.slane %v602, 4
      %v605 = vshll.u32 %v244, 16
      %v607 = vrot.slane %v605, 5
      %v608 = vsel %vm248, %v603, %v607
      %v610 = vshrl.u32 %v212, 16
      %v612 = vrot.slane %v610, 4
      %v613 = vshll.u32 %v212, 16
      %v615 = vrot.slane %v613, 5
      %v616 = vor.u32 %v612, %v615
      %v617 = vrot.slane %v616, 4
      %v619 = vshll.u32 %v213, 16
      %v621 = vrot.slane %v619, 5
      %v622 = vsel %vm248, %v617, %v621
      %v623 = vshrl.u32 %v213, 16
      %v625 = vrot.slane %v623, 4
      %v626 = vor.u32 %v625, %v621
      %v627 = vrot.slane %v626, 4
      %v629 = vshll.u32 %v245, 16
      %v631 = vrot.slane %v629, 5
      %v632 = vsel %vm248, %v627, %v631
      %v633 = vld [vmem:[%s172 + $0x40] sm:$0xf]
      %v634 = vld [vmem:[%s172 + $0x44] sm:$0xf]
      %v635 = vld [vmem:[%s172 + $0x48] sm:$0xf]
      %v636 = vld [vmem:[%s172 + $0x4c] sm:$0xf]
      %v637 = vld [vmem:[%s172 + $0x50] sm:$0xf]
      %v638 = vld [vmem:[%s172 + $0x54] sm:$0xf]
      %v639 = vld [vmem:[%s172 + $0x58] sm:$0xf]
      %v640 = vld [vmem:[%s172 + $0x5c] sm:$0xf]
      %v641 = vld [vmem:[%s172 + $0x60] sm:$0xf]
      %v642 = vld [vmem:[%s172 + $0x64] sm:$0xf]
      %v643 = vld [vmem:[%s172 + $0x68] sm:$0xf]
      %v644 = vld [vmem:[%s172 + $0x6c] sm:$0xf]
      %v645 = vld [vmem:[%s172 + $0x70] sm:$0xf]
      %v646 = vld [vmem:[%s172 + $0x74] sm:$0xf]
      %v647 = vld [vmem:[%s172 + $0x78] sm:$0xf]
      %v648 = vld [vmem:[%s172 + $0x7c] sm:$0xf]
      %v649 = vunpack.c.l.b16 %v262
      %v650 = vunpack.c.l.b16 %v272
      %v651 = vunpack.c.l.b16 %v286
      %v652 = vunpack.c.l.b16 %v296
      %v653 = vunpack.c.l.b16 %v310
      %v654 = vunpack.c.l.b16 %v320
      %v655 = vunpack.c.l.b16 %v334
      %v656 = vunpack.c.l.b16 %v344
      %v657 = vunpack.c.l.b16 %v358
      %v658 = vunpack.c.l.b16 %v368
      %v659 = vunpack.c.l.b16 %v382
      %v660 = vunpack.c.l.b16 %v392
      %v661 = vunpack.c.l.b16 %v406
      %v662 = vunpack.c.l.b16 %v416
      %v663 = vunpack.c.l.b16 %v430
      %v664 = vunpack.c.l.b16 %v440
      %v665 = vunpack.c.l.b16 %v454
      %v666 = vunpack.c.l.b16 %v464
      %v667 = vunpack.c.l.b16 %v478
      %v668 = vunpack.c.l.b16 %v488
      %v669 = vunpack.c.l.b16 %v502
      %v670 = vunpack.c.l.b16 %v512
      %v671 = vunpack.c.l.b16 %v526
      %v672 = vunpack.c.l.b16 %v536
      %v673 = vunpack.c.l.b16 %v550
      %v674 = vunpack.c.l.b16 %v560
      %v675 = vunpack.c.l.b16 %v574
      %v676 = vunpack.c.l.b16 %v584
      %v677 = vunpack.c.l.b16 %v598
      %v678 = vunpack.c.l.b16 %v608
      %v679 = vunpack.c.l.b16 %v622
      %v680 = vunpack.c.l.b16 %v632
      %v681 = vpack.c.b16 %v650, %v649
      %v682 = vpack.c.b16 %v652, %v651
      %v683 = vpack.c.b16 %v654, %v653
      %v684 = vpack.c.b16 %v656, %v655
      %v685 = vpack.c.b16 %v658, %v657
      %v686 = vpack.c.b16 %v660, %v659
      %v687 = vpack.c.b16 %v662, %v661
      %v688 = vpack.c.b16 %v664, %v663
      %v689 = vpack.c.b16 %v666, %v665
      %v690 = vpack.c.b16 %v668, %v667
      %v691 = vpack.c.b16 %v670, %v669
      %v692 = vpack.c.b16 %v672, %v671
      %v693 = vpack.c.b16 %v674, %v673
      %v694 = vpack.c.b16 %v676, %v675
      %v695 = vpack.c.b16 %v678, %v677
      %v696 = vpack.c.b16 %v680, %v679
      %v729 = vunpack.c.l.b16 %v633
      %v730 = vunpack.c.l.b16 %v634
      %v731 = vunpack.c.l.b16 %v635
      %v732 = vunpack.c.l.b16 %v636
      %v733 = vunpack.c.l.b16 %v637
      %v734 = vunpack.c.l.b16 %v638
      %v735 = vunpack.c.l.b16 %v639
      %v736 = vunpack.c.l.b16 %v640
      %v737 = vunpack.c.l.b16 %v641
      %v738 = vunpack.c.l.b16 %v642
      %v739 = vunpack.c.l.b16 %v643
      %v740 = vunpack.c.l.b16 %v644
      %v741 = vunpack.c.l.b16 %v645
      %v742 = vunpack.c.l.b16 %v646
      %v743 = vunpack.c.l.b16 %v647
      %v744 = vunpack.c.l.b16 %v648
      %v745 = vpack.c.b16 %v730, %v729
      %v746 = vpack.c.b16 %v732, %v731
      %v747 = vpack.c.b16 %v734, %v733
      %v748 = vpack.c.b16 %v736, %v735
      %v749 = vpack.c.b16 %v738, %v737
      %v750 = vpack.c.b16 %v740, %v739
      %v751 = vpack.c.b16 %v742, %v741
      %v752 = vpack.c.b16 %v744, %v743
      %761 = vmatprep.subr.bf16.mxu0 0
      %762 = vmatpush1.bf16.msra.mxu0 %v745
      %763 = vmatprep.subr.bf16.mxu0 0
      %764 = vmatpush1.bf16.msra.mxu0 %v746
      %765 = vmatprep.subr.bf16.mxu0 0
      %766 = vmatpush1.bf16.msra.mxu0 %v747
      %767 = vmatprep.subr.bf16.mxu0 0
      %768 = vmatpush1.bf16.msra.mxu0 %v748
      %769 = vmatprep.subr.bf16.mxu0 0
      %770 = vmatpush1.bf16.msra.mxu0 %v749
      %771 = vmatprep.subr.bf16.mxu0 0
      %772 = vmatpush1.bf16.msra.mxu0 %v750
      %773 = vmatprep.subr.bf16.mxu0 0
      %774 = vmatpush1.bf16.msra.mxu0 %v751
      %775 = vmatprep.subr.bf16.mxu0 0
      %776 = vmatpush1.bf16.msra.mxu0 %v752
      %777 = vmatprep.subr.bf16.mxu0 0
      %778 = vmatpush1.bf16.msra.mxu0 0
      %779 = vmatprep.subr.bf16.mxu0 0
      %780 = vmatpush1.bf16.msra.mxu0 0
      %781 = vmatprep.subr.bf16.mxu0 0
      %782 = vmatpush1.bf16.msra.mxu0 0
      %783 = vmatprep.subr.bf16.mxu0 0
      %784 = vmatpush1.bf16.msra.mxu0 0
      %785 = vmatprep.subr.bf16.mxu0 0
      %786 = vmatpush1.bf16.msra.mxu0 0
      %787 = vmatprep.subr.bf16.mxu0 0
      %788 = vmatpush1.bf16.msra.mxu0 0
      %789 = vmatprep.subr.bf16.mxu0 0
      %790 = vmatpush1.bf16.msra.mxu0 0
      %791 = vmatprep.subr.bf16.mxu0 0
      %792 = vmatpush1.bf16.msra.mxu0 0
      %793 = vmatprep.mubr.bf16.mxu0 0
      %794 = vmatmul.mubr.bf16.gmra.mrb[0].mxu0 %v681
      %v795 = vpop.f32.mrb[0].mxu0
      %v796 = vadd.f32 0.0, %v795
      %v797 = vpop.f32.mrb[0].mxu0
      %v798 = vpop.f32.mrb[0].mxu0
      %v799 = vadd.f32 0.0, %v798
      %v800 = vpop.f32.mrb[0].mxu0
      %801 = vmatprep.mubr.bf16.mxu0 0
      %802 = vmatmul.mubr.bf16.gmra.mrb[0].mxu0 %v682
      %v803 = vpop.f32.mrb[0].mxu0
      %v804 = vadd.f32 0.0, %v803
      %v805 = vpop.f32.mrb[0].mxu0
      %v806 = vpop.f32.mrb[0].mxu0
      %v807 = vadd.f32 0.0, %v806
      %v808 = vpop.f32.mrb[0].mxu0
      %809 = vmatprep.mubr.bf16.mxu0 0
      %810 = vmatmul.mubr.bf16.gmra.mrb[0].mxu0 %v683
      %v811 = vpop.f32.mrb[0].mxu0
      %v812 = vadd.f32 0.0, %v811
      %v813 = vpop.f32.mrb[0].mxu0
      %v814 = vpop.f32.mrb[0].mxu0
      %v815 = vadd.f32 0.0, %v814
      %v816 = vpop.f32.mrb[0].mxu0
      %817 = vmatprep.mubr.bf16.mxu0 0
      %818 = vmatmul.mubr.bf16.gmra.mrb[0].mxu0 %v684
      %v819 = vpop.f32.mrb[0].mxu0
      %v820 = vadd.f32 0.0, %v819
      %v821 = vpop.f32.mrb[0].mxu0
      %v822 = vpop.f32.mrb[0].mxu0
      %v823 = vadd.f32 0.0, %v822
      %v824 = vpop.f32.mrb[0].mxu0
      %825 = vmatprep.mubr.bf16.mxu0 0
      %826 = vmatmul.mubr.bf16.gmra.mrb[0].mxu0 %v685
      %v827 = vpop.f32.mrb[0].mxu0
      %v828 = vadd.f32 0.0, %v827
      %v829 = vpop.f32.mrb[0].mxu0
      %v830 = vpop.f32.mrb[0].mxu0
      %v831 = vadd.f32 0.0, %v830
      %v832 = vpop.f32.mrb[0].mxu0
      %833 = vmatprep.mubr.bf16.mxu0 0
      %834 = vmatmul.mubr.bf16.gmra.mrb[0].mxu0 %v686
      %v835 = vpop.f32.mrb[0].mxu0
      %v836 = vadd.f32 0.0, %v835
      %v837 = vpop.f32.mrb[0].mxu0
      %v838 = vpop.f32.mrb[0].mxu0
      %v839 = vadd.f32 0.0, %v838
      %v840 = vpop.f32.mrb[0].mxu0
      %841 = vmatprep.mubr.bf16.mxu0 0
      %842 = vmatmul.mubr.bf16.gmra.mrb[0].mxu0 %v687
      %v843 = vpop.f32.mrb[0].mxu0
      %v844 = vadd.f32 0.0, %v843
      %v845 = vpop.f32.mrb[0].mxu0
      %v846 = vpop.f32.mrb[0].mxu0
      %v847 = vadd.f32 0.0, %v846
      %v848 = vpop.f32.mrb[0].mxu0
      %849 = vmatprep.mubr.bf16.mxu0 0
      %850 = vmatmul.mubr.bf16.gmra.mrb[0].mxu0 %v688
      %v851 = vpop.f32.mrb[0].mxu0
      %v852 = vadd.f32 0.0, %v851
      %v853 = vpop.f32.mrb[0].mxu0
      %v854 = vpop.f32.mrb[0].mxu0
      %v855 = vadd.f32 0.0, %v854
      %v856 = vpop.f32.mrb[0].mxu0
      %857 = vmatprep.mubr.bf16.mxu0 0
      %858 = vmatmul.mubr.bf16.gmra.mrb[0].mxu0 %v689
      %v859 = vpop.f32.mrb[0].mxu0
      %v860 = vadd.f32 0.0, %v859
      %v861 = vpop.f32.mrb[0].mxu0
      %v862 = vpop.f32.mrb[0].mxu0
      %v863 = vadd.f32 0.0, %v862
      %v864 = vpop.f32.mrb[0].mxu0
      %865 = vmatprep.mubr.bf16.mxu0 0
      %866 = vmatmul.mubr.bf16.gmra.mrb[0].mxu0 %v690
      %v867 = vpop.f32.mrb[0].mxu0
      %v868 = vadd.f32 0.0, %v867
      %v869 = vpop.f32.mrb[0].mxu0
      %v870 = vpop.f32.mrb[0].mxu0
      %v871 = vadd.f32 0.0, %v870
      %v872 = vpop.f32.mrb[0].mxu0
      %873 = vmatprep.mubr.bf16.mxu0 0
      %874 = vmatmul.mubr.bf16.gmra.mrb[0].mxu0 %v691
      %v875 = vpop.f32.mrb[0].mxu0
      %v876 = vadd.f32 0.0, %v875
      %v877 = vpop.f32.mrb[0].mxu0
      %v878 = vpop.f32.mrb[0].mxu0
      %v879 = vadd.f32 0.0, %v878
      %v880 = vpop.f32.mrb[0].mxu0
      %881 = vmatprep.mubr.bf16.mxu0 0
      %882 = vmatmul.mubr.bf16.gmra.mrb[0].mxu0 %v692
      %v883 = vpop.f32.mrb[0].mxu0
      %v884 = vadd.f32 0.0, %v883
      %v885 = vpop.f32.mrb[0].mxu0
      %v886 = vpop.f32.mrb[0].mxu0
      %v887 = vadd.f32 0.0, %v886
      %v888 = vpop.f32.mrb[0].mxu0
      %889 = vmatprep.mubr.bf16.mxu0 0
      %890 = vmatmul.mubr.bf16.gmra.mrb[0].mxu0 %v693
      %v891 = vpop.f32.mrb[0].mxu0
      %v892 = vadd.f32 0.0, %v891
      %v893 = vpop.f32.mrb[0].mxu0
      %v894 = vpop.f32.mrb[0].mxu0
      %v895 = vadd.f32 0.0, %v894
      %v896 = vpop.f32.mrb[0].mxu0
      %897 = vmatprep.mubr.bf16.mxu0 0
      %898 = vmatmul.mubr.bf16.gmra.mrb[0].mxu0 %v694
      %v899 = vpop.f32.mrb[0].mxu0
      %v900 = vadd.f32 0.0, %v899
      %v901 = vpop.f32.mrb[0].mxu0
      %v902 = vpop.f32.mrb[0].mxu0
      %v903 = vadd.f32 0.0, %v902
      %v904 = vpop.f32.mrb[0].mxu0
      %905 = vmatprep.mubr.bf16.mxu0 0
      %906 = vmatmul.mubr.bf16.gmra.mrb[0].mxu0 %v695
      %v907 = vpop.f32.mrb[0].mxu0
      %v908 = vadd.f32 0.0, %v907
      %v909 = vpop.f32.mrb[0].mxu0
      %v910 = vpop.f32.mrb[0].mxu0
      %v911 = vadd.f32 0.0, %v910
      %v912 = vpop.f32.mrb[0].mxu0
      %913 = vmatprep.mubr.bf16.mxu0 0
      %914 = vmatmul.mubr.bf16.gmra.mrb[0].mxu0 %v696
      %v915 = vpop.f32.mrb[0].mxu0
      %v916 = vadd.f32 0.0, %v915
      %v917 = vpop.f32.mrb[0].mxu0
      %v918 = vpop.f32.mrb[0].mxu0
      %v919 = vadd.f32 0.0, %v918
      %v920 = vpop.f32.mrb[0].mxu0
      %921 = vdwg.mxu0
      %v954 = vunpack.c.l.b16 %v182
      %v955 = vunpack.c.l.b16 %v183
      %v956 = vunpack.c.l.b16 %v184
      %v957 = vunpack.c.l.b16 %v185
      %v958 = vunpack.c.l.b16 %v186
      %v959 = vunpack.c.l.b16 %v187
      %v960 = vunpack.c.l.b16 %v188
      %v961 = vunpack.c.l.b16 %v189
      %v962 = vunpack.c.l.b16 %v190
      %v963 = vunpack.c.l.b16 %v191
      %v964 = vunpack.c.l.b16 %v192
      %v965 = vunpack.c.l.b16 %v193
      %v966 = vunpack.c.l.b16 %v194
      %v967 = vunpack.c.l.b16 %v195
      %v968 = vunpack.c.l.b16 %v196
      %v969 = vunpack.c.l.b16 %v197
      %v970 = vunpack.c.l.b16 %v198
      %v971 = vunpack.c.l.b16 %v199
      %v972 = vunpack.c.l.b16 %v200
      %v973 = vunpack.c.l.b16 %v201
      %v974 = vunpack.c.l.b16 %v202
      %v975 = vunpack.c.l.b16 %v203
      %v976 = vunpack.c.l.b16 %v204
      %v977 = vunpack.c.l.b16 %v205
      %v978 = vunpack.c.l.b16 %v206
      %v979 = vunpack.c.l.b16 %v207
      %v980 = vunpack.c.l.b16 %v208
      %v981 = vunpack.c.l.b16 %v209
      %v982 = vunpack.c.l.b16 %v210
      %v983 = vunpack.c.l.b16 %v211
      %v984 = vunpack.c.l.b16 %v212
      %v985 = vunpack.c.l.b16 %v213
      %v986 = vpack.c.b16 %v955, %v954
      %v987 = vpack.c.b16 %v957, %v956
      %v988 = vpack.c.b16 %v959, %v958
      %v989 = vpack.c.b16 %v961, %v960
      %v990 = vpack.c.b16 %v963, %v962
      %v991 = vpack.c.b16 %v965, %v964
      %v992 = vpack.c.b16 %v967, %v966
      %v993 = vpack.c.b16 %v969, %v968
      %v994 = vpack.c.b16 %v971, %v970
      %v995 = vpack.c.b16 %v973, %v972
      %v996 = vpack.c.b16 %v975, %v974
      %v997 = vpack.c.b16 %v977, %v976
      %v998 = vpack.c.b16 %v979, %v978
      %v999 = vpack.c.b16 %v981, %v980
      %v1000 = vpack.c.b16 %v983, %v982
      %v1001 = vpack.c.b16 %v985, %v984
      %v1034 = vunpack.c.l.b16 %v214
      %v1035 = vunpack.c.l.b16 %v215
      %v1036 = vunpack.c.l.b16 %v216
      %v1037 = vunpack.c.l.b16 %v217
      %v1038 = vunpack.c.l.b16 %v218
      %v1039 = vunpack.c.l.b16 %v219
      %v1040 = vunpack.c.l.b16 %v220
      %v1041 = vunpack.c.l.b16 %v221
      %v1042 = vunpack.c.l.b16 %v222
      %v1043 = vunpack.c.l.b16 %v223
      %v1044 = vunpack.c.l.b16 %v224
      %v1045 = vunpack.c.l.b16 %v225
      %v1046 = vunpack.c.l.b16 %v226
      %v1047 = vunpack.c.l.b16 %v227
      %v1048 = vunpack.c.l.b16 %v228
      %v1049 = vunpack.c.l.b16 %v229
      %v1050 = vpack.c.b16 %v1035, %v1034
      %v1051 = vpack.c.b16 %v1037, %v1036
      %v1052 = vpack.c.b16 %v1039, %v1038
      %v1053 = vpack.c.b16 %v1041, %v1040
      %v1054 = vpack.c.b16 %v1043, %v1042
      %v1055 = vpack.c.b16 %v1045, %v1044
      %v1056 = vpack.c.b16 %v1047, %v1046
      %v1057 = vpack.c.b16 %v1049, %v1048
      %1066 = vmatprep.subr.bf16.mxu0 0
      %1067 = vmatpush1.bf16.msra.mxu0 %v1050
      %1068 = vmatprep.subr.bf16.mxu0 0
      %1069 = vmatpush1.bf16.msra.mxu0 %v1051
      %1070 = vmatprep.subr.bf16.mxu0 0
      %1071 = vmatpush1.bf16.msra.mxu0 %v1052
      %1072 = vmatprep.subr.bf16.mxu0 0
      %1073 = vmatpush1.bf16.msra.mxu0 %v1053
      %1074 = vmatprep.subr.bf16.mxu0 0
      %1075 = vmatpush1.bf16.msra.mxu0 %v1054
      %1076 = vmatprep.subr.bf16.mxu0 0
      %1077 = vmatpush1.bf16.msra.mxu0 %v1055
      %1078 = vmatprep.subr.bf16.mxu0 0
      %1079 = vmatpush1.bf16.msra.mxu0 %v1056
      %1080 = vmatprep.subr.bf16.mxu0 0
      %1081 = vmatpush1.bf16.msra.mxu0 %v1057
      %1082 = vmatprep.subr.bf16.mxu0 0
      %1083 = vmatpush1.bf16.msra.mxu0 0
      %1084 = vmatprep.subr.bf16.mxu0 0
      %1085 = vmatpush1.bf16.msra.mxu0 0
      %1086 = vmatprep.subr.bf16.mxu0 0
      %1087 = vmatpush1.bf16.msra.mxu0 0
      %1088 = vmatprep.subr.bf16.mxu0 0
      %1089 = vmatpush1.bf16.msra.mxu0 0
      %1090 = vmatprep.subr.bf16.mxu0 0
      %1091 = vmatpush1.bf16.msra.mxu0 0
      %1092 = vmatprep.subr.bf16.mxu0 0
      %1093 = vmatpush1.bf16.msra.mxu0 0
      %1094 = vmatprep.subr.bf16.mxu0 0
      %1095 = vmatpush1.bf16.msra.mxu0 0
      %1096 = vmatprep.subr.bf16.mxu0 0
      %1097 = vmatpush1.bf16.msra.mxu0 0
      %1098 = vmatprep.mubr.bf16.mxu0 0
      %1099 = vmatmul.mubr.bf16.gmra.mrb[0].mxu0 %v986
      %v1100 = vpop.f32.mrb[0].mxu0
      %v1101 = vadd.f32 %v796, %v1100
      %v1102 = vpop.f32.mrb[0].mxu0
      %v1103 = vpop.f32.mrb[0].mxu0
      %v1104 = vadd.f32 %v799, %v1103
      %v1105 = vpop.f32.mrb[0].mxu0
      %1106 = vmatprep.mubr.bf16.mxu0 0
      %1107 = vmatmul.mubr.bf16.gmra.mrb[0].mxu0 %v987
      %v1108 = vpop.f32.mrb[0].mxu0
      %v1109 = vadd.f32 %v804, %v1108
      %v1110 = vpop.f32.mrb[0].mxu0
      %v1111 = vpop.f32.mrb[0].mxu0
      %v1112 = vadd.f32 %v807, %v1111
      %v1113 = vpop.f32.mrb[0].mxu0
      %1114 = vmatprep.mubr.bf16.mxu0 0
      %1115 = vmatmul.mubr.bf16.gmra.mrb[0].mxu0 %v988
      %v1116 = vpop.f32.mrb[0].mxu0
      %v1117 = vadd.f32 %v812, %v1116
      %v1118 = vpop.f32.mrb[0].mxu0
      %v1119 = vpop.f32.mrb[0].mxu0
      %v1120 = vadd.f32 %v815, %v1119
      %v1121 = vpop.f32.mrb[0].mxu0
      %1122 = vmatprep.mubr.bf16.mxu0 0
      %1123 = vmatmul.mubr.bf16.gmra.mrb[0].mxu0 %v989
      %v1124 = vpop.f32.mrb[0].mxu0
      %v1125 = vadd.f32 %v820, %v1124
      %v1126 = vpop.f32.mrb[0].mxu0
      %v1127 = vpop.f32.mrb[0].mxu0
      %v1128 = vadd.f32 %v823, %v1127
      %v1129 = vpop.f32.mrb[0].mxu0
      %1130 = vmatprep.mubr.bf16.mxu0 0
      %1131 = vmatmul.mubr.bf16.gmra.mrb[0].mxu0 %v990
      %v1132 = vpop.f32.mrb[0].mxu0
      %v1133 = vadd.f32 %v828, %v1132
      %v1134 = vpop.f32.mrb[0].mxu0
      %v1135 = vpop.f32.mrb[0].mxu0
      %v1136 = vadd.f32 %v831, %v1135
      %v1137 = vpop.f32.mrb[0].mxu0
      %1138 = vmatprep.mubr.bf16.mxu0 0
      %1139 = vmatmul.mubr.bf16.gmra.mrb[0].mxu0 %v991
      %v1140 = vpop.f32.mrb[0].mxu0
      %v1141 = vadd.f32 %v836, %v1140
      %v1142 = vpop.f32.mrb[0].mxu0
      %v1143 = vpop.f32.mrb[0].mxu0
      %v1144 = vadd.f32 %v839, %v1143
      %v1145 = vpop.f32.mrb[0].mxu0
      %1146 = vmatprep.mubr.bf16.mxu0 0
      %1147 = vmatmul.mubr.bf16.gmra.mrb[0].mxu0 %v992
      %v1148 = vpop.f32.mrb[0].mxu0
      %v1149 = vadd.f32 %v844, %v1148
      %v1150 = vpop.f32.mrb[0].mxu0
      %v1151 = vpop.f32.mrb[0].mxu0
      %v1152 = vadd.f32 %v847, %v1151
      %v1153 = vpop.f32.mrb[0].mxu0
      %1154 = vmatprep.mubr.bf16.mxu0 0
      %1155 = vmatmul.mubr.bf16.gmra.mrb[0].mxu0 %v993
      %v1156 = vpop.f32.mrb[0].mxu0
      %v1157 = vadd.f32 %v852, %v1156
      %v1158 = vpop.f32.mrb[0].mxu0
      %v1159 = vpop.f32.mrb[0].mxu0
      %v1160 = vadd.f32 %v855, %v1159
      %v1161 = vpop.f32.mrb[0].mxu0
      %1162 = vmatprep.mubr.bf16.mxu0 0
      %1163 = vmatmul.mubr.bf16.gmra.mrb[0].mxu0 %v994
      %v1164 = vpop.f32.mrb[0].mxu0
      %v1165 = vadd.f32 %v860, %v1164
      %v1166 = vpop.f32.mrb[0].mxu0
      %v1167 = vpop.f32.mrb[0].mxu0
      %v1168 = vadd.f32 %v863, %v1167
      %v1169 = vpop.f32.mrb[0].mxu0
      %1170 = vmatprep.mubr.bf16.mxu0 0
      %1171 = vmatmul.mubr.bf16.gmra.mrb[0].mxu0 %v995
      %v1172 = vpop.f32.mrb[0].mxu0
      %v1173 = vadd.f32 %v868, %v1172
      %v1174 = vpop.f32.mrb[0].mxu0
      %v1175 = vpop.f32.mrb[0].mxu0
      %v1176 = vadd.f32 %v871, %v1175
      %v1177 = vpop.f32.mrb[0].mxu0
      %1178 = vmatprep.mubr.bf16.mxu0 0
      %1179 = vmatmul.mubr.bf16.gmra.mrb[0].mxu0 %v996
      %v1180 = vpop.f32.mrb[0].mxu0
      %v1181 = vadd.f32 %v876, %v1180
      %v1182 = vpop.f32.mrb[0].mxu0
      %v1183 = vpop.f32.mrb[0].mxu0
      %v1184 = vadd.f32 %v879, %v1183
      %v1185 = vpop.f32.mrb[0].mxu0
      %1186 = vmatprep.mubr.bf16.mxu0 0
      %1187 = vmatmul.mubr.bf16.gmra.mrb[0].mxu0 %v997
      %v1188 = vpop.f32.mrb[0].mxu0
      %v1189 = vadd.f32 %v884, %v1188
      %v1190 = vpop.f32.mrb[0].mxu0
      %v1191 = vpop.f32.mrb[0].mxu0
      %v1192 = vadd.f32 %v887, %v1191
      %v1193 = vpop.f32.mrb[0].mxu0
      %1194 = vmatprep.mubr.bf16.mxu0 0
      %1195 = vmatmul.mubr.bf16.gmra.mrb[0].mxu0 %v998
      %v1196 = vpop.f32.mrb[0].mxu0
      %v1197 = vadd.f32 %v892, %v1196
      %v1198 = vpop.f32.mrb[0].mxu0
      %v1199 = vpop.f32.mrb[0].mxu0
      %v1200 = vadd.f32 %v895, %v1199
      %v1201 = vpop.f32.mrb[0].mxu0
      %1202 = vmatprep.mubr.bf16.mxu0 0
      %1203 = vmatmul.mubr.bf16.gmra.mrb[0].mxu0 %v999
      %v1204 = vpop.f32.mrb[0].mxu0
      %v1205 = vadd.f32 %v900, %v1204
      %v1206 = vpop.f32.mrb[0].mxu0
      %v1207 = vpop.f32.mrb[0].mxu0
      %v1208 = vadd.f32 %v903, %v1207
      %v1209 = vpop.f32.mrb[0].mxu0
      %1210 = vmatprep.mubr.bf16.mxu0 0
      %1211 = vmatmul.mubr.bf16.gmra.mrb[0].mxu0 %v1000
      %v1212 = vpop.f32.mrb[0].mxu0
      %v1213 = vadd.f32 %v908, %v1212
      %v1214 = vpop.f32.mrb[0].mxu0
      %v1215 = vpop.f32.mrb[0].mxu0
      %v1216 = vadd.f32 %v911, %v1215
      %v1217 = vpop.f32.mrb[0].mxu0
      %1218 = vmatprep.mubr.bf16.mxu0 0
      %1219 = vmatmul.mubr.bf16.gmra.mrb[0].mxu0 %v1001
      %v1220 = vpop.f32.mrb[0].mxu0
      %v1221 = vadd.f32 %v916, %v1220
      %v1222 = vpop.f32.mrb[0].mxu0
      %v1223 = vpop.f32.mrb[0].mxu0
      %v1224 = vadd.f32 %v919, %v1223
      %v1225 = vpop.f32.mrb[0].mxu0
      %1226 = vdwg.mxu0
      %v1227 = vld [vmem:[%s168] sm:$0xe]
      %v1228 = vld [vmem:[%s168 + $0xc] sm:$0xe]
      %v1229 = vld [vmem:[%s168 + $0x18] sm:$0xe]
      %v1230 = vld [vmem:[%s168 + $0x24] sm:$0xe]
      %v1231 = vld [vmem:[%s168 + $0x30] sm:$0xe]
      %v1232 = vld [vmem:[%s168 + $0x3c] sm:$0xe]
      %v1233 = vld [vmem:[%s168 + $0x48] sm:$0xe]
      %v1234 = vld [vmem:[%s168 + $0x54] sm:$0xe]
      %v1235 = vld [vmem:[%s168 + $0x60] sm:$0xe]
      %v1236 = vld [vmem:[%s168 + $0x6c] sm:$0xe]
      %v1237 = vld [vmem:[%s168 + $0x78] sm:$0xe]
      %v1238 = vld [vmem:[%s168 + $0x84] sm:$0xe]
      %v1239 = vld [vmem:[%s168 + $0x90] sm:$0xe]
      %v1240 = vld [vmem:[%s168 + $0x9c] sm:$0xe]
      %v1241 = vld [vmem:[%s168 + $0xa8] sm:$0xe]
      %v1242 = vld [vmem:[%s168 + $0xb4] sm:$0xe]
      %vm1275 = vcmask 1042432
      %vm1276 = vcmask 1046532
      %vm1277 = vmor %vm1275, %vm1276
      %v1278 = vrot.slane %v1227, 5
      %v1279 = vrot.slane %v1278, 4
      %v1280 = vrot.slane %v183, 5
      %v1281 = vsel %vm1277, %v1279, %v1280
      %v1282 = vrot.slane %v1280, 4
      %v1283 = vrot.slane %v230, 5
      %v1284 = vsel %vm1277, %v1282, %v1283
      %v1285 = vrot.slane %v1228, 5
      %v1286 = vrot.slane %v1285, 4
      %v1287 = vrot.slane %v185, 5
      %v1288 = vsel %vm1277, %v1286, %v1287
      %v1289 = vrot.slane %v1287, 4
      %v1290 = vrot.slane %v231, 5
      %v1291 = vsel %vm1277, %v1289, %v1290
      %v1292 = vrot.slane %v1229, 5
      %v1293 = vrot.slane %v1292, 4
      %v1294 = vrot.slane %v187, 5
      %v1295 = vsel %vm1277, %v1293, %v1294
      %v1296 = vrot.slane %v1294, 4
      %v1297 = vrot.slane %v232, 5
      %v1298 = vsel %vm1277, %v1296, %v1297
      %v1299 = vrot.slane %v1230, 5
      %v1300 = vrot.slane %v1299, 4
      %v1301 = vrot.slane %v189, 5
      %v1302 = vsel %vm1277, %v1300, %v1301
      %v1303 = vrot.slane %v1301, 4
      %v1304 = vrot.slane %v233, 5
      %v1305 = vsel %vm1277, %v1303, %v1304
      %v1306 = vrot.slane %v1231, 5
      %v1307 = vrot.slane %v1306, 4
      %v1308 = vrot.slane %v191, 5
      %v1309 = vsel %vm1277, %v1307, %v1308
      %v1310 = vrot.slane %v1308, 4
      %v1311 = vrot.slane %v234, 5
      %v1312 = vsel %vm1277, %v1310, %v1311
      %v1313 = vrot.slane %v1232, 5
      %v1314 = vrot.slane %v1313, 4
      %v1315 = vrot.slane %v193, 5
      %v1316 = vsel %vm1277, %v1314, %v1315
      %v1317 = vrot.slane %v1315, 4
      %v1318 = vrot.slane %v235, 5
      %v1319 = vsel %vm1277, %v1317, %v1318
      %v1320 = vrot.slane %v1233, 5
      %v1321 = vrot.slane %v1320, 4
      %v1322 = vrot.slane %v195, 5
      %v1323 = vsel %vm1277, %v1321, %v1322
      %v1324 = vrot.slane %v1322, 4
      %v1325 = vrot.slane %v236, 5
      %v1326 = vsel %vm1277, %v1324, %v1325
      %v1327 = vrot.slane %v1234, 5
      %v1328 = vrot.slane %v1327, 4
      %v1329 = vrot.slane %v197, 5
      %v1330 = vsel %vm1277, %v1328, %v1329
      %v1331 = vrot.slane %v1329, 4
      %v1332 = vrot.slane %v237, 5
      %v1333 = vsel %vm1277, %v1331, %v1332
      %v1334 = vrot.slane %v1235, 5
      %v1335 = vrot.slane %v1334, 4
      %v1336 = vrot.slane %v199, 5
      %v1337 = vsel %vm1277, %v1335, %v1336
      %v1338 = vrot.slane %v1336, 4
      %v1339 = vrot.slane %v238, 5
      %v1340 = vsel %vm1277, %v1338, %v1339
      %v1341 = vrot.slane %v1236, 5
      %v1342 = vrot.slane %v1341, 4
      %v1343 = vrot.slane %v201, 5
      %v1344 = vsel %vm1277, %v1342, %v1343
      %v1345 = vrot.slane %v1343, 4
      %v1346 = vrot.slane %v239, 5
      %v1347 = vsel %vm1277, %v1345, %v1346
      %v1348 = vrot.slane %v1237, 5
      %v1349 = vrot.slane %v1348, 4
      %v1350 = vrot.slane %v203, 5
      %v1351 = vsel %vm1277, %v1349, %v1350
      %v1352 = vrot.slane %v1350, 4
      %v1353 = vrot.slane %v240, 5
      %v1354 = vsel %vm1277, %v1352, %v1353
      %v1355 = vrot.slane %v1238, 5
      %v1356 = vrot.slane %v1355, 4
      %v1357 = vrot.slane %v205, 5
      %v1358 = vsel %vm1277, %v1356, %v1357
      %v1359 = vrot.slane %v1357, 4
      %v1360 = vrot.slane %v241, 5
      %v1361 = vsel %vm1277, %v1359, %v1360
      %v1362 = vrot.slane %v1239, 5
      %v1363 = vrot.slane %v1362, 4
      %v1364 = vrot.slane %v207, 5
      %v1365 = vsel %vm1277, %v1363, %v1364
      %v1366 = vrot.slane %v1364, 4
      %v1367 = vrot.slane %v242, 5
      %v1368 = vsel %vm1277, %v1366, %v1367
      %v1369 = vrot.slane %v1240, 5
      %v1370 = vrot.slane %v1369, 4
      %v1371 = vrot.slane %v209, 5
      %v1372 = vsel %vm1277, %v1370, %v1371
      %v1373 = vrot.slane %v1371, 4
      %v1374 = vrot.slane %v243, 5
      %v1375 = vsel %vm1277, %v1373, %v1374
      %v1376 = vrot.slane %v1241, 5
      %v1377 = vrot.slane %v1376, 4
      %v1378 = vrot.slane %v211, 5
      %v1379 = vsel %vm1277, %v1377, %v1378
      %v1380 = vrot.slane %v1378, 4
      %v1381 = vrot.slane %v244, 5
      %v1382 = vsel %vm1277, %v1380, %v1381
      %v1383 = vrot.slane %v1242, 5
      %v1384 = vrot.slane %v1383, 4
      %v1385 = vrot.slane %v213, 5
      %v1386 = vsel %vm1277, %v1384, %v1385
      %v1387 = vrot.slane %v1385, 4
      %v1388 = vrot.slane %v245, 5
      %v1389 = vsel %vm1277, %v1387, %v1388
      %v1390 = vld [vmem:[%s172 + $0x80] sm:$0xf]
      %v1391 = vld [vmem:[%s172 + $0x84] sm:$0xf]
      %v1392 = vld [vmem:[%s172 + $0x88] sm:$0xf]
      %v1393 = vld [vmem:[%s172 + $0x8c] sm:$0xf]
      %v1394 = vld [vmem:[%s172 + $0x90] sm:$0xf]
      %v1395 = vld [vmem:[%s172 + $0x94] sm:$0xf]
      %v1396 = vld [vmem:[%s172 + $0x98] sm:$0xf]
      %v1397 = vld [vmem:[%s172 + $0x9c] sm:$0xf]
      %v1398 = vld [vmem:[%s172 + $0xa0] sm:$0xf]
      %v1399 = vld [vmem:[%s172 + $0xa4] sm:$0xf]
      %v1400 = vld [vmem:[%s172 + $0xa8] sm:$0xf]
      %v1401 = vld [vmem:[%s172 + $0xac] sm:$0xf]
      %v1402 = vld [vmem:[%s172 + $0xb0] sm:$0xf]
      %v1403 = vld [vmem:[%s172 + $0xb4] sm:$0xf]
      %v1404 = vld [vmem:[%s172 + $0xb8] sm:$0xf]
      %v1405 = vld [vmem:[%s172 + $0xbc] sm:$0xf]
      %v1406 = vunpack.c.l.b16 %v1281
      %v1407 = vunpack.c.l.b16 %v1284
      %v1408 = vunpack.c.l.b16 %v1288
      %v1409 = vunpack.c.l.b16 %v1291
      %v1410 = vunpack.c.l.b16 %v1295
      %v1411 = vunpack.c.l.b16 %v1298
      %v1412 = vunpack.c.l.b16 %v1302
      %v1413 = vunpack.c.l.b16 %v1305
      %v1414 = vunpack.c.l.b16 %v1309
      %v1415 = vunpack.c.l.b16 %v1312
      %v1416 = vunpack.c.l.b16 %v1316
      %v1417 = vunpack.c.l.b16 %v1319
      %v1418 = vunpack.c.l.b16 %v1323
      %v1419 = vunpack.c.l.b16 %v1326
      %v1420 = vunpack.c.l.b16 %v1330
      %v1421 = vunpack.c.l.b16 %v1333
      %v1422 = vunpack.c.l.b16 %v1337
      %v1423 = vunpack.c.l.b16 %v1340
      %v1424 = vunpack.c.l.b16 %v1344
      %v1425 = vunpack.c.l.b16 %v1347
      %v1426 = vunpack.c.l.b16 %v1351
      %v1427 = vunpack.c.l.b16 %v1354
      %v1428 = vunpack.c.l.b16 %v1358
      %v1429 = vunpack.c.l.b16 %v1361
      %v1430 = vunpack.c.l.b16 %v1365
      %v1431 = vunpack.c.l.b16 %v1368
      %v1432 = vunpack.c.l.b16 %v1372
      %v1433 = vunpack.c.l.b16 %v1375
      %v1434 = vunpack.c.l.b16 %v1379
      %v1435 = vunpack.c.l.b16 %v1382
      %v1436 = vunpack.c.l.b16 %v1386
      %v1437 = vunpack.c.l.b16 %v1389
      %v1438 = vpack.c.b16 %v1407, %v1406
      %v1439 = vpack.c.b16 %v1409, %v1408
      %v1440 = vpack.c.b16 %v1411, %v1410
      %v1441 = vpack.c.b16 %v1413, %v1412
      %v1442 = vpack.c.b16 %v1415, %v1414
      %v1443 = vpack.c.b16 %v1417, %v1416
      %v1444 = vpack.c.b16 %v1419, %v1418
      %v1445 = vpack.c.b16 %v1421, %v1420
      %v1446 = vpack.c.b16 %v1423, %v1422
      %v1447 = vpack.c.b16 %v1425, %v1424
      %v1448 = vpack.c.b16 %v1427, %v1426
      %v1449 = vpack.c.b16 %v1429, %v1428
      %v1450 = vpack.c.b16 %v1431, %v1430
      %v1451 = vpack.c.b16 %v1433, %v1432
      %v1452 = vpack.c.b16 %v1435, %v1434
      %v1453 = vpack.c.b16 %v1437, %v1436
      %v1486 = vunpack.c.l.b16 %v1390
      %v1487 = vunpack.c.l.b16 %v1391
      %v1488 = vunpack.c.l.b16 %v1392
      %v1489 = vunpack.c.l.b16 %v1393
      %v1490 = vunpack.c.l.b16 %v1394
      %v1491 = vunpack.c.l.b16 %v1395
      %v1492 = vunpack.c.l.b16 %v1396
      %v1493 = vunpack.c.l.b16 %v1397
      %v1494 = vunpack.c.l.b16 %v1398
      %v1495 = vunpack.c.l.b16 %v1399
      %v1496 = vunpack.c.l.b16 %v1400
      %v1497 = vunpack.c.l.b16 %v1401
      %v1498 = vunpack.c.l.b16 %v1402
      %v1499 = vunpack.c.l.b16 %v1403
      %v1500 = vunpack.c.l.b16 %v1404
      %v1501 = vunpack.c.l.b16 %v1405
      %v1502 = vpack.c.b16 %v1487, %v1486
      %v1503 = vpack.c.b16 %v1489, %v1488
      %v1504 = vpack.c.b16 %v1491, %v1490
      %v1505 = vpack.c.b16 %v1493, %v1492
      %v1506 = vpack.c.b16 %v1495, %v1494
      %v1507 = vpack.c.b16 %v1497, %v1496
      %v1508 = vpack.c.b16 %v1499, %v1498
      %v1509 = vpack.c.b16 %v1501, %v1500
      %1518 = vmatprep.subr.bf16.mxu0 0
      %1519 = vmatpush1.bf16.msra.mxu0 %v1502
      %1520 = vmatprep.subr.bf16.mxu0 0
      %1521 = vmatpush1.bf16.msra.mxu0 %v1503
      %1522 = vmatprep.subr.bf16.mxu0 0
      %1523 = vmatpush1.bf16.msra.mxu0 %v1504
      %1524 = vmatprep.subr.bf16.mxu0 0
      %1525 = vmatpush1.bf16.msra.mxu0 %v1505
      %1526 = vmatprep.subr.bf16.mxu0 0
      %1527 = vmatpush1.bf16.msra.mxu0 %v1506
      %1528 = vmatprep.subr.bf16.mxu0 0
      %1529 = vmatpush1.bf16.msra.mxu0 %v1507
      %1530 = vmatprep.subr.bf16.mxu0 0
      %1531 = vmatpush1.bf16.msra.mxu0 %v1508
      %1532 = vmatprep.subr.bf16.mxu0 0
      %1533 = vmatpush1.bf16.msra.mxu0 %v1509
      %1534 = vmatprep.subr.bf16.mxu0 0
      %1535 = vmatpush1.bf16.msra.mxu0 0
      %1536 = vmatprep.subr.bf16.mxu0 0
      %1537 = vmatpush1.bf16.msra.mxu0 0
      %1538 = vmatprep.subr.bf16.mxu0 0
      %1539 = vmatpush1.bf16.msra.mxu0 0
      %1540 = vmatprep.subr.bf16.mxu0 0
      %1541 = vmatpush1.bf16.msra.mxu0 0
      %1542 = vmatprep.subr.bf16.mxu0 0
      %1543 = vmatpush1.bf16.msra.mxu0 0
      %1544 = vmatprep.subr.bf16.mxu0 0
      %1545 = vmatpush1.bf16.msra.mxu0 0
      %1546 = vmatprep.subr.bf16.mxu0 0
      %1547 = vmatpush1.bf16.msra.mxu0 0
      %1548 = vmatprep.subr.bf16.mxu0 0
      %1549 = vmatpush1.bf16.msra.mxu0 0
      %1550 = vmatprep.mubr.bf16.mxu0 0
      %1551 = vmatmul.mubr.bf16.gmra.mrb[0].mxu0 %v1438
      %v1552 = vpop.f32.mrb[0].mxu0
      %v1553 = vadd.f32 0.0, %v1552
      %v1554 = vpop.f32.mrb[0].mxu0
      %v1555 = vpop.f32.mrb[0].mxu0
      %v1556 = vadd.f32 0.0, %v1555
      %v1557 = vpop.f32.mrb[0].mxu0
      %1558 = vmatprep.mubr.bf16.mxu0 0
      %1559 = vmatmul.mubr.bf16.gmra.mrb[0].mxu0 %v1439
      %v1560 = vpop.f32.mrb[0].mxu0
      %v1561 = vadd.f32 0.0, %v1560
      %v1562 = vpop.f32.mrb[0].mxu0
      %v1563 = vpop.f32.mrb[0].mxu0
      %v1564 = vadd.f32 0.0, %v1563
      %v1565 = vpop.f32.mrb[0].mxu0
      %1566 = vmatprep.mubr.bf16.mxu0 0
      %1567 = vmatmul.mubr.bf16.gmra.mrb[0].mxu0 %v1440
      %v1568 = vpop.f32.mrb[0].mxu0
      %v1569 = vadd.f32 0.0, %v1568
      %v1570 = vpop.f32.mrb[0].mxu0
      %v1571 = vpop.f32.mrb[0].mxu0
      %v1572 = vadd.f32 0.0, %v1571
      %v1573 = vpop.f32.mrb[0].mxu0
      %1574 = vmatprep.mubr.bf16.mxu0 0
      %1575 = vmatmul.mubr.bf16.gmra.mrb[0].mxu0 %v1441
      %v1576 = vpop.f32.mrb[0].mxu0
      %v1577 = vadd.f32 0.0, %v1576
      %v1578 = vpop.f32.mrb[0].mxu0
      %v1579 = vpop.f32.mrb[0].mxu0
      %v1580 = vadd.f32 0.0, %v1579
      %v1581 = vpop.f32.mrb[0].mxu0
      %1582 = vmatprep.mubr.bf16.mxu0 0
      %1583 = vmatmul.mubr.bf16.gmra.mrb[0].mxu0 %v1442
      %v1584 = vpop.f32.mrb[0].mxu0
      %v1585 = vadd.f32 0.0, %v1584
      %v1586 = vpop.f32.mrb[0].mxu0
      %v1587 = vpop.f32.mrb[0].mxu0
      %v1588 = vadd.f32 0.0, %v1587
      %v1589 = vpop.f32.mrb[0].mxu0
      %1590 = vmatprep.mubr.bf16.mxu0 0
      %1591 = vmatmul.mubr.bf16.gmra.mrb[0].mxu0 %v1443
      %v1592 = vpop.f32.mrb[0].mxu0
      %v1593 = vadd.f32 0.0, %v1592
      %v1594 = vpop.f32.mrb[0].mxu0
      %v1595 = vpop.f32.mrb[0].mxu0
      %v1596 = vadd.f32 0.0, %v1595
      %v1597 = vpop.f32.mrb[0].mxu0
      %1598 = vmatprep.mubr.bf16.mxu0 0
      %1599 = vmatmul.mubr.bf16.gmra.mrb[0].mxu0 %v1444
      %v1600 = vpop.f32.mrb[0].mxu0
      %v1601 = vadd.f32 0.0, %v1600
      %v1602 = vpop.f32.mrb[0].mxu0
      %v1603 = vpop.f32.mrb[0].mxu0
      %v1604 = vadd.f32 0.0, %v1603
      %v1605 = vpop.f32.mrb[0].mxu0
      %1606 = vmatprep.mubr.bf16.mxu0 0
      %1607 = vmatmul.mubr.bf16.gmra.mrb[0].mxu0 %v1445
      %v1608 = vpop.f32.mrb[0].mxu0
      %v1609 = vadd.f32 0.0, %v1608
      %v1610 = vpop.f32.mrb[0].mxu0
      %v1611 = vpop.f32.mrb[0].mxu0
      %v1612 = vadd.f32 0.0, %v1611
      %v1613 = vpop.f32.mrb[0].mxu0
      %1614 = vmatprep.mubr.bf16.mxu0 0
      %1615 = vmatmul.mubr.bf16.gmra.mrb[0].mxu0 %v1446
      %v1616 = vpop.f32.mrb[0].mxu0
      %v1617 = vadd.f32 0.0, %v1616
      %v1618 = vpop.f32.mrb[0].mxu0
      %v1619 = vpop.f32.mrb[0].mxu0
      %v1620 = vadd.f32 0.0, %v1619
      %v1621 = vpop.f32.mrb[0].mxu0
      %1622 = vmatprep.mubr.bf16.mxu0 0
      %1623 = vmatmul.mubr.bf16.gmra.mrb[0].mxu0 %v1447
      %v1624 = vpop.f32.mrb[0].mxu0
      %v1625 = vadd.f32 0.0, %v1624
      %v1626 = vpop.f32.mrb[0].mxu0
      %v1627 = vpop.f32.mrb[0].mxu0
      %v1628 = vadd.f32 0.0, %v1627
      %v1629 = vpop.f32.mrb[0].mxu0
      %1630 = vmatprep.mubr.bf16.mxu0 0
      %1631 = vmatmul.mubr.bf16.gmra.mrb[0].mxu0 %v1448
      %v1632 = vpop.f32.mrb[0].mxu0
      %v1633 = vadd.f32 0.0, %v1632
      %v1634 = vpop.f32.mrb[0].mxu0
      %v1635 = vpop.f32.mrb[0].mxu0
      %v1636 = vadd.f32 0.0, %v1635
      %v1637 = vpop.f32.mrb[0].mxu0
      %1638 = vmatprep.mubr.bf16.mxu0 0
      %1639 = vmatmul.mubr.bf16.gmra.mrb[0].mxu0 %v1449
      %v1640 = vpop.f32.mrb[0].mxu0
      %v1641 = vadd.f32 0.0, %v1640
      %v1642 = vpop.f32.mrb[0].mxu0
      %v1643 = vpop.f32.mrb[0].mxu0
      %v1644 = vadd.f32 0.0, %v1643
      %v1645 = vpop.f32.mrb[0].mxu0
      %1646 = vmatprep.mubr.bf16.mxu0 0
      %1647 = vmatmul.mubr.bf16.gmra.mrb[0].mxu0 %v1450
      %v1648 = vpop.f32.mrb[0].mxu0
      %v1649 = vadd.f32 0.0, %v1648
      %v1650 = vpop.f32.mrb[0].mxu0
      %v1651 = vpop.f32.mrb[0].mxu0
      %v1652 = vadd.f32 0.0, %v1651
      %v1653 = vpop.f32.mrb[0].mxu0
      %1654 = vmatprep.mubr.bf16.mxu0 0
      %1655 = vmatmul.mubr.bf16.gmra.mrb[0].mxu0 %v1451
      %v1656 = vpop.f32.mrb[0].mxu0
      %v1657 = vadd.f32 0.0, %v1656
      %v1658 = vpop.f32.mrb[0].mxu0
      %v1659 = vpop.f32.mrb[0].mxu0
      %v1660 = vadd.f32 0.0, %v1659
      %v1661 = vpop.f32.mrb[0].mxu0
      %1662 = vmatprep.mubr.bf16.mxu0 0
      %1663 = vmatmul.mubr.bf16.gmra.mrb[0].mxu0 %v1452
      %v1664 = vpop.f32.mrb[0].mxu0
      %v1665 = vadd.f32 0.0, %v1664
      %v1666 = vpop.f32.mrb[0].mxu0
      %v1667 = vpop.f32.mrb[0].mxu0
      %v1668 = vadd.f32 0.0, %v1667
      %v1669 = vpop.f32.mrb[0].mxu0
      %1670 = vmatprep.mubr.bf16.mxu0 0
      %1671 = vmatmul.mubr.bf16.gmra.mrb[0].mxu0 %v1453
      %v1672 = vpop.f32.mrb[0].mxu0
      %v1673 = vadd.f32 0.0, %v1672
      %v1674 = vpop.f32.mrb[0].mxu0
      %v1675 = vpop.f32.mrb[0].mxu0
      %v1676 = vadd.f32 0.0, %v1675
      %v1677 = vpop.f32.mrb[0].mxu0
      %1678 = vdwg.mxu0
      %v1679 = vadd.f32 %v1101, %v1553
      %v1680 = vadd.f32 %v1104, %v1556
      %v1681 = vadd.f32 %v1109, %v1561
      %v1682 = vadd.f32 %v1112, %v1564
      %v1683 = vadd.f32 %v1117, %v1569
      %v1684 = vadd.f32 %v1120, %v1572
      %v1685 = vadd.f32 %v1125, %v1577
      %v1686 = vadd.f32 %v1128, %v1580
      %v1687 = vadd.f32 %v1133, %v1585
      %v1688 = vadd.f32 %v1136, %v1588
      %v1689 = vadd.f32 %v1141, %v1593
      %v1690 = vadd.f32 %v1144, %v1596
      %v1691 = vadd.f32 %v1149, %v1601
      %v1692 = vadd.f32 %v1152, %v1604
      %v1693 = vadd.f32 %v1157, %v1609
      %v1694 = vadd.f32 %v1160, %v1612
      %v1695 = vadd.f32 %v1165, %v1617
      %v1696 = vadd.f32 %v1168, %v1620
      %v1697 = vadd.f32 %v1173, %v1625
      %v1698 = vadd.f32 %v1176, %v1628
      %v1699 = vadd.f32 %v1181, %v1633
      %v1700 = vadd.f32 %v1184, %v1636
      %v1701 = vadd.f32 %v1189, %v1641
      %v1702 = vadd.f32 %v1192, %v1644
      %v1703 = vadd.f32 %v1197, %v1649
      %v1704 = vadd.f32 %v1200, %v1652
      %v1705 = vadd.f32 %v1205, %v1657
      %v1706 = vadd.f32 %v1208, %v1660
      %v1707 = vadd.f32 %v1213, %v1665
      %v1708 = vadd.f32 %v1216, %v1668
      %v1709 = vadd.f32 %v1221, %v1673
      %v1710 = vadd.f32 %v1224, %v1676
      %s1711 = scalar_lea.vmem %s168, 12
      %v1712 = vld [vmem:[%s1711] sm:$0xf]
      %v1713 = vld [vmem:[%s1711 + $0x4] sm:$0xf]
      %v1714 = vld [vmem:[%s1711 + $0xc] sm:$0xf]
      %v1715 = vld [vmem:[%s1711 + $0x10] sm:$0xf]
      %v1716 = vld [vmem:[%s1711 + $0x18] sm:$0xf]
      %v1717 = vld [vmem:[%s1711 + $0x1c] sm:$0xf]
      %v1718 = vld [vmem:[%s1711 + $0x24] sm:$0xf]
      %v1719 = vld [vmem:[%s1711 + $0x28] sm:$0xf]
      %v1720 = vld [vmem:[%s1711 + $0x30] sm:$0xf]
      %v1721 = vld [vmem:[%s1711 + $0x34] sm:$0xf]
      %v1722 = vld [vmem:[%s1711 + $0x3c] sm:$0xf]
      %v1723 = vld [vmem:[%s1711 + $0x40] sm:$0xf]
      %v1724 = vld [vmem:[%s1711 + $0x48] sm:$0xf]
      %v1725 = vld [vmem:[%s1711 + $0x4c] sm:$0xf]
      %v1726 = vld [vmem:[%s1711 + $0x54] sm:$0xf]
      %v1727 = vld [vmem:[%s1711 + $0x58] sm:$0xf]
      %v1728 = vld [vmem:[%s1711 + $0x60] sm:$0xf]
      %v1729 = vld [vmem:[%s1711 + $0x64] sm:$0xf]
      %v1730 = vld [vmem:[%s1711 + $0x6c] sm:$0xf]
      %v1731 = vld [vmem:[%s1711 + $0x70] sm:$0xf]
      %v1732 = vld [vmem:[%s1711 + $0x78] sm:$0xf]
      %v1733 = vld [vmem:[%s1711 + $0x7c] sm:$0xf]
      %v1734 = vld [vmem:[%s1711 + $0x84] sm:$0xf]
      %v1735 = vld [vmem:[%s1711 + $0x88] sm:$0xf]
      %v1736 = vld [vmem:[%s1711 + $0x90] sm:$0xf]
      %v1737 = vld [vmem:[%s1711 + $0x94] sm:$0xf]
      %v1738 = vld [vmem:[%s1711 + $0x9c] sm:$0xf]
      %v1739 = vld [vmem:[%s1711 + $0xa0] sm:$0xf]
      %v1740 = vld [vmem:[%s1711 + $0xa8] sm:$0xf]
      %v1741 = vld [vmem:[%s1711 + $0xac] sm:$0xf]
      %v1742 = vld [vmem:[%s1711 + $0xb4] sm:$0xf]
      %v1743 = vld [vmem:[%s1711 + $0xb8] sm:$0xf]
      %v1744 = vld [vmem:[%s172 + $0xc0] sm:$0xf]
      %v1745 = vld [vmem:[%s172 + $0xc4] sm:$0xf]
      %v1746 = vld [vmem:[%s172 + $0xc8] sm:$0xf]
      %v1747 = vld [vmem:[%s172 + $0xcc] sm:$0xf]
      %v1748 = vld [vmem:[%s172 + $0xd0] sm:$0xf]
      %v1749 = vld [vmem:[%s172 + $0xd4] sm:$0xf]
      %v1750 = vld [vmem:[%s172 + $0xd8] sm:$0xf]
      %v1751 = vld [vmem:[%s172 + $0xdc] sm:$0xf]
      %v1752 = vld [vmem:[%s172 + $0xe0] sm:$0xf]
      %v1753 = vld [vmem:[%s172 + $0xe4] sm:$0xf]
      %v1754 = vld [vmem:[%s172 + $0xe8] sm:$0xf]
      %v1755 = vld [vmem:[%s172 + $0xec] sm:$0xf]
      %v1756 = vld [vmem:[%s172 + $0xf0] sm:$0xf]
      %v1757 = vld [vmem:[%s172 + $0xf4] sm:$0xf]
      %v1758 = vld [vmem:[%s172 + $0xf8] sm:$0xf]
      %v1759 = vld [vmem:[%s172 + $0xfc] sm:$0xf]
      %v1792 = vunpack.c.l.b16 %v1712
      %v1793 = vunpack.c.l.b16 %v1713
      %v1794 = vunpack.c.l.b16 %v1714
      %v1795 = vunpack.c.l.b16 %v1715
      %v1796 = vunpack.c.l.b16 %v1716
      %v1797 = vunpack.c.l.b16 %v1717
      %v1798 = vunpack.c.l.b16 %v1718
      %v1799 = vunpack.c.l.b16 %v1719
      %v1800 = vunpack.c.l.b16 %v1720
      %v1801 = vunpack.c.l.b16 %v1721
      %v1802 = vunpack.c.l.b16 %v1722
      %v1803 = vunpack.c.l.b16 %v1723
      %v1804 = vunpack.c.l.b16 %v1724
      %v1805 = vunpack.c.l.b16 %v1725
      %v1806 = vunpack.c.l.b16 %v1726
      %v1807 = vunpack.c.l.b16 %v1727
      %v1808 = vunpack.c.l.b16 %v1728
      %v1809 = vunpack.c.l.b16 %v1729
      %v1810 = vunpack.c.l.b16 %v1730
      %v1811 = vunpack.c.l.b16 %v1731
      %v1812 = vunpack.c.l.b16 %v1732
      %v1813 = vunpack.c.l.b16 %v1733
      %v1814 = vunpack.c.l.b16 %v1734
      %v1815 = vunpack.c.l.b16 %v1735
      %v1816 = vunpack.c.l.b16 %v1736
      %v1817 = vunpack.c.l.b16 %v1737
      %v1818 = vunpack.c.l.b16 %v1738
      %v1819 = vunpack.c.l.b16 %v1739
      %v1820 = vunpack.c.l.b16 %v1740
      %v1821 = vunpack.c.l.b16 %v1741
      %v1822 = vunpack.c.l.b16 %v1742
      %v1823 = vunpack.c.l.b16 %v1743
      %v1824 = vpack.c.b16 %v1793, %v1792
      %v1825 = vpack.c.b16 %v1795, %v1794
      %v1826 = vpack.c.b16 %v1797, %v1796
      %v1827 = vpack.c.b16 %v1799, %v1798
      %v1828 = vpack.c.b16 %v1801, %v1800
      %v1829 = vpack.c.b16 %v1803, %v1802
      %v1830 = vpack.c.b16 %v1805, %v1804
      %v1831 = vpack.c.b16 %v1807, %v1806
      %v1832 = vpack.c.b16 %v1809, %v1808
      %v1833 = vpack.c.b16 %v1811, %v1810
      %v1834 = vpack.c.b16 %v1813, %v1812
      %v1835 = vpack.c.b16 %v1815, %v1814
      %v1836 = vpack.c.b16 %v1817, %v1816
      %v1837 = vpack.c.b16 %v1819, %v1818
      %v1838 = vpack.c.b16 %v1821, %v1820
      %v1839 = vpack.c.b16 %v1823, %v1822
      %v1872 = vunpack.c.l.b16 %v1744
      %v1873 = vunpack.c.l.b16 %v1745
      %v1874 = vunpack.c.l.b16 %v1746
      %v1875 = vunpack.c.l.b16 %v1747
      %v1876 = vunpack.c.l.b16 %v1748
      %v1877 = vunpack.c.l.b16 %v1749
      %v1878 = vunpack.c.l.b16 %v1750
      %v1879 = vunpack.c.l.b16 %v1751
      %v1880 = vunpack.c.l.b16 %v1752
      %v1881 = vunpack.c.l.b16 %v1753
      %v1882 = vunpack.c.l.b16 %v1754
      %v1883 = vunpack.c.l.b16 %v1755
      %v1884 = vunpack.c.l.b16 %v1756
      %v1885 = vunpack.c.l.b16 %v1757
      %v1886 = vunpack.c.l.b16 %v1758
      %v1887 = vunpack.c.l.b16 %v1759
      %v1888 = vpack.c.b16 %v1873, %v1872
      %v1889 = vpack.c.b16 %v1875, %v1874
      %v1890 = vpack.c.b16 %v1877, %v1876
      %v1891 = vpack.c.b16 %v1879, %v1878
      %v1892 = vpack.c.b16 %v1881, %v1880
      %v1893 = vpack.c.b16 %v1883, %v1882
      %v1894 = vpack.c.b16 %v1885, %v1884
      %v1895 = vpack.c.b16 %v1887, %v1886
      %1904 = vmatprep.subr.bf16.mxu0 0
      %1905 = vmatpush1.bf16.msra.mxu0 %v1888
      %1906 = vmatprep.subr.bf16.mxu0 0
      %1907 = vmatpush1.bf16.msra.mxu0 %v1889
      %1908 = vmatprep.subr.bf16.mxu0 0
      %1909 = vmatpush1.bf16.msra.mxu0 %v1890
      %1910 = vmatprep.subr.bf16.mxu0 0
      %1911 = vmatpush1.bf16.msra.mxu0 %v1891
      %1912 = vmatprep.subr.bf16.mxu0 0
      %1913 = vmatpush1.bf16.msra.mxu0 %v1892
      %1914 = vmatprep.subr.bf16.mxu0 0
      %1915 = vmatpush1.bf16.msra.mxu0 %v1893
      %1916 = vmatprep.subr.bf16.mxu0 0
      %1917 = vmatpush1.bf16.msra.mxu0 %v1894
      %1918 = vmatprep.subr.bf16.mxu0 0
      %1919 = vmatpush1.bf16.msra.mxu0 %v1895
      %1920 = vmatprep.subr.bf16.mxu0 0
      %1921 = vmatpush1.bf16.msra.mxu0 0
      %1922 = vmatprep.subr.bf16.mxu0 0
      %1923 = vmatpush1.bf16.msra.mxu0 0
      %1924 = vmatprep.subr.bf16.mxu0 0
      %1925 = vmatpush1.bf16.msra.mxu0 0
      %1926 = vmatprep.subr.bf16.mxu0 0
      %1927 = vmatpush1.bf16.msra.mxu0 0
      %1928 = vmatprep.subr.bf16.mxu0 0
      %1929 = vmatpush1.bf16.msra.mxu0 0
      %1930 = vmatprep.subr.bf16.mxu0 0
      %1931 = vmatpush1.bf16.msra.mxu0 0
      %1932 = vmatprep.subr.bf16.mxu0 0
      %1933 = vmatpush1.bf16.msra.mxu0 0
      %1934 = vmatprep.subr.bf16.mxu0 0
      %1935 = vmatpush1.bf16.msra.mxu0 0
      %1936 = vmatprep.mubr.bf16.mxu0 0
      %1937 = vmatmul.mubr.bf16.gmra.mrb[0].mxu0 %v1824
      %v1938 = vpop.f32.mrb[0].mxu0
      %v1939 = vadd.f32 0.0, %v1938
      %v1940 = vpop.f32.mrb[0].mxu0
      %v1941 = vpop.f32.mrb[0].mxu0
      %v1942 = vadd.f32 0.0, %v1941
      %v1943 = vpop.f32.mrb[0].mxu0
      %1944 = vmatprep.mubr.bf16.mxu0 0
      %1945 = vmatmul.mubr.bf16.gmra.mrb[0].mxu0 %v1825
      %v1946 = vpop.f32.mrb[0].mxu0
      %v1947 = vadd.f32 0.0, %v1946
      %v1948 = vpop.f32.mrb[0].mxu0
      %v1949 = vpop.f32.mrb[0].mxu0
      %v1950 = vadd.f32 0.0, %v1949
      %v1951 = vpop.f32.mrb[0].mxu0
      %1952 = vmatprep.mubr.bf16.mxu0 0
      %1953 = vmatmul.mubr.bf16.gmra.mrb[0].mxu0 %v1826
      %v1954 = vpop.f32.mrb[0].mxu0
      %v1955 = vadd.f32 0.0, %v1954
      %v1956 = vpop.f32.mrb[0].mxu0
      %v1957 = vpop.f32.mrb[0].mxu0
      %v1958 = vadd.f32 0.0, %v1957
      %v1959 = vpop.f32.mrb[0].mxu0
      %1960 = vmatprep.mubr.bf16.mxu0 0
      %1961 = vmatmul.mubr.bf16.gmra.mrb[0].mxu0 %v1827
      %v1962 = vpop.f32.mrb[0].mxu0
      %v1963 = vadd.f32 0.0, %v1962
      %v1964 = vpop.f32.mrb[0].mxu0
      %v1965 = vpop.f32.mrb[0].mxu0
      %v1966 = vadd.f32 0.0, %v1965
      %v1967 = vpop.f32.mrb[0].mxu0
      %1968 = vmatprep.mubr.bf16.mxu0 0
      %1969 = vmatmul.mubr.bf16.gmra.mrb[0].mxu0 %v1828
      %v1970 = vpop.f32.mrb[0].mxu0
      %v1971 = vadd.f32 0.0, %v1970
      %v1972 = vpop.f32.mrb[0].mxu0
      %v1973 = vpop.f32.mrb[0].mxu0
      %v1974 = vadd.f32 0.0, %v1973
      %v1975 = vpop.f32.mrb[0].mxu0
      %1976 = vmatprep.mubr.bf16.mxu0 0
      %1977 = vmatmul.mubr.bf16.gmra.mrb[0].mxu0 %v1829
      %v1978 = vpop.f32.mrb[0].mxu0
      %v1979 = vadd.f32 0.0, %v1978
      %v1980 = vpop.f32.mrb[0].mxu0
      %v1981 = vpop.f32.mrb[0].mxu0
      %v1982 = vadd.f32 0.0, %v1981
      %v1983 = vpop.f32.mrb[0].mxu0
      %1984 = vmatprep.mubr.bf16.mxu0 0
      %1985 = vmatmul.mubr.bf16.gmra.mrb[0].mxu0 %v1830
      %v1986 = vpop.f32.mrb[0].mxu0
      %v1987 = vadd.f32 0.0, %v1986
      %v1988 = vpop.f32.mrb[0].mxu0
      %v1989 = vpop.f32.mrb[0].mxu0
      %v1990 = vadd.f32 0.0, %v1989
      %v1991 = vpop.f32.mrb[0].mxu0
      %1992 = vmatprep.mubr.bf16.mxu0 0
      %1993 = vmatmul.mubr.bf16.gmra.mrb[0].mxu0 %v1831
      %v1994 = vpop.f32.mrb[0].mxu0
      %v1995 = vadd.f32 0.0, %v1994
      %v1996 = vpop.f32.mrb[0].mxu0
      %v1997 = vpop.f32.mrb[0].mxu0
      %v1998 = vadd.f32 0.0, %v1997
      %v1999 = vpop.f32.mrb[0].mxu0
      %2000 = vmatprep.mubr.bf16.mxu0 0
      %2001 = vmatmul.mubr.bf16.gmra.mrb[0].mxu0 %v1832
      %v2002 = vpop.f32.mrb[0].mxu0
      %v2003 = vadd.f32 0.0, %v2002
      %v2004 = vpop.f32.mrb[0].mxu0
      %v2005 = vpop.f32.mrb[0].mxu0
      %v2006 = vadd.f32 0.0, %v2005
      %v2007 = vpop.f32.mrb[0].mxu0
      %2008 = vmatprep.mubr.bf16.mxu0 0
      %2009 = vmatmul.mubr.bf16.gmra.mrb[0].mxu0 %v1833
      %v2010 = vpop.f32.mrb[0].mxu0
      %v2011 = vadd.f32 0.0, %v2010
      %v2012 = vpop.f32.mrb[0].mxu0
      %v2013 = vpop.f32.mrb[0].mxu0
      %v2014 = vadd.f32 0.0, %v2013
      %v2015 = vpop.f32.mrb[0].mxu0
      %2016 = vmatprep.mubr.bf16.mxu0 0
      %2017 = vmatmul.mubr.bf16.gmra.mrb[0].mxu0 %v1834
      %v2018 = vpop.f32.mrb[0].mxu0
      %v2019 = vadd.f32 0.0, %v2018
      %v2020 = vpop.f32.mrb[0].mxu0
      %v2021 = vpop.f32.mrb[0].mxu0
      %v2022 = vadd.f32 0.0, %v2021
      %v2023 = vpop.f32.mrb[0].mxu0
      %2024 = vmatprep.mubr.bf16.mxu0 0
      %2025 = vmatmul.mubr.bf16.gmra.mrb[0].mxu0 %v1835
      %v2026 = vpop.f32.mrb[0].mxu0
      %v2027 = vadd.f32 0.0, %v2026
      %v2028 = vpop.f32.mrb[0].mxu0
      %v2029 = vpop.f32.mrb[0].mxu0
      %v2030 = vadd.f32 0.0, %v2029
      %v2031 = vpop.f32.mrb[0].mxu0
      %2032 = vmatprep.mubr.bf16.mxu0 0
      %2033 = vmatmul.mubr.bf16.gmra.mrb[0].mxu0 %v1836
      %v2034 = vpop.f32.mrb[0].mxu0
      %v2035 = vadd.f32 0.0, %v2034
      %v2036 = vpop.f32.mrb[0].mxu0
      %v2037 = vpop.f32.mrb[0].mxu0
      %v2038 = vadd.f32 0.0, %v2037
      %v2039 = vpop.f32.mrb[0].mxu0
      %2040 = vmatprep.mubr.bf16.mxu0 0
      %2041 = vmatmul.mubr.bf16.gmra.mrb[0].mxu0 %v1837
      %v2042 = vpop.f32.mrb[0].mxu0
      %v2043 = vadd.f32 0.0, %v2042
      %v2044 = vpop.f32.mrb[0].mxu0
      %v2045 = vpop.f32.mrb[0].mxu0
      %v2046 = vadd.f32 0.0, %v2045
      %v2047 = vpop.f32.mrb[0].mxu0
      %2048 = vmatprep.mubr.bf16.mxu0 0
      %2049 = vmatmul.mubr.bf16.gmra.mrb[0].mxu0 %v1838
      %v2050 = vpop.f32.mrb[0].mxu0
      %v2051 = vadd.f32 0.0, %v2050
      %v2052 = vpop.f32.mrb[0].mxu0
      %v2053 = vpop.f32.mrb[0].mxu0
      %v2054 = vadd.f32 0.0, %v2053
      %v2055 = vpop.f32.mrb[0].mxu0
      %2056 = vmatprep.mubr.bf16.mxu0 0
      %2057 = vmatmul.mubr.bf16.gmra.mrb[0].mxu0 %v1839
      %v2058 = vpop.f32.mrb[0].mxu0
      %v2059 = vadd.f32 0.0, %v2058
      %v2060 = vpop.f32.mrb[0].mxu0
      %v2061 = vpop.f32.mrb[0].mxu0
      %v2062 = vadd.f32 0.0, %v2061
      %v2063 = vpop.f32.mrb[0].mxu0
      %2064 = vdwg.mxu0
      %v2065 = vadd.f32 %v1679, %v1939
      %v2066 = vadd.f32 %v1680, %v1942
      %v2067 = vadd.f32 %v1681, %v1947
      %v2068 = vadd.f32 %v1682, %v1950
      %v2069 = vadd.f32 %v1683, %v1955
      %v2070 = vadd.f32 %v1684, %v1958
      %v2071 = vadd.f32 %v1685, %v1963
      %v2072 = vadd.f32 %v1686, %v1966
      %v2073 = vadd.f32 %v1687, %v1971
      %v2074 = vadd.f32 %v1688, %v1974
      %v2075 = vadd.f32 %v1689, %v1979
      %v2076 = vadd.f32 %v1690, %v1982
      %v2077 = vadd.f32 %v1691, %v1987
      %v2078 = vadd.f32 %v1692, %v1990
      %v2079 = vadd.f32 %v1693, %v1995
      %v2080 = vadd.f32 %v1694, %v1998
      %v2081 = vadd.f32 %v1695, %v2003
      %v2082 = vadd.f32 %v1696, %v2006
      %v2083 = vadd.f32 %v1697, %v2011
      %v2084 = vadd.f32 %v1698, %v2014
      %v2085 = vadd.f32 %v1699, %v2019
      %v2086 = vadd.f32 %v1700, %v2022
      %v2087 = vadd.f32 %v1701, %v2027
      %v2088 = vadd.f32 %v1702, %v2030
      %v2089 = vadd.f32 %v1703, %v2035
      %v2090 = vadd.f32 %v1704, %v2038
      %v2091 = vadd.f32 %v1705, %v2043
      %v2092 = vadd.f32 %v1706, %v2046
      %v2093 = vadd.f32 %v1707, %v2051
      %v2094 = vadd.f32 %v1708, %v2054
      %v2095 = vadd.f32 %v1709, %v2059
      %v2096 = vadd.f32 %v1710, %v2062
      %v2097 = vld [vmem:[%s1711] sm:$0xf]
      %v2098 = vld [vmem:[%s1711 + $0x4] sm:$0xf]
      %v2099 = vld [vmem:[%s1711 + $0x8] sm:$0x1]
      %v2100 = vld [vmem:[%s1711 + $0xc] sm:$0xf]
      %v2101 = vld [vmem:[%s1711 + $0x10] sm:$0xf]
      %v2102 = vld [vmem:[%s1711 + $0x14] sm:$0x1]
      %v2103 = vld [vmem:[%s1711 + $0x18] sm:$0xf]
      %v2104 = vld [vmem:[%s1711 + $0x1c] sm:$0xf]
      %v2105 = vld [vmem:[%s1711 + $0x20] sm:$0x1]
      %v2106 = vld [vmem:[%s1711 + $0x24] sm:$0xf]
      %v2107 = vld [vmem:[%s1711 + $0x28] sm:$0xf]
      %v2108 = vld [vmem:[%s1711 + $0x2c] sm:$0x1]
      %v2109 = vld [vmem:[%s1711 + $0x30] sm:$0xf]
      %v2110 = vld [vmem:[%s1711 + $0x34] sm:$0xf]
      %v2111 = vld [vmem:[%s1711 + $0x38] sm:$0x1]
      %v2112 = vld [vmem:[%s1711 + $0x3c] sm:$0xf]
      %v2113 = vld [vmem:[%s1711 + $0x40] sm:$0xf]
      %v2114 = vld [vmem:[%s1711 + $0x44] sm:$0x1]
      %v2115 = vld [vmem:[%s1711 + $0x48] sm:$0xf]
      %v2116 = vld [vmem:[%s1711 + $0x4c] sm:$0xf]
      %v2117 = vld [vmem:[%s1711 + $0x50] sm:$0x1]
      %v2118 = vld [vmem:[%s1711 + $0x54] sm:$0xf]
      %v2119 = vld [vmem:[%s1711 + $0x58] sm:$0xf]
      %v2120 = vld [vmem:[%s1711 + $0x5c] sm:$0x1]
      %v2121 = vld [vmem:[%s1711 + $0x60] sm:$0xf]
      %v2122 = vld [vmem:[%s1711 + $0x64] sm:$0xf]
      %v2123 = vld [vmem:[%s1711 + $0x68] sm:$0x1]
      %v2124 = vld [vmem:[%s1711 + $0x6c] sm:$0xf]
      %v2125 = vld [vmem:[%s1711 + $0x70] sm:$0xf]
      %v2126 = vld [vmem:[%s1711 + $0x74] sm:$0x1]
      %v2127 = vld [vmem:[%s1711 + $0x78] sm:$0xf]
      %v2128 = vld [vmem:[%s1711 + $0x7c] sm:$0xf]
      %v2129 = vld [vmem:[%s1711 + $0x80] sm:$0x1]
      %v2130 = vld [vmem:[%s1711 + $0x84] sm:$0xf]
      %v2131 = vld [vmem:[%s1711 + $0x88] sm:$0xf]
      %v2132 = vld [vmem:[%s1711 + $0x8c] sm:$0x1]
      %v2133 = vld [vmem:[%s1711 + $0x90] sm:$0xf]
      %v2134 = vld [vmem:[%s1711 + $0x94] sm:$0xf]
      %v2135 = vld [vmem:[%s1711 + $0x98] sm:$0x1]
      %v2136 = vld [vmem:[%s1711 + $0x9c] sm:$0xf]
      %v2137 = vld [vmem:[%s1711 + $0xa0] sm:$0xf]
      %v2138 = vld [vmem:[%s1711 + $0xa4] sm:$0x1]
      %v2139 = vld [vmem:[%s1711 + $0xa8] sm:$0xf]
      %v2140 = vld [vmem:[%s1711 + $0xac] sm:$0xf]
      %v2141 = vld [vmem:[%s1711 + $0xb0] sm:$0x1]
      %v2142 = vld [vmem:[%s1711 + $0xb4] sm:$0xf]
      %v2143 = vld [vmem:[%s1711 + $0xb8] sm:$0xf]
      %v2144 = vld [vmem:[%s1711 + $0xbc] sm:$0x1]
      %v2146 = vshrl.u32 %v2097, 16
      %v2148 = vrot.slane %v2146, 4
      %v2149 = vshll.u32 %v2097, 16
      %v2151 = vrot.slane %v2149, 5
      %v2152 = vor.u32 %v2148, %v2151
      %v2153 = vrot.slane %v2152, 4
      %v2155 = vshll.u32 %v2098, 16
      %v2157 = vrot.slane %v2155, 5
      %v2158 = vsel %vm248, %v2153, %v2157
      %v2159 = vshrl.u32 %v2098, 16
      %v2161 = vrot.slane %v2159, 4
      %v2162 = vor.u32 %v2161, %v2157
      %v2163 = vrot.slane %v2162, 4
      %v2165 = vshll.u32 %v2099, 16
      %v2167 = vrot.slane %v2165, 5
      %v2168 = vsel %vm248, %v2163, %v2167
      %v2170 = vshrl.u32 %v2100, 16
      %v2172 = vrot.slane %v2170, 4
      %v2173 = vshll.u32 %v2100, 16
      %v2175 = vrot.slane %v2173, 5
      %v2176 = vor.u32 %v2172, %v2175
      %v2177 = vrot.slane %v2176, 4
      %v2179 = vshll.u32 %v2101, 16
      %v2181 = vrot.slane %v2179, 5
      %v2182 = vsel %vm248, %v2177, %v2181
      %v2183 = vshrl.u32 %v2101, 16
      %v2185 = vrot.slane %v2183, 4
      %v2186 = vor.u32 %v2185, %v2181
      %v2187 = vrot.slane %v2186, 4
      %v2189 = vshll.u32 %v2102, 16
      %v2191 = vrot.slane %v2189, 5
      %v2192 = vsel %vm248, %v2187, %v2191
      %v2194 = vshrl.u32 %v2103, 16
      %v2196 = vrot.slane %v2194, 4
      %v2197 = vshll.u32 %v2103, 16
      %v2199 = vrot.slane %v2197, 5
      %v2200 = vor.u32 %v2196, %v2199
      %v2201 = vrot.slane %v2200, 4
      %v2203 = vshll.u32 %v2104, 16
      %v2205 = vrot.slane %v2203, 5
      %v2206 = vsel %vm248, %v2201, %v2205
      %v2207 = vshrl.u32 %v2104, 16
      %v2209 = vrot.slane %v2207, 4
      %v2210 = vor.u32 %v2209, %v2205
      %v2211 = vrot.slane %v2210, 4
      %v2213 = vshll.u32 %v2105, 16
      %v2215 = vrot.slane %v2213, 5
      %v2216 = vsel %vm248, %v2211, %v2215
      %v2218 = vshrl.u32 %v2106, 16
      %v2220 = vrot.slane %v2218, 4
      %v2221 = vshll.u32 %v2106, 16
      %v2223 = vrot.slane %v2221, 5
      %v2224 = vor.u32 %v2220, %v2223
      %v2225 = vrot.slane %v2224, 4
      %v2227 = vshll.u32 %v2107, 16
      %v2229 = vrot.slane %v2227, 5
      %v2230 = vsel %vm248, %v2225, %v2229
      %v2231 = vshrl.u32 %v2107, 16
      %v2233 = vrot.slane %v2231, 4
      %v2234 = vor.u32 %v2233, %v2229
      %v2235 = vrot.slane %v2234, 4
      %v2237 = vshll.u32 %v2108, 16
      %v2239 = vrot.slane %v2237, 5
      %v2240 = vsel %vm248, %v2235, %v2239
      %v2242 = vshrl.u32 %v2109, 16
      %v2244 = vrot.slane %v2242, 4
      %v2245 = vshll.u32 %v2109, 16
      %v2247 = vrot.slane %v2245, 5
      %v2248 = vor.u32 %v2244, %v2247
      %v2249 = vrot.slane %v2248, 4
      %v2251 = vshll.u32 %v2110, 16
      %v2253 = vrot.slane %v2251, 5
      %v2254 = vsel %vm248, %v2249, %v2253
      %v2255 = vshrl.u32 %v2110, 16
      %v2257 = vrot.slane %v2255, 4
      %v2258 = vor.u32 %v2257, %v2253
      %v2259 = vrot.slane %v2258, 4
      %v2261 = vshll.u32 %v2111, 16
      %v2263 = vrot.slane %v2261, 5
      %v2264 = vsel %vm248, %v2259, %v2263
      %v2266 = vshrl.u32 %v2112, 16
      %v2268 = vrot.slane %v2266, 4
      %v2269 = vshll.u32 %v2112, 16
      %v2271 = vrot.slane %v2269, 5
      %v2272 = vor.u32 %v2268, %v2271
      %v2273 = vrot.slane %v2272, 4
      %v2275 = vshll.u32 %v2113, 16
      %v2277 = vrot.slane %v2275, 5
      %v2278 = vsel %vm248, %v2273, %v2277
      %v2279 = vshrl.u32 %v2113, 16
      %v2281 = vrot.slane %v2279, 4
      %v2282 = vor.u32 %v2281, %v2277
      %v2283 = vrot.slane %v2282, 4
      %v2285 = vshll.u32 %v2114, 16
      %v2287 = vrot.slane %v2285, 5
      %v2288 = vsel %vm248, %v2283, %v2287
      %v2290 = vshrl.u32 %v2115, 16
      %v2292 = vrot.slane %v2290, 4
      %v2293 = vshll.u32 %v2115, 16
      %v2295 = vrot.slane %v2293, 5
      %v2296 = vor.u32 %v2292, %v2295
      %v2297 = vrot.slane %v2296, 4
      %v2299 = vshll.u32 %v2116, 16
      %v2301 = vrot.slane %v2299, 5
      %v2302 = vsel %vm248, %v2297, %v2301
      %v2303 = vshrl.u32 %v2116, 16
      %v2305 = vrot.slane %v2303, 4
      %v2306 = vor.u32 %v2305, %v2301
      %v2307 = vrot.slane %v2306, 4
      %v2309 = vshll.u32 %v2117, 16
      %v2311 = vrot.slane %v2309, 5
      %v2312 = vsel %vm248, %v2307, %v2311
      %v2314 = vshrl.u32 %v2118, 16
      %v2316 = vrot.slane %v2314, 4
      %v2317 = vshll.u32 %v2118, 16
      %v2319 = vrot.slane %v2317, 5
      %v2320 = vor.u32 %v2316, %v2319
      %v2321 = vrot.slane %v2320, 4
      %v2323 = vshll.u32 %v2119, 16
      %v2325 = vrot.slane %v2323, 5
      %v2326 = vsel %vm248, %v2321, %v2325
      %v2327 = vshrl.u32 %v2119, 16
      %v2329 = vrot.slane %v2327, 4
      %v2330 = vor.u32 %v2329, %v2325
      %v2331 = vrot.slane %v2330, 4
      %v2333 = vshll.u32 %v2120, 16
      %v2335 = vrot.slane %v2333, 5
      %v2336 = vsel %vm248, %v2331, %v2335
      %v2338 = vshrl.u32 %v2121, 16
      %v2340 = vrot.slane %v2338, 4
      %v2341 = vshll.u32 %v2121, 16
      %v2343 = vrot.slane %v2341, 5
      %v2344 = vor.u32 %v2340, %v2343
      %v2345 = vrot.slane %v2344, 4
      %v2347 = vshll.u32 %v2122, 16
      %v2349 = vrot.slane %v2347, 5
      %v2350 = vsel %vm248, %v2345, %v2349
      %v2351 = vshrl.u32 %v2122, 16
      %v2353 = vrot.slane %v2351, 4
      %v2354 = vor.u32 %v2353, %v2349
      %v2355 = vrot.slane %v2354, 4
      %v2357 = vshll.u32 %v2123, 16
      %v2359 = vrot.slane %v2357, 5
      %v2360 = vsel %vm248, %v2355, %v2359
      %v2362 = vshrl.u32 %v2124, 16
      %v2364 = vrot.slane %v2362, 4
      %v2365 = vshll.u32 %v2124, 16
      %v2367 = vrot.slane %v2365, 5
      %v2368 = vor.u32 %v2364, %v2367
      %v2369 = vrot.slane %v2368, 4
      %v2371 = vshll.u32 %v2125, 16
      %v2373 = vrot.slane %v2371, 5
      %v2374 = vsel %vm248, %v2369, %v2373
      %v2375 = vshrl.u32 %v2125, 16
      %v2377 = vrot.slane %v2375, 4
      %v2378 = vor.u32 %v2377, %v2373
      %v2379 = vrot.slane %v2378, 4
      %v2381 = vshll.u32 %v2126, 16
      %v2383 = vrot.slane %v2381, 5
      %v2384 = vsel %vm248, %v2379, %v2383
      %v2386 = vshrl.u32 %v2127, 16
      %v2388 = vrot.slane %v2386, 4
      %v2389 = vshll.u32 %v2127, 16
      %v2391 = vrot.slane %v2389, 5
      %v2392 = vor.u32 %v2388, %v2391
      %v2393 = vrot.slane %v2392, 4
      %v2395 = vshll.u32 %v2128, 16
      %v2397 = vrot.slane %v2395, 5
      %v2398 = vsel %vm248, %v2393, %v2397
      %v2399 = vshrl.u32 %v2128, 16
      %v2401 = vrot.slane %v2399, 4
      %v2402 = vor.u32 %v2401, %v2397
      %v2403 = vrot.slane %v2402, 4
      %v2405 = vshll.u32 %v2129, 16
      %v2407 = vrot.slane %v2405, 5
      %v2408 = vsel %vm248, %v2403, %v2407
      %v2410 = vshrl.u32 %v2130, 16
      %v2412 = vrot.slane %v2410, 4
      %v2413 = vshll.u32 %v2130, 16
      %v2415 = vrot.slane %v2413, 5
      %v2416 = vor.u32 %v2412, %v2415
      %v2417 = vrot.slane %v2416, 4
      %v2419 = vshll.u32 %v2131, 16
      %v2421 = vrot.slane %v2419, 5
      %v2422 = vsel %vm248, %v2417, %v2421
      %v2423 = vshrl.u32 %v2131, 16
      %v2425 = vrot.slane %v2423, 4
      %v2426 = vor.u32 %v2425, %v2421
      %v2427 = vrot.slane %v2426, 4
      %v2429 = vshll.u32 %v2132, 16
      %v2431 = vrot.slane %v2429, 5
      %v2432 = vsel %vm248, %v2427, %v2431
      %v2434 = vshrl.u32 %v2133, 16
      %v2436 = vrot.slane %v2434, 4
      %v2437 = vshll.u32 %v2133, 16
      %v2439 = vrot.slane %v2437, 5
      %v2440 = vor.u32 %v2436, %v2439
      %v2441 = vrot.slane %v2440, 4
      %v2443 = vshll.u32 %v2134, 16
      %v2445 = vrot.slane %v2443, 5
      %v2446 = vsel %vm248, %v2441, %v2445
      %v2447 = vshrl.u32 %v2134, 16
      %v2449 = vrot.slane %v2447, 4
      %v2450 = vor.u32 %v2449, %v2445
      %v2451 = vrot.slane %v2450, 4
      %v2453 = vshll.u32 %v2135, 16
      %v2455 = vrot.slane %v2453, 5
      %v2456 = vsel %vm248, %v2451, %v2455
      %v2458 = vshrl.u32 %v2136, 16
      %v2460 = vrot.slane %v2458, 4
      %v2461 = vshll.u32 %v2136, 16
      %v2463 = vrot.slane %v2461, 5
      %v2464 = vor.u32 %v2460, %v2463
      %v2465 = vrot.slane %v2464, 4
      %v2467 = vshll.u32 %v2137, 16
      %v2469 = vrot.slane %v2467, 5
      %v2470 = vsel %vm248, %v2465, %v2469
      %v2471 = vshrl.u32 %v2137, 16
      %v2473 = vrot.slane %v2471, 4
      %v2474 = vor.u32 %v2473, %v2469
      %v2475 = vrot.slane %v2474, 4
      %v2477 = vshll.u32 %v2138, 16
      %v2479 = vrot.slane %v2477, 5
      %v2480 = vsel %vm248, %v2475, %v2479
      %v2482 = vshrl.u32 %v2139, 16
      %v2484 = vrot.slane %v2482, 4
      %v2485 = vshll.u32 %v2139, 16
      %v2487 = vrot.slane %v2485, 5
      %v2488 = vor.u32 %v2484, %v2487
      %v2489 = vrot.slane %v2488, 4
      %v2491 = vshll.u32 %v2140, 16
      %v2493 = vrot.slane %v2491, 5
      %v2494 = vsel %vm248, %v2489, %v2493
      %v2495 = vshrl.u32 %v2140, 16
      %v2497 = vrot.slane %v2495, 4
      %v2498 = vor.u32 %v2497, %v2493
      %v2499 = vrot.slane %v2498, 4
      %v2501 = vshll.u32 %v2141, 16
      %v2503 = vrot.slane %v2501, 5
      %v2504 = vsel %vm248, %v2499, %v2503
      %v2506 = vshrl.u32 %v2142, 16
      %v2508 = vrot.slane %v2506, 4
      %v2509 = vshll.u32 %v2142, 16
      %v2511 = vrot.slane %v2509, 5
      %v2512 = vor.u32 %v2508, %v2511
      %v2513 = vrot.slane %v2512, 4
      %v2515 = vshll.u32 %v2143, 16
      %v2517 = vrot.slane %v2515, 5
      %v2518 = vsel %vm248, %v2513, %v2517
      %v2519 = vshrl.u32 %v2143, 16
      %v2521 = vrot.slane %v2519, 4
      %v2522 = vor.u32 %v2521, %v2517
      %v2523 = vrot.slane %v2522, 4
      %v2525 = vshll.u32 %v2144, 16
      %v2527 = vrot.slane %v2525, 5
      %v2528 = vsel %vm248, %v2523, %v2527
      %v2529 = vld [vmem:[%s172 + $0x100] sm:$0xf]
      %v2530 = vld [vmem:[%s172 + $0x104] sm:$0xf]
      %v2531 = vld [vmem:[%s172 + $0x108] sm:$0xf]
      %v2532 = vld [vmem:[%s172 + $0x10c] sm:$0xf]
      %v2533 = vld [vmem:[%s172 + $0x110] sm:$0xf]
      %v2534 = vld [vmem:[%s172 + $0x114] sm:$0xf]
      %v2535 = vld [vmem:[%s172 + $0x118] sm:$0xf]
      %v2536 = vld [vmem:[%s172 + $0x11c] sm:$0xf]
      %v2537 = vld [vmem:[%s172 + $0x120] sm:$0xf]
      %v2538 = vld [vmem:[%s172 + $0x124] sm:$0xf]
      %v2539 = vld [vmem:[%s172 + $0x128] sm:$0xf]
      %v2540 = vld [vmem:[%s172 + $0x12c] sm:$0xf]
      %v2541 = vld [vmem:[%s172 + $0x130] sm:$0xf]
      %v2542 = vld [vmem:[%s172 + $0x134] sm:$0xf]
      %v2543 = vld [vmem:[%s172 + $0x138] sm:$0xf]
      %v2544 = vld [vmem:[%s172 + $0x13c] sm:$0xf]
      %v2545 = vunpack.c.l.b16 %v2158
      %v2546 = vunpack.c.l.b16 %v2168
      %v2547 = vunpack.c.l.b16 %v2182
      %v2548 = vunpack.c.l.b16 %v2192
      %v2549 = vunpack.c.l.b16 %v2206
      %v2550 = vunpack.c.l.b16 %v2216
      %v2551 = vunpack.c.l.b16 %v2230
      %v2552 = vunpack.c.l.b16 %v2240
      %v2553 = vunpack.c.l.b16 %v2254
      %v2554 = vunpack.c.l.b16 %v2264
      %v2555 = vunpack.c.l.b16 %v2278
      %v2556 = vunpack.c.l.b16 %v2288
      %v2557 = vunpack.c.l.b16 %v2302
      %v2558 = vunpack.c.l.b16 %v2312
      %v2559 = vunpack.c.l.b16 %v2326
      %v2560 = vunpack.c.l.b16 %v2336
      %v2561 = vunpack.c.l.b16 %v2350
      %v2562 = vunpack.c.l.b16 %v2360
      %v2563 = vunpack.c.l.b16 %v2374
      %v2564 = vunpack.c.l.b16 %v2384
      %v2565 = vunpack.c.l.b16 %v2398
      %v2566 = vunpack.c.l.b16 %v2408
      %v2567 = vunpack.c.l.b16 %v2422
      %v2568 = vunpack.c.l.b16 %v2432
      %v2569 = vunpack.c.l.b16 %v2446
      %v2570 = vunpack.c.l.b16 %v2456
      %v2571 = vunpack.c.l.b16 %v2470
      %v2572 = vunpack.c.l.b16 %v2480
      %v2573 = vunpack.c.l.b16 %v2494
      %v2574 = vunpack.c.l.b16 %v2504
      %v2575 = vunpack.c.l.b16 %v2518
      %v2576 = vunpack.c.l.b16 %v2528
      %v2577 = vpack.c.b16 %v2546, %v2545
      %v2578 = vpack.c.b16 %v2548, %v2547
      %v2579 = vpack.c.b16 %v2550, %v2549
      %v2580 = vpack.c.b16 %v2552, %v2551
      %v2581 = vpack.c.b16 %v2554, %v2553
      %v2582 = vpack.c.b16 %v2556, %v2555
      %v2583 = vpack.c.b16 %v2558, %v2557
      %v2584 = vpack.c.b16 %v2560, %v2559
      %v2585 = vpack.c.b16 %v2562, %v2561
      %v2586 = vpack.c.b16 %v2564, %v2563
      %v2587 = vpack.c.b16 %v2566, %v2565
      %v2588 = vpack.c.b16 %v2568, %v2567
      %v2589 = vpack.c.b16 %v2570, %v2569
      %v2590 = vpack.c.b16 %v2572, %v2571
      %v2591 = vpack.c.b16 %v2574, %v2573
      %v2592 = vpack.c.b16 %v2576, %v2575
      %v2625 = vunpack.c.l.b16 %v2529
      %v2626 = vunpack.c.l.b16 %v2530
      %v2627 = vunpack.c.l.b16 %v2531
      %v2628 = vunpack.c.l.b16 %v2532
      %v2629 = vunpack.c.l.b16 %v2533
      %v2630 = vunpack.c.l.b16 %v2534
      %v2631 = vunpack.c.l.b16 %v2535
      %v2632 = vunpack.c.l.b16 %v2536
      %v2633 = vunpack.c.l.b16 %v2537
      %v2634 = vunpack.c.l.b16 %v2538
      %v2635 = vunpack.c.l.b16 %v2539
      %v2636 = vunpack.c.l.b16 %v2540
      %v2637 = vunpack.c.l.b16 %v2541
      %v2638 = vunpack.c.l.b16 %v2542
      %v2639 = vunpack.c.l.b16 %v2543
      %v2640 = vunpack.c.l.b16 %v2544
      %v2641 = vpack.c.b16 %v2626, %v2625
      %v2642 = vpack.c.b16 %v2628, %v2627
      %v2643 = vpack.c.b16 %v2630, %v2629
      %v2644 = vpack.c.b16 %v2632, %v2631
      %v2645 = vpack.c.b16 %v2634, %v2633
      %v2646 = vpack.c.b16 %v2636, %v2635
      %v2647 = vpack.c.b16 %v2638, %v2637
      %v2648 = vpack.c.b16 %v2640, %v2639
      %2657 = vmatprep.subr.bf16.mxu0 0
      %2658 = vmatpush1.bf16.msra.mxu0 %v2641
      %2659 = vmatprep.subr.bf16.mxu0 0
      %2660 = vmatpush1.bf16.msra.mxu0 %v2642
      %2661 = vmatprep.subr.bf16.mxu0 0
      %2662 = vmatpush1.bf16.msra.mxu0 %v2643
      %2663 = vmatprep.subr.bf16.mxu0 0
      %2664 = vmatpush1.bf16.msra.mxu0 %v2644
      %2665 = vmatprep.subr.bf16.mxu0 0
      %2666 = vmatpush1.bf16.msra.mxu0 %v2645
      %2667 = vmatprep.subr.bf16.mxu0 0
      %2668 = vmatpush1.bf16.msra.mxu0 %v2646
      %2669 = vmatprep.subr.bf16.mxu0 0
      %2670 = vmatpush1.bf16.msra.mxu0 %v2647
      %2671 = vmatprep.subr.bf16.mxu0 0
      %2672 = vmatpush1.bf16.msra.mxu0 %v2648
      %2673 = vmatprep.subr.bf16.mxu0 0
      %2674 = vmatpush1.bf16.msra.mxu0 0
      %2675 = vmatprep.subr.bf16.mxu0 0
      %2676 = vmatpush1.bf16.msra.mxu0 0
      %2677 = vmatprep.subr.bf16.mxu0 0
      %2678 = vmatpush1.bf16.msra.mxu0 0
      %2679 = vmatprep.subr.bf16.mxu0 0
      %2680 = vmatpush1.bf16.msra.mxu0 0
      %2681 = vmatprep.subr.bf16.mxu0 0
      %2682 = vmatpush1.bf16.msra.mxu0 0
      %2683 = vmatprep.subr.bf16.mxu0 0
      %2684 = vmatpush1.bf16.msra.mxu0 0
      %2685 = vmatprep.subr.bf16.mxu0 0
      %2686 = vmatpush1.bf16.msra.mxu0 0
      %2687 = vmatprep.subr.bf16.mxu0 0
      %2688 = vmatpush1.bf16.msra.mxu0 0
      %2689 = vmatprep.mubr.bf16.mxu0 0
      %2690 = vmatmul.mubr.bf16.gmra.mrb[0].mxu0 %v2577
      %v2691 = vpop.f32.mrb[0].mxu0
      %v2692 = vadd.f32 0.0, %v2691
      %v2693 = vpop.f32.mrb[0].mxu0
      %v2694 = vpop.f32.mrb[0].mxu0
      %v2695 = vadd.f32 0.0, %v2694
      %v2696 = vpop.f32.mrb[0].mxu0
      %2697 = vmatprep.mubr.bf16.mxu0 0
      %2698 = vmatmul.mubr.bf16.gmra.mrb[0].mxu0 %v2578
      %v2699 = vpop.f32.mrb[0].mxu0
      %v2700 = vadd.f32 0.0, %v2699
      %v2701 = vpop.f32.mrb[0].mxu0
      %v2702 = vpop.f32.mrb[0].mxu0
      %v2703 = vadd.f32 0.0, %v2702
      %v2704 = vpop.f32.mrb[0].mxu0
      %2705 = vmatprep.mubr.bf16.mxu0 0
      %2706 = vmatmul.mubr.bf16.gmra.mrb[0].mxu0 %v2579
      %v2707 = vpop.f32.mrb[0].mxu0
      %v2708 = vadd.f32 0.0, %v2707
      %v2709 = vpop.f32.mrb[0].mxu0
      %v2710 = vpop.f32.mrb[0].mxu0
      %v2711 = vadd.f32 0.0, %v2710
      %v2712 = vpop.f32.mrb[0].mxu0
      %2713 = vmatprep.mubr.bf16.mxu0 0
      %2714 = vmatmul.mubr.bf16.gmra.mrb[0].mxu0 %v2580
      %v2715 = vpop.f32.mrb[0].mxu0
      %v2716 = vadd.f32 0.0, %v2715
      %v2717 = vpop.f32.mrb[0].mxu0
      %v2718 = vpop.f32.mrb[0].mxu0
      %v2719 = vadd.f32 0.0, %v2718
      %v2720 = vpop.f32.mrb[0].mxu0
      %2721 = vmatprep.mubr.bf16.mxu0 0
      %2722 = vmatmul.mubr.bf16.gmra.mrb[0].mxu0 %v2581
      %v2723 = vpop.f32.mrb[0].mxu0
      %v2724 = vadd.f32 0.0, %v2723
      %v2725 = vpop.f32.mrb[0].mxu0
      %v2726 = vpop.f32.mrb[0].mxu0
      %v2727 = vadd.f32 0.0, %v2726
      %v2728 = vpop.f32.mrb[0].mxu0
      %2729 = vmatprep.mubr.bf16.mxu0 0
      %2730 = vmatmul.mubr.bf16.gmra.mrb[0].mxu0 %v2582
      %v2731 = vpop.f32.mrb[0].mxu0
      %v2732 = vadd.f32 0.0, %v2731
      %v2733 = vpop.f32.mrb[0].mxu0
      %v2734 = vpop.f32.mrb[0].mxu0
      %v2735 = vadd.f32 0.0, %v2734
      %v2736 = vpop.f32.mrb[0].mxu0
      %2737 = vmatprep.mubr.bf16.mxu0 0
      %2738 = vmatmul.mubr.bf16.gmra.mrb[0].mxu0 %v2583
      %v2739 = vpop.f32.mrb[0].mxu0
      %v2740 = vadd.f32 0.0, %v2739
      %v2741 = vpop.f32.mrb[0].mxu0
      %v2742 = vpop.f32.mrb[0].mxu0
      %v2743 = vadd.f32 0.0, %v2742
      %v2744 = vpop.f32.mrb[0].mxu0
      %2745 = vmatprep.mubr.bf16.mxu0 0
      %2746 = vmatmul.mubr.bf16.gmra.mrb[0].mxu0 %v2584
      %v2747 = vpop.f32.mrb[0].mxu0
      %v2748 = vadd.f32 0.0, %v2747
      %v2749 = vpop.f32.mrb[0].mxu0
      %v2750 = vpop.f32.mrb[0].mxu0
      %v2751 = vadd.f32 0.0, %v2750
      %v2752 = vpop.f32.mrb[0].mxu0
      %2753 = vmatprep.mubr.bf16.mxu0 0
      %2754 = vmatmul.mubr.bf16.gmra.mrb[0].mxu0 %v2585
      %v2755 = vpop.f32.mrb[0].mxu0
      %v2756 = vadd.f32 0.0, %v2755
      %v2757 = vpop.f32.mrb[0].mxu0
      %v2758 = vpop.f32.mrb[0].mxu0
      %v2759 = vadd.f32 0.0, %v2758
      %v2760 = vpop.f32.mrb[0].mxu0
      %2761 = vmatprep.mubr.bf16.mxu0 0
      %2762 = vmatmul.mubr.bf16.gmra.mrb[0].mxu0 %v2586
      %v2763 = vpop.f32.mrb[0].mxu0
      %v2764 = vadd.f32 0.0, %v2763
      %v2765 = vpop.f32.mrb[0].mxu0
      %v2766 = vpop.f32.mrb[0].mxu0
      %v2767 = vadd.f32 0.0, %v2766
      %v2768 = vpop.f32.mrb[0].mxu0
      %2769 = vmatprep.mubr.bf16.mxu0 0
      %2770 = vmatmul.mubr.bf16.gmra.mrb[0].mxu0 %v2587
      %v2771 = vpop.f32.mrb[0].mxu0
      %v2772 = vadd.f32 0.0, %v2771
      %v2773 = vpop.f32.mrb[0].mxu0
      %v2774 = vpop.f32.mrb[0].mxu0
      %v2775 = vadd.f32 0.0, %v2774
      %v2776 = vpop.f32.mrb[0].mxu0
      %2777 = vmatprep.mubr.bf16.mxu0 0
      %2778 = vmatmul.mubr.bf16.gmra.mrb[0].mxu0 %v2588
      %v2779 = vpop.f32.mrb[0].mxu0
      %v2780 = vadd.f32 0.0, %v2779
      %v2781 = vpop.f32.mrb[0].mxu0
      %v2782 = vpop.f32.mrb[0].mxu0
      %v2783 = vadd.f32 0.0, %v2782
      %v2784 = vpop.f32.mrb[0].mxu0
      %2785 = vmatprep.mubr.bf16.mxu0 0
      %2786 = vmatmul.mubr.bf16.gmra.mrb[0].mxu0 %v2589
      %v2787 = vpop.f32.mrb[0].mxu0
      %v2788 = vadd.f32 0.0, %v2787
      %v2789 = vpop.f32.mrb[0].mxu0
      %v2790 = vpop.f32.mrb[0].mxu0
      %v2791 = vadd.f32 0.0, %v2790
      %v2792 = vpop.f32.mrb[0].mxu0
      %2793 = vmatprep.mubr.bf16.mxu0 0
      %2794 = vmatmul.mubr.bf16.gmra.mrb[0].mxu0 %v2590
      %v2795 = vpop.f32.mrb[0].mxu0
      %v2796 = vadd.f32 0.0, %v2795
      %v2797 = vpop.f32.mrb[0].mxu0
      %v2798 = vpop.f32.mrb[0].mxu0
      %v2799 = vadd.f32 0.0, %v2798
      %v2800 = vpop.f32.mrb[0].mxu0
      %2801 = vmatprep.mubr.bf16.mxu0 0
      %2802 = vmatmul.mubr.bf16.gmra.mrb[0].mxu0 %v2591
      %v2803 = vpop.f32.mrb[0].mxu0
      %v2804 = vadd.f32 0.0, %v2803
      %v2805 = vpop.f32.mrb[0].mxu0
      %v2806 = vpop.f32.mrb[0].mxu0
      %v2807 = vadd.f32 0.0, %v2806
      %v2808 = vpop.f32.mrb[0].mxu0
      %2809 = vmatprep.mubr.bf16.mxu0 0
      %2810 = vmatmul.mubr.bf16.gmra.mrb[0].mxu0 %v2592
      %v2811 = vpop.f32.mrb[0].mxu0
      %v2812 = vadd.f32 0.0, %v2811
      %v2813 = vpop.f32.mrb[0].mxu0
      %v2814 = vpop.f32.mrb[0].mxu0
      %v2815 = vadd.f32 0.0, %v2814
      %v2816 = vpop.f32.mrb[0].mxu0
      %2817 = vdwg.mxu0
      %v2818 = vadd.f32 %v2065, %v2692
      %v2819 = vadd.f32 %v2066, %v2695
      %v2820 = vadd.f32 %v2067, %v2700
      %v2821 = vadd.f32 %v2068, %v2703
      %v2822 = vadd.f32 %v2069, %v2708
      %v2823 = vadd.f32 %v2070, %v2711
      %v2824 = vadd.f32 %v2071, %v2716
      %v2825 = vadd.f32 %v2072, %v2719
      %v2826 = vadd.f32 %v2073, %v2724
      %v2827 = vadd.f32 %v2074, %v2727
      %v2828 = vadd.f32 %v2075, %v2732
      %v2829 = vadd.f32 %v2076, %v2735
      %v2830 = vadd.f32 %v2077, %v2740
      %v2831 = vadd.f32 %v2078, %v2743
      %v2832 = vadd.f32 %v2079, %v2748
      %v2833 = vadd.f32 %v2080, %v2751
      %v2834 = vadd.f32 %v2081, %v2756
      %v2835 = vadd.f32 %v2082, %v2759
      %v2836 = vadd.f32 %v2083, %v2764
      %v2837 = vadd.f32 %v2084, %v2767
      %v2838 = vadd.f32 %v2085, %v2772
      %v2839 = vadd.f32 %v2086, %v2775
      %v2840 = vadd.f32 %v2087, %v2780
      %v2841 = vadd.f32 %v2088, %v2783
      %v2842 = vadd.f32 %v2089, %v2788
      %v2843 = vadd.f32 %v2090, %v2791
      %v2844 = vadd.f32 %v2091, %v2796
      %v2845 = vadd.f32 %v2092, %v2799
      %v2846 = vadd.f32 %v2093, %v2804
      %v2847 = vadd.f32 %v2094, %v2807
      %v2848 = vadd.f32 %v2095, %v2812
      %v2849 = vadd.f32 %v2096, %v2815
      %v2850 = vld [vmem:[%s1711] sm:$0xe]
      %v2851 = vld [vmem:[%s1711 + $0xc] sm:$0xe]
      %v2852 = vld [vmem:[%s1711 + $0x18] sm:$0xe]
      %v2853 = vld [vmem:[%s1711 + $0x24] sm:$0xe]
      %v2854 = vld [vmem:[%s1711 + $0x30] sm:$0xe]
      %v2855 = vld [vmem:[%s1711 + $0x3c] sm:$0xe]
      %v2856 = vld [vmem:[%s1711 + $0x48] sm:$0xe]
      %v2857 = vld [vmem:[%s1711 + $0x54] sm:$0xe]
      %v2858 = vld [vmem:[%s1711 + $0x60] sm:$0xe]
      %v2859 = vld [vmem:[%s1711 + $0x6c] sm:$0xe]
      %v2860 = vld [vmem:[%s1711 + $0x78] sm:$0xe]
      %v2861 = vld [vmem:[%s1711 + $0x84] sm:$0xe]
      %v2862 = vld [vmem:[%s1711 + $0x90] sm:$0xe]
      %v2863 = vld [vmem:[%s1711 + $0x9c] sm:$0xe]
      %v2864 = vld [vmem:[%s1711 + $0xa8] sm:$0xe]
      %v2865 = vld [vmem:[%s1711 + $0xb4] sm:$0xe]
      %v2914 = vrot.slane %v2850, 5
      %v2915 = vrot.slane %v2914, 4
      %v2916 = vrot.slane %v2098, 5
      %v2917 = vsel %vm1277, %v2915, %v2916
      %v2918 = vrot.slane %v2916, 4
      %v2919 = vrot.slane %v2099, 5
      %v2920 = vsel %vm1277, %v2918, %v2919
      %v2921 = vrot.slane %v2851, 5
      %v2922 = vrot.slane %v2921, 4
      %v2923 = vrot.slane %v2101, 5
      %v2924 = vsel %vm1277, %v2922, %v2923
      %v2925 = vrot.slane %v2923, 4
      %v2926 = vrot.slane %v2102, 5
      %v2927 = vsel %vm1277, %v2925, %v2926
      %v2928 = vrot.slane %v2852, 5
      %v2929 = vrot.slane %v2928, 4
      %v2930 = vrot.slane %v2104, 5
      %v2931 = vsel %vm1277, %v2929, %v2930
      %v2932 = vrot.slane %v2930, 4
      %v2933 = vrot.slane %v2105, 5
      %v2934 = vsel %vm1277, %v2932, %v2933
      %v2935 = vrot.slane %v2853, 5
      %v2936 = vrot.slane %v2935, 4
      %v2937 = vrot.slane %v2107, 5
      %v2938 = vsel %vm1277, %v2936, %v2937
      %v2939 = vrot.slane %v2937, 4
      %v2940 = vrot.slane %v2108, 5
      %v2941 = vsel %vm1277, %v2939, %v2940
      %v2942 = vrot.slane %v2854, 5
      %v2943 = vrot.slane %v2942, 4
      %v2944 = vrot.slane %v2110, 5
      %v2945 = vsel %vm1277, %v2943, %v2944
      %v2946 = vrot.slane %v2944, 4
      %v2947 = vrot.slane %v2111, 5
      %v2948 = vsel %vm1277, %v2946, %v2947
      %v2949 = vrot.slane %v2855, 5
      %v2950 = vrot.slane %v2949, 4
      %v2951 = vrot.slane %v2113, 5
      %v2952 = vsel %vm1277, %v2950, %v2951
      %v2953 = vrot.slane %v2951, 4
      %v2954 = vrot.slane %v2114, 5
      %v2955 = vsel %vm1277, %v2953, %v2954
      %v2956 = vrot.slane %v2856, 5
      %v2957 = vrot.slane %v2956, 4
      %v2958 = vrot.slane %v2116, 5
      %v2959 = vsel %vm1277, %v2957, %v2958
      %v2960 = vrot.slane %v2958, 4
      %v2961 = vrot.slane %v2117, 5
      %v2962 = vsel %vm1277, %v2960, %v2961
      %v2963 = vrot.slane %v2857, 5
      %v2964 = vrot.slane %v2963, 4
      %v2965 = vrot.slane %v2119, 5
      %v2966 = vsel %vm1277, %v2964, %v2965
      %v2967 = vrot.slane %v2965, 4
      %v2968 = vrot.slane %v2120, 5
      %v2969 = vsel %vm1277, %v2967, %v2968
      %v2970 = vrot.slane %v2858, 5
      %v2971 = vrot.slane %v2970, 4
      %v2972 = vrot.slane %v2122, 5
      %v2973 = vsel %vm1277, %v2971, %v2972
      %v2974 = vrot.slane %v2972, 4
      %v2975 = vrot.slane %v2123, 5
      %v2976 = vsel %vm1277, %v2974, %v2975
      %v2977 = vrot.slane %v2859, 5
      %v2978 = vrot.slane %v2977, 4
      %v2979 = vrot.slane %v2125, 5
      %v2980 = vsel %vm1277, %v2978, %v2979
      %v2981 = vrot.slane %v2979, 4
      %v2982 = vrot.slane %v2126, 5
      %v2983 = vsel %vm1277, %v2981, %v2982
      %v2984 = vrot.slane %v2860, 5
      %v2985 = vrot.slane %v2984, 4
      %v2986 = vrot.slane %v2128, 5
      %v2987 = vsel %vm1277, %v2985, %v2986
      %v2988 = vrot.slane %v2986, 4
      %v2989 = vrot.slane %v2129, 5
      %v2990 = vsel %vm1277, %v2988, %v2989
      %v2991 = vrot.slane %v2861, 5
      %v2992 = vrot.slane %v2991, 4
      %v2993 = vrot.slane %v2131, 5
      %v2994 = vsel %vm1277, %v2992, %v2993
      %v2995 = vrot.slane %v2993, 4
      %v2996 = vrot.slane %v2132, 5
      %v2997 = vsel %vm1277, %v2995, %v2996
      %v2998 = vrot.slane %v2862, 5
      %v2999 = vrot.slane %v2998, 4
      %v3000 = vrot.slane %v2134, 5
      %v3001 = vsel %vm1277, %v2999, %v3000
      %v3002 = vrot.slane %v3000, 4
      %v3003 = vrot.slane %v2135, 5
      %v3004 = vsel %vm1277, %v3002, %v3003
      %v3005 = vrot.slane %v2863, 5
      %v3006 = vrot.slane %v3005, 4
      %v3007 = vrot.slane %v2137, 5
      %v3008 = vsel %vm1277, %v3006, %v3007
      %v3009 = vrot.slane %v3007, 4
      %v3010 = vrot.slane %v2138, 5
      %v3011 = vsel %vm1277, %v3009, %v3010
      %v3012 = vrot.slane %v2864, 5
      %v3013 = vrot.slane %v3012, 4
      %v3014 = vrot.slane %v2140, 5
      %v3015 = vsel %vm1277, %v3013, %v3014
      %v3016 = vrot.slane %v3014, 4
      %v3017 = vrot.slane %v2141, 5
      %v3018 = vsel %vm1277, %v3016, %v3017
      %v3019 = vrot.slane %v2865, 5
      %v3020 = vrot.slane %v3019, 4
      %v3021 = vrot.slane %v2143, 5
      %v3022 = vsel %vm1277, %v3020, %v3021
      %v3023 = vrot.slane %v3021, 4
      %v3024 = vrot.slane %v2144, 5
      %v3025 = vsel %vm1277, %v3023, %v3024
      %v3026 = vld [vmem:[%s172 + $0x140] sm:$0xf]
      %v3027 = vld [vmem:[%s172 + $0x144] sm:$0xf]
      %v3028 = vld [vmem:[%s172 + $0x148] sm:$0xf]
      %v3029 = vld [vmem:[%s172 + $0x14c] sm:$0xf]
      %v3030 = vld [vmem:[%s172 + $0x150] sm:$0xf]
      %v3031 = vld [vmem:[%s172 + $0x154] sm:$0xf]
      %v3032 = vld [vmem:[%s172 + $0x158] sm:$0xf]
      %v3033 = vld [vmem:[%s172 + $0x15c] sm:$0xf]
      %v3034 = vld [vmem:[%s172 + $0x160] sm:$0xf]
      %v3035 = vld [vmem:[%s172 + $0x164] sm:$0xf]
      %v3036 = vld [vmem:[%s172 + $0x168] sm:$0xf]
      %v3037 = vld [vmem:[%s172 + $0x16c] sm:$0xf]
      %v3038 = vld [vmem:[%s172 + $0x170] sm:$0xf]
      %v3039 = vld [vmem:[%s172 + $0x174] sm:$0xf]
      %v3040 = vld [vmem:[%s172 + $0x178] sm:$0xf]
      %v3041 = vld [vmem:[%s172 + $0x17c] sm:$0xf]
      %v3042 = vunpack.c.l.b16 %v2917
      %v3043 = vunpack.c.l.b16 %v2920
      %v3044 = vunpack.c.l.b16 %v2924
      %v3045 = vunpack.c.l.b16 %v2927
      %v3046 = vunpack.c.l.b16 %v2931
      %v3047 = vunpack.c.l.b16 %v2934
      %v3048 = vunpack.c.l.b16 %v2938
      %v3049 = vunpack.c.l.b16 %v2941
      %v3050 = vunpack.c.l.b16 %v2945
      %v3051 = vunpack.c.l.b16 %v2948
      %v3052 = vunpack.c.l.b16 %v2952
      %v3053 = vunpack.c.l.b16 %v2955
      %v3054 = vunpack.c.l.b16 %v2959
      %v3055 = vunpack.c.l.b16 %v2962
      %v3056 = vunpack.c.l.b16 %v2966
      %v3057 = vunpack.c.l.b16 %v2969
      %v3058 = vunpack.c.l.b16 %v2973
      %v3059 = vunpack.c.l.b16 %v2976
      %v3060 = vunpack.c.l.b16 %v2980
      %v3061 = vunpack.c.l.b16 %v2983
      %v3062 = vunpack.c.l.b16 %v2987
      %v3063 = vunpack.c.l.b16 %v2990
      %v3064 = vunpack.c.l.b16 %v2994
      %v3065 = vunpack.c.l.b16 %v2997
      %v3066 = vunpack.c.l.b16 %v3001
      %v3067 = vunpack.c.l.b16 %v3004
      %v3068 = vunpack.c.l.b16 %v3008
      %v3069 = vunpack.c.l.b16 %v3011
      %v3070 = vunpack.c.l.b16 %v3015
      %v3071 = vunpack.c.l.b16 %v3018
      %v3072 = vunpack.c.l.b16 %v3022
      %v3073 = vunpack.c.l.b16 %v3025
      %v3074 = vpack.c.b16 %v3043, %v3042
      %v3075 = vpack.c.b16 %v3045, %v3044
      %v3076 = vpack.c.b16 %v3047, %v3046
      %v3077 = vpack.c.b16 %v3049, %v3048
      %v3078 = vpack.c.b16 %v3051, %v3050
      %v3079 = vpack.c.b16 %v3053, %v3052
      %v3080 = vpack.c.b16 %v3055, %v3054
      %v3081 = vpack.c.b16 %v3057, %v3056
      %v3082 = vpack.c.b16 %v3059, %v3058
      %v3083 = vpack.c.b16 %v3061, %v3060
      %v3084 = vpack.c.b16 %v3063, %v3062
      %v3085 = vpack.c.b16 %v3065, %v3064
      %v3086 = vpack.c.b16 %v3067, %v3066
      %v3087 = vpack.c.b16 %v3069, %v3068
      %v3088 = vpack.c.b16 %v3071, %v3070
      %v3089 = vpack.c.b16 %v3073, %v3072
      %v3122 = vunpack.c.l.b16 %v3026
      %v3123 = vunpack.c.l.b16 %v3027
      %v3124 = vunpack.c.l.b16 %v3028
      %v3125 = vunpack.c.l.b16 %v3029
      %v3126 = vunpack.c.l.b16 %v3030
      %v3127 = vunpack.c.l.b16 %v3031
      %v3128 = vunpack.c.l.b16 %v3032
      %v3129 = vunpack.c.l.b16 %v3033
      %v3130 = vunpack.c.l.b16 %v3034
      %v3131 = vunpack.c.l.b16 %v3035
      %v3132 = vunpack.c.l.b16 %v3036
      %v3133 = vunpack.c.l.b16 %v3037
      %v3134 = vunpack.c.l.b16 %v3038
      %v3135 = vunpack.c.l.b16 %v3039
      %v3136 = vunpack.c.l.b16 %v3040
      %v3137 = vunpack.c.l.b16 %v3041
      %v3138 = vpack.c.b16 %v3123, %v3122
      %v3139 = vpack.c.b16 %v3125, %v3124
      %v3140 = vpack.c.b16 %v3127, %v3126
      %v3141 = vpack.c.b16 %v3129, %v3128
      %v3142 = vpack.c.b16 %v3131, %v3130
      %v3143 = vpack.c.b16 %v3133, %v3132
      %v3144 = vpack.c.b16 %v3135, %v3134
      %v3145 = vpack.c.b16 %v3137, %v3136
      %3154 = vmatprep.subr.bf16.mxu0 0
      %3155 = vmatpush1.bf16.msra.mxu0 %v3138
      %3156 = vmatprep.subr.bf16.mxu0 0
      %3157 = vmatpush1.bf16.msra.mxu0 %v3139
      %3158 = vmatprep.subr.bf16.mxu0 0
      %3159 = vmatpush1.bf16.msra.mxu0 %v3140
      %3160 = vmatprep.subr.bf16.mxu0 0
      %3161 = vmatpush1.bf16.msra.mxu0 %v3141
      %3162 = vmatprep.subr.bf16.mxu0 0
      %3163 = vmatpush1.bf16.msra.mxu0 %v3142
      %3164 = vmatprep.subr.bf16.mxu0 0
      %3165 = vmatpush1.bf16.msra.mxu0 %v3143
      %3166 = vmatprep.subr.bf16.mxu0 0
      %3167 = vmatpush1.bf16.msra.mxu0 %v3144
      %3168 = vmatprep.subr.bf16.mxu0 0
      %3169 = vmatpush1.bf16.msra.mxu0 %v3145
      %3170 = vmatprep.subr.bf16.mxu0 0
      %3171 = vmatpush1.bf16.msra.mxu0 0
      %3172 = vmatprep.subr.bf16.mxu0 0
      %3173 = vmatpush1.bf16.msra.mxu0 0
      %3174 = vmatprep.subr.bf16.mxu0 0
      %3175 = vmatpush1.bf16.msra.mxu0 0
      %3176 = vmatprep.subr.bf16.mxu0 0
      %3177 = vmatpush1.bf16.msra.mxu0 0
      %3178 = vmatprep.subr.bf16.mxu0 0
      %3179 = vmatpush1.bf16.msra.mxu0 0
      %3180 = vmatprep.subr.bf16.mxu0 0
      %3181 = vmatpush1.bf16.msra.mxu0 0
      %3182 = vmatprep.subr.bf16.mxu0 0
      %3183 = vmatpush1.bf16.msra.mxu0 0
      %3184 = vmatprep.subr.bf16.mxu0 0
      %3185 = vmatpush1.bf16.msra.mxu0 0
      %3186 = vmatprep.mubr.bf16.mxu0 0
      %3187 = vmatmul.mubr.bf16.gmra.mrb[0].mxu0 %v3074
      %v3188 = vpop.f32.mrb[0].mxu0
      %v3189 = vadd.f32 0.0, %v3188
      %v3190 = vpop.f32.mrb[0].mxu0
      %v3191 = vpop.f32.mrb[0].mxu0
      %v3192 = vadd.f32 0.0, %v3191
      %v3193 = vpop.f32.mrb[0].mxu0
      %3194 = vmatprep.mubr.bf16.mxu0 0
      %3195 = vmatmul.mubr.bf16.gmra.mrb[0].mxu0 %v3075
      %v3196 = vpop.f32.mrb[0].mxu0
      %v3197 = vadd.f32 0.0, %v3196
      %v3198 = vpop.f32.mrb[0].mxu0
      %v3199 = vpop.f32.mrb[0].mxu0
      %v3200 = vadd.f32 0.0, %v3199
      %v3201 = vpop.f32.mrb[0].mxu0
      %3202 = vmatprep.mubr.bf16.mxu0 0
      %3203 = vmatmul.mubr.bf16.gmra.mrb[0].mxu0 %v3076
      %v3204 = vpop.f32.mrb[0].mxu0
      %v3205 = vadd.f32 0.0, %v3204
      %v3206 = vpop.f32.mrb[0].mxu0
      %v3207 = vpop.f32.mrb[0].mxu0
      %v3208 = vadd.f32 0.0, %v3207
      %v3209 = vpop.f32.mrb[0].mxu0
      %3210 = vmatprep.mubr.bf16.mxu0 0
      %3211 = vmatmul.mubr.bf16.gmra.mrb[0].mxu0 %v3077
      %v3212 = vpop.f32.mrb[0].mxu0
      %v3213 = vadd.f32 0.0, %v3212
      %v3214 = vpop.f32.mrb[0].mxu0
      %v3215 = vpop.f32.mrb[0].mxu0
      %v3216 = vadd.f32 0.0, %v3215
      %v3217 = vpop.f32.mrb[0].mxu0
      %3218 = vmatprep.mubr.bf16.mxu0 0
      %3219 = vmatmul.mubr.bf16.gmra.mrb[0].mxu0 %v3078
      %v3220 = vpop.f32.mrb[0].mxu0
      %v3221 = vadd.f32 0.0, %v3220
      %v3222 = vpop.f32.mrb[0].mxu0
      %v3223 = vpop.f32.mrb[0].mxu0
      %v3224 = vadd.f32 0.0, %v3223
      %v3225 = vpop.f32.mrb[0].mxu0
      %3226 = vmatprep.mubr.bf16.mxu0 0
      %3227 = vmatmul.mubr.bf16.gmra.mrb[0].mxu0 %v3079
      %v3228 = vpop.f32.mrb[0].mxu0
      %v3229 = vadd.f32 0.0, %v3228
      %v3230 = vpop.f32.mrb[0].mxu0
      %v3231 = vpop.f32.mrb[0].mxu0
      %v3232 = vadd.f32 0.0, %v3231
      %v3233 = vpop.f32.mrb[0].mxu0
      %3234 = vmatprep.mubr.bf16.mxu0 0
      %3235 = vmatmul.mubr.bf16.gmra.mrb[0].mxu0 %v3080
      %v3236 = vpop.f32.mrb[0].mxu0
      %v3237 = vadd.f32 0.0, %v3236
      %v3238 = vpop.f32.mrb[0].mxu0
      %v3239 = vpop.f32.mrb[0].mxu0
      %v3240 = vadd.f32 0.0, %v3239
      %v3241 = vpop.f32.mrb[0].mxu0
      %3242 = vmatprep.mubr.bf16.mxu0 0
      %3243 = vmatmul.mubr.bf16.gmra.mrb[0].mxu0 %v3081
      %v3244 = vpop.f32.mrb[0].mxu0
      %v3245 = vadd.f32 0.0, %v3244
      %v3246 = vpop.f32.mrb[0].mxu0
      %v3247 = vpop.f32.mrb[0].mxu0
      %v3248 = vadd.f32 0.0, %v3247
      %v3249 = vpop.f32.mrb[0].mxu0
      %3250 = vmatprep.mubr.bf16.mxu0 0
      %3251 = vmatmul.mubr.bf16.gmra.mrb[0].mxu0 %v3082
      %v3252 = vpop.f32.mrb[0].mxu0
      %v3253 = vadd.f32 0.0, %v3252
      %v3254 = vpop.f32.mrb[0].mxu0
      %v3255 = vpop.f32.mrb[0].mxu0
      %v3256 = vadd.f32 0.0, %v3255
      %v3257 = vpop.f32.mrb[0].mxu0
      %3258 = vmatprep.mubr.bf16.mxu0 0
      %3259 = vmatmul.mubr.bf16.gmra.mrb[0].mxu0 %v3083
      %v3260 = vpop.f32.mrb[0].mxu0
      %v3261 = vadd.f32 0.0, %v3260
      %v3262 = vpop.f32.mrb[0].mxu0
      %v3263 = vpop.f32.mrb[0].mxu0
      %v3264 = vadd.f32 0.0, %v3263
      %v3265 = vpop.f32.mrb[0].mxu0
      %3266 = vmatprep.mubr.bf16.mxu0 0
      %3267 = vmatmul.mubr.bf16.gmra.mrb[0].mxu0 %v3084
      %v3268 = vpop.f32.mrb[0].mxu0
      %v3269 = vadd.f32 0.0, %v3268
      %v3270 = vpop.f32.mrb[0].mxu0
      %v3271 = vpop.f32.mrb[0].mxu0
      %v3272 = vadd.f32 0.0, %v3271
      %v3273 = vpop.f32.mrb[0].mxu0
      %3274 = vmatprep.mubr.bf16.mxu0 0
      %3275 = vmatmul.mubr.bf16.gmra.mrb[0].mxu0 %v3085
      %v3276 = vpop.f32.mrb[0].mxu0
      %v3277 = vadd.f32 0.0, %v3276
      %v3278 = vpop.f32.mrb[0].mxu0
      %v3279 = vpop.f32.mrb[0].mxu0
      %v3280 = vadd.f32 0.0, %v3279
      %v3281 = vpop.f32.mrb[0].mxu0
      %3282 = vmatprep.mubr.bf16.mxu0 0
      %3283 = vmatmul.mubr.bf16.gmra.mrb[0].mxu0 %v3086
      %v3284 = vpop.f32.mrb[0].mxu0
      %v3285 = vadd.f32 0.0, %v3284
      %v3286 = vpop.f32.mrb[0].mxu0
      %v3287 = vpop.f32.mrb[0].mxu0
      %v3288 = vadd.f32 0.0, %v3287
      %v3289 = vpop.f32.mrb[0].mxu0
      %3290 = vmatprep.mubr.bf16.mxu0 0
      %3291 = vmatmul.mubr.bf16.gmra.mrb[0].mxu0 %v3087
      %v3292 = vpop.f32.mrb[0].mxu0
      %v3293 = vadd.f32 0.0, %v3292
      %v3294 = vpop.f32.mrb[0].mxu0
      %v3295 = vpop.f32.mrb[0].mxu0
      %v3296 = vadd.f32 0.0, %v3295
      %v3297 = vpop.f32.mrb[0].mxu0
      %3298 = vmatprep.mubr.bf16.mxu0 0
      %3299 = vmatmul.mubr.bf16.gmra.mrb[0].mxu0 %v3088
      %v3300 = vpop.f32.mrb[0].mxu0
      %v3301 = vadd.f32 0.0, %v3300
      %v3302 = vpop.f32.mrb[0].mxu0
      %v3303 = vpop.f32.mrb[0].mxu0
      %v3304 = vadd.f32 0.0, %v3303
      %v3305 = vpop.f32.mrb[0].mxu0
      %3306 = vmatprep.mubr.bf16.mxu0 0
      %3307 = vmatmul.mubr.bf16.gmra.mrb[0].mxu0 %v3089
      %v3308 = vpop.f32.mrb[0].mxu0
      %v3309 = vadd.f32 0.0, %v3308
      %v3310 = vpop.f32.mrb[0].mxu0
      %v3311 = vpop.f32.mrb[0].mxu0
      %v3312 = vadd.f32 0.0, %v3311
      %v3313 = vpop.f32.mrb[0].mxu0
      %3314 = vdwg.mxu0
      %v3315 = vadd.f32 %v2818, %v3189
      %v3316 = vadd.f32 %v2819, %v3192
      %v3317 = vadd.f32 %v2820, %v3197
      %v3318 = vadd.f32 %v2821, %v3200
      %v3319 = vadd.f32 %v2822, %v3205
      %v3320 = vadd.f32 %v2823, %v3208
      %v3321 = vadd.f32 %v2824, %v3213
      %v3322 = vadd.f32 %v2825, %v3216
      %v3323 = vadd.f32 %v2826, %v3221
      %v3324 = vadd.f32 %v2827, %v3224
      %v3325 = vadd.f32 %v2828, %v3229
      %v3326 = vadd.f32 %v2829, %v3232
      %v3327 = vadd.f32 %v2830, %v3237
      %v3328 = vadd.f32 %v2831, %v3240
      %v3329 = vadd.f32 %v2832, %v3245
      %v3330 = vadd.f32 %v2833, %v3248
      %v3331 = vadd.f32 %v2834, %v3253
      %v3332 = vadd.f32 %v2835, %v3256
      %v3333 = vadd.f32 %v2836, %v3261
      %v3334 = vadd.f32 %v2837, %v3264
      %v3335 = vadd.f32 %v2838, %v3269
      %v3336 = vadd.f32 %v2839, %v3272
      %v3337 = vadd.f32 %v2840, %v3277
      %v3338 = vadd.f32 %v2841, %v3280
      %v3339 = vadd.f32 %v2842, %v3285
      %v3340 = vadd.f32 %v2843, %v3288
      %v3341 = vadd.f32 %v2844, %v3293
      %v3342 = vadd.f32 %v2845, %v3296
      %v3343 = vadd.f32 %v2846, %v3301
      %v3344 = vadd.f32 %v2847, %v3304
      %v3345 = vadd.f32 %v2848, %v3309
      %v3346 = vadd.f32 %v2849, %v3312
      %s3347 = scalar_lea.vmem %s168, 24
      %v3348 = vld [vmem:[%s3347] sm:$0xf]
      %v3349 = vld [vmem:[%s3347 + $0x4] sm:$0xf]
      %v3350 = vld [vmem:[%s3347 + $0xc] sm:$0xf]
      %v3351 = vld [vmem:[%s3347 + $0x10] sm:$0xf]
      %v3352 = vld [vmem:[%s3347 + $0x18] sm:$0xf]
      %v3353 = vld [vmem:[%s3347 + $0x1c] sm:$0xf]
      %v3354 = vld [vmem:[%s3347 + $0x24] sm:$0xf]
      %v3355 = vld [vmem:[%s3347 + $0x28] sm:$0xf]
      %v3356 = vld [vmem:[%s3347 + $0x30] sm:$0xf]
      %v3357 = vld [vmem:[%s3347 + $0x34] sm:$0xf]
      %v3358 = vld [vmem:[%s3347 + $0x3c] sm:$0xf]
      %v3359 = vld [vmem:[%s3347 + $0x40] sm:$0xf]
      %v3360 = vld [vmem:[%s3347 + $0x48] sm:$0xf]
      %v3361 = vld [vmem:[%s3347 + $0x4c] sm:$0xf]
      %v3362 = vld [vmem:[%s3347 + $0x54] sm:$0xf]
      %v3363 = vld [vmem:[%s3347 + $0x58] sm:$0xf]
      %v3364 = vld [vmem:[%s3347 + $0x60] sm:$0xf]
      %v3365 = vld [vmem:[%s3347 + $0x64] sm:$0xf]
      %v3366 = vld [vmem:[%s3347 + $0x6c] sm:$0xf]
      %v3367 = vld [vmem:[%s3347 + $0x70] sm:$0xf]
      %v3368 = vld [vmem:[%s3347 + $0x78] sm:$0xf]
      %v3369 = vld [vmem:[%s3347 + $0x7c] sm:$0xf]
      %v3370 = vld [vmem:[%s3347 + $0x84] sm:$0xf]
      %v3371 = vld [vmem:[%s3347 + $0x88] sm:$0xf]
      %v3372 = vld [vmem:[%s3347 + $0x90] sm:$0xf]
      %v3373 = vld [vmem:[%s3347 + $0x94] sm:$0xf]
      %v3374 = vld [vmem:[%s3347 + $0x9c] sm:$0xf]
      %v3375 = vld [vmem:[%s3347 + $0xa0] sm:$0xf]
      %v3376 = vld [vmem:[%s3347 + $0xa8] sm:$0xf]
      %v3377 = vld [vmem:[%s3347 + $0xac] sm:$0xf]
      %v3378 = vld [vmem:[%s3347 + $0xb4] sm:$0xf]
      %v3379 = vld [vmem:[%s3347 + $0xb8] sm:$0xf]
      %v3380 = vld [vmem:[%s172 + $0x180] sm:$0xf]
      %v3381 = vld [vmem:[%s172 + $0x184] sm:$0xf]
      %v3382 = vld [vmem:[%s172 + $0x188] sm:$0xf]
      %v3383 = vld [vmem:[%s172 + $0x18c] sm:$0xf]
      %v3384 = vld [vmem:[%s172 + $0x190] sm:$0xf]
      %v3385 = vld [vmem:[%s172 + $0x194] sm:$0xf]
      %v3386 = vld [vmem:[%s172 + $0x198] sm:$0xf]
      %v3387 = vld [vmem:[%s172 + $0x19c] sm:$0xf]
      %v3388 = vld [vmem:[%s172 + $0x1a0] sm:$0xf]
      %v3389 = vld [vmem:[%s172 + $0x1a4] sm:$0xf]
      %v3390 = vld [vmem:[%s172 + $0x1a8] sm:$0xf]
      %v3391 = vld [vmem:[%s172 + $0x1ac] sm:$0xf]
      %v3392 = vld [vmem:[%s172 + $0x1b0] sm:$0xf]
      %v3393 = vld [vmem:[%s172 + $0x1b4] sm:$0xf]
      %v3394 = vld [vmem:[%s172 + $0x1b8] sm:$0xf]
      %v3395 = vld [vmem:[%s172 + $0x1bc] sm:$0xf]
      %v3428 = vunpack.c.l.b16 %v3348
      %v3429 = vunpack.c.l.b16 %v3349
      %v3430 = vunpack.c.l.b16 %v3350
      %v3431 = vunpack.c.l.b16 %v3351
      %v3432 = vunpack.c.l.b16 %v3352
      %v3433 = vunpack.c.l.b16 %v3353
      %v3434 = vunpack.c.l.b16 %v3354
      %v3435 = vunpack.c.l.b16 %v3355
      %v3436 = vunpack.c.l.b16 %v3356
      %v3437 = vunpack.c.l.b16 %v3357
      %v3438 = vunpack.c.l.b16 %v3358
      %v3439 = vunpack.c.l.b16 %v3359
      %v3440 = vunpack.c.l.b16 %v3360
      %v3441 = vunpack.c.l.b16 %v3361
      %v3442 = vunpack.c.l.b16 %v3362
      %v3443 = vunpack.c.l.b16 %v3363
      %v3444 = vunpack.c.l.b16 %v3364
      %v3445 = vunpack.c.l.b16 %v3365
      %v3446 = vunpack.c.l.b16 %v3366
      %v3447 = vunpack.c.l.b16 %v3367
      %v3448 = vunpack.c.l.b16 %v3368
      %v3449 = vunpack.c.l.b16 %v3369
      %v3450 = vunpack.c.l.b16 %v3370
      %v3451 = vunpack.c.l.b16 %v3371
      %v3452 = vunpack.c.l.b16 %v3372
      %v3453 = vunpack.c.l.b16 %v3373
      %v3454 = vunpack.c.l.b16 %v3374
      %v3455 = vunpack.c.l.b16 %v3375
      %v3456 = vunpack.c.l.b16 %v3376
      %v3457 = vunpack.c.l.b16 %v3377
      %v3458 = vunpack.c.l.b16 %v3378
      %v3459 = vunpack.c.l.b16 %v3379
      %v3460 = vpack.c.b16 %v3429, %v3428
      %v3461 = vpack.c.b16 %v3431, %v3430
      %v3462 = vpack.c.b16 %v3433, %v3432
      %v3463 = vpack.c.b16 %v3435, %v3434
      %v3464 = vpack.c.b16 %v3437, %v3436
      %v3465 = vpack.c.b16 %v3439, %v3438
      %v3466 = vpack.c.b16 %v3441, %v3440
      %v3467 = vpack.c.b16 %v3443, %v3442
      %v3468 = vpack.c.b16 %v3445, %v3444
      %v3469 = vpack.c.b16 %v3447, %v3446
      %v3470 = vpack.c.b16 %v3449, %v3448
      %v3471 = vpack.c.b16 %v3451, %v3450
      %v3472 = vpack.c.b16 %v3453, %v3452
      %v3473 = vpack.c.b16 %v3455, %v3454
      %v3474 = vpack.c.b16 %v3457, %v3456
      %v3475 = vpack.c.b16 %v3459, %v3458
      %v3508 = vunpack.c.l.b16 %v3380
      %v3509 = vunpack.c.l.b16 %v3381
      %v3510 = vunpack.c.l.b16 %v3382
      %v3511 = vunpack.c.l.b16 %v3383
      %v3512 = vunpack.c.l.b16 %v3384
      %v3513 = vunpack.c.l.b16 %v3385
      %v3514 = vunpack.c.l.b16 %v3386
      %v3515 = vunpack.c.l.b16 %v3387
      %v3516 = vunpack.c.l.b16 %v3388
      %v3517 = vunpack.c.l.b16 %v3389
      %v3518 = vunpack.c.l.b16 %v3390
      %v3519 = vunpack.c.l.b16 %v3391
      %v3520 = vunpack.c.l.b16 %v3392
      %v3521 = vunpack.c.l.b16 %v3393
      %v3522 = vunpack.c.l.b16 %v3394
      %v3523 = vunpack.c.l.b16 %v3395
      %v3524 = vpack.c.b16 %v3509, %v3508
      %v3525 = vpack.c.b16 %v3511, %v3510
      %v3526 = vpack.c.b16 %v3513, %v3512
      %v3527 = vpack.c.b16 %v3515, %v3514
      %v3528 = vpack.c.b16 %v3517, %v3516
      %v3529 = vpack.c.b16 %v3519, %v3518
      %v3530 = vpack.c.b16 %v3521, %v3520
      %v3531 = vpack.c.b16 %v3523, %v3522
      %3540 = vmatprep.subr.bf16.mxu0 0
      %3541 = vmatpush1.bf16.msra.mxu0 %v3524
      %3542 = vmatprep.subr.bf16.mxu0 0
      %3543 = vmatpush1.bf16.msra.mxu0 %v3525
      %3544 = vmatprep.subr.bf16.mxu0 0
      %3545 = vmatpush1.bf16.msra.mxu0 %v3526
      %3546 = vmatprep.subr.bf16.mxu0 0
      %3547 = vmatpush1.bf16.msra.mxu0 %v3527
      %3548 = vmatprep.subr.bf16.mxu0 0
      %3549 = vmatpush1.bf16.msra.mxu0 %v3528
      %3550 = vmatprep.subr.bf16.mxu0 0
      %3551 = vmatpush1.bf16.msra.mxu0 %v3529
      %3552 = vmatprep.subr.bf16.mxu0 0
      %3553 = vmatpush1.bf16.msra.mxu0 %v3530
      %3554 = vmatprep.subr.bf16.mxu0 0
      %3555 = vmatpush1.bf16.msra.mxu0 %v3531
      %3556 = vmatprep.subr.bf16.mxu0 0
      %3557 = vmatpush1.bf16.msra.mxu0 0
      %3558 = vmatprep.subr.bf16.mxu0 0
      %3559 = vmatpush1.bf16.msra.mxu0 0
      %3560 = vmatprep.subr.bf16.mxu0 0
      %3561 = vmatpush1.bf16.msra.mxu0 0
      %3562 = vmatprep.subr.bf16.mxu0 0
      %3563 = vmatpush1.bf16.msra.mxu0 0
      %3564 = vmatprep.subr.bf16.mxu0 0
      %3565 = vmatpush1.bf16.msra.mxu0 0
      %3566 = vmatprep.subr.bf16.mxu0 0
      %3567 = vmatpush1.bf16.msra.mxu0 0
      %3568 = vmatprep.subr.bf16.mxu0 0
      %3569 = vmatpush1.bf16.msra.mxu0 0
      %3570 = vmatprep.subr.bf16.mxu0 0
      %3571 = vmatpush1.bf16.msra.mxu0 0
      %3572 = vmatprep.mubr.bf16.mxu0 0
      %3573 = vmatmul.mubr.bf16.gmra.mrb[0].mxu0 %v3460
      %v3574 = vpop.f32.mrb[0].mxu0
      %v3575 = vadd.f32 0.0, %v3574
      %v3576 = vpop.f32.mrb[0].mxu0
      %v3577 = vpop.f32.mrb[0].mxu0
      %v3578 = vadd.f32 0.0, %v3577
      %v3579 = vpop.f32.mrb[0].mxu0
      %3580 = vmatprep.mubr.bf16.mxu0 0
      %3581 = vmatmul.mubr.bf16.gmra.mrb[0].mxu0 %v3461
      %v3582 = vpop.f32.mrb[0].mxu0
      %v3583 = vadd.f32 0.0, %v3582
      %v3584 = vpop.f32.mrb[0].mxu0
      %v3585 = vpop.f32.mrb[0].mxu0
      %v3586 = vadd.f32 0.0, %v3585
      %v3587 = vpop.f32.mrb[0].mxu0
      %3588 = vmatprep.mubr.bf16.mxu0 0
      %3589 = vmatmul.mubr.bf16.gmra.mrb[0].mxu0 %v3462
      %v3590 = vpop.f32.mrb[0].mxu0
      %v3591 = vadd.f32 0.0, %v3590
      %v3592 = vpop.f32.mrb[0].mxu0
      %v3593 = vpop.f32.mrb[0].mxu0
      %v3594 = vadd.f32 0.0, %v3593
      %v3595 = vpop.f32.mrb[0].mxu0
      %3596 = vmatprep.mubr.bf16.mxu0 0
      %3597 = vmatmul.mubr.bf16.gmra.mrb[0].mxu0 %v3463
      %v3598 = vpop.f32.mrb[0].mxu0
      %v3599 = vadd.f32 0.0, %v3598
      %v3600 = vpop.f32.mrb[0].mxu0
      %v3601 = vpop.f32.mrb[0].mxu0
      %v3602 = vadd.f32 0.0, %v3601
      %v3603 = vpop.f32.mrb[0].mxu0
      %3604 = vmatprep.mubr.bf16.mxu0 0
      %3605 = vmatmul.mubr.bf16.gmra.mrb[0].mxu0 %v3464
      %v3606 = vpop.f32.mrb[0].mxu0
      %v3607 = vadd.f32 0.0, %v3606
      %v3608 = vpop.f32.mrb[0].mxu0
      %v3609 = vpop.f32.mrb[0].mxu0
      %v3610 = vadd.f32 0.0, %v3609
      %v3611 = vpop.f32.mrb[0].mxu0
      %3612 = vmatprep.mubr.bf16.mxu0 0
      %3613 = vmatmul.mubr.bf16.gmra.mrb[0].mxu0 %v3465
      %v3614 = vpop.f32.mrb[0].mxu0
      %v3615 = vadd.f32 0.0, %v3614
      %v3616 = vpop.f32.mrb[0].mxu0
      %v3617 = vpop.f32.mrb[0].mxu0
      %v3618 = vadd.f32 0.0, %v3617
      %v3619 = vpop.f32.mrb[0].mxu0
      %3620 = vmatprep.mubr.bf16.mxu0 0
      %3621 = vmatmul.mubr.bf16.gmra.mrb[0].mxu0 %v3466
      %v3622 = vpop.f32.mrb[0].mxu0
      %v3623 = vadd.f32 0.0, %v3622
      %v3624 = vpop.f32.mrb[0].mxu0
      %v3625 = vpop.f32.mrb[0].mxu0
      %v3626 = vadd.f32 0.0, %v3625
      %v3627 = vpop.f32.mrb[0].mxu0
      %3628 = vmatprep.mubr.bf16.mxu0 0
      %3629 = vmatmul.mubr.bf16.gmra.mrb[0].mxu0 %v3467
      %v3630 = vpop.f32.mrb[0].mxu0
      %v3631 = vadd.f32 0.0, %v3630
      %v3632 = vpop.f32.mrb[0].mxu0
      %v3633 = vpop.f32.mrb[0].mxu0
      %v3634 = vadd.f32 0.0, %v3633
      %v3635 = vpop.f32.mrb[0].mxu0
      %3636 = vmatprep.mubr.bf16.mxu0 0
      %3637 = vmatmul.mubr.bf16.gmra.mrb[0].mxu0 %v3468
      %v3638 = vpop.f32.mrb[0].mxu0
      %v3639 = vadd.f32 0.0, %v3638
      %v3640 = vpop.f32.mrb[0].mxu0
      %v3641 = vpop.f32.mrb[0].mxu0
      %v3642 = vadd.f32 0.0, %v3641
      %v3643 = vpop.f32.mrb[0].mxu0
      %3644 = vmatprep.mubr.bf16.mxu0 0
      %3645 = vmatmul.mubr.bf16.gmra.mrb[0].mxu0 %v3469
      %v3646 = vpop.f32.mrb[0].mxu0
      %v3647 = vadd.f32 0.0, %v3646
      %v3648 = vpop.f32.mrb[0].mxu0
      %v3649 = vpop.f32.mrb[0].mxu0
      %v3650 = vadd.f32 0.0, %v3649
      %v3651 = vpop.f32.mrb[0].mxu0
      %3652 = vmatprep.mubr.bf16.mxu0 0
      %3653 = vmatmul.mubr.bf16.gmra.mrb[0].mxu0 %v3470
      %v3654 = vpop.f32.mrb[0].mxu0
      %v3655 = vadd.f32 0.0, %v3654
      %v3656 = vpop.f32.mrb[0].mxu0
      %v3657 = vpop.f32.mrb[0].mxu0
      %v3658 = vadd.f32 0.0, %v3657
      %v3659 = vpop.f32.mrb[0].mxu0
      %3660 = vmatprep.mubr.bf16.mxu0 0
      %3661 = vmatmul.mubr.bf16.gmra.mrb[0].mxu0 %v3471
      %v3662 = vpop.f32.mrb[0].mxu0
      %v3663 = vadd.f32 0.0, %v3662
      %v3664 = vpop.f32.mrb[0].mxu0
      %v3665 = vpop.f32.mrb[0].mxu0
      %v3666 = vadd.f32 0.0, %v3665
      %v3667 = vpop.f32.mrb[0].mxu0
      %3668 = vmatprep.mubr.bf16.mxu0 0
      %3669 = vmatmul.mubr.bf16.gmra.mrb[0].mxu0 %v3472
      %v3670 = vpop.f32.mrb[0].mxu0
      %v3671 = vadd.f32 0.0, %v3670
      %v3672 = vpop.f32.mrb[0].mxu0
      %v3673 = vpop.f32.mrb[0].mxu0
      %v3674 = vadd.f32 0.0, %v3673
      %v3675 = vpop.f32.mrb[0].mxu0
      %3676 = vmatprep.mubr.bf16.mxu0 0
      %3677 = vmatmul.mubr.bf16.gmra.mrb[0].mxu0 %v3473
      %v3678 = vpop.f32.mrb[0].mxu0
      %v3679 = vadd.f32 0.0, %v3678
      %v3680 = vpop.f32.mrb[0].mxu0
      %v3681 = vpop.f32.mrb[0].mxu0
      %v3682 = vadd.f32 0.0, %v3681
      %v3683 = vpop.f32.mrb[0].mxu0
      %3684 = vmatprep.mubr.bf16.mxu0 0
      %3685 = vmatmul.mubr.bf16.gmra.mrb[0].mxu0 %v3474
      %v3686 = vpop.f32.mrb[0].mxu0
      %v3687 = vadd.f32 0.0, %v3686
      %v3688 = vpop.f32.mrb[0].mxu0
      %v3689 = vpop.f32.mrb[0].mxu0
      %v3690 = vadd.f32 0.0, %v3689
      %v3691 = vpop.f32.mrb[0].mxu0
      %3692 = vmatprep.mubr.bf16.mxu0 0
      %3693 = vmatmul.mubr.bf16.gmra.mrb[0].mxu0 %v3475
      %v3694 = vpop.f32.mrb[0].mxu0
      %v3695 = vadd.f32 0.0, %v3694
      %v3696 = vpop.f32.mrb[0].mxu0
      %v3697 = vpop.f32.mrb[0].mxu0
      %v3698 = vadd.f32 0.0, %v3697
      %v3699 = vpop.f32.mrb[0].mxu0
      %3700 = vdwg.mxu0
      %v3701 = vadd.f32 %v3315, %v3575
      %v3702 = vadd.f32 %v3316, %v3578
      %v3703 = vadd.f32 %v3317, %v3583
      %v3704 = vadd.f32 %v3318, %v3586
      %v3705 = vadd.f32 %v3319, %v3591
      %v3706 = vadd.f32 %v3320, %v3594
      %v3707 = vadd.f32 %v3321, %v3599
      %v3708 = vadd.f32 %v3322, %v3602
      %v3709 = vadd.f32 %v3323, %v3607
      %v3710 = vadd.f32 %v3324, %v3610
      %v3711 = vadd.f32 %v3325, %v3615
      %v3712 = vadd.f32 %v3326, %v3618
      %v3713 = vadd.f32 %v3327, %v3623
      %v3714 = vadd.f32 %v3328, %v3626
      %v3715 = vadd.f32 %v3329, %v3631
      %v3716 = vadd.f32 %v3330, %v3634
      %v3717 = vadd.f32 %v3331, %v3639
      %v3718 = vadd.f32 %v3332, %v3642
      %v3719 = vadd.f32 %v3333, %v3647
      %v3720 = vadd.f32 %v3334, %v3650
      %v3721 = vadd.f32 %v3335, %v3655
      %v3722 = vadd.f32 %v3336, %v3658
      %v3723 = vadd.f32 %v3337, %v3663
      %v3724 = vadd.f32 %v3338, %v3666
      %v3725 = vadd.f32 %v3339, %v3671
      %v3726 = vadd.f32 %v3340, %v3674
      %v3727 = vadd.f32 %v3341, %v3679
      %v3728 = vadd.f32 %v3342, %v3682
      %v3729 = vadd.f32 %v3343, %v3687
      %v3730 = vadd.f32 %v3344, %v3690
      %v3731 = vadd.f32 %v3345, %v3695
      %v3732 = vadd.f32 %v3346, %v3698
      %v3733 = vld [vmem:[%s3347] sm:$0xf]
      %v3734 = vld [vmem:[%s3347 + $0x4] sm:$0xf]
      %v3735 = vld [vmem:[%s3347 + $0x8] sm:$0x1]
      %v3736 = vld [vmem:[%s3347 + $0xc] sm:$0xf]
      %v3737 = vld [vmem:[%s3347 + $0x10] sm:$0xf]
      %v3738 = vld [vmem:[%s3347 + $0x14] sm:$0x1]
      %v3739 = vld [vmem:[%s3347 + $0x18] sm:$0xf]
      %v3740 = vld [vmem:[%s3347 + $0x1c] sm:$0xf]
      %v3741 = vld [vmem:[%s3347 + $0x20] sm:$0x1]
      %v3742 = vld [vmem:[%s3347 + $0x24] sm:$0xf]
      %v3743 = vld [vmem:[%s3347 + $0x28] sm:$0xf]
      %v3744 = vld [vmem:[%s3347 + $0x2c] sm:$0x1]
      %v3745 = vld [vmem:[%s3347 + $0x30] sm:$0xf]
      %v3746 = vld [vmem:[%s3347 + $0x34] sm:$0xf]
      %v3747 = vld [vmem:[%s3347 + $0x38] sm:$0x1]
      %v3748 = vld [vmem:[%s3347 + $0x3c] sm:$0xf]
      %v3749 = vld [vmem:[%s3347 + $0x40] sm:$0xf]
      %v3750 = vld [vmem:[%s3347 + $0x44] sm:$0x1]
      %v3751 = vld [vmem:[%s3347 + $0x48] sm:$0xf]
      %v3752 = vld [vmem:[%s3347 + $0x4c] sm:$0xf]
      %v3753 = vld [vmem:[%s3347 + $0x50] sm:$0x1]
      %v3754 = vld [vmem:[%s3347 + $0x54] sm:$0xf]
      %v3755 = vld [vmem:[%s3347 + $0x58] sm:$0xf]
      %v3756 = vld [vmem:[%s3347 + $0x5c] sm:$0x1]
      %v3757 = vld [vmem:[%s3347 + $0x60] sm:$0xf]
      %v3758 = vld [vmem:[%s3347 + $0x64] sm:$0xf]
      %v3759 = vld [vmem:[%s3347 + $0x68] sm:$0x1]
      %v3760 = vld [vmem:[%s3347 + $0x6c] sm:$0xf]
      %v3761 = vld [vmem:[%s3347 + $0x70] sm:$0xf]
      %v3762 = vld [vmem:[%s3347 + $0x74] sm:$0x1]
      %v3763 = vld [vmem:[%s3347 + $0x78] sm:$0xf]
      %v3764 = vld [vmem:[%s3347 + $0x7c] sm:$0xf]
      %v3765 = vld [vmem:[%s3347 + $0x80] sm:$0x1]
      %v3766 = vld [vmem:[%s3347 + $0x84] sm:$0xf]
      %v3767 = vld [vmem:[%s3347 + $0x88] sm:$0xf]
      %v3768 = vld [vmem:[%s3347 + $0x8c] sm:$0x1]
      %v3769 = vld [vmem:[%s3347 + $0x90] sm:$0xf]
      %v3770 = vld [vmem:[%s3347 + $0x94] sm:$0xf]
      %v3771 = vld [vmem:[%s3347 + $0x98] sm:$0x1]
      %v3772 = vld [vmem:[%s3347 + $0x9c] sm:$0xf]
      %v3773 = vld [vmem:[%s3347 + $0xa0] sm:$0xf]
      %v3774 = vld [vmem:[%s3347 + $0xa4] sm:$0x1]
      %v3775 = vld [vmem:[%s3347 + $0xa8] sm:$0xf]
      %v3776 = vld [vmem:[%s3347 + $0xac] sm:$0xf]
      %v3777 = vld [vmem:[%s3347 + $0xb0] sm:$0x1]
      %v3778 = vld [vmem:[%s3347 + $0xb4] sm:$0xf]
      %v3779 = vld [vmem:[%s3347 + $0xb8] sm:$0xf]
      %v3780 = vld [vmem:[%s3347 + $0xbc] sm:$0x1]
      %v3782 = vshrl.u32 %v3733, 16
      %v3784 = vrot.slane %v3782, 4
      %v3785 = vshll.u32 %v3733, 16
      %v3787 = vrot.slane %v3785, 5
      %v3788 = vor.u32 %v3784, %v3787
      %v3789 = vrot.slane %v3788, 4
      %v3791 = vshll.u32 %v3734, 16
      %v3793 = vrot.slane %v3791, 5
      %v3794 = vsel %vm248, %v3789, %v3793
      %v3795 = vshrl.u32 %v3734, 16
      %v3797 = vrot.slane %v3795, 4
      %v3798 = vor.u32 %v3797, %v3793
      %v3799 = vrot.slane %v3798, 4
      %v3801 = vshll.u32 %v3735, 16
      %v3803 = vrot.slane %v3801, 5
      %v3804 = vsel %vm248, %v3799, %v3803
      %v3806 = vshrl.u32 %v3736, 16
      %v3808 = vrot.slane %v3806, 4
      %v3809 = vshll.u32 %v3736, 16
      %v3811 = vrot.slane %v3809, 5
      %v3812 = vor.u32 %v3808, %v3811
      %v3813 = vrot.slane %v3812, 4
      %v3815 = vshll.u32 %v3737, 16
      %v3817 = vrot.slane %v3815, 5
      %v3818 = vsel %vm248, %v3813, %v3817
      %v3819 = vshrl.u32 %v3737, 16
      %v3821 = vrot.slane %v3819, 4
      %v3822 = vor.u32 %v3821, %v3817
      %v3823 = vrot.slane %v3822, 4
      %v3825 = vshll.u32 %v3738, 16
      %v3827 = vrot.slane %v3825, 5
      %v3828 = vsel %vm248, %v3823, %v3827
      %v3830 = vshrl.u32 %v3739, 16
      %v3832 = vrot.slane %v3830, 4
      %v3833 = vshll.u32 %v3739, 16
      %v3835 = vrot.slane %v3833, 5
      %v3836 = vor.u32 %v3832, %v3835
      %v3837 = vrot.slane %v3836, 4
      %v3839 = vshll.u32 %v3740, 16
      %v3841 = vrot.slane %v3839, 5
      %v3842 = vsel %vm248, %v3837, %v3841
      %v3843 = vshrl.u32 %v3740, 16
      %v3845 = vrot.slane %v3843, 4
      %v3846 = vor.u32 %v3845, %v3841
      %v3847 = vrot.slane %v3846, 4
      %v3849 = vshll.u32 %v3741, 16
      %v3851 = vrot.slane %v3849, 5
      %v3852 = vsel %vm248, %v3847, %v3851
      %v3854 = vshrl.u32 %v3742, 16
      %v3856 = vrot.slane %v3854, 4
      %v3857 = vshll.u32 %v3742, 16
      %v3859 = vrot.slane %v3857, 5
      %v3860 = vor.u32 %v3856, %v3859
      %v3861 = vrot.slane %v3860, 4
      %v3863 = vshll.u32 %v3743, 16
      %v3865 = vrot.slane %v3863, 5
      %v3866 = vsel %vm248, %v3861, %v3865
      %v3867 = vshrl.u32 %v3743, 16
      %v3869 = vrot.slane %v3867, 4
      %v3870 = vor.u32 %v3869, %v3865
      %v3871 = vrot.slane %v3870, 4
      %v3873 = vshll.u32 %v3744, 16
      %v3875 = vrot.slane %v3873, 5
      %v3876 = vsel %vm248, %v3871, %v3875
      %v3878 = vshrl.u32 %v3745, 16
      %v3880 = vrot.slane %v3878, 4
      %v3881 = vshll.u32 %v3745, 16
      %v3883 = vrot.slane %v3881, 5
      %v3884 = vor.u32 %v3880, %v3883
      %v3885 = vrot.slane %v3884, 4
      %v3887 = vshll.u32 %v3746, 16
      %v3889 = vrot.slane %v3887, 5
      %v3890 = vsel %vm248, %v3885, %v3889
      %v3891 = vshrl.u32 %v3746, 16
      %v3893 = vrot.slane %v3891, 4
      %v3894 = vor.u32 %v3893, %v3889
      %v3895 = vrot.slane %v3894, 4
      %v3897 = vshll.u32 %v3747, 16
      %v3899 = vrot.slane %v3897, 5
      %v3900 = vsel %vm248, %v3895, %v3899
      %v3902 = vshrl.u32 %v3748, 16
      %v3904 = vrot.slane %v3902, 4
      %v3905 = vshll.u32 %v3748, 16
      %v3907 = vrot.slane %v3905, 5
      %v3908 = vor.u32 %v3904, %v3907
      %v3909 = vrot.slane %v3908, 4
      %v3911 = vshll.u32 %v3749, 16
      %v3913 = vrot.slane %v3911, 5
      %v3914 = vsel %vm248, %v3909, %v3913
      %v3915 = vshrl.u32 %v3749, 16
      %v3917 = vrot.slane %v3915, 4
      %v3918 = vor.u32 %v3917, %v3913
      %v3919 = vrot.slane %v3918, 4
      %v3921 = vshll.u32 %v3750, 16
      %v3923 = vrot.slane %v3921, 5
      %v3924 = vsel %vm248, %v3919, %v3923
      %v3926 = vshrl.u32 %v3751, 16
      %v3928 = vrot.slane %v3926, 4
      %v3929 = vshll.u32 %v3751, 16
      %v3931 = vrot.slane %v3929, 5
      %v3932 = vor.u32 %v3928, %v3931
      %v3933 = vrot.slane %v3932, 4
      %v3935 = vshll.u32 %v3752, 16
      %v3937 = vrot.slane %v3935, 5
      %v3938 = vsel %vm248, %v3933, %v3937
      %v3939 = vshrl.u32 %v3752, 16
      %v3941 = vrot.slane %v3939, 4
      %v3942 = vor.u32 %v3941, %v3937
      %v3943 = vrot.slane %v3942, 4
      %v3945 = vshll.u32 %v3753, 16
      %v3947 = vrot.slane %v3945, 5
      %v3948 = vsel %vm248, %v3943, %v3947
      %v3950 = vshrl.u32 %v3754, 16
      %v3952 = vrot.slane %v3950, 4
      %v3953 = vshll.u32 %v3754, 16
      %v3955 = vrot.slane %v3953, 5
      %v3956 = vor.u32 %v3952, %v3955
      %v3957 = vrot.slane %v3956, 4
      %v3959 = vshll.u32 %v3755, 16
      %v3961 = vrot.slane %v3959, 5
      %v3962 = vsel %vm248, %v3957, %v3961
      %v3963 = vshrl.u32 %v3755, 16
      %v3965 = vrot.slane %v3963, 4
      %v3966 = vor.u32 %v3965, %v3961
      %v3967 = vrot.slane %v3966, 4
      %v3969 = vshll.u32 %v3756, 16
      %v3971 = vrot.slane %v3969, 5
      %v3972 = vsel %vm248, %v3967, %v3971
      %v3974 = vshrl.u32 %v3757, 16
      %v3976 = vrot.slane %v3974, 4
      %v3977 = vshll.u32 %v3757, 16
      %v3979 = vrot.slane %v3977, 5
      %v3980 = vor.u32 %v3976, %v3979
      %v3981 = vrot.slane %v3980, 4
      %v3983 = vshll.u32 %v3758, 16
      %v3985 = vrot.slane %v3983, 5
      %v3986 = vsel %vm248, %v3981, %v3985
      %v3987 = vshrl.u32 %v3758, 16
      %v3989 = vrot.slane %v3987, 4
      %v3990 = vor.u32 %v3989, %v3985
      %v3991 = vrot.slane %v3990, 4
      %v3993 = vshll.u32 %v3759, 16
      %v3995 = vrot.slane %v3993, 5
      %v3996 = vsel %vm248, %v3991, %v3995
      %v3998 = vshrl.u32 %v3760, 16
      %v4000 = vrot.slane %v3998, 4
      %v4001 = vshll.u32 %v3760, 16
      %v4003 = vrot.slane %v4001, 5
      %v4004 = vor.u32 %v4000, %v4003
      %v4005 = vrot.slane %v4004, 4
      %v4007 = vshll.u32 %v3761, 16
      %v4009 = vrot.slane %v4007, 5
      %v4010 = vsel %vm248, %v4005, %v4009
      %v4011 = vshrl.u32 %v3761, 16
      %v4013 = vrot.slane %v4011, 4
      %v4014 = vor.u32 %v4013, %v4009
      %v4015 = vrot.slane %v4014, 4
      %v4017 = vshll.u32 %v3762, 16
      %v4019 = vrot.slane %v4017, 5
      %v4020 = vsel %vm248, %v4015, %v4019
      %v4022 = vshrl.u32 %v3763, 16
      %v4024 = vrot.slane %v4022, 4
      %v4025 = vshll.u32 %v3763, 16
      %v4027 = vrot.slane %v4025, 5
      %v4028 = vor.u32 %v4024, %v4027
      %v4029 = vrot.slane %v4028, 4
      %v4031 = vshll.u32 %v3764, 16
      %v4033 = vrot.slane %v4031, 5
      %v4034 = vsel %vm248, %v4029, %v4033
      %v4035 = vshrl.u32 %v3764, 16
      %v4037 = vrot.slane %v4035, 4
      %v4038 = vor.u32 %v4037, %v4033
      %v4039 = vrot.slane %v4038, 4
      %v4041 = vshll.u32 %v3765, 16
      %v4043 = vrot.slane %v4041, 5
      %v4044 = vsel %vm248, %v4039, %v4043
      %v4046 = vshrl.u32 %v3766, 16
      %v4048 = vrot.slane %v4046, 4
      %v4049 = vshll.u32 %v3766, 16
      %v4051 = vrot.slane %v4049, 5
      %v4052 = vor.u32 %v4048, %v4051
      %v4053 = vrot.slane %v4052, 4
      %v4055 = vshll.u32 %v3767, 16
      %v4057 = vrot.slane %v4055, 5
      %v4058 = vsel %vm248, %v4053, %v4057
      %v4059 = vshrl.u32 %v3767, 16
      %v4061 = vrot.slane %v4059, 4
      %v4062 = vor.u32 %v4061, %v4057
      %v4063 = vrot.slane %v4062, 4
      %v4065 = vshll.u32 %v3768, 16
      %v4067 = vrot.slane %v4065, 5
      %v4068 = vsel %vm248, %v4063, %v4067
      %v4070 = vshrl.u32 %v3769, 16
      %v4072 = vrot.slane %v4070, 4
      %v4073 = vshll.u32 %v3769, 16
      %v4075 = vrot.slane %v4073, 5
      %v4076 = vor.u32 %v4072, %v4075
      %v4077 = vrot.slane %v4076, 4
      %v4079 = vshll.u32 %v3770, 16
      %v4081 = vrot.slane %v4079, 5
      %v4082 = vsel %vm248, %v4077, %v4081
      %v4083 = vshrl.u32 %v3770, 16
      %v4085 = vrot.slane %v4083, 4
      %v4086 = vor.u32 %v4085, %v4081
      %v4087 = vrot.slane %v4086, 4
      %v4089 = vshll.u32 %v3771, 16
      %v4091 = vrot.slane %v4089, 5
      %v4092 = vsel %vm248, %v4087, %v4091
      %v4094 = vshrl.u32 %v3772, 16
      %v4096 = vrot.slane %v4094, 4
      %v4097 = vshll.u32 %v3772, 16
      %v4099 = vrot.slane %v4097, 5
      %v4100 = vor.u32 %v4096, %v4099
      %v4101 = vrot.slane %v4100, 4
      %v4103 = vshll.u32 %v3773, 16
      %v4105 = vrot.slane %v4103, 5
      %v4106 = vsel %vm248, %v4101, %v4105
      %v4107 = vshrl.u32 %v3773, 16
      %v4109 = vrot.slane %v4107, 4
      %v4110 = vor.u32 %v4109, %v4105
      %v4111 = vrot.slane %v4110, 4
      %v4113 = vshll.u32 %v3774, 16
      %v4115 = vrot.slane %v4113, 5
      %v4116 = vsel %vm248, %v4111, %v4115
      %v4118 = vshrl.u32 %v3775, 16
      %v4120 = vrot.slane %v4118, 4
      %v4121 = vshll.u32 %v3775, 16
      %v4123 = vrot.slane %v4121, 5
      %v4124 = vor.u32 %v4120, %v4123
      %v4125 = vrot.slane %v4124, 4
      %v4127 = vshll.u32 %v3776, 16
      %v4129 = vrot.slane %v4127, 5
      %v4130 = vsel %vm248, %v4125, %v4129
      %v4131 = vshrl.u32 %v3776, 16
      %v4133 = vrot.slane %v4131, 4
      %v4134 = vor.u32 %v4133, %v4129
      %v4135 = vrot.slane %v4134, 4
      %v4137 = vshll.u32 %v3777, 16
      %v4139 = vrot.slane %v4137, 5
      %v4140 = vsel %vm248, %v4135, %v4139
      %v4142 = vshrl.u32 %v3778, 16
      %v4144 = vrot.slane %v4142, 4
      %v4145 = vshll.u32 %v3778, 16
      %v4147 = vrot.slane %v4145, 5
      %v4148 = vor.u32 %v4144, %v4147
      %v4149 = vrot.slane %v4148, 4
      %v4151 = vshll.u32 %v3779, 16
      %v4153 = vrot.slane %v4151, 5
      %v4154 = vsel %vm248, %v4149, %v4153
      %v4155 = vshrl.u32 %v3779, 16
      %v4157 = vrot.slane %v4155, 4
      %v4158 = vor.u32 %v4157, %v4153
      %v4159 = vrot.slane %v4158, 4
      %v4161 = vshll.u32 %v3780, 16
      %v4163 = vrot.slane %v4161, 5
      %v4164 = vsel %vm248, %v4159, %v4163
      %v4165 = vld [vmem:[%s172 + $0x1c0] sm:$0xf]
      %v4166 = vld [vmem:[%s172 + $0x1c4] sm:$0xf]
      %v4167 = vld [vmem:[%s172 + $0x1c8] sm:$0xf]
      %v4168 = vld [vmem:[%s172 + $0x1cc] sm:$0xf]
      %v4169 = vld [vmem:[%s172 + $0x1d0] sm:$0xf]
      %v4170 = vld [vmem:[%s172 + $0x1d4] sm:$0xf]
      %v4171 = vld [vmem:[%s172 + $0x1d8] sm:$0xf]
      %v4172 = vld [vmem:[%s172 + $0x1dc] sm:$0xf]
      %v4173 = vld [vmem:[%s172 + $0x1e0] sm:$0xf]
      %v4174 = vld [vmem:[%s172 + $0x1e4] sm:$0xf]
      %v4175 = vld [vmem:[%s172 + $0x1e8] sm:$0xf]
      %v4176 = vld [vmem:[%s172 + $0x1ec] sm:$0xf]
      %v4177 = vld [vmem:[%s172 + $0x1f0] sm:$0xf]
      %v4178 = vld [vmem:[%s172 + $0x1f4] sm:$0xf]
      %v4179 = vld [vmem:[%s172 + $0x1f8] sm:$0xf]
      %v4180 = vld [vmem:[%s172 + $0x1fc] sm:$0xf]
      %v4181 = vunpack.c.l.b16 %v3794
      %v4182 = vunpack.c.l.b16 %v3804
      %v4183 = vunpack.c.l.b16 %v3818
      %v4184 = vunpack.c.l.b16 %v3828
      %v4185 = vunpack.c.l.b16 %v3842
      %v4186 = vunpack.c.l.b16 %v3852
      %v4187 = vunpack.c.l.b16 %v3866
      %v4188 = vunpack.c.l.b16 %v3876
      %v4189 = vunpack.c.l.b16 %v3890
      %v4190 = vunpack.c.l.b16 %v3900
      %v4191 = vunpack.c.l.b16 %v3914
      %v4192 = vunpack.c.l.b16 %v3924
      %v4193 = vunpack.c.l.b16 %v3938
      %v4194 = vunpack.c.l.b16 %v3948
      %v4195 = vunpack.c.l.b16 %v3962
      %v4196 = vunpack.c.l.b16 %v3972
      %v4197 = vunpack.c.l.b16 %v3986
      %v4198 = vunpack.c.l.b16 %v3996
      %v4199 = vunpack.c.l.b16 %v4010
      %v4200 = vunpack.c.l.b16 %v4020
      %v4201 = vunpack.c.l.b16 %v4034
      %v4202 = vunpack.c.l.b16 %v4044
      %v4203 = vunpack.c.l.b16 %v4058
      %v4204 = vunpack.c.l.b16 %v4068
      %v4205 = vunpack.c.l.b16 %v4082
      %v4206 = vunpack.c.l.b16 %v4092
      %v4207 = vunpack.c.l.b16 %v4106
      %v4208 = vunpack.c.l.b16 %v4116
      %v4209 = vunpack.c.l.b16 %v4130
      %v4210 = vunpack.c.l.b16 %v4140
      %v4211 = vunpack.c.l.b16 %v4154
      %v4212 = vunpack.c.l.b16 %v4164
      %v4213 = vpack.c.b16 %v4182, %v4181
      %v4214 = vpack.c.b16 %v4184, %v4183
      %v4215 = vpack.c.b16 %v4186, %v4185
      %v4216 = vpack.c.b16 %v4188, %v4187
      %v4217 = vpack.c.b16 %v4190, %v4189
      %v4218 = vpack.c.b16 %v4192, %v4191
      %v4219 = vpack.c.b16 %v4194, %v4193
      %v4220 = vpack.c.b16 %v4196, %v4195
      %v4221 = vpack.c.b16 %v4198, %v4197
      %v4222 = vpack.c.b16 %v4200, %v4199
      %v4223 = vpack.c.b16 %v4202, %v4201
      %v4224 = vpack.c.b16 %v4204, %v4203
      %v4225 = vpack.c.b16 %v4206, %v4205
      %v4226 = vpack.c.b16 %v4208, %v4207
      %v4227 = vpack.c.b16 %v4210, %v4209
      %v4228 = vpack.c.b16 %v4212, %v4211
      %v4261 = vunpack.c.l.b16 %v4165
      %v4262 = vunpack.c.l.b16 %v4166
      %v4263 = vunpack.c.l.b16 %v4167
      %v4264 = vunpack.c.l.b16 %v4168
      %v4265 = vunpack.c.l.b16 %v4169
      %v4266 = vunpack.c.l.b16 %v4170
      %v4267 = vunpack.c.l.b16 %v4171
      %v4268 = vunpack.c.l.b16 %v4172
      %v4269 = vunpack.c.l.b16 %v4173
      %v4270 = vunpack.c.l.b16 %v4174
      %v4271 = vunpack.c.l.b16 %v4175
      %v4272 = vunpack.c.l.b16 %v4176
      %v4273 = vunpack.c.l.b16 %v4177
      %v4274 = vunpack.c.l.b16 %v4178
      %v4275 = vunpack.c.l.b16 %v4179
      %v4276 = vunpack.c.l.b16 %v4180
      %v4277 = vpack.c.b16 %v4262, %v4261
      %v4278 = vpack.c.b16 %v4264, %v4263
      %v4279 = vpack.c.b16 %v4266, %v4265
      %v4280 = vpack.c.b16 %v4268, %v4267
      %v4281 = vpack.c.b16 %v4270, %v4269
      %v4282 = vpack.c.b16 %v4272, %v4271
      %v4283 = vpack.c.b16 %v4274, %v4273
      %v4284 = vpack.c.b16 %v4276, %v4275
      %4293 = vmatprep.subr.bf16.mxu0 0
      %4294 = vmatpush1.bf16.msra.mxu0 %v4277
      %4295 = vmatprep.subr.bf16.mxu0 0
      %4296 = vmatpush1.bf16.msra.mxu0 %v4278
      %4297 = vmatprep.subr.bf16.mxu0 0
      %4298 = vmatpush1.bf16.msra.mxu0 %v4279
      %4299 = vmatprep.subr.bf16.mxu0 0
      %4300 = vmatpush1.bf16.msra.mxu0 %v4280
      %4301 = vmatprep.subr.bf16.mxu0 0
      %4302 = vmatpush1.bf16.msra.mxu0 %v4281
      %4303 = vmatprep.subr.bf16.mxu0 0
      %4304 = vmatpush1.bf16.msra.mxu0 %v4282
      %4305 = vmatprep.subr.bf16.mxu0 0
      %4306 = vmatpush1.bf16.msra.mxu0 %v4283
      %4307 = vmatprep.subr.bf16.mxu0 0
      %4308 = vmatpush1.bf16.msra.mxu0 %v4284
      %4309 = vmatprep.subr.bf16.mxu0 0
      %4310 = vmatpush1.bf16.msra.mxu0 0
      %4311 = vmatprep.subr.bf16.mxu0 0
      %4312 = vmatpush1.bf16.msra.mxu0 0
      %4313 = vmatprep.subr.bf16.mxu0 0
      %4314 = vmatpush1.bf16.msra.mxu0 0
      %4315 = vmatprep.subr.bf16.mxu0 0
      %4316 = vmatpush1.bf16.msra.mxu0 0
      %4317 = vmatprep.subr.bf16.mxu0 0
      %4318 = vmatpush1.bf16.msra.mxu0 0
      %4319 = vmatprep.subr.bf16.mxu0 0
      %4320 = vmatpush1.bf16.msra.mxu0 0
      %4321 = vmatprep.subr.bf16.mxu0 0
      %4322 = vmatpush1.bf16.msra.mxu0 0
      %4323 = vmatprep.subr.bf16.mxu0 0
      %4324 = vmatpush1.bf16.msra.mxu0 0
      %4325 = vmatprep.mubr.bf16.mxu0 0
      %4326 = vmatmul.mubr.bf16.gmra.mrb[0].mxu0 %v4213
      %v4327 = vpop.f32.mrb[0].mxu0
      %v4328 = vadd.f32 0.0, %v4327
      %v4329 = vpop.f32.mrb[0].mxu0
      %v4330 = vpop.f32.mrb[0].mxu0
      %v4331 = vadd.f32 0.0, %v4330
      %v4332 = vpop.f32.mrb[0].mxu0
      %4333 = vmatprep.mubr.bf16.mxu0 0
      %4334 = vmatmul.mubr.bf16.gmra.mrb[0].mxu0 %v4214
      %v4335 = vpop.f32.mrb[0].mxu0
      %v4336 = vadd.f32 0.0, %v4335
      %v4337 = vpop.f32.mrb[0].mxu0
      %v4338 = vpop.f32.mrb[0].mxu0
      %v4339 = vadd.f32 0.0, %v4338
      %v4340 = vpop.f32.mrb[0].mxu0
      %4341 = vmatprep.mubr.bf16.mxu0 0
      %4342 = vmatmul.mubr.bf16.gmra.mrb[0].mxu0 %v4215
      %v4343 = vpop.f32.mrb[0].mxu0
      %v4344 = vadd.f32 0.0, %v4343
      %v4345 = vpop.f32.mrb[0].mxu0
      %v4346 = vpop.f32.mrb[0].mxu0
      %v4347 = vadd.f32 0.0, %v4346
      %v4348 = vpop.f32.mrb[0].mxu0
      %4349 = vmatprep.mubr.bf16.mxu0 0
      %4350 = vmatmul.mubr.bf16.gmra.mrb[0].mxu0 %v4216
      %v4351 = vpop.f32.mrb[0].mxu0
      %v4352 = vadd.f32 0.0, %v4351
      %v4353 = vpop.f32.mrb[0].mxu0
      %v4354 = vpop.f32.mrb[0].mxu0
      %v4355 = vadd.f32 0.0, %v4354
      %v4356 = vpop.f32.mrb[0].mxu0
      %4357 = vmatprep.mubr.bf16.mxu0 0
      %4358 = vmatmul.mubr.bf16.gmra.mrb[0].mxu0 %v4217
      %v4359 = vpop.f32.mrb[0].mxu0
      %v4360 = vadd.f32 0.0, %v4359
      %v4361 = vpop.f32.mrb[0].mxu0
      %v4362 = vpop.f32.mrb[0].mxu0
      %v4363 = vadd.f32 0.0, %v4362
      %v4364 = vpop.f32.mrb[0].mxu0
      %4365 = vmatprep.mubr.bf16.mxu0 0
      %4366 = vmatmul.mubr.bf16.gmra.mrb[0].mxu0 %v4218
      %v4367 = vpop.f32.mrb[0].mxu0
      %v4368 = vadd.f32 0.0, %v4367
      %v4369 = vpop.f32.mrb[0].mxu0
      %v4370 = vpop.f32.mrb[0].mxu0
      %v4371 = vadd.f32 0.0, %v4370
      %v4372 = vpop.f32.mrb[0].mxu0
      %4373 = vmatprep.mubr.bf16.mxu0 0
      %4374 = vmatmul.mubr.bf16.gmra.mrb[0].mxu0 %v4219
      %v4375 = vpop.f32.mrb[0].mxu0
      %v4376 = vadd.f32 0.0, %v4375
      %v4377 = vpop.f32.mrb[0].mxu0
      %v4378 = vpop.f32.mrb[0].mxu0
      %v4379 = vadd.f32 0.0, %v4378
      %v4380 = vpop.f32.mrb[0].mxu0
      %4381 = vmatprep.mubr.bf16.mxu0 0
      %4382 = vmatmul.mubr.bf16.gmra.mrb[0].mxu0 %v4220
      %v4383 = vpop.f32.mrb[0].mxu0
      %v4384 = vadd.f32 0.0, %v4383
      %v4385 = vpop.f32.mrb[0].mxu0
      %v4386 = vpop.f32.mrb[0].mxu0
      %v4387 = vadd.f32 0.0, %v4386
      %v4388 = vpop.f32.mrb[0].mxu0
      %4389 = vmatprep.mubr.bf16.mxu0 0
      %4390 = vmatmul.mubr.bf16.gmra.mrb[0].mxu0 %v4221
      %v4391 = vpop.f32.mrb[0].mxu0
      %v4392 = vadd.f32 0.0, %v4391
      %v4393 = vpop.f32.mrb[0].mxu0
      %v4394 = vpop.f32.mrb[0].mxu0
      %v4395 = vadd.f32 0.0, %v4394
      %v4396 = vpop.f32.mrb[0].mxu0
      %4397 = vmatprep.mubr.bf16.mxu0 0
      %4398 = vmatmul.mubr.bf16.gmra.mrb[0].mxu0 %v4222
      %v4399 = vpop.f32.mrb[0].mxu0
      %v4400 = vadd.f32 0.0, %v4399
      %v4401 = vpop.f32.mrb[0].mxu0
      %v4402 = vpop.f32.mrb[0].mxu0
      %v4403 = vadd.f32 0.0, %v4402
      %v4404 = vpop.f32.mrb[0].mxu0
      %4405 = vmatprep.mubr.bf16.mxu0 0
      %4406 = vmatmul.mubr.bf16.gmra.mrb[0].mxu0 %v4223
      %v4407 = vpop.f32.mrb[0].mxu0
      %v4408 = vadd.f32 0.0, %v4407
      %v4409 = vpop.f32.mrb[0].mxu0
      %v4410 = vpop.f32.mrb[0].mxu0
      %v4411 = vadd.f32 0.0, %v4410
      %v4412 = vpop.f32.mrb[0].mxu0
      %4413 = vmatprep.mubr.bf16.mxu0 0
      %4414 = vmatmul.mubr.bf16.gmra.mrb[0].mxu0 %v4224
      %v4415 = vpop.f32.mrb[0].mxu0
      %v4416 = vadd.f32 0.0, %v4415
      %v4417 = vpop.f32.mrb[0].mxu0
      %v4418 = vpop.f32.mrb[0].mxu0
      %v4419 = vadd.f32 0.0, %v4418
      %v4420 = vpop.f32.mrb[0].mxu0
      %4421 = vmatprep.mubr.bf16.mxu0 0
      %4422 = vmatmul.mubr.bf16.gmra.mrb[0].mxu0 %v4225
      %v4423 = vpop.f32.mrb[0].mxu0
      %v4424 = vadd.f32 0.0, %v4423
      %v4425 = vpop.f32.mrb[0].mxu0
      %v4426 = vpop.f32.mrb[0].mxu0
      %v4427 = vadd.f32 0.0, %v4426
      %v4428 = vpop.f32.mrb[0].mxu0
      %4429 = vmatprep.mubr.bf16.mxu0 0
      %4430 = vmatmul.mubr.bf16.gmra.mrb[0].mxu0 %v4226
      %v4431 = vpop.f32.mrb[0].mxu0
      %v4432 = vadd.f32 0.0, %v4431
      %v4433 = vpop.f32.mrb[0].mxu0
      %v4434 = vpop.f32.mrb[0].mxu0
      %v4435 = vadd.f32 0.0, %v4434
      %v4436 = vpop.f32.mrb[0].mxu0
      %4437 = vmatprep.mubr.bf16.mxu0 0
      %4438 = vmatmul.mubr.bf16.gmra.mrb[0].mxu0 %v4227
      %v4439 = vpop.f32.mrb[0].mxu0
      %v4440 = vadd.f32 0.0, %v4439
      %v4441 = vpop.f32.mrb[0].mxu0
      %v4442 = vpop.f32.mrb[0].mxu0
      %v4443 = vadd.f32 0.0, %v4442
      %v4444 = vpop.f32.mrb[0].mxu0
      %4445 = vmatprep.mubr.bf16.mxu0 0
      %4446 = vmatmul.mubr.bf16.gmra.mrb[0].mxu0 %v4228
      %v4447 = vpop.f32.mrb[0].mxu0
      %v4448 = vadd.f32 0.0, %v4447
      %v4449 = vpop.f32.mrb[0].mxu0
      %v4450 = vpop.f32.mrb[0].mxu0
      %v4451 = vadd.f32 0.0, %v4450
      %v4452 = vpop.f32.mrb[0].mxu0
      %4453 = vdwg.mxu0
      %v4454 = vadd.f32 %v3701, %v4328
      %v4455 = vadd.f32 %v3702, %v4331
      %v4456 = vadd.f32 %v3703, %v4336
      %v4457 = vadd.f32 %v3704, %v4339
      %v4458 = vadd.f32 %v3705, %v4344
      %v4459 = vadd.f32 %v3706, %v4347
      %v4460 = vadd.f32 %v3707, %v4352
      %v4461 = vadd.f32 %v3708, %v4355
      %v4462 = vadd.f32 %v3709, %v4360
      %v4463 = vadd.f32 %v3710, %v4363
      %v4464 = vadd.f32 %v3711, %v4368
      %v4465 = vadd.f32 %v3712, %v4371
      %v4466 = vadd.f32 %v3713, %v4376
      %v4467 = vadd.f32 %v3714, %v4379
      %v4468 = vadd.f32 %v3715, %v4384
      %v4469 = vadd.f32 %v3716, %v4387
      %v4470 = vadd.f32 %v3717, %v4392
      %v4471 = vadd.f32 %v3718, %v4395
      %v4472 = vadd.f32 %v3719, %v4400
      %v4473 = vadd.f32 %v3720, %v4403
      %v4474 = vadd.f32 %v3721, %v4408
      %v4475 = vadd.f32 %v3722, %v4411
      %v4476 = vadd.f32 %v3723, %v4416
      %v4477 = vadd.f32 %v3724, %v4419
      %v4478 = vadd.f32 %v3725, %v4424
      %v4479 = vadd.f32 %v3726, %v4427
      %v4480 = vadd.f32 %v3727, %v4432
      %v4481 = vadd.f32 %v3728, %v4435
      %v4482 = vadd.f32 %v3729, %v4440
      %v4483 = vadd.f32 %v3730, %v4443
      %v4484 = vadd.f32 %v3731, %v4448
      %v4485 = vadd.f32 %v3732, %v4451
      %v4486 = vld [vmem:[%s3347] sm:$0xe]
      %v4487 = vld [vmem:[%s3347 + $0xc] sm:$0xe]
      %v4488 = vld [vmem:[%s3347 + $0x18] sm:$0xe]
      %v4489 = vld [vmem:[%s3347 + $0x24] sm:$0xe]
      %v4490 = vld [vmem:[%s3347 + $0x30] sm:$0xe]
      %v4491 = vld [vmem:[%s3347 + $0x3c] sm:$0xe]
      %v4492 = vld [vmem:[%s3347 + $0x48] sm:$0xe]
      %v4493 = vld [vmem:[%s3347 + $0x54] sm:$0xe]
      %v4494 = vld [vmem:[%s3347 + $0x60] sm:$0xe]
      %v4495 = vld [vmem:[%s3347 + $0x6c] sm:$0xe]
      %v4496 = vld [vmem:[%s3347 + $0x78] sm:$0xe]
      %v4497 = vld [vmem:[%s3347 + $0x84] sm:$0xe]
      %v4498 = vld [vmem:[%s3347 + $0x90] sm:$0xe]
      %v4499 = vld [vmem:[%s3347 + $0x9c] sm:$0xe]
      %v4500 = vld [vmem:[%s3347 + $0xa8] sm:$0xe]
      %v4501 = vld [vmem:[%s3347 + $0xb4] sm:$0xe]
      %v4550 = vrot.slane %v4486, 5
      %v4551 = vrot.slane %v4550, 4
      %v4552 = vrot.slane %v3734, 5
      %v4553 = vsel %vm1277, %v4551, %v4552
      %v4554 = vrot.slane %v4552, 4
      %v4555 = vrot.slane %v3735, 5
      %v4556 = vsel %vm1277, %v4554, %v4555
      %v4557 = vrot.slane %v4487, 5
      %v4558 = vrot.slane %v4557, 4
      %v4559 = vrot.slane %v3737, 5
      %v4560 = vsel %vm1277, %v4558, %v4559
      %v4561 = vrot.slane %v4559, 4
      %v4562 = vrot.slane %v3738, 5
      %v4563 = vsel %vm1277, %v4561, %v4562
      %v4564 = vrot.slane %v4488, 5
      %v4565 = vrot.slane %v4564, 4
      %v4566 = vrot.slane %v3740, 5
      %v4567 = vsel %vm1277, %v4565, %v4566
      %v4568 = vrot.slane %v4566, 4
      %v4569 = vrot.slane %v3741, 5
      %v4570 = vsel %vm1277, %v4568, %v4569
      %v4571 = vrot.slane %v4489, 5
      %v4572 = vrot.slane %v4571, 4
      %v4573 = vrot.slane %v3743, 5
      %v4574 = vsel %vm1277, %v4572, %v4573
      %v4575 = vrot.slane %v4573, 4
      %v4576 = vrot.slane %v3744, 5
      %v4577 = vsel %vm1277, %v4575, %v4576
      %v4578 = vrot.slane %v4490, 5
      %v4579 = vrot.slane %v4578, 4
      %v4580 = vrot.slane %v3746, 5
      %v4581 = vsel %vm1277, %v4579, %v4580
      %v4582 = vrot.slane %v4580, 4
      %v4583 = vrot.slane %v3747, 5
      %v4584 = vsel %vm1277, %v4582, %v4583
      %v4585 = vrot.slane %v4491, 5
      %v4586 = vrot.slane %v4585, 4
      %v4587 = vrot.slane %v3749, 5
      %v4588 = vsel %vm1277, %v4586, %v4587
      %v4589 = vrot.slane %v4587, 4
      %v4590 = vrot.slane %v3750, 5
      %v4591 = vsel %vm1277, %v4589, %v4590
      %v4592 = vrot.slane %v4492, 5
      %v4593 = vrot.slane %v4592, 4
      %v4594 = vrot.slane %v3752, 5
      %v4595 = vsel %vm1277, %v4593, %v4594
      %v4596 = vrot.slane %v4594, 4
      %v4597 = vrot.slane %v3753, 5
      %v4598 = vsel %vm1277, %v4596, %v4597
      %v4599 = vrot.slane %v4493, 5
      %v4600 = vrot.slane %v4599, 4
      %v4601 = vrot.slane %v3755, 5
      %v4602 = vsel %vm1277, %v4600, %v4601
      %v4603 = vrot.slane %v4601, 4
      %v4604 = vrot.slane %v3756, 5
      %v4605 = vsel %vm1277, %v4603, %v4604
      %v4606 = vrot.slane %v4494, 5
      %v4607 = vrot.slane %v4606, 4
      %v4608 = vrot.slane %v3758, 5
      %v4609 = vsel %vm1277, %v4607, %v4608
      %v4610 = vrot.slane %v4608, 4
      %v4611 = vrot.slane %v3759, 5
      %v4612 = vsel %vm1277, %v4610, %v4611
      %v4613 = vrot.slane %v4495, 5
      %v4614 = vrot.slane %v4613, 4
      %v4615 = vrot.slane %v3761, 5
      %v4616 = vsel %vm1277, %v4614, %v4615
      %v4617 = vrot.slane %v4615, 4
      %v4618 = vrot.slane %v3762, 5
      %v4619 = vsel %vm1277, %v4617, %v4618
      %v4620 = vrot.slane %v4496, 5
      %v4621 = vrot.slane %v4620, 4
      %v4622 = vrot.slane %v3764, 5
      %v4623 = vsel %vm1277, %v4621, %v4622
      %v4624 = vrot.slane %v4622, 4
      %v4625 = vrot.slane %v3765, 5
      %v4626 = vsel %vm1277, %v4624, %v4625
      %v4627 = vrot.slane %v4497, 5
      %v4628 = vrot.slane %v4627, 4
      %v4629 = vrot.slane %v3767, 5
      %v4630 = vsel %vm1277, %v4628, %v4629
      %v4631 = vrot.slane %v4629, 4
      %v4632 = vrot.slane %v3768, 5
      %v4633 = vsel %vm1277, %v4631, %v4632
      %v4634 = vrot.slane %v4498, 5
      %v4635 = vrot.slane %v4634, 4
      %v4636 = vrot.slane %v3770, 5
      %v4637 = vsel %vm1277, %v4635, %v4636
      %v4638 = vrot.slane %v4636, 4
      %v4639 = vrot.slane %v3771, 5
      %v4640 = vsel %vm1277, %v4638, %v4639
      %v4641 = vrot.slane %v4499, 5
      %v4642 = vrot.slane %v4641, 4
      %v4643 = vrot.slane %v3773, 5
      %v4644 = vsel %vm1277, %v4642, %v4643
      %v4645 = vrot.slane %v4643, 4
      %v4646 = vrot.slane %v3774, 5
      %v4647 = vsel %vm1277, %v4645, %v4646
      %v4648 = vrot.slane %v4500, 5
      %v4649 = vrot.slane %v4648, 4
      %v4650 = vrot.slane %v3776, 5
      %v4651 = vsel %vm1277, %v4649, %v4650
      %v4652 = vrot.slane %v4650, 4
      %v4653 = vrot.slane %v3777, 5
      %v4654 = vsel %vm1277, %v4652, %v4653
      %v4655 = vrot.slane %v4501, 5
      %v4656 = vrot.slane %v4655, 4
      %v4657 = vrot.slane %v3779, 5
      %v4658 = vsel %vm1277, %v4656, %v4657
      %v4659 = vrot.slane %v4657, 4
      %v4660 = vrot.slane %v3780, 5
      %v4661 = vsel %vm1277, %v4659, %v4660
      %v4662 = vld [vmem:[%s172 + $0x200] sm:$0xf]
      %v4663 = vld [vmem:[%s172 + $0x204] sm:$0xf]
      %v4664 = vld [vmem:[%s172 + $0x208] sm:$0xf]
      %v4665 = vld [vmem:[%s172 + $0x20c] sm:$0xf]
      %v4666 = vld [vmem:[%s172 + $0x210] sm:$0xf]
      %v4667 = vld [vmem:[%s172 + $0x214] sm:$0xf]
      %v4668 = vld [vmem:[%s172 + $0x218] sm:$0xf]
      %v4669 = vld [vmem:[%s172 + $0x21c] sm:$0xf]
      %v4670 = vld [vmem:[%s172 + $0x220] sm:$0xf]
      %v4671 = vld [vmem:[%s172 + $0x224] sm:$0xf]
      %v4672 = vld [vmem:[%s172 + $0x228] sm:$0xf]
      %v4673 = vld [vmem:[%s172 + $0x22c] sm:$0xf]
      %v4674 = vld [vmem:[%s172 + $0x230] sm:$0xf]
      %v4675 = vld [vmem:[%s172 + $0x234] sm:$0xf]
      %v4676 = vld [vmem:[%s172 + $0x238] sm:$0xf]
      %v4677 = vld [vmem:[%s172 + $0x23c] sm:$0xf]
      %v4678 = vunpack.c.l.b16 %v4553
      %v4679 = vunpack.c.l.b16 %v4556
      %v4680 = vunpack.c.l.b16 %v4560
      %v4681 = vunpack.c.l.b16 %v4563
      %v4682 = vunpack.c.l.b16 %v4567
      %v4683 = vunpack.c.l.b16 %v4570
      %v4684 = vunpack.c.l.b16 %v4574
      %v4685 = vunpack.c.l.b16 %v4577
      %v4686 = vunpack.c.l.b16 %v4581
      %v4687 = vunpack.c.l.b16 %v4584
      %v4688 = vunpack.c.l.b16 %v4588
      %v4689 = vunpack.c.l.b16 %v4591
      %v4690 = vunpack.c.l.b16 %v4595
      %v4691 = vunpack.c.l.b16 %v4598
      %v4692 = vunpack.c.l.b16 %v4602
      %v4693 = vunpack.c.l.b16 %v4605
      %v4694 = vunpack.c.l.b16 %v4609
      %v4695 = vunpack.c.l.b16 %v4612
      %v4696 = vunpack.c.l.b16 %v4616
      %v4697 = vunpack.c.l.b16 %v4619
      %v4698 = vunpack.c.l.b16 %v4623
      %v4699 = vunpack.c.l.b16 %v4626
      %v4700 = vunpack.c.l.b16 %v4630
      %v4701 = vunpack.c.l.b16 %v4633
      %v4702 = vunpack.c.l.b16 %v4637
      %v4703 = vunpack.c.l.b16 %v4640
      %v4704 = vunpack.c.l.b16 %v4644
      %v4705 = vunpack.c.l.b16 %v4647
      %v4706 = vunpack.c.l.b16 %v4651
      %v4707 = vunpack.c.l.b16 %v4654
      %v4708 = vunpack.c.l.b16 %v4658
      %v4709 = vunpack.c.l.b16 %v4661
      %v4710 = vpack.c.b16 %v4679, %v4678
      %v4711 = vpack.c.b16 %v4681, %v4680
      %v4712 = vpack.c.b16 %v4683, %v4682
      %v4713 = vpack.c.b16 %v4685, %v4684
      %v4714 = vpack.c.b16 %v4687, %v4686
      %v4715 = vpack.c.b16 %v4689, %v4688
      %v4716 = vpack.c.b16 %v4691, %v4690
      %v4717 = vpack.c.b16 %v4693, %v4692
      %v4718 = vpack.c.b16 %v4695, %v4694
      %v4719 = vpack.c.b16 %v4697, %v4696
      %v4720 = vpack.c.b16 %v4699, %v4698
      %v4721 = vpack.c.b16 %v4701, %v4700
      %v4722 = vpack.c.b16 %v4703, %v4702
      %v4723 = vpack.c.b16 %v4705, %v4704
      %v4724 = vpack.c.b16 %v4707, %v4706
      %v4725 = vpack.c.b16 %v4709, %v4708
      %v4758 = vunpack.c.l.b16 %v4662
      %v4759 = vunpack.c.l.b16 %v4663
      %v4760 = vunpack.c.l.b16 %v4664
      %v4761 = vunpack.c.l.b16 %v4665
      %v4762 = vunpack.c.l.b16 %v4666
      %v4763 = vunpack.c.l.b16 %v4667
      %v4764 = vunpack.c.l.b16 %v4668
      %v4765 = vunpack.c.l.b16 %v4669
      %v4766 = vunpack.c.l.b16 %v4670
      %v4767 = vunpack.c.l.b16 %v4671
      %v4768 = vunpack.c.l.b16 %v4672
      %v4769 = vunpack.c.l.b16 %v4673
      %v4770 = vunpack.c.l.b16 %v4674
      %v4771 = vunpack.c.l.b16 %v4675
      %v4772 = vunpack.c.l.b16 %v4676
      %v4773 = vunpack.c.l.b16 %v4677
      %v4774 = vpack.c.b16 %v4759, %v4758
      %v4775 = vpack.c.b16 %v4761, %v4760
      %v4776 = vpack.c.b16 %v4763, %v4762
      %v4777 = vpack.c.b16 %v4765, %v4764
      %v4778 = vpack.c.b16 %v4767, %v4766
      %v4779 = vpack.c.b16 %v4769, %v4768
      %v4780 = vpack.c.b16 %v4771, %v4770
      %v4781 = vpack.c.b16 %v4773, %v4772
      %4790 = vmatprep.subr.bf16.mxu0 0
      %4791 = vmatpush1.bf16.msra.mxu0 %v4774
      %4792 = vmatprep.subr.bf16.mxu0 0
      %4793 = vmatpush1.bf16.msra.mxu0 %v4775
      %4794 = vmatprep.subr.bf16.mxu0 0
      %4795 = vmatpush1.bf16.msra.mxu0 %v4776
      %4796 = vmatprep.subr.bf16.mxu0 0
      %4797 = vmatpush1.bf16.msra.mxu0 %v4777
      %4798 = vmatprep.subr.bf16.mxu0 0
      %4799 = vmatpush1.bf16.msra.mxu0 %v4778
      %4800 = vmatprep.subr.bf16.mxu0 0
      %4801 = vmatpush1.bf16.msra.mxu0 %v4779
      %4802 = vmatprep.subr.bf16.mxu0 0
      %4803 = vmatpush1.bf16.msra.mxu0 %v4780
      %4804 = vmatprep.subr.bf16.mxu0 0
      %4805 = vmatpush1.bf16.msra.mxu0 %v4781
      %4806 = vmatprep.subr.bf16.mxu0 0
      %4807 = vmatpush1.bf16.msra.mxu0 0
      %4808 = vmatprep.subr.bf16.mxu0 0
      %4809 = vmatpush1.bf16.msra.mxu0 0
      %4810 = vmatprep.subr.bf16.mxu0 0
      %4811 = vmatpush1.bf16.msra.mxu0 0
      %4812 = vmatprep.subr.bf16.mxu0 0
      %4813 = vmatpush1.bf16.msra.mxu0 0
      %4814 = vmatprep.subr.bf16.mxu0 0
      %4815 = vmatpush1.bf16.msra.mxu0 0
      %4816 = vmatprep.subr.bf16.mxu0 0
      %4817 = vmatpush1.bf16.msra.mxu0 0
      %4818 = vmatprep.subr.bf16.mxu0 0
      %4819 = vmatpush1.bf16.msra.mxu0 0
      %4820 = vmatprep.subr.bf16.mxu0 0
      %4821 = vmatpush1.bf16.msra.mxu0 0
      %4822 = vmatprep.mubr.bf16.mxu0 0
      %4823 = vmatmul.mubr.bf16.gmra.mrb[0].mxu0 %v4710
      %v4824 = vpop.f32.mrb[0].mxu0
      %v4825 = vadd.f32 0.0, %v4824
      %v4826 = vpop.f32.mrb[0].mxu0
      %v4827 = vpop.f32.mrb[0].mxu0
      %v4828 = vadd.f32 0.0, %v4827
      %v4829 = vpop.f32.mrb[0].mxu0
      %4830 = vmatprep.mubr.bf16.mxu0 0
      %4831 = vmatmul.mubr.bf16.gmra.mrb[0].mxu0 %v4711
      %v4832 = vpop.f32.mrb[0].mxu0
      %v4833 = vadd.f32 0.0, %v4832
      %v4834 = vpop.f32.mrb[0].mxu0
      %v4835 = vpop.f32.mrb[0].mxu0
      %v4836 = vadd.f32 0.0, %v4835
      %v4837 = vpop.f32.mrb[0].mxu0
      %4838 = vmatprep.mubr.bf16.mxu0 0
      %4839 = vmatmul.mubr.bf16.gmra.mrb[0].mxu0 %v4712
      %v4840 = vpop.f32.mrb[0].mxu0
      %v4841 = vadd.f32 0.0, %v4840
      %v4842 = vpop.f32.mrb[0].mxu0
      %v4843 = vpop.f32.mrb[0].mxu0
      %v4844 = vadd.f32 0.0, %v4843
      %v4845 = vpop.f32.mrb[0].mxu0
      %4846 = vmatprep.mubr.bf16.mxu0 0
      %4847 = vmatmul.mubr.bf16.gmra.mrb[0].mxu0 %v4713
      %v4848 = vpop.f32.mrb[0].mxu0
      %v4849 = vadd.f32 0.0, %v4848
      %v4850 = vpop.f32.mrb[0].mxu0
      %v4851 = vpop.f32.mrb[0].mxu0
      %v4852 = vadd.f32 0.0, %v4851
      %v4853 = vpop.f32.mrb[0].mxu0
      %4854 = vmatprep.mubr.bf16.mxu0 0
      %4855 = vmatmul.mubr.bf16.gmra.mrb[0].mxu0 %v4714
      %v4856 = vpop.f32.mrb[0].mxu0
      %v4857 = vadd.f32 0.0, %v4856
      %v4858 = vpop.f32.mrb[0].mxu0
      %v4859 = vpop.f32.mrb[0].mxu0
      %v4860 = vadd.f32 0.0, %v4859
      %v4861 = vpop.f32.mrb[0].mxu0
      %4862 = vmatprep.mubr.bf16.mxu0 0
      %4863 = vmatmul.mubr.bf16.gmra.mrb[0].mxu0 %v4715
      %v4864 = vpop.f32.mrb[0].mxu0
      %v4865 = vadd.f32 0.0, %v4864
      %v4866 = vpop.f32.mrb[0].mxu0
      %v4867 = vpop.f32.mrb[0].mxu0
      %v4868 = vadd.f32 0.0, %v4867
      %v4869 = vpop.f32.mrb[0].mxu0
      %4870 = vmatprep.mubr.bf16.mxu0 0
      %4871 = vmatmul.mubr.bf16.gmra.mrb[0].mxu0 %v4716
      %v4872 = vpop.f32.mrb[0].mxu0
      %v4873 = vadd.f32 0.0, %v4872
      %v4874 = vpop.f32.mrb[0].mxu0
      %v4875 = vpop.f32.mrb[0].mxu0
      %v4876 = vadd.f32 0.0, %v4875
      %v4877 = vpop.f32.mrb[0].mxu0
      %4878 = vmatprep.mubr.bf16.mxu0 0
      %4879 = vmatmul.mubr.bf16.gmra.mrb[0].mxu0 %v4717
      %v4880 = vpop.f32.mrb[0].mxu0
      %v4881 = vadd.f32 0.0, %v4880
      %v4882 = vpop.f32.mrb[0].mxu0
      %v4883 = vpop.f32.mrb[0].mxu0
      %v4884 = vadd.f32 0.0, %v4883
      %v4885 = vpop.f32.mrb[0].mxu0
      %4886 = vmatprep.mubr.bf16.mxu0 0
      %4887 = vmatmul.mubr.bf16.gmra.mrb[0].mxu0 %v4718
      %v4888 = vpop.f32.mrb[0].mxu0
      %v4889 = vadd.f32 0.0, %v4888
      %v4890 = vpop.f32.mrb[0].mxu0
      %v4891 = vpop.f32.mrb[0].mxu0
      %v4892 = vadd.f32 0.0, %v4891
      %v4893 = vpop.f32.mrb[0].mxu0
      %4894 = vmatprep.mubr.bf16.mxu0 0
      %4895 = vmatmul.mubr.bf16.gmra.mrb[0].mxu0 %v4719
      %v4896 = vpop.f32.mrb[0].mxu0
      %v4897 = vadd.f32 0.0, %v4896
      %v4898 = vpop.f32.mrb[0].mxu0
      %v4899 = vpop.f32.mrb[0].mxu0
      %v4900 = vadd.f32 0.0, %v4899
      %v4901 = vpop.f32.mrb[0].mxu0
      %4902 = vmatprep.mubr.bf16.mxu0 0
      %4903 = vmatmul.mubr.bf16.gmra.mrb[0].mxu0 %v4720
      %v4904 = vpop.f32.mrb[0].mxu0
      %v4905 = vadd.f32 0.0, %v4904
      %v4906 = vpop.f32.mrb[0].mxu0
      %v4907 = vpop.f32.mrb[0].mxu0
      %v4908 = vadd.f32 0.0, %v4907
      %v4909 = vpop.f32.mrb[0].mxu0
      %4910 = vmatprep.mubr.bf16.mxu0 0
      %4911 = vmatmul.mubr.bf16.gmra.mrb[0].mxu0 %v4721
      %v4912 = vpop.f32.mrb[0].mxu0
      %v4913 = vadd.f32 0.0, %v4912
      %v4914 = vpop.f32.mrb[0].mxu0
      %v4915 = vpop.f32.mrb[0].mxu0
      %v4916 = vadd.f32 0.0, %v4915
      %v4917 = vpop.f32.mrb[0].mxu0
      %4918 = vmatprep.mubr.bf16.mxu0 0
      %4919 = vmatmul.mubr.bf16.gmra.mrb[0].mxu0 %v4722
      %v4920 = vpop.f32.mrb[0].mxu0
      %v4921 = vadd.f32 0.0, %v4920
      %v4922 = vpop.f32.mrb[0].mxu0
      %v4923 = vpop.f32.mrb[0].mxu0
      %v4924 = vadd.f32 0.0, %v4923
      %v4925 = vpop.f32.mrb[0].mxu0
      %4926 = vmatprep.mubr.bf16.mxu0 0
      %4927 = vmatmul.mubr.bf16.gmra.mrb[0].mxu0 %v4723
      %v4928 = vpop.f32.mrb[0].mxu0
      %v4929 = vadd.f32 0.0, %v4928
      %v4930 = vpop.f32.mrb[0].mxu0
      %v4931 = vpop.f32.mrb[0].mxu0
      %v4932 = vadd.f32 0.0, %v4931
      %v4933 = vpop.f32.mrb[0].mxu0
      %4934 = vmatprep.mubr.bf16.mxu0 0
      %4935 = vmatmul.mubr.bf16.gmra.mrb[0].mxu0 %v4724
      %v4936 = vpop.f32.mrb[0].mxu0
      %v4937 = vadd.f32 0.0, %v4936
      %v4938 = vpop.f32.mrb[0].mxu0
      %v4939 = vpop.f32.mrb[0].mxu0
      %v4940 = vadd.f32 0.0, %v4939
      %v4941 = vpop.f32.mrb[0].mxu0
      %4942 = vmatprep.mubr.bf16.mxu0 0
      %4943 = vmatmul.mubr.bf16.gmra.mrb[0].mxu0 %v4725
      %v4944 = vpop.f32.mrb[0].mxu0
      %v4945 = vadd.f32 0.0, %v4944
      %v4946 = vpop.f32.mrb[0].mxu0
      %v4947 = vpop.f32.mrb[0].mxu0
      %v4948 = vadd.f32 0.0, %v4947
      %v4949 = vpop.f32.mrb[0].mxu0
      %4950 = vdwg.mxu0
      %v4951 = vadd.f32 %v4454, %v4825
      %v4952 = vadd.f32 %v4455, %v4828
      %v4953 = vadd.f32 %v4456, %v4833
      %v4954 = vadd.f32 %v4457, %v4836
      %v4955 = vadd.f32 %v4458, %v4841
      %v4956 = vadd.f32 %v4459, %v4844
      %v4957 = vadd.f32 %v4460, %v4849
      %v4958 = vadd.f32 %v4461, %v4852
      %v4959 = vadd.f32 %v4462, %v4857
      %v4960 = vadd.f32 %v4463, %v4860
      %v4961 = vadd.f32 %v4464, %v4865
      %v4962 = vadd.f32 %v4465, %v4868
      %v4963 = vadd.f32 %v4466, %v4873
      %v4964 = vadd.f32 %v4467, %v4876
      %v4965 = vadd.f32 %v4468, %v4881
      %v4966 = vadd.f32 %v4469, %v4884
      %v4967 = vadd.f32 %v4470, %v4889
      %v4968 = vadd.f32 %v4471, %v4892
      %v4969 = vadd.f32 %v4472, %v4897
      %v4970 = vadd.f32 %v4473, %v4900
      %v4971 = vadd.f32 %v4474, %v4905
      %v4972 = vadd.f32 %v4475, %v4908
      %v4973 = vadd.f32 %v4476, %v4913
      %v4974 = vadd.f32 %v4477, %v4916
      %v4975 = vadd.f32 %v4478, %v4921
      %v4976 = vadd.f32 %v4479, %v4924
      %v4977 = vadd.f32 %v4480, %v4929
      %v4978 = vadd.f32 %v4481, %v4932
      %v4979 = vadd.f32 %v4482, %v4937
      %v4980 = vadd.f32 %v4483, %v4940
      %v4981 = vadd.f32 %v4484, %v4945
      %v4982 = vadd.f32 %v4485, %v4948
      %4983 = vst [vmem:[%s180] sm:$0xff] %v4951
      %4984 = vst [vmem:[%s180 + $0x8] sm:$0xff] %v4952
      %4985 = vst [vmem:[%s180 + $0x10] sm:$0xff] %v4953
      %4986 = vst [vmem:[%s180 + $0x18] sm:$0xff] %v4954
      %4987 = vst [vmem:[%s180 + $0x20] sm:$0xff] %v4955
      %4988 = vst [vmem:[%s180 + $0x28] sm:$0xff] %v4956
      %4989 = vst [vmem:[%s180 + $0x30] sm:$0xff] %v4957
      %4990 = vst [vmem:[%s180 + $0x38] sm:$0xff] %v4958
      %4991 = vst [vmem:[%s180 + $0x40] sm:$0xff] %v4959
      %4992 = vst [vmem:[%s180 + $0x48] sm:$0xff] %v4960
      %4993 = vst [vmem:[%s180 + $0x50] sm:$0xff] %v4961
      %4994 = vst [vmem:[%s180 + $0x58] sm:$0xff] %v4962
      %4995 = vst [vmem:[%s180 + $0x60] sm:$0xff] %v4963
      %4996 = vst [vmem:[%s180 + $0x68] sm:$0xff] %v4964
      %4997 = vst [vmem:[%s180 + $0x70] sm:$0xff] %v4965
      %4998 = vst [vmem:[%s180 + $0x78] sm:$0xff] %v4966
      %4999 = vst [vmem:[%s180 + $0x80] sm:$0xff] %v4967
      %5000 = vst [vmem:[%s180 + $0x88] sm:$0xff] %v4968
      %5001 = vst [vmem:[%s180 + $0x90] sm:$0xff] %v4969
      %5002 = vst [vmem:[%s180 + $0x98] sm:$0xff] %v4970
      %5003 = vst [vmem:[%s180 + $0xa0] sm:$0xff] %v4971
      %5004 = vst [vmem:[%s180 + $0xa8] sm:$0xff] %v4972
      %5005 = vst [vmem:[%s180 + $0xb0] sm:$0xff] %v4973
      %5006 = vst [vmem:[%s180 + $0xb8] sm:$0xff] %v4974
      %5007 = vst [vmem:[%s180 + $0xc0] sm:$0xff] %v4975
      %5008 = vst [vmem:[%s180 + $0xc8] sm:$0xff] %v4976
      %5009 = vst [vmem:[%s180 + $0xd0] sm:$0xff] %v4977
      %5010 = vst [vmem:[%s180 + $0xd8] sm:$0xff] %v4978
      %5011 = vst [vmem:[%s180 + $0xe0] sm:$0xff] %v4979
      %5012 = vst [vmem:[%s180 + $0xe8] sm:$0xff] %v4980
      %5013 = vst [vmem:[%s180 + $0xf0] sm:$0xff] %v4981
      %5014 = vst [vmem:[%s180 + $0xf8] sm:$0xff] %v4982
      %p5015 = scmp.lt.s32.totalorder %s17, 1
      %s5016 = scalar_select %p5015, %s17, 1
      %p5017 = scmp.lt.s32.totalorder %s18, 0
      %s5018 = scalar_select %p5017, %s18, 0
      %s5019 = smul.addr %s5016, 32
      %s5020 = sadd.s32 %s5018, %s5019
      %s5021 = smul.addr %s5020, 8
      %s5022 = scalar_lea.vmem %s2, %s5021
      // Predicated region
      $region29: #{bottleneck_forward.15} parent=27 // pred_check
        %p5023 = pneg %p97
      $region30: #{bottleneck_forward.15} parent=27 // pred_check_branch
        %5025 = sbr.rel (%p5023) target = $region32
      $region31: #{bottleneck_forward.15} parent=27 // pred_region
        _
      $region32: #{bottleneck_forward.15} parent=27 // pred_fallthru
        _
    $region28: #{bottleneck_forward.15} parent=5 // pred_fallthru
      _
    %p5026 = scmp.le.s32.totalorder 2, %s8
    // Predicated region
    $region33: #{bottleneck_forward.15} parent=5 // pred_check
      %p5027 = pneg %p5026
    $region34: #{bottleneck_forward.15} parent=5 // pred_check_branch
      %5029 = sbr.rel (%p5027) target = $region36
    $region35: #{bottleneck_forward.15} parent=5 // pred_region
      %s5030 = ssub.s32 %s8, 2
      // Predicated region
      $region37: #{bottleneck_forward.15} parent=35 // pred_check
        %p5031 = pneg %p103
      $region38: #{bottleneck_forward.15} parent=35 // pred_check_branch
        %5033 = sbr.rel (%p5031) target = $region40
      $region39: #{bottleneck_forward.15} parent=35 // pred_region
        %p5034 = scmp.lt.s32.totalorder %s19, 1
        %s5035 = scalar_select %p5034, %s19, 1
        %p5036 = scmp.lt.s32.totalorder %s20, 0
        %s5037 = scalar_select %p5036, %s20, 0
        %s5038 = smul.addr %s5035, 32
        %s5039 = sadd.s32 %s5037, %s5038
        %s5040 = smul.addr %s5039, 8
        %s5041 = scalar_lea.vmem %s2, %s5040
      $region40: #{bottleneck_forward.15} parent=35 // pred_fallthru
        _
    $region36: #{bottleneck_forward.15} parent=5 // pred_fallthru
      _
  $region6: #{bottleneck_forward.15} parent=0 // loop_footer
    %s12 = sadd.s32 1, %s8
  $region7: #{bottleneck_forward.15} parent=0 // loop_footer_branch
    %7 = sbr.rel target = $region3
  $region8: #{bottleneck_forward.15} parent=0 // loop_exit
    _

</llo_original>
